<compile_context>
chip_gen: v5e
topology: v5e:2x2
jax: 0.10.0
libtpu: 0.0.40
codegen_flags: <defaults>
</compile_context>

<pallas_src>
import functools
import math

import jax
import jax.numpy as jnp
from jax.experimental import pallas as pl
from jax.experimental.pallas import tpu as pltpu

# ---------------- small synthetic config (stands in for ViT-base / GPT2 @ 768) -------
BATCH      = 4
CHANNELS   = 3
IMG        = 16
PATCH      = 8
HIDDEN     = 32          # shared ViT / VisualBert / GPT2 hidden size (768 in real model)
N_HEADS    = 4
HEAD_DIM   = HIDDEN // N_HEADS
MLP        = 4 * HIDDEN
VIT_LAYERS = 2
GPT_LAYERS = 2
VOCAB      = 64
N_POS      = 64
SEQ_Q      = 8
INTER      = 64          # stands in for the 512-dim intermediate layer
NUM_CLASS  = 12
NCLS_PAD   = 128         # classifier output padded to a lane-dense width (sliced outside)
NB         = 2 if BATCH % 2 == 0 else 1   # batch tiles ("parallel" grid axis)
NEG        = -1e9        # additive mask value (stand-in for finfo.min)
BF16       = jnp.bfloat16

# ================================ shared in-kernel helpers ============================

def _layer_norm(x, g, b, eps):
    mu = jnp.mean(x, axis=-1, keepdims=True)
    var = jnp.mean(jnp.square(x - mu), axis=-1, keepdims=True)
    return (x - mu) * jax.lax.rsqrt(var + eps) * g + b


def _gelu(x, kind):
    if kind == "gelu_erf":            # ViT exact GELU
        return 0.5 * x * (1.0 + jax.lax.erf(x * (1.0 / math.sqrt(2.0))))
    c = math.sqrt(2.0 / math.pi)      # GPT2 gelu_new (tanh approximation)
    return 0.5 * x * (1.0 + jnp.tanh(c * (x + 0.044715 * x * x * x)))


def _attention(q, k, v, bias, n_heads):
    """Per-sample multi-head attention.  q/k/v: (T, H) f32 (score scale already folded
    into the Q weights); bias: (T, T) additive mask or None.  Returns (T, H) f32."""
    T, H = q.shape
    dh = H // n_heads
    heads = []
    for h in range(n_heads):
        sl = slice(h * dh, (h + 1) * dh)
        s = jax.lax.dot_general(q[:, sl].astype(BF16), k[:, sl].astype(BF16),
                                (((1,), (1,)), ((), ())),
                                preferred_element_type=jnp.float32)       # (T, T)
        if bias is not None:
            s = s + bias
        s = s - jnp.max(s, axis=-1, keepdims=True)
        p = jnp.exp(s)
        p = p * pl.reciprocal(jnp.sum(p, axis=-1, keepdims=True), approx=True)
        heads.append(jnp.dot(p.astype(BF16), v[:, sl].astype(BF16),
                             preferred_element_type=jnp.float32))          # (T, dh)
    # concat_h(ov_h) feeds ONE full-depth (BT*T,H)@(H,H) output projection in the caller
    return jnp.concatenate(heads, axis=-1)                                 # (T, H)


def _pre_ln_block(x, bias, ln1g, ln1b, wqkv, bqkv, wo, bo,
                  ln2g, ln2b, wfc, bfc, wpr, bpr, *, eps, act, n_heads):
    """One pre-LN transformer block over a (BT, T, H) batch tile.
    All matmuls are lane-dense and run over M = BT*T rows (fused QKV, single W_o,
    fused fc+GELU+proj)."""
    BT, T, H = x.shape
    x2 = x.reshape(BT * T, H)

    # ---------------- attention ----------------
    h1 = _layer_norm(x2, ln1g, ln1b, eps).astype(BF16)
    qkv = jnp.dot(h1, wqkv, preferred_element_type=jnp.float32) + bqkv     # (BT*T, 3H)
    q = qkv[:, :H].reshape(BT, T, H)
    k = qkv[:, H:2 * H].reshape(BT, T, H)
    v = qkv[:, 2 * H:].reshape(BT, T, H)
    ctx = [_attention(q[b], k[b], v[b],
                      None if bias is None else bias[b], n_heads)
           for b in range(BT)]
    ctx = ctx[0] if BT == 1 else jnp.concatenate(ctx, axis=0)              # (BT*T, H)
    attn = jnp.dot(ctx.astype(BF16), wo, preferred_element_type=jnp.float32) + bo
    x2 = x2 + attn

    # ---------------- MLP (fused fc + GELU + proj) ----------------
    h2 = _layer_norm(x2, ln2g, ln2b, eps).astype(BF16)
    ff = jnp.dot(h2, wfc, preferred_element_type=jnp.float32) + bfc
    ff = _gelu(ff, act)
    ff = jnp.dot(ff.astype(BF16), wpr, preferred_element_type=jnp.float32) + bpr
    return (x2 + ff).reshape(BT, T, H)


# ================================ Pallas kernels ======================================

def _vit_stack_kernel(eps, act, n_heads,
                      x_ref,
                      ln1g, ln1b, wqkv, bqkv, wo, bo, ln2g, ln2b, wfc, bfc, wpr, bpr,
                      lnfg, lnfb, vpw, vpb,
                      o_ref):
    """grid=(NB, L).  o_ref doubles as the VMEM-resident residual carry across the layer
    axis (its block index ignores l); ViT final LayerNorm + VisualBert visual_projection
    run as an epilogue at l == L-1."""
    l = pl.program_id(1)
    L = pl.num_programs(1)
    BT, T, H = o_ref.shape

    @pl.when(l == 0)
    def _():
        o_ref[...] = x_ref[...]

    y = _pre_ln_block(o_ref[...], None,
                      ln1g[0], ln1b[0], wqkv[0], bqkv[0], wo[0], bo[0],
                      ln2g[0], ln2b[0], wfc[0], bfc[0], wpr[0], bpr[0],
                      eps=eps, act=act, n_heads=n_heads)

    @pl.when(l < L - 1)
    def _():
        o_ref[...] = y

    @pl.when(l == L - 1)
    def _():
        hn = _layer_norm(y.reshape(BT * T, H), lnfg[...], lnfb[...], eps)
        ve = jnp.dot(hn.astype(BF16), vpw[...],
                     preferred_element_type=jnp.float32) + vpb[...]
        o_ref[...] = ve.reshape(BT, T, H)


def _gpt_stack_kernel(eps, act, n_heads, bn_eps,
                      x_ref, m_ref,
                      ln1g, ln1b, wqkv, bqkv, wo, bo, ln2g, ln2b, wfc, bfc, wpr, bpr,
                      lnfg, lnfb, w1, b1, bng, bnb, bnm, bnv, w2, b2,
                      o_ref, carry_ref, bias_ref):
    """grid=(NB, L).  Residual stream in a VMEM scratch; the causal+padding additive bias
    is built ONCE per batch tile at l==0; GPT2 final LN -> mean pool -> intermediate
    Linear -> BatchNorm1d(eval) -> classifier run as the l == L-1 epilogue."""
    l = pl.program_id(1)
    L = pl.num_programs(1)
    BT, T, H = carry_ref.shape

    @pl.when(l == 0)
    def _():
        carry_ref[...] = x_ref[...]
        key_ok = m_ref[...] > 0.5                                    # (BT, 1, T)
        rows = jax.lax.broadcasted_iota(jnp.int32, (T, T), 0)
        cols = jax.lax.broadcasted_iota(jnp.int32, (T, T), 1)
        allowed = jnp.logical_and((cols <= rows)[None], key_ok)      # (BT, T, T)
        bias_ref[...] = jnp.where(allowed, 0.0, NEG)

    y = _pre_ln_block(carry_ref[...], bias_ref[...],
                      ln1g[0], ln1b[0], wqkv[0], bqkv[0], wo[0], bo[0],
                      ln2g[0], ln2b[0], wfc[0], bfc[0], wpr[0], bpr[0],
                      eps=eps, act=act, n_heads=n_heads)

    @pl.when(l < L - 1)
    def _():
        carry_ref[...] = y

    @pl.when(l == L - 1)
    def _():
        hn = _layer_norm(y.reshape(BT * T, H), lnfg[...], lnfb[...], eps)
        pooled = jnp.mean(hn.reshape(BT, T, H), axis=1)              # (BT, H) mean pool
        z = jnp.dot(pooled.astype(BF16), w1[...],
                    preferred_element_type=jnp.float32) + b1[...]
        z = (z - bnm[...]) * jax.lax.rsqrt(bnv[...] + bn_eps) * bng[...] + bnb[...]
        logits = jnp.dot(z.astype(BF16), w2[...],
                         preferred_element_type=jnp.float32) + b2[...]
        o_ref[...] = logits[:, None, :].astype(o_ref.dtype)


def _linear_kernel(x_ref, w_ref, b_ref, o_ref):
    """o = x @ w + b (bf16 MXU operands, fp32 accumulation)."""
    o_ref[...] = (jnp.dot(x_ref[...].astype(BF16), w_ref[...],
                          preferred_element_type=jnp.float32)
                  + b_ref[...]).astype(o_ref.dtype)


# ================================ kernel wrappers =====================================

_STACK_PARAM_ORDER = ("ln1_g", "ln1_b", "wqkv", "bqkv", "wo", "bo",
                      "ln2_g", "ln2_b", "w_fc", "b_fc", "w_proj", "b_proj")

# At real (768-hidden) sizes: shrink buffering / tile MLP weights on v7x (64 MiB VMEM),
# raise further on v5e/v6e (128 MiB).
_COMPILER_PARAMS = pltpu.CompilerParams(
    dimension_semantics=("parallel", "arbitrary"),
    vmem_limit_bytes=48 * 1024 * 1024,
)


def _layer_specs(arrays):
    """Blocks of the per-layer stacked weights, indexed by the layer grid axis only
    (so they are DMA'd NB times total, not B times)."""
    specs = []
    for a in arrays:
        n = a.ndim - 1
        specs.append(pl.BlockSpec((1,) + a.shape[1:],
                                  lambda bt, l, n=n: (l,) + (0,) * n))
    return specs


def _const_spec(a):
    return pl.BlockSpec(a.shape, lambda bt, l, n=a.ndim: (0,) * n)


def vit_encoder(x, stack, lnf_g, lnf_b, vproj_w, vproj_b, *, eps, act):
    """L-layer ViT encoder + final LN + visual_projection in a single pallas_call."""
    B, T, H = x.shape
    bt = B // NB
    layer_params = [stack[k] for k in _STACK_PARAM_ORDER]
    L = layer_params[2].shape[0]
    extras = [lnf_g.reshape(1, H), lnf_b.reshape(1, H), vproj_w, vproj_b.reshape(1, H)]
    return pl.pallas_call(
        functools.partial(_vit_stack_kernel, eps, act, N_HEADS),
        out_shape=jax.ShapeDtypeStruct((B, T, H), jnp.float32),
        grid=(NB, L),
        in_specs=([pl.BlockSpec((bt, T, H), lambda b, l: (b, 0, 0))]
                  + _layer_specs(layer_params)
                  + [_const_spec(a) for a in extras]),
        out_specs=pl.BlockSpec((bt, T, H), lambda b, l: (b, 0, 0)),
        compiler_params=_COMPILER_PARAMS,
    )(x, *layer_params, *extras)


def gpt_decoder_classify(h, attn_mask, stack, lnf_g, lnf_b, head, *, eps, act):
    """L-layer GPT2 decoder + final LN + pool + intermediate + BN(eval) + classifier in a
    single pallas_call.  Returns (B, NCLS_PAD) logits (lane-dense padded)."""
    B, T, H = h.shape
    bt = B // NB
    layer_params = [stack[k] for k in _STACK_PARAM_ORDER]
    L = layer_params[2].shape[0]
    inter = head["w1"].shape[1]
    ncls = head["w2"].shape[1]
    extras = [lnf_g.reshape(1, H), lnf_b.reshape(1, H),
              head["w1"], head["b1"].reshape(1, inter),
              head["bn_g"].reshape(1, inter), head["bn_b"].reshape(1, inter),
              head["bn_mean"].reshape(1, inter), head["bn_var"].reshape(1, inter),
              head["w2"], head["b2"].reshape(1, ncls)]
    mask3 = attn_mask.astype(jnp.float32).reshape(B, 1, T)
    logits = pl.pallas_call(
        functools.partial(_gpt_stack_kernel, eps, act, N_HEADS, 1e-5),
        out_shape=jax.ShapeDtypeStruct((B, 1, ncls), jnp.float32),
        grid=(NB, L),
        in_specs=([pl.BlockSpec((bt, T, H), lambda b, l: (b, 0, 0)),
                   pl.BlockSpec((bt, 1, T), lambda b, l: (b, 0, 0))]
                  + _layer_specs(layer_params)
                  + [_const_spec(a) for a in extras]),
        out_specs=pl.BlockSpec((bt, 1, ncls), lambda b, l: (b, 0, 0)),
        scratch_shapes=[pltpu.VMEM((bt, T, H), jnp.float32),     # residual carry
                        pltpu.VMEM((bt, T, T), jnp.float32)],    # additive mask bias
        compiler_params=_COMPILER_PARAMS,
    )(h, mask3, *layer_params, *extras)
    return logits[:, 0, :]


def linear(x, w, b):
    lead, K, N = x.shape[:-1], x.shape[-1], w.shape[-1]
    x2 = x.reshape(-1, K)
    out = pl.pallas_call(
        _linear_kernel,
        out_shape=jax.ShapeDtypeStruct((x2.shape[0], N), jnp.float32),
    )(x2, w, b.reshape(1, N))
    return out.reshape(*lead, N)


# ================================ model forward =======================================

def forward(params, input_ids, question_attention_mask, pixel_values):
    vit = params["vit"]
    B = pixel_values.shape[0]

    # --- ViT patch embedding: Conv2d(kernel=stride=PATCH) == linear over flat patches ---
    nh, nw = IMG // PATCH, IMG // PATCH
    patches = pixel_values.reshape(B, CHANNELS, nh, PATCH, nw, PATCH)
    patches = patches.transpose(0, 2, 4, 1, 3, 5).reshape(B, nh * nw,
                                                          CHANNELS * PATCH * PATCH)
    x = linear(patches, vit["patch_w"], vit["patch_b"])                   # (B, N, H)
    cls = jnp.broadcast_to(vit["cls"], (B, 1, HIDDEN))
    x = jnp.concatenate([cls, x], axis=1) + vit["pos_emb"]                # (B, N+1, H)
    Tv = x.shape[1]

    # --- fused ViT encoder stack (+ final LN + VisualBert visual_projection, v0) ---
    visual_embeds = vit_encoder(x, vit["stack"], vit["lnf_g"], vit["lnf_b"],
                                params["vproj_w"], params["vproj_b"],
                                eps=1e-12, act="gelu_erf")
    visual_attention_mask = jnp.ones((B, Tv), jnp.float32)

    # --- question embedder: GPT2 wte lookup ---
    gpt2 = params["gpt2"]
    question_embeds = jnp.take(gpt2["wte"], input_ids, axis=0)            # (B, Sq, H)

    # --- concat text + vision ---
    inputs_embeds = jnp.concatenate([question_embeds, visual_embeds], axis=1)
    attention_mask = jnp.concatenate(
        [question_attention_mask.astype(jnp.float32), visual_attention_mask], axis=1)
    T = inputs_embeds.shape[1]
    h = inputs_embeds + gpt2["wpe"][:T][None]                             # position embeds

    # --- fused GPT2 decoder stack + classification head ---
    logits_pad = gpt_decoder_classify(h, attention_mask, gpt2["stack"],
                                      gpt2["lnf_g"], gpt2["lnf_b"], params["head"],
                                      eps=1e-5, act="gelu_tanh")
    return logits_pad[:, :NUM_CLASS]


# ================================ parameter init ======================================

class KeyGen:
    def __init__(self, key):
        self.key = key

    def __call__(self):
        self.key, sub = jax.random.split(self.key)
        return sub


def _lin(kg, fan_in, fan_out, scale=0.02):
    w = jax.random.normal(kg(), (fan_in, fan_out), jnp.float32) * scale
    b = jax.random.normal(kg(), (fan_out,), jnp.float32) * scale
    return w, b


def _ln(dim):
    return jnp.ones((dim,), jnp.float32), jnp.zeros((dim,), jnp.float32)


def _stack_params(kg, n_layers):
    """Per-layer weights stacked on a leading layer axis; MXU weights stored in bf16.

    wqkv is (L, H, 3H) with columns [Q | K | V], each ordered head-major, so the kernel
    does ONE fused QKV matmul and splits heads from the activation.  The 1/sqrt(dh)
    attention score scale is folded into the Q columns (weights and bias)."""
    H = HIDDEN

    def nrm(shape, scale=0.02):
        return jax.random.normal(kg(), (n_layers,) + shape, jnp.float32) * scale

    qscale = jnp.concatenate([jnp.full((H,), 1.0 / math.sqrt(HEAD_DIM), jnp.float32),
                              jnp.ones((2 * H,), jnp.float32)])
    p = {}
    p["ln1_g"]  = jnp.ones((n_layers, 1, H), jnp.float32)
    p["ln1_b"]  = jnp.zeros((n_layers, 1, H), jnp.float32)
    p["wqkv"]   = (nrm((H, 3 * H)) * qscale).astype(BF16)
    p["bqkv"]   = nrm((1, 3 * H)) * qscale
    p["wo"]     = nrm((H, H)).astype(BF16)
    p["bo"]     = nrm((1, H))
    p["ln2_g"]  = jnp.ones((n_layers, 1, H), jnp.float32)
    p["ln2_b"]  = jnp.zeros((n_layers, 1, H), jnp.float32)
    p["w_fc"]   = nrm((H, MLP)).astype(BF16)
    p["b_fc"]   = nrm((1, MLP))
    p["w_proj"] = nrm((MLP, H)).astype(BF16)
    p["b_proj"] = nrm((1, H))
    return p


def init_params(key):
    kg = KeyGen(key)
    n_patches = (IMG // PATCH) ** 2

    vit = {}
    pw, pb = _lin(kg, CHANNELS * PATCH * PATCH, HIDDEN)
    vit["patch_w"], vit["patch_b"] = pw.astype(BF16), pb
    vit["cls"] = jax.random.normal(kg(), (1, 1, HIDDEN), jnp.float32) * 0.02
    vit["pos_emb"] = jax.random.normal(kg(), (1, n_patches + 1, HIDDEN), jnp.float32) * 0.02
    vit["stack"] = _stack_params(kg, VIT_LAYERS)
    vit["lnf_g"], vit["lnf_b"] = _ln(HIDDEN)

    gpt2 = {}
    gpt2["wte"] = jax.random.normal(kg(), (VOCAB, HIDDEN), jnp.float32) * 0.02
    gpt2["wpe"] = jax.random.normal(kg(), (N_POS, HIDDEN), jnp.float32) * 0.02
    gpt2["stack"] = _stack_params(kg, GPT_LAYERS)
    gpt2["lnf_g"], gpt2["lnf_b"] = _ln(HIDDEN)

    head = {}
    w1, b1 = _lin(kg, HIDDEN, INTER)                            # intermediate_layer
    head["w1"], head["b1"] = w1.astype(BF16), b1
    head["bn_g"] = jnp.ones((INTER,), jnp.float32)              # BatchNorm1d (eval mode)
    head["bn_b"] = jnp.zeros((INTER,), jnp.float32)
    head["bn_mean"] = jnp.zeros((INTER,), jnp.float32)
    head["bn_var"] = jnp.ones((INTER,), jnp.float32)
    w2, b2 = _lin(kg, INTER, NUM_CLASS)                         # classifier (lane-padded)
    head["w2"] = jnp.zeros((INTER, NCLS_PAD), jnp.float32).at[:, :NUM_CLASS].set(w2).astype(BF16)
    head["b2"] = jnp.zeros((NCLS_PAD,), jnp.float32).at[:NUM_CLASS].set(b2)

    vproj_w, vproj_b = _lin(kg, HIDDEN, HIDDEN)                 # VisualBert visual_projection
    return {"vit": vit, "gpt2": gpt2, "head": head,
            "vproj_w": vproj_w.astype(BF16), "vproj_b": vproj_b}


# ================================ main ================================================

if __name__ == "__main__":
    key = jax.random.PRNGKey(0)
    k_params, k_img, k_ids = jax.random.split(key, 3)

    params = init_params(k_params)
    pixel_values = jax.random.normal(k_img, (BATCH, CHANNELS, IMG, IMG), jnp.float32)
    input_ids = jax.random.randint(k_ids, (BATCH, SEQ_Q), 0, VOCAB, dtype=jnp.int32)
    question_attention_mask = jnp.ones((BATCH, SEQ_Q), jnp.float32)

    fwd = jax.jit(forward)
    logits = fwd(params, input_ids, question_attention_mask, pixel_values)
    logits = jax.block_until_ready(logits)

    assert logits.shape == (BATCH, NUM_CLASS), logits.shape
    assert logits.dtype == jnp.float32
    assert bool(jnp.all(jnp.isfinite(logits)))
    print("KERNEL_OK")
</pallas_src>

<mosaic_0001>
module attributes {stable_mosaic.version = 11 : i64} {
  func.func @_linear_kernel(%arg0: memref<16x192xf32, #tpu.memory_space<vmem>>, %arg1: memref<192x32xbf16, #tpu.memory_space<vmem>>, %arg2: memref<1x32xf32, #tpu.memory_space<vmem>>, %arg3: memref<16x32xf32, #tpu.memory_space<vmem>>) attributes {dimension_semantics = [], scalar_prefetch = 0 : i64, scratch_operands = 0 : i64, tpu.core_type = #tpu.core_type<tc>} {
    %c0 = arith.constant 0 : index
    %c0_0 = arith.constant 0 : index
    %0 = vector.load %arg0[%c0, %c0_0] : memref<16x192xf32, #tpu.memory_space<vmem>>, vector<16x192xf32>
    %1 = arith.truncf %0 : vector<16x192xf32> to vector<16x192xbf16>
    %c0_1 = arith.constant 0 : index
    %c0_2 = arith.constant 0 : index
    %2 = vector.load %arg1[%c0_1, %c0_2] : memref<192x32xbf16, #tpu.memory_space<vmem>>, vector<192x32xbf16>
    %cst = arith.constant dense<0.000000e+00> : vector<16x32xf32>
    %3 = tpu.matmul %1, %2, %cst {dimension_numbers = #tpu.dot_dimension_numbers<[1], [0], [0], [1], [0, 0, 1, 1], [], []>} : vector<16x192xbf16>, vector<192x32xbf16>, vector<16x32xf32> -> vector<16x32xf32>
    %c0_3 = arith.constant 0 : index
    %c0_4 = arith.constant 0 : index
    %4 = vector.load %arg2[%c0_3, %c0_4] : memref<1x32xf32, #tpu.memory_space<vmem>>, vector<1x32xf32>
    %5 = vector.broadcast %4 : vector<1x32xf32> to vector<16x32xf32>
    %6 = arith.addf %3, %5 : vector<16x32xf32>
    %c0_5 = arith.constant 0 : index
    %c0_6 = arith.constant 0 : index
    %7 = vector.load %arg3[%c0_5, %c0_6] : memref<16x32xf32, #tpu.memory_space<vmem>>, vector<16x32xf32>
    tpu.vector_store %arg3[%c0_5, %c0_6], %6 {strides = array<i32>} : memref<16x32xf32, #tpu.memory_space<vmem>>, vector<16x32xf32>,
    return
  }
}

module attributes {stable_mosaic.version = 11 : i64} {
  func.func @_vit_stack_kernel(%arg0: i32, %arg1: i32, %arg2: memref<2x5x32xf32, #tpu.memory_space<vmem>>, %arg3: memref<1x1x32xf32, #tpu.memory_space<vmem>>, %arg4: memref<1x1x32xf32, #tpu.memory_space<vmem>>, %arg5: memref<1x32x96xbf16, #tpu.memory_space<vmem>>, %arg6: memref<1x1x96xf32, #tpu.memory_space<vmem>>, %arg7: memref<1x32x32xbf16, #tpu.memory_space<vmem>>, %arg8: memref<1x1x32xf32, #tpu.memory_space<vmem>>, %arg9: memref<1x1x32xf32, #tpu.memory_space<vmem>>, %arg10: memref<1x1x32xf32, #tpu.memory_space<vmem>>, %arg11: memref<1x32x128xbf16, #tpu.memory_space<vmem>>, %arg12: memref<1x1x128xf32, #tpu.memory_space<vmem>>, %arg13: memref<1x128x32xbf16, #tpu.memory_space<vmem>>, %arg14: memref<1x1x32xf32, #tpu.memory_space<vmem>>, %arg15: memref<1x32xf32, #tpu.memory_space<vmem>>, %arg16: memref<1x32xf32, #tpu.memory_space<vmem>>, %arg17: memref<32x32xbf16, #tpu.memory_space<vmem>>, %arg18: memref<1x32xf32, #tpu.memory_space<vmem>>, %arg19: memref<2x5x32xf32, #tpu.memory_space<vmem>>) attributes {dimension_semantics = [#tpu.dimension_semantics<parallel>, #tpu.dimension_semantics<arbitrary>], iteration_bounds = array<i64: 2, 2>, scalar_prefetch = 0 : i64, scratch_operands = 0 : i64, tpu.core_type = #tpu.core_type<tc>, window_params = [{transform_indices = @transform_0, window_bounds = array<i64: 2, 5, 32>}, {transform_indices = @transform_1, window_bounds = array<i64: 1, 1, 32>}, {transform_indices = @transform_2, window_bounds = array<i64: 1, 1, 32>}, {transform_indices = @transform_3, window_bounds = array<i64: 1, 32, 96>}, {transform_indices = @transform_4, window_bounds = array<i64: 1, 1, 96>}, {transform_indices = @transform_5, window_bounds = array<i64: 1, 32, 32>}, {transform_indices = @transform_6, window_bounds = array<i64: 1, 1, 32>}, {transform_indices = @transform_7, window_bounds = array<i64: 1, 1, 32>}, {transform_indices = @transform_8, window_bounds = array<i64: 1, 1, 32>}, {transform_indices = @transform_9, window_bounds = array<i64: 1, 32, 128>}, {transform_indices = @transform_10, window_bounds = array<i64: 1, 1, 128>}, {transform_indices = @transform_11, window_bounds = array<i64: 1, 128, 32>}, {transform_indices = @transform_12, window_bounds = array<i64: 1, 1, 32>}, {pipeline_mode = #tpu.pipeline_mode<synchronous>, transform_indices = @transform_13, window_bounds = array<i64: 1, 32>}, {pipeline_mode = #tpu.pipeline_mode<synchronous>, transform_indices = @transform_14, window_bounds = array<i64: 1, 32>}, {pipeline_mode = #tpu.pipeline_mode<synchronous>, transform_indices = @transform_15, window_bounds = array<i64: 32, 32>}, {pipeline_mode = #tpu.pipeline_mode<synchronous>, transform_indices = @transform_16, window_bounds = array<i64: 1, 32>}, {transform_indices = @transform_17, window_bounds = array<i64: 2, 5, 32>}]} {
    %c0_i32 = arith.constant 0 : i32
    %0 = arith.cmpi eq, %arg1, %c0_i32 : i32
    %1 = arith.extui %0 : i1 to i32
    %c0_i32_0 = arith.constant 0 : i32
    %2 = arith.cmpi ne, %1, %c0_i32_0 : i32
    scf.if %2 {
      %c0_90 = arith.constant 0 : index
      %c0_91 = arith.constant 0 : index
      %c0_92 = arith.constant 0 : index
      %279 = vector.load %arg2[%c0_90, %c0_91, %c0_92] : memref<2x5x32xf32, #tpu.memory_space<vmem>>, vector<2x5x32xf32>
      %c0_93 = arith.constant 0 : index
      %c0_94 = arith.constant 0 : index
      %c0_95 = arith.constant 0 : index
      %280 = vector.load %arg19[%c0_93, %c0_94, %c0_95] : memref<2x5x32xf32, #tpu.memory_space<vmem>>, vector<2x5x32xf32>
      tpu.vector_store %arg19[%c0_93, %c0_94, %c0_95], %279 {strides = array<i32>} : memref<2x5x32xf32, #tpu.memory_space<vmem>>, vector<2x5x32xf32>,
    } else {
    }
    %c0 = arith.constant 0 : index
    %c0_1 = arith.constant 0 : index
    %c0_2 = arith.constant 0 : index
    %3 = vector.load %arg19[%c0, %c0_1, %c0_2] : memref<2x5x32xf32, #tpu.memory_space<vmem>>, vector<2x5x32xf32>
    %c0_3 = arith.constant 0 : index
    %c0_4 = arith.constant 0 : index
    %c0_5 = arith.constant 0 : index
    %4 = vector.load %arg3[%c0_3, %c0_4, %c0_5] : memref<1x1x32xf32, #tpu.memory_space<vmem>>, vector<1x1x32xf32>
    %5 = vector.shape_cast %4 : vector<1x1x32xf32> to vector<1x32xf32>
    %c0_6 = arith.constant 0 : index
    %c0_7 = arith.constant 0 : index
    %c0_8 = arith.constant 0 : index
    %6 = vector.load %arg4[%c0_6, %c0_7, %c0_8] : memref<1x1x32xf32, #tpu.memory_space<vmem>>, vector<1x1x32xf32>
    %7 = vector.shape_cast %6 : vector<1x1x32xf32> to vector<1x32xf32>
    %c0_9 = arith.constant 0 : index
    %c0_10 = arith.constant 0 : index
    %c0_11 = arith.constant 0 : index
    %8 = vector.load %arg5[%c0_9, %c0_10, %c0_11] : memref<1x32x96xbf16, #tpu.memory_space<vmem>>, vector<1x32x96xbf16>
    %9 = vector.shape_cast %8 : vector<1x32x96xbf16> to vector<32x96xbf16>
    %c0_12 = arith.constant 0 : index
    %c0_13 = arith.constant 0 : index
    %c0_14 = arith.constant 0 : index
    %10 = vector.load %arg6[%c0_12, %c0_13, %c0_14] : memref<1x1x96xf32, #tpu.memory_space<vmem>>, vector<1x1x96xf32>
    %11 = vector.shape_cast %10 : vector<1x1x96xf32> to vector<1x96xf32>
    %c0_15 = arith.constant 0 : index
    %c0_16 = arith.constant 0 : index
    %c0_17 = arith.constant 0 : index
    %12 = vector.load %arg7[%c0_15, %c0_16, %c0_17] : memref<1x32x32xbf16, #tpu.memory_space<vmem>>, vector<1x32x32xbf16>
    %13 = vector.shape_cast %12 : vector<1x32x32xbf16> to vector<32x32xbf16>
    %c0_18 = arith.constant 0 : index
    %c0_19 = arith.constant 0 : index
    %c0_20 = arith.constant 0 : index
    %14 = vector.load %arg8[%c0_18, %c0_19, %c0_20] : memref<1x1x32xf32, #tpu.memory_space<vmem>>, vector<1x1x32xf32>
    %15 = vector.shape_cast %14 : vector<1x1x32xf32> to vector<1x32xf32>
    %c0_21 = arith.constant 0 : index
    %c0_22 = arith.constant 0 : index
    %c0_23 = arith.constant 0 : index
    %16 = vector.load %arg9[%c0_21, %c0_22, %c0_23] : memref<1x1x32xf32, #tpu.memory_space<vmem>>, vector<1x1x32xf32>
    %17 = vector.shape_cast %16 : vector<1x1x32xf32> to vector<1x32xf32>
    %c0_24 = arith.constant 0 : index
    %c0_25 = arith.constant 0 : index
    %c0_26 = arith.constant 0 : index
    %18 = vector.load %arg10[%c0_24, %c0_25, %c0_26] : memref<1x1x32xf32, #tpu.memory_space<vmem>>, vector<1x1x32xf32>
    %19 = vector.shape_cast %18 : vector<1x1x32xf32> to vector<1x32xf32>
    %c0_27 = arith.constant 0 : index
    %c0_28 = arith.constant 0 : index
    %c0_29 = arith.constant 0 : index
    %20 = vector.load %arg11[%c0_27, %c0_28, %c0_29] : memref<1x32x128xbf16, #tpu.memory_space<vmem>>, vector<1x32x128xbf16>
    %21 = vector.shape_cast %20 : vector<1x32x128xbf16> to vector<32x128xbf16>
    %c0_30 = arith.constant 0 : index
    %c0_31 = arith.constant 0 : index
    %c0_32 = arith.constant 0 : index
    %22 = vector.load %arg12[%c0_30, %c0_31, %c0_32] : memref<1x1x128xf32, #tpu.memory_space<vmem>>, vector<1x1x128xf32>
    %23 = vector.shape_cast %22 : vector<1x1x128xf32> to vector<1x128xf32>
    %c0_33 = arith.constant 0 : index
    %c0_34 = arith.constant 0 : index
    %c0_35 = arith.constant 0 : index
    %24 = vector.load %arg13[%c0_33, %c0_34, %c0_35] : memref<1x128x32xbf16, #tpu.memory_space<vmem>>, vector<1x128x32xbf16>
    %25 = vector.shape_cast %24 : vector<1x128x32xbf16> to vector<128x32xbf16>
    %c0_36 = arith.constant 0 : index
    %c0_37 = arith.constant 0 : index
    %c0_38 = arith.constant 0 : index
    %26 = vector.load %arg14[%c0_36, %c0_37, %c0_38] : memref<1x1x32xf32, #tpu.memory_space<vmem>>, vector<1x1x32xf32>
    %27 = vector.shape_cast %26 : vector<1x1x32xf32> to vector<1x32xf32>
    %28 = vector.shape_cast %3 : vector<2x5x32xf32> to vector<10x32xf32>
    %cst = arith.constant dense<0.000000e+00> : vector<10xf32>
    %29 = vector.multi_reduction <add>, %28, %cst [1] : vector<10x32xf32> to vector<10xf32>
    %30 = vector.shape_cast %29 : vector<10xf32> to vector<10x1xf32>
    %cst_39 = arith.constant 3.200000e+01 : f32
    %31 = vector.broadcast %cst_39 : f32 to vector<10x1xf32>
    %32 = arith.divf %30, %31 : vector<10x1xf32>
    %33 = vector.broadcast %32 : vector<10x1xf32> to vector<10x32xf32>
    %34 = arith.subf %28, %33 : vector<10x32xf32>
    %35 = arith.mulf %34, %34 : vector<10x32xf32>
    %cst_40 = arith.constant dense<0.000000e+00> : vector<10xf32>
    %36 = vector.multi_reduction <add>, %35, %cst_40 [1] : vector<10x32xf32> to vector<10xf32>
    %37 = vector.shape_cast %36 : vector<10xf32> to vector<10x1xf32>
    %cst_41 = arith.constant 3.200000e+01 : f32
    %38 = vector.broadcast %cst_41 : f32 to vector<10x1xf32>
    %39 = arith.divf %37, %38 : vector<10x1xf32>
    %40 = vector.broadcast %32 : vector<10x1xf32> to vector<10x32xf32>
    %41 = arith.subf %28, %40 : vector<10x32xf32>
    %cst_42 = arith.constant 9.99999996E-13 : f32
    %42 = vector.broadcast %cst_42 : f32 to vector<10x1xf32>
    %43 = arith.addf %39, %42 : vector<10x1xf32>
    %44 = math.rsqrt %43 : vector<10x1xf32>
    %45 = vector.broadcast %44 : vector<10x1xf32> to vector<10x32xf32>
    %46 = arith.mulf %41, %45 : vector<10x32xf32>
    %47 = vector.broadcast %5 : vector<1x32xf32> to vector<10x32xf32>
    %48 = arith.mulf %46, %47 : vector<10x32xf32>
    %49 = vector.broadcast %7 : vector<1x32xf32> to vector<10x32xf32>
    %50 = arith.addf %48, %49 : vector<10x32xf32>
    %51 = arith.truncf %50 : vector<10x32xf32> to vector<10x32xbf16>
    %cst_43 = arith.constant dense<0.000000e+00> : vector<10x96xf32>
    %52 = tpu.matmul %51, %9, %cst_43 {dimension_numbers = #tpu.dot_dimension_numbers<[1], [0], [0], [1], [0, 0, 1, 1], [], []>} : vector<10x32xbf16>, vector<32x96xbf16>, vector<10x96xf32> -> vector<10x96xf32>
    %53 = vector.broadcast %11 : vector<1x96xf32> to vector<10x96xf32>
    %54 = arith.addf %52, %53 : vector<10x96xf32>
    %55 = vector.extract_strided_slice %54 {offsets = [0, 0], sizes = [10, 32], strides = [1, 1]} : vector<10x96xf32> to vector<10x32xf32>
    %56 = vector.shape_cast %55 : vector<10x32xf32> to vector<2x5x32xf32>
    %57 = vector.extract_strided_slice %54 {offsets = [0, 32], sizes = [10, 32], strides = [1, 1]} : vector<10x96xf32> to vector<10x32xf32>
    %58 = vector.shape_cast %57 : vector<10x32xf32> to vector<2x5x32xf32>
    %59 = vector.extract_strided_slice %54 {offsets = [0, 64], sizes = [10, 32], strides = [1, 1]} : vector<10x96xf32> to vector<10x32xf32>
    %60 = vector.shape_cast %59 : vector<10x32xf32> to vector<2x5x32xf32>
    %61 = vector.extract_strided_slice %56 {offsets = [0, 0, 0], sizes = [1, 5, 32], strides = [1, 1, 1]} : vector<2x5x32xf32> to vector<1x5x32xf32>
    %62 = vector.shape_cast %61 : vector<1x5x32xf32> to vector<5x32xf32>
    %63 = vector.extract_strided_slice %58 {offsets = [0, 0, 0], sizes = [1, 5, 32], strides = [1, 1, 1]} : vector<2x5x32xf32> to vector<1x5x32xf32>
    %64 = vector.shape_cast %63 : vector<1x5x32xf32> to vector<5x32xf32>
    %65 = vector.extract_strided_slice %60 {offsets = [0, 0, 0], sizes = [1, 5, 32], strides = [1, 1, 1]} : vector<2x5x32xf32> to vector<1x5x32xf32>
    %66 = vector.shape_cast %65 : vector<1x5x32xf32> to vector<5x32xf32>
    %67 = vector.extract_strided_slice %62 {offsets = [0, 0], sizes = [5, 8], strides = [1, 1]} : vector<5x32xf32> to vector<5x8xf32>
    %68 = arith.truncf %67 : vector<5x8xf32> to vector<5x8xbf16>
    %69 = vector.extract_strided_slice %64 {offsets = [0, 0], sizes = [5, 8], strides = [1, 1]} : vector<5x32xf32> to vector<5x8xf32>
    %70 = arith.truncf %69 : vector<5x8xf32> to vector<5x8xbf16>
    %cst_44 = arith.constant dense<0.000000e+00> : vector<5x5xf32>
    %71 = tpu.matmul %68, %70, %cst_44 {dimension_numbers = #tpu.dot_dimension_numbers<[1], [1], [0], [0], [0, 0, 1, 0], [], []>} : vector<5x8xbf16>, vector<5x8xbf16>, vector<5x5xf32> -> vector<5x5xf32>
    %cst_45 = arith.constant dense<0xFF800000> : vector<5xf32>
    %72 = vector.multi_reduction <maximumf>, %71, %cst_45 [1] : vector<5x5xf32> to vector<5xf32>
    %73 = vector.shape_cast %72 : vector<5xf32> to vector<5x1xf32>
    %74 = vector.broadcast %73 : vector<5x1xf32> to vector<5x5xf32>
    %75 = arith.subf %71, %74 : vector<5x5xf32>
    %76 = math.exp %75 : vector<5x5xf32>
    %cst_46 = arith.constant dense<0.000000e+00> : vector<5xf32>
    %77 = vector.multi_reduction <add>, %76, %cst_46 [1] : vector<5x5xf32> to vector<5xf32>
    %78 = vector.shape_cast %77 : vector<5xf32> to vector<5x1xf32>
    %79 = tpu.reciprocal %78 {approx = true} : vector<5x1xf32> -> vector<5x1xf32>
    %80 = vector.broadcast %79 : vector<5x1xf32> to vector<5x5xf32>
    %81 = arith.mulf %76, %80 : vector<5x5xf32>
    %82 = arith.truncf %81 : vector<5x5xf32> to vector<5x5xbf16>
    %83 = vector.extract_strided_slice %66 {offsets = [0, 0], sizes = [5, 8], strides = [1, 1]} : vector<5x32xf32> to vector<5x8xf32>
    %84 = arith.truncf %83 : vector<5x8xf32> to vector<5x8xbf16>
    %cst_47 = arith.constant dense<0.000000e+00> : vector<5x8xf32>
    %85 = tpu.matmul %82, %84, %cst_47 {dimension_numbers = #tpu.dot_dimension_numbers<[1], [0], [0], [1], [0, 0, 1, 1], [], []>} : vector<5x5xbf16>, vector<5x8xbf16>, vector<5x8xf32> -> vector<5x8xf32>
    %86 = vector.extract_strided_slice %62 {offsets = [0, 8], sizes = [5, 8], strides = [1, 1]} : vector<5x32xf32> to vector<5x8xf32>
    %87 = arith.truncf %86 : vector<5x8xf32> to vector<5x8xbf16>
    %88 = vector.extract_strided_slice %64 {offsets = [0, 8], sizes = [5, 8], strides = [1, 1]} : vector<5x32xf32> to vector<5x8xf32>
    %89 = arith.truncf %88 : vector<5x8xf32> to vector<5x8xbf16>
    %cst_48 = arith.constant dense<0.000000e+00> : vector<5x5xf32>
    %90 = tpu.matmul %87, %89, %cst_48 {dimension_numbers = #tpu.dot_dimension_numbers<[1], [1], [0], [0], [0, 0, 1, 0], [], []>} : vector<5x8xbf16>, vector<5x8xbf16>, vector<5x5xf32> -> vector<5x5xf32>
    %cst_49 = arith.constant dense<0xFF800000> : vector<5xf32>
    %91 = vector.multi_reduction <maximumf>, %90, %cst_49 [1] : vector<5x5xf32> to vector<5xf32>
    %92 = vector.shape_cast %91 : vector<5xf32> to vector<5x1xf32>
    %93 = vector.broadcast %92 : vector<5x1xf32> to vector<5x5xf32>
    %94 = arith.subf %90, %93 : vector<5x5xf32>
    %95 = math.exp %94 : vector<5x5xf32>
    %cst_50 = arith.constant dense<0.000000e+00> : vector<5xf32>
    %96 = vector.multi_reduction <add>, %95, %cst_50 [1] : vector<5x5xf32> to vector<5xf32>
    %97 = vector.shape_cast %96 : vector<5xf32> to vector<5x1xf32>
    %98 = tpu.reciprocal %97 {approx = true} : vector<5x1xf32> -> vector<5x1xf32>
    %99 = vector.broadcast %98 : vector<5x1xf32> to vector<5x5xf32>
    %100 = arith.mulf %95, %99 : vector<5x5xf32>
    %101 = arith.truncf %100 : vector<5x5xf32> to vector<5x5xbf16>
    %102 = vector.extract_strided_slice %66 {offsets = [0, 8], sizes = [5, 8], strides = [1, 1]} : vector<5x32xf32> to vector<5x8xf32>
    %103 = arith.truncf %102 : vector<5x8xf32> to vector<5x8xbf16>
    %cst_51 = arith.constant dense<0.000000e+00> : vector<5x8xf32>
    %104 = tpu.matmul %101, %103, %cst_51 {dimension_numbers = #tpu.dot_dimension_numbers<[1], [0], [0], [1], [0, 0, 1, 1], [], []>} : vector<5x5xbf16>, vector<5x8xbf16>, vector<5x8xf32> -> vector<5x8xf32>
    %105 = vector.extract_strided_slice %62 {offsets = [0, 16], sizes = [5, 8], strides = [1, 1]} : vector<5x32xf32> to vector<5x8xf32>
    %106 = arith.truncf %105 : vector<5x8xf32> to vector<5x8xbf16>
    %107 = vector.extract_strided_slice %64 {offsets = [0, 16], sizes = [5, 8], strides = [1, 1]} : vector<5x32xf32> to vector<5x8xf32>
    %108 = arith.truncf %107 : vector<5x8xf32> to vector<5x8xbf16>
    %cst_52 = arith.constant dense<0.000000e+00> : vector<5x5xf32>
    %109 = tpu.matmul %106, %108, %cst_52 {dimension_numbers = #tpu.dot_dimension_numbers<[1], [1], [0], [0], [0, 0, 1, 0], [], []>} : vector<5x8xbf16>, vector<5x8xbf16>, vector<5x5xf32> -> vector<5x5xf32>
    %cst_53 = arith.constant dense<0xFF800000> : vector<5xf32>
    %110 = vector.multi_reduction <maximumf>, %109, %cst_53 [1] : vector<5x5xf32> to vector<5xf32>
    %111 = vector.shape_cast %110 : vector<5xf32> to vector<5x1xf32>
    %112 = vector.broadcast %111 : vector<5x1xf32> to vector<5x5xf32>
    %113 = arith.subf %109, %112 : vector<5x5xf32>
    %114 = math.exp %113 : vector<5x5xf32>
    %cst_54 = arith.constant dense<0.000000e+00> : vector<5xf32>
    %115 = vector.multi_reduction <add>, %114, %cst_54 [1] : vector<5x5xf32> to vector<5xf32>
    %116 = vector.shape_cast %115 : vector<5xf32> to vector<5x1xf32>
    %117 = tpu.reciprocal %116 {approx = true} : vector<5x1xf32> -> vector<5x1xf32>
    %118 = vector.broadcast %117 : vector<5x1xf32> to vector<5x5xf32>
    %119 = arith.mulf %114, %118 : vector<5x5xf32>
    %120 = arith.truncf %119 : vector<5x5xf32> to vector<5x5xbf16>
    %121 = vector.extract_strided_slice %66 {offsets = [0, 16], sizes = [5, 8], strides = [1, 1]} : vector<5x32xf32> to vector<5x8xf32>
    %122 = arith.truncf %121 : vector<5x8xf32> to vector<5x8xbf16>
    %cst_55 = arith.constant dense<0.000000e+00> : vector<5x8xf32>
    %123 = tpu.matmul %120, %122, %cst_55 {dimension_numbers = #tpu.dot_dimension_numbers<[1], [0], [0], [1], [0, 0, 1, 1], [], []>} : vector<5x5xbf16>, vector<5x8xbf16>, vector<5x8xf32> -> vector<5x8xf32>
    %124 = vector.extract_strided_slice %62 {offsets = [0, 24], sizes = [5, 8], strides = [1, 1]} : vector<5x32xf32> to vector<5x8xf32>
    %125 = arith.truncf %124 : vector<5x8xf32> to vector<5x8xbf16>
    %126 = vector.extract_strided_slice %64 {offsets = [0, 24], sizes = [5, 8], strides = [1, 1]} : vector<5x32xf32> to vector<5x8xf32>
    %127 = arith.truncf %126 : vector<5x8xf32> to vector<5x8xbf16>
    %cst_56 = arith.constant dense<0.000000e+00> : vector<5x5xf32>
    %128 = tpu.matmul %125, %127, %cst_56 {dimension_numbers = #tpu.dot_dimension_numbers<[1], [1], [0], [0], [0, 0, 1, 0], [], []>} : vector<5x8xbf16>, vector<5x8xbf16>, vector<5x5xf32> -> vector<5x5xf32>
    %cst_57 = arith.constant dense<0xFF800000> : vector<5xf32>
    %129 = vector.multi_reduction <maximumf>, %128, %cst_57 [1] : vector<5x5xf32> to vector<5xf32>
    %130 = vector.shape_cast %129 : vector<5xf32> to vector<5x1xf32>
    %131 = vector.broadcast %130 : vector<5x1xf32> to vector<5x5xf32>
    %132 = arith.subf %128, %131 : vector<5x5xf32>
    %133 = math.exp %132 : vector<5x5xf32>
    %cst_58 = arith.constant dense<0.000000e+00> : vector<5xf32>
    %134 = vector.multi_reduction <add>, %133, %cst_58 [1] : vector<5x5xf32> to vector<5xf32>
    %135 = vector.shape_cast %134 : vector<5xf32> to vector<5x1xf32>
    %136 = tpu.reciprocal %135 {approx = true} : vector<5x1xf32> -> vector<5x1xf32>
    %137 = vector.broadcast %136 : vector<5x1xf32> to vector<5x5xf32>
    %138 = arith.mulf %133, %137 : vector<5x5xf32>
    %139 = arith.truncf %138 : vector<5x5xf32> to vector<5x5xbf16>
    %140 = vector.extract_strided_slice %66 {offsets = [0, 24], sizes = [5, 8], strides = [1, 1]} : vector<5x32xf32> to vector<5x8xf32>
    %141 = arith.truncf %140 : vector<5x8xf32> to vector<5x8xbf16>
    %cst_59 = arith.constant dense<0.000000e+00> : vector<5x8xf32>
    %142 = tpu.matmul %139, %141, %cst_59 {dimension_numbers = #tpu.dot_dimension_numbers<[1], [0], [0], [1], [0, 0, 1, 1], [], []>} : vector<5x5xbf16>, vector<5x8xbf16>, vector<5x8xf32> -> vector<5x8xf32>
    %143 = tpu.concatenate %85, %104, %123, %142 in 1 : vector<5x8xf32>, vector<5x8xf32>, vector<5x8xf32>, vector<5x8xf32> -> vector<5x32xf32>
    %144 = vector.extract_strided_slice %56 {offsets = [1, 0, 0], sizes = [1, 5, 32], strides = [1, 1, 1]} : vector<2x5x32xf32> to vector<1x5x32xf32>
    %145 = vector.shape_cast %144 : vector<1x5x32xf32> to vector<5x32xf32>
    %146 = vector.extract_strided_slice %58 {offsets = [1, 0, 0], sizes = [1, 5, 32], strides = [1, 1, 1]} : vector<2x5x32xf32> to vector<1x5x32xf32>
    %147 = vector.shape_cast %146 : vector<1x5x32xf32> to vector<5x32xf32>
    %148 = vector.extract_strided_slice %60 {offsets = [1, 0, 0], sizes = [1, 5, 32], strides = [1, 1, 1]} : vector<2x5x32xf32> to vector<1x5x32xf32>
    %149 = vector.shape_cast %148 : vector<1x5x32xf32> to vector<5x32xf32>
    %150 = vector.extract_strided_slice %145 {offsets = [0, 0], sizes = [5, 8], strides = [1, 1]} : vector<5x32xf32> to vector<5x8xf32>
    %151 = arith.truncf %150 : vector<5x8xf32> to vector<5x8xbf16>
    %152 = vector.extract_strided_slice %147 {offsets = [0, 0], sizes = [5, 8], strides = [1, 1]} : vector<5x32xf32> to vector<5x8xf32>
    %153 = arith.truncf %152 : vector<5x8xf32> to vector<5x8xbf16>
    %cst_60 = arith.constant dense<0.000000e+00> : vector<5x5xf32>
    %154 = tpu.matmul %151, %153, %cst_60 {dimension_numbers = #tpu.dot_dimension_numbers<[1], [1], [0], [0], [0, 0, 1, 0], [], []>} : vector<5x8xbf16>, vector<5x8xbf16>, vector<5x5xf32> -> vector<5x5xf32>
    %cst_61 = arith.constant dense<0xFF800000> : vector<5xf32>
    %155 = vector.multi_reduction <maximumf>, %154, %cst_61 [1] : vector<5x5xf32> to vector<5xf32>
    %156 = vector.shape_cast %155 : vector<5xf32> to vector<5x1xf32>
    %157 = vector.broadcast %156 : vector<5x1xf32> to vector<5x5xf32>
    %158 = arith.subf %154, %157 : vector<5x5xf32>
    %159 = math.exp %158 : vector<5x5xf32>
    %cst_62 = arith.constant dense<0.000000e+00> : vector<5xf32>
    %160 = vector.multi_reduction <add>, %159, %cst_62 [1] : vector<5x5xf32> to vector<5xf32>
    %161 = vector.shape_cast %160 : vector<5xf32> to vector<5x1xf32>
    %162 = tpu.reciprocal %161 {approx = true} : vector<5x1xf32> -> vector<5x1xf32>
    %163 = vector.broadcast %162 : vector<5x1xf32> to vector<5x5xf32>
    %164 = arith.mulf %159, %163 : vector<5x5xf32>
    %165 = arith.truncf %164 : vector<5x5xf32> to vector<5x5xbf16>
    %166 = vector.extract_strided_slice %149 {offsets = [0, 0], sizes = [5, 8], strides = [1, 1]} : vector<5x32xf32> to vector<5x8xf32>
    %167 = arith.truncf %166 : vector<5x8xf32> to vector<5x8xbf16>
    %cst_63 = arith.constant dense<0.000000e+00> : vector<5x8xf32>
    %168 = tpu.matmul %165, %167, %cst_63 {dimension_numbers = #tpu.dot_dimension_numbers<[1], [0], [0], [1], [0, 0, 1, 1], [], []>} : vector<5x5xbf16>, vector<5x8xbf16>, vector<5x8xf32> -> vector<5x8xf32>
    %169 = vector.extract_strided_slice %145 {offsets = [0, 8], sizes = [5, 8], strides = [1, 1]} : vector<5x32xf32> to vector<5x8xf32>
    %170 = arith.truncf %169 : vector<5x8xf32> to vector<5x8xbf16>
    %171 = vector.extract_strided_slice %147 {offsets = [0, 8], sizes = [5, 8], strides = [1, 1]} : vector<5x32xf32> to vector<5x8xf32>
    %172 = arith.truncf %171 : vector<5x8xf32> to vector<5x8xbf16>
    %cst_64 = arith.constant dense<0.000000e+00> : vector<5x5xf32>
    %173 = tpu.matmul %170, %172, %cst_64 {dimension_numbers = #tpu.dot_dimension_numbers<[1], [1], [0], [0], [0, 0, 1, 0], [], []>} : vector<5x8xbf16>, vector<5x8xbf16>, vector<5x5xf32> -> vector<5x5xf32>
    %cst_65 = arith.constant dense<0xFF800000> : vector<5xf32>
    %174 = vector.multi_reduction <maximumf>, %173, %cst_65 [1] : vector<5x5xf32> to vector<5xf32>
    %175 = vector.shape_cast %174 : vector<5xf32> to vector<5x1xf32>
    %176 = vector.broadcast %175 : vector<5x1xf32> to vector<5x5xf32>
    %177 = arith.subf %173, %176 : vector<5x5xf32>
    %178 = math.exp %177 : vector<5x5xf32>
    %cst_66 = arith.constant dense<0.000000e+00> : vector<5xf32>
    %179 = vector.multi_reduction <add>, %178, %cst_66 [1] : vector<5x5xf32> to vector<5xf32>
    %180 = vector.shape_cast %179 : vector<5xf32> to vector<5x1xf32>
    %181 = tpu.reciprocal %180 {approx = true} : vector<5x1xf32> -> vector<5x1xf32>
    %182 = vector.broadcast %181 : vector<5x1xf32> to vector<5x5xf32>
    %183 = arith.mulf %178, %182 : vector<5x5xf32>
    %184 = arith.truncf %183 : vector<5x5xf32> to vector<5x5xbf16>
    %185 = vector.extract_strided_slice %149 {offsets = [0, 8], sizes = [5, 8], strides = [1, 1]} : vector<5x32xf32> to vector<5x8xf32>
    %186 = arith.truncf %185 : vector<5x8xf32> to vector<5x8xbf16>
    %cst_67 = arith.constant dense<0.000000e+00> : vector<5x8xf32>
    %187 = tpu.matmul %184, %186, %cst_67 {dimension_numbers = #tpu.dot_dimension_numbers<[1], [0], [0], [1], [0, 0, 1, 1], [], []>} : vector<5x5xbf16>, vector<5x8xbf16>, vector<5x8xf32> -> vector<5x8xf32>
    %188 = vector.extract_strided_slice %145 {offsets = [0, 16], sizes = [5, 8], strides = [1, 1]} : vector<5x32xf32> to vector<5x8xf32>
    %189 = arith.truncf %188 : vector<5x8xf32> to vector<5x8xbf16>
    %190 = vector.extract_strided_slice %147 {offsets = [0, 16], sizes = [5, 8], strides = [1, 1]} : vector<5x32xf32> to vector<5x8xf32>
    %191 = arith.truncf %190 : vector<5x8xf32> to vector<5x8xbf16>
    %cst_68 = arith.constant dense<0.000000e+00> : vector<5x5xf32>
    %192 = tpu.matmul %189, %191, %cst_68 {dimension_numbers = #tpu.dot_dimension_numbers<[1], [1], [0], [0], [0, 0, 1, 0], [], []>} : vector<5x8xbf16>, vector<5x8xbf16>, vector<5x5xf32> -> vector<5x5xf32>
    %cst_69 = arith.constant dense<0xFF800000> : vector<5xf32>
    %193 = vector.multi_reduction <maximumf>, %192, %cst_69 [1] : vector<5x5xf32> to vector<5xf32>
    %194 = vector.shape_cast %193 : vector<5xf32> to vector<5x1xf32>
    %195 = vector.broadcast %194 : vector<5x1xf32> to vector<5x5xf32>
    %196 = arith.subf %192, %195 : vector<5x5xf32>
    %197 = math.exp %196 : vector<5x5xf32>
    %cst_70 = arith.constant dense<0.000000e+00> : vector<5xf32>
    %198 = vector.multi_reduction <add>, %197, %cst_70 [1] : vector<5x5xf32> to vector<5xf32>
    %199 = vector.shape_cast %198 : vector<5xf32> to vector<5x1xf32>
    %200 = tpu.reciprocal %199 {approx = true} : vector<5x1xf32> -> vector<5x1xf32>
    %201 = vector.broadcast %200 : vector<5x1xf32> to vector<5x5xf32>
    %202 = arith.mulf %197, %201 : vector<5x5xf32>
    %203 = arith.truncf %202 : vector<5x5xf32> to vector<5x5xbf16>
    %204 = vector.extract_strided_slice %149 {offsets = [0, 16], sizes = [5, 8], strides = [1, 1]} : vector<5x32xf32> to vector<5x8xf32>
    %205 = arith.truncf %204 : vector<5x8xf32> to vector<5x8xbf16>
    %cst_71 = arith.constant dense<0.000000e+00> : vector<5x8xf32>
    %206 = tpu.matmul %203, %205, %cst_71 {dimension_numbers = #tpu.dot_dimension_numbers<[1], [0], [0], [1], [0, 0, 1, 1], [], []>} : vector<5x5xbf16>, vector<5x8xbf16>, vector<5x8xf32> -> vector<5x8xf32>
    %207 = vector.extract_strided_slice %145 {offsets = [0, 24], sizes = [5, 8], strides = [1, 1]} : vector<5x32xf32> to vector<5x8xf32>
    %208 = arith.truncf %207 : vector<5x8xf32> to vector<5x8xbf16>
    %209 = vector.extract_strided_slice %147 {offsets = [0, 24], sizes = [5, 8], strides = [1, 1]} : vector<5x32xf32> to vector<5x8xf32>
    %210 = arith.truncf %209 : vector<5x8xf32> to vector<5x8xbf16>
    %cst_72 = arith.constant dense<0.000000e+00> : vector<5x5xf32>
    %211 = tpu.matmul %208, %210, %cst_72 {dimension_numbers = #tpu.dot_dimension_numbers<[1], [1], [0], [0], [0, 0, 1, 0], [], []>} : vector<5x8xbf16>, vector<5x8xbf16>, vector<5x5xf32> -> vector<5x5xf32>
    %cst_73 = arith.constant dense<0xFF800000> : vector<5xf32>
    %212 = vector.multi_reduction <maximumf>, %211, %cst_73 [1] : vector<5x5xf32> to vector<5xf32>
    %213 = vector.shape_cast %212 : vector<5xf32> to vector<5x1xf32>
    %214 = vector.broadcast %213 : vector<5x1xf32> to vector<5x5xf32>
    %215 = arith.subf %211, %214 : vector<5x5xf32>
    %216 = math.exp %215 : vector<5x5xf32>
    %cst_74 = arith.constant dense<0.000000e+00> : vector<5xf32>
    %217 = vector.multi_reduction <add>, %216, %cst_74 [1] : vector<5x5xf32> to vector<5xf32>
    %218 = vector.shape_cast %217 : vector<5xf32> to vector<5x1xf32>
    %219 = tpu.reciprocal %218 {approx = true} : vector<5x1xf32> -> vector<5x1xf32>
    %220 = vector.broadcast %219 : vector<5x1xf32> to vector<5x5xf32>
    %221 = arith.mulf %216, %220 : vector<5x5xf32>
    %222 = arith.truncf %221 : vector<5x5xf32> to vector<5x5xbf16>
    %223 = vector.extract_strided_slice %149 {offsets = [0, 24], sizes = [5, 8], strides = [1, 1]} : vector<5x32xf32> to vector<5x8xf32>
    %224 = arith.truncf %223 : vector<5x8xf32> to vector<5x8xbf16>
    %cst_75 = arith.constant dense<0.000000e+00> : vector<5x8xf32>
    %225 = tpu.matmul %222, %224, %cst_75 {dimension_numbers = #tpu.dot_dimension_numbers<[1], [0], [0], [1], [0, 0, 1, 1], [], []>} : vector<5x5xbf16>, vector<5x8xbf16>, vector<5x8xf32> -> vector<5x8xf32>
    %226 = tpu.concatenate %168, %187, %206, %225 in 1 : vector<5x8xf32>, vector<5x8xf32>, vector<5x8xf32>, vector<5x8xf32> -> vector<5x32xf32>
    %227 = tpu.concatenate %143, %226 in 0 : vector<5x32xf32>, vector<5x32xf32> -> vector<10x32xf32>
    %228 = arith.truncf %227 : vector<10x32xf32> to vector<10x32xbf16>
    %cst_76 = arith.constant dense<0.000000e+00> : vector<10x32xf32>
    %229 = tpu.matmul %228, %13, %cst_76 {dimension_numbers = #tpu.dot_dimension_numbers<[1], [0], [0], [1], [0, 0, 1, 1], [], []>} : vector<10x32xbf16>, vector<32x32xbf16>, vector<10x32xf32> -> vector<10x32xf32>
    %230 = vector.broadcast %15 : vector<1x32xf32> to vector<10x32xf32>
    %231 = arith.addf %229, %230 : vector<10x32xf32>
    %232 = arith.addf %28, %231 : vector<10x32xf32>
    %cst_77 = arith.constant dense<0.000000e+00> : vector<10xf32>
    %233 = vector.multi_reduction <add>, %232, %cst_77 [1] : vector<10x32xf32> to vector<10xf32>
    %234 = vector.shape_cast %233 : vector<10xf32> to vector<10x1xf32>
    %cst_78 = arith.constant 3.200000e+01 : f32
    %235 = vector.broadcast %cst_78 : f32 to vector<10x1xf32>
    %236 = arith.divf %234, %235 : vector<10x1xf32>
    %237 = vector.broadcast %236 : vector<10x1xf32> to vector<10x32xf32>
    %238 = arith.subf %232, %237 : vector<10x32xf32>
    %239 = arith.mulf %238, %238 : vector<10x32xf32>
    %cst_79 = arith.constant dense<0.000000e+00> : vector<10xf32>
    %240 = vector.multi_reduction <add>, %239, %cst_79 [1] : vector<10x32xf32> to vector<10xf32>
    %241 = vector.shape_cast %240 : vector<10xf32> to vector<10x1xf32>
    %cst_80 = arith.constant 3.200000e+01 : f32
    %242 = vector.broadcast %cst_80 : f32 to vector<10x1xf32>
    %243 = arith.divf %241, %242 : vector<10x1xf32>
    %244 = vector.broadcast %236 : vector<10x1xf32> to vector<10x32xf32>
    %245 = arith.subf %232, %244 : vector<10x32xf32>
    %cst_81 = arith.constant 9.99999996E-13 : f32
    %246 = vector.broadcast %cst_81 : f32 to vector<10x1xf32>
    %247 = arith.addf %243, %246 : vector<10x1xf32>
    %248 = math.rsqrt %247 : vector<10x1xf32>
    %249 = vector.broadcast %248 : vector<10x1xf32> to vector<10x32xf32>
    %250 = arith.mulf %245, %249 : vector<10x32xf32>
    %251 = vector.broadcast %17 : vector<1x32xf32> to vector<10x32xf32>
    %252 = arith.mulf %250, %251 : vector<10x32xf32>
    %253 = vector.broadcast %19 : vector<1x32xf32> to vector<10x32xf32>
    %254 = arith.addf %252, %253 : vector<10x32xf32>
    %255 = arith.truncf %254 : vector<10x32xf32> to vector<10x32xbf16>
    %cst_82 = arith.constant dense<0.000000e+00> : vector<10x128xf32>
    %256 = tpu.matmul %255, %21, %cst_82 {dimension_numbers = #tpu.dot_dimension_numbers<[1], [0], [0], [1], [0, 0, 1, 1], [], []>} : vector<10x32xbf16>, vector<32x128xbf16>, vector<10x128xf32> -> vector<10x128xf32>
    %257 = vector.broadcast %23 : vector<1x128xf32> to vector<10x128xf32>
    %258 = arith.addf %256, %257 : vector<10x128xf32>
    %cst_83 = arith.constant 5.000000e-01 : f32
    %259 = vector.broadcast %cst_83 : f32 to vector<10x128xf32>
    %260 = arith.mulf %259, %258 : vector<10x128xf32>
    %cst_84 = arith.constant 0.707106769 : f32
    %261 = vector.broadcast %cst_84 : f32 to vector<10x128xf32>
    %262 = arith.mulf %258, %261 : vector<10x128xf32>
    %263 = math.erf %262 : vector<10x128xf32>
    %cst_85 = arith.constant 1.000000e+00 : f32
    %264 = vector.broadcast %cst_85 : f32 to vector<10x128xf32>
    %265 = arith.addf %264, %263 : vector<10x128xf32>
    %266 = arith.mulf %260, %265 : vector<10x128xf32>
    %267 = arith.truncf %266 : vector<10x128xf32> to vector<10x128xbf16>
    %cst_86 = arith.constant dense<0.000000e+00> : vector<10x32xf32>
    %268 = tpu.matmul %267, %25, %cst_86 {dimension_numbers = #tpu.dot_dimension_numbers<[1], [0], [0], [1], [0, 0, 1, 1], [], []>} : vector<10x128xbf16>, vector<128x32xbf16>, vector<10x32xf32> -> vector<10x32xf32>
    %269 = vector.broadcast %27 : vector<1x32xf32> to vector<10x32xf32>
    %270 = arith.addf %268, %269 : vector<10x32xf32>
    %271 = arith.addf %232, %270 : vector<10x32xf32>
    %272 = vector.shape_cast %271 : vector<10x32xf32> to vector<2x5x32xf32>
    %c1_i32 = arith.constant 1 : i32
    %273 = arith.cmpi slt, %arg1, %c1_i32 : i32
    %274 = arith.extui %273 : i1 to i32
    %c0_i32_87 = arith.constant 0 : i32
    %275 = arith.cmpi ne, %274, %c0_i32_87 : i32
    scf.if %275 {
      %c0_90 = arith.constant 0 : index
      %c0_91 = arith.constant 0 : index
      %c0_92 = arith.constant 0 : index
      %279 = vector.load %arg19[%c0_90, %c0_91, %c0_92] : memref<2x5x32xf32, #tpu.memory_space<vmem>>, vector<2x5x32xf32>
      tpu.vector_store %arg19[%c0_90, %c0_91, %c0_92], %272 {strides = array<i32>} : memref<2x5x32xf32, #tpu.memory_space<vmem>>, vector<2x5x32xf32>,
    } else {
    }
    %c1_i32_88 = arith.constant 1 : i32
    %276 = arith.cmpi eq, %arg1, %c1_i32_88 : i32
    %277 = arith.extui %276 : i1 to i32
    %c0_i32_89 = arith.constant 0 : i32
    %278 = arith.cmpi ne, %277, %c0_i32_89 : i32
    scf.if %278 {
      %279 = vector.shape_cast %272 : vector<2x5x32xf32> to vector<10x32xf32>
      %c0_90 = arith.constant 0 : index
      %c0_91 = arith.constant 0 : index
      %280 = vector.load %arg15[%c0_90, %c0_91] : memref<1x32xf32, #tpu.memory_space<vmem>>, vector<1x32xf32>
      %c0_92 = arith.constant 0 : index
      %c0_93 = arith.constant 0 : index
      %281 = vector.load %arg16[%c0_92, %c0_93] : memref<1x32xf32, #tpu.memory_space<vmem>>, vector<1x32xf32>
      %cst_94 = arith.constant dense<0.000000e+00> : vector<10xf32>
      %282 = vector.multi_reduction <add>, %279, %cst_94 [1] : vector<10x32xf32> to vector<10xf32>
      %283 = vector.shape_cast %282 : vector<10xf32> to vector<10x1xf32>
      %cst_95 = arith.constant 3.200000e+01 : f32
      %284 = vector.broadcast %cst_95 : f32 to vector<10x1xf32>
      %285 = arith.divf %283, %284 : vector<10x1xf32>
      %286 = vector.broadcast %285 : vector<10x1xf32> to vector<10x32xf32>
      %287 = arith.subf %279, %286 : vector<10x32xf32>
      %288 = arith.mulf %287, %287 : vector<10x32xf32>
      %cst_96 = arith.constant dense<0.000000e+00> : vector<10xf32>
      %289 = vector.multi_reduction <add>, %288, %cst_96 [1] : vector<10x32xf32> to vector<10xf32>
      %290 = vector.shape_cast %289 : vector<10xf32> to vector<10x1xf32>
      %cst_97 = arith.constant 3.200000e+01 : f32
      %291 = vector.broadcast %cst_97 : f32 to vector<10x1xf32>
      %292 = arith.divf %290, %291 : vector<10x1xf32>
      %293 = vector.broadcast %285 : vector<10x1xf32> to vector<10x32xf32>
      %294 = arith.subf %279, %293 : vector<10x32xf32>
      %cst_98 = arith.constant 9.99999996E-13 : f32
      %295 = vector.broadcast %cst_98 : f32 to vector<10x1xf32>
      %296 = arith.addf %292, %295 : vector<10x1xf32>
      %297 = math.rsqrt %296 : vector<10x1xf32>
      %298 = vector.broadcast %297 : vector<10x1xf32> to vector<10x32xf32>
      %299 = arith.mulf %294, %298 : vector<10x32xf32>
      %300 = vector.broadcast %280 : vector<1x32xf32> to vector<10x32xf32>
      %301 = arith.mulf %299, %300 : vector<10x32xf32>
      %302 = vector.broadcast %281 : vector<1x32xf32> to vector<10x32xf32>
      %303 = arith.addf %301, %302 : vector<10x32xf32>
      %304 = arith.truncf %303 : vector<10x32xf32> to vector<10x32xbf16>
      %c0_99 = arith.constant 0 : index
      %c0_100 = arith.constant 0 : index
      %305 = vector.load %arg17[%c0_99, %c0_100] : memref<32x32xbf16, #tpu.memory_space<vmem>>, vector<32x32xbf16>
      %cst_101 = arith.constant dense<0.000000e+00> : vector<10x32xf32>
      %306 = tpu.matmul %304, %305, %cst_101 {dimension_numbers = #tpu.dot_dimension_numbers<[1], [0], [0], [1], [0, 0, 1, 1], [], []>} : vector<10x32xbf16>, vector<32x32xbf16>, vector<10x32xf32> -> vector<10x32xf32>
      %c0_102 = arith.constant 0 : index
      %c0_103 = arith.constant 0 : index
      %307 = vector.load %arg18[%c0_102, %c0_103] : memref<1x32xf32, #tpu.memory_space<vmem>>, vector<1x32xf32>
      %308 = vector.broadcast %307 : vector<1x32xf32> to vector<10x32xf32>
      %309 = arith.addf %306, %308 : vector<10x32xf32>
      %310 = vector.shape_cast %309 : vector<10x32xf32> to vector<2x5x32xf32>
      %c0_104 = arith.constant 0 : index
      %c0_105 = arith.constant 0 : index
      %c0_106 = arith.constant 0 : index
      %311 = vector.load %arg19[%c0_104, %c0_105, %c0_106] : memref<2x5x32xf32, #tpu.memory_space<vmem>>, vector<2x5x32xf32>
      tpu.vector_store %arg19[%c0_104, %c0_105, %c0_106], %310 {strides = array<i32>} : memref<2x5x32xf32, #tpu.memory_space<vmem>>, vector<2x5x32xf32>,
    } else {
    }
    return
  }
  func.func @transform_0(%arg0: i32, %arg1: i32) -> (i32, i32, i32) {
    %c0_i32 = arith.constant 0 : i32
    %c0_i32_0 = arith.constant 0 : i32
    %c0_i32_1 = arith.constant 0 : i32
    return %arg0, %c0_i32, %c0_i32_0 : i32, i32, i32
  }
  func.func @transform_1(%arg0: i32, %arg1: i32) -> (i32, i32, i32) {
    %c0_i32 = arith.constant 0 : i32
    %c0_i32_0 = arith.constant 0 : i32
    %c0_i32_1 = arith.constant 0 : i32
    return %arg1, %c0_i32, %c0_i32_0 : i32, i32, i32
  }
  func.func @transform_2(%arg0: i32, %arg1: i32) -> (i32, i32, i32) {
    %c0_i32 = arith.constant 0 : i32
    %c0_i32_0 = arith.constant 0 : i32
    %c0_i32_1 = arith.constant 0 : i32
    return %arg1, %c0_i32, %c0_i32_0 : i32, i32, i32
  }
  func.func @transform_3(%arg0: i32, %arg1: i32) -> (i32, i32, i32) {
    %c0_i32 = arith.constant 0 : i32
    %c0_i32_0 = arith.constant 0 : i32
    %c0_i32_1 = arith.constant 0 : i32
    return %arg1, %c0_i32, %c0_i32_0 : i32, i32, i32
  }
  func.func @transform_4(%arg0: i32, %arg1: i32) -> (i32, i32, i32) {
    %c0_i32 = arith.constant 0 : i32
    %c0_i32_0 = arith.constant 0 : i32
    %c0_i32_1 = arith.constant 0 : i32
    return %arg1, %c0_i32, %c0_i32_0 : i32, i32, i32
  }
  func.func @transform_5(%arg0: i32, %arg1: i32) -> (i32, i32, i32) {
    %c0_i32 = arith.constant 0 : i32
    %c0_i32_0 = arith.constant 0 : i32
    %c0_i32_1 = arith.constant 0 : i32
    return %arg1, %c0_i32, %c0_i32_0 : i32, i32, i32
  }
  func.func @transform_6(%arg0: i32, %arg1: i32) -> (i32, i32, i32) {
    %c0_i32 = arith.constant 0 : i32
    %c0_i32_0 = arith.constant 0 : i32
    %c0_i32_1 = arith.constant 0 : i32
    return %arg1, %c0_i32, %c0_i32_0 : i32, i32, i32
  }
  func.func @transform_7(%arg0: i32, %arg1: i32) -> (i32, i32, i32) {
    %c0_i32 = arith.constant 0 : i32
    %c0_i32_0 = arith.constant 0 : i32
    %c0_i32_1 = arith.constant 0 : i32
    return %arg1, %c0_i32, %c0_i32_0 : i32, i32, i32
  }
  func.func @transform_8(%arg0: i32, %arg1: i32) -> (i32, i32, i32) {
    %c0_i32 = arith.constant 0 : i32
    %c0_i32_0 = arith.constant 0 : i32
    %c0_i32_1 = arith.constant 0 : i32
    return %arg1, %c0_i32, %c0_i32_0 : i32, i32, i32
  }
  func.func @transform_9(%arg0: i32, %arg1: i32) -> (i32, i32, i32) {
    %c0_i32 = arith.constant 0 : i32
    %c0_i32_0 = arith.constant 0 : i32
    %c0_i32_1 = arith.constant 0 : i32
    return %arg1, %c0_i32, %c0_i32_0 : i32, i32, i32
  }
  func.func @transform_10(%arg0: i32, %arg1: i32) -> (i32, i32, i32) {
    %c0_i32 = arith.constant 0 : i32
    %c0_i32_0 = arith.constant 0 : i32
    %c0_i32_1 = arith.constant 0 : i32
    return %arg1, %c0_i32, %c0_i32_0 : i32, i32, i32
  }
  func.func @transform_11(%arg0: i32, %arg1: i32) -> (i32, i32, i32) {
    %c0_i32 = arith.constant 0 : i32
    %c0_i32_0 = arith.constant 0 : i32
    %c0_i32_1 = arith.constant 0 : i32
    return %arg1, %c0_i32, %c0_i32_0 : i32, i32, i32
  }
  func.func @transform_12(%arg0: i32, %arg1: i32) -> (i32, i32, i32) {
    %c0_i32 = arith.constant 0 : i32
    %c0_i32_0 = arith.constant 0 : i32
    %c0_i32_1 = arith.constant 0 : i32
    return %arg1, %c0_i32, %c0_i32_0 : i32, i32, i32
  }
  func.func @transform_13(%arg0: i32, %arg1: i32) -> (i32, i32) {
    %c0_i32 = arith.constant 0 : i32
    %c0_i32_0 = arith.constant 0 : i32
    %c0_i32_1 = arith.constant 0 : i32
    return %c0_i32, %c0_i32_0 : i32, i32
  }
  func.func @transform_14(%arg0: i32, %arg1: i32) -> (i32, i32) {
    %c0_i32 = arith.constant 0 : i32
    %c0_i32_0 = arith.constant 0 : i32
    %c0_i32_1 = arith.constant 0 : i32
    return %c0_i32, %c0_i32_0 : i32, i32
  }
  func.func @transform_15(%arg0: i32, %arg1: i32) -> (i32, i32) {
    %c0_i32 = arith.constant 0 : i32
    %c0_i32_0 = arith.constant 0 : i32
    %c0_i32_1 = arith.constant 0 : i32
    return %c0_i32, %c0_i32_0 : i32, i32
  }
  func.func @transform_16(%arg0: i32, %arg1: i32) -> (i32, i32) {
    %c0_i32 = arith.constant 0 : i32
    %c0_i32_0 = arith.constant 0 : i32
    %c0_i32_1 = arith.constant 0 : i32
    return %c0_i32, %c0_i32_0 : i32, i32
  }
  func.func @transform_17(%arg0: i32, %arg1: i32) -> (i32, i32, i32) {
    %c0_i32 = arith.constant 0 : i32
    %c0_i32_0 = arith.constant 0 : i32
    %c0_i32_1 = arith.constant 0 : i32
    return %arg0, %c0_i32, %c0_i32_0 : i32, i32, i32
  }
}

module attributes {stable_mosaic.version = 11 : i64} {
  func.func @_gpt_stack_kernel(%arg0: i32, %arg1: i32, %arg2: memref<2x13x32xf32, #tpu.memory_space<vmem>>, %arg3: memref<2x1x13xf32, #tpu.memory_space<vmem>>, %arg4: memref<1x1x32xf32, #tpu.memory_space<vmem>>, %arg5: memref<1x1x32xf32, #tpu.memory_space<vmem>>, %arg6: memref<1x32x96xbf16, #tpu.memory_space<vmem>>, %arg7: memref<1x1x96xf32, #tpu.memory_space<vmem>>, %arg8: memref<1x32x32xbf16, #tpu.memory_space<vmem>>, %arg9: memref<1x1x32xf32, #tpu.memory_space<vmem>>, %arg10: memref<1x1x32xf32, #tpu.memory_space<vmem>>, %arg11: memref<1x1x32xf32, #tpu.memory_space<vmem>>, %arg12: memref<1x32x128xbf16, #tpu.memory_space<vmem>>, %arg13: memref<1x1x128xf32, #tpu.memory_space<vmem>>, %arg14: memref<1x128x32xbf16, #tpu.memory_space<vmem>>, %arg15: memref<1x1x32xf32, #tpu.memory_space<vmem>>, %arg16: memref<1x32xf32, #tpu.memory_space<vmem>>, %arg17: memref<1x32xf32, #tpu.memory_space<vmem>>, %arg18: memref<32x64xbf16, #tpu.memory_space<vmem>>, %arg19: memref<1x64xf32, #tpu.memory_space<vmem>>, %arg20: memref<1x64xf32, #tpu.memory_space<vmem>>, %arg21: memref<1x64xf32, #tpu.memory_space<vmem>>, %arg22: memref<1x64xf32, #tpu.memory_space<vmem>>, %arg23: memref<1x64xf32, #tpu.memory_space<vmem>>, %arg24: memref<64x128xbf16, #tpu.memory_space<vmem>>, %arg25: memref<1x128xf32, #tpu.memory_space<vmem>>, %arg26: memref<2x1x128xf32, #tpu.memory_space<vmem>>, %arg27: memref<2x13x32xf32, #tpu.memory_space<vmem>>, %arg28: memref<2x13x13xf32, #tpu.memory_space<vmem>>) attributes {dimension_semantics = [#tpu.dimension_semantics<parallel>, #tpu.dimension_semantics<arbitrary>], iteration_bounds = array<i64: 2, 2>, scalar_prefetch = 0 : i64, scratch_operands = 2 : i64, tpu.core_type = #tpu.core_type<tc>, window_params = [{transform_indices = @transform_0, window_bounds = array<i64: 2, 13, 32>}, {transform_indices = @transform_1, window_bounds = array<i64: 2, 1, 13>}, {transform_indices = @transform_2, window_bounds = array<i64: 1, 1, 32>}, {transform_indices = @transform_3, window_bounds = array<i64: 1, 1, 32>}, {transform_indices = @transform_4, window_bounds = array<i64: 1, 32, 96>}, {transform_indices = @transform_5, window_bounds = array<i64: 1, 1, 96>}, {transform_indices = @transform_6, window_bounds = array<i64: 1, 32, 32>}, {transform_indices = @transform_7, window_bounds = array<i64: 1, 1, 32>}, {transform_indices = @transform_8, window_bounds = array<i64: 1, 1, 32>}, {transform_indices = @transform_9, window_bounds = array<i64: 1, 1, 32>}, {transform_indices = @transform_10, window_bounds = array<i64: 1, 32, 128>}, {transform_indices = @transform_11, window_bounds = array<i64: 1, 1, 128>}, {transform_indices = @transform_12, window_bounds = array<i64: 1, 128, 32>}, {transform_indices = @transform_13, window_bounds = array<i64: 1, 1, 32>}, {pipeline_mode = #tpu.pipeline_mode<synchronous>, transform_indices = @transform_14, window_bounds = array<i64: 1, 32>}, {pipeline_mode = #tpu.pipeline_mode<synchronous>, transform_indices = @transform_15, window_bounds = array<i64: 1, 32>}, {pipeline_mode = #tpu.pipeline_mode<synchronous>, transform_indices = @transform_16, window_bounds = array<i64: 32, 64>}, {pipeline_mode = #tpu.pipeline_mode<synchronous>, transform_indices = @transform_17, window_bounds = array<i64: 1, 64>}, {pipeline_mode = #tpu.pipeline_mode<synchronous>, transform_indices = @transform_18, window_bounds = array<i64: 1, 64>}, {pipeline_mode = #tpu.pipeline_mode<synchronous>, transform_indices = @transform_19, window_bounds = array<i64: 1, 64>}, {pipeline_mode = #tpu.pipeline_mode<synchronous>, transform_indices = @transform_20, window_bounds = array<i64: 1, 64>}, {pipeline_mode = #tpu.pipeline_mode<synchronous>, transform_indices = @transform_21, window_bounds = array<i64: 1, 64>}, {pipeline_mode = #tpu.pipeline_mode<synchronous>, transform_indices = @transform_22, window_bounds = array<i64: 64, 128>}, {pipeline_mode = #tpu.pipeline_mode<synchronous>, transform_indices = @transform_23, window_bounds = array<i64: 1, 128>}, {transform_indices = @transform_24, window_bounds = array<i64: 2, 1, 128>}]} {
    %c0_i32 = arith.constant 0 : i32
    %0 = arith.cmpi eq, %arg1, %c0_i32 : i32
    %1 = arith.extui %0 : i1 to i32
    %c0_i32_0 = arith.constant 0 : i32
    %2 = arith.cmpi ne, %1, %c0_i32_0 : i32
    scf.if %2 {
      %c0_94 = arith.constant 0 : index
      %c0_95 = arith.constant 0 : index
      %c0_96 = arith.constant 0 : index
      %297 = vector.load %arg2[%c0_94, %c0_95, %c0_96] : memref<2x13x32xf32, #tpu.memory_space<vmem>>, vector<2x13x32xf32>
      %c0_97 = arith.constant 0 : index
      %c0_98 = arith.constant 0 : index
      %c0_99 = arith.constant 0 : index
      %298 = vector.load %arg27[%c0_97, %c0_98, %c0_99] : memref<2x13x32xf32, #tpu.memory_space<vmem>>, vector<2x13x32xf32>
      tpu.vector_store %arg27[%c0_97, %c0_98, %c0_99], %297 {strides = array<i32>} : memref<2x13x32xf32, #tpu.memory_space<vmem>>, vector<2x13x32xf32>,
      %c0_100 = arith.constant 0 : index
      %c0_101 = arith.constant 0 : index
      %c0_102 = arith.constant 0 : index
      %299 = vector.load %arg3[%c0_100, %c0_101, %c0_102] : memref<2x1x13xf32, #tpu.memory_space<vmem>>, vector<2x1x13xf32>
      %cst_103 = arith.constant 5.000000e-01 : f32
      %300 = vector.broadcast %cst_103 : f32 to vector<2x1x13xf32>
      %301 = arith.cmpf ogt, %299, %300 : vector<2x1x13xf32>
      %302 = tpu.iota {dimensions = array<i32: 0>} : vector<13x13xi32>
      %303 = tpu.iota {dimensions = array<i32: 1>} : vector<13x13xi32>
      %304 = arith.cmpi sle, %303, %302 : vector<13x13xi32>
      %305 = vector.shape_cast %304 : vector<13x13xi1> to vector<1x13x13xi1>
      %306 = vector.broadcast %305 : vector<1x13x13xi1> to vector<2x13x13xi1>
      %307 = vector.broadcast %301 : vector<2x1x13xi1> to vector<2x13x13xi1>
      %308 = arith.andi %306, %307 : vector<2x13x13xi1>
      %cst_104 = arith.constant 0.000000e+00 : f32
      %cst_105 = arith.constant -1.000000e+09 : f32
      %309 = vector.broadcast %cst_104 : f32 to vector<2x13x13xf32>
      %310 = vector.broadcast %cst_105 : f32 to vector<2x13x13xf32>
      %311 = arith.select %308, %309, %310 : vector<2x13x13xi1>, vector<2x13x13xf32>
      %c0_106 = arith.constant 0 : index
      %c0_107 = arith.constant 0 : index
      %c0_108 = arith.constant 0 : index
      %312 = vector.load %arg28[%c0_106, %c0_107, %c0_108] : memref<2x13x13xf32, #tpu.memory_space<vmem>>, vector<2x13x13xf32>
      tpu.vector_store %arg28[%c0_106, %c0_107, %c0_108], %311 {strides = array<i32>} : memref<2x13x13xf32, #tpu.memory_space<vmem>>, vector<2x13x13xf32>,
    } else {
    }
    %c0 = arith.constant 0 : index
    %c0_1 = arith.constant 0 : index
    %c0_2 = arith.constant 0 : index
    %3 = vector.load %arg27[%c0, %c0_1, %c0_2] : memref<2x13x32xf32, #tpu.memory_space<vmem>>, vector<2x13x32xf32>
    %c0_3 = arith.constant 0 : index
    %c0_4 = arith.constant 0 : index
    %c0_5 = arith.constant 0 : index
    %4 = vector.load %arg28[%c0_3, %c0_4, %c0_5] : memref<2x13x13xf32, #tpu.memory_space<vmem>>, vector<2x13x13xf32>
    %c0_6 = arith.constant 0 : index
    %c0_7 = arith.constant 0 : index
    %c0_8 = arith.constant 0 : index
    %5 = vector.load %arg4[%c0_6, %c0_7, %c0_8] : memref<1x1x32xf32, #tpu.memory_space<vmem>>, vector<1x1x32xf32>
    %6 = vector.shape_cast %5 : vector<1x1x32xf32> to vector<1x32xf32>
    %c0_9 = arith.constant 0 : index
    %c0_10 = arith.constant 0 : index
    %c0_11 = arith.constant 0 : index
    %7 = vector.load %arg5[%c0_9, %c0_10, %c0_11] : memref<1x1x32xf32, #tpu.memory_space<vmem>>, vector<1x1x32xf32>
    %8 = vector.shape_cast %7 : vector<1x1x32xf32> to vector<1x32xf32>
    %c0_12 = arith.constant 0 : index
    %c0_13 = arith.constant 0 : index
    %c0_14 = arith.constant 0 : index
    %9 = vector.load %arg6[%c0_12, %c0_13, %c0_14] : memref<1x32x96xbf16, #tpu.memory_space<vmem>>, vector<1x32x96xbf16>
    %10 = vector.shape_cast %9 : vector<1x32x96xbf16> to vector<32x96xbf16>
    %c0_15 = arith.constant 0 : index
    %c0_16 = arith.constant 0 : index
    %c0_17 = arith.constant 0 : index
    %11 = vector.load %arg7[%c0_15, %c0_16, %c0_17] : memref<1x1x96xf32, #tpu.memory_space<vmem>>, vector<1x1x96xf32>
    %12 = vector.shape_cast %11 : vector<1x1x96xf32> to vector<1x96xf32>
    %c0_18 = arith.constant 0 : index
    %c0_19 = arith.constant 0 : index
    %c0_20 = arith.constant 0 : index
    %13 = vector.load %arg8[%c0_18, %c0_19, %c0_20] : memref<1x32x32xbf16, #tpu.memory_space<vmem>>, vector<1x32x32xbf16>
    %14 = vector.shape_cast %13 : vector<1x32x32xbf16> to vector<32x32xbf16>
    %c0_21 = arith.constant 0 : index
    %c0_22 = arith.constant 0 : index
    %c0_23 = arith.constant 0 : index
    %15 = vector.load %arg9[%c0_21, %c0_22, %c0_23] : memref<1x1x32xf32, #tpu.memory_space<vmem>>, vector<1x1x32xf32>
    %16 = vector.shape_cast %15 : vector<1x1x32xf32> to vector<1x32xf32>
    %c0_24 = arith.constant 0 : index
    %c0_25 = arith.constant 0 : index
    %c0_26 = arith.constant 0 : index
    %17 = vector.load %arg10[%c0_24, %c0_25, %c0_26] : memref<1x1x32xf32, #tpu.memory_space<vmem>>, vector<1x1x32xf32>
    %18 = vector.shape_cast %17 : vector<1x1x32xf32> to vector<1x32xf32>
    %c0_27 = arith.constant 0 : index
    %c0_28 = arith.constant 0 : index
    %c0_29 = arith.constant 0 : index
    %19 = vector.load %arg11[%c0_27, %c0_28, %c0_29] : memref<1x1x32xf32, #tpu.memory_space<vmem>>, vector<1x1x32xf32>
    %20 = vector.shape_cast %19 : vector<1x1x32xf32> to vector<1x32xf32>
    %c0_30 = arith.constant 0 : index
    %c0_31 = arith.constant 0 : index
    %c0_32 = arith.constant 0 : index
    %21 = vector.load %arg12[%c0_30, %c0_31, %c0_32] : memref<1x32x128xbf16, #tpu.memory_space<vmem>>, vector<1x32x128xbf16>
    %22 = vector.shape_cast %21 : vector<1x32x128xbf16> to vector<32x128xbf16>
    %c0_33 = arith.constant 0 : index
    %c0_34 = arith.constant 0 : index
    %c0_35 = arith.constant 0 : index
    %23 = vector.load %arg13[%c0_33, %c0_34, %c0_35] : memref<1x1x128xf32, #tpu.memory_space<vmem>>, vector<1x1x128xf32>
    %24 = vector.shape_cast %23 : vector<1x1x128xf32> to vector<1x128xf32>
    %c0_36 = arith.constant 0 : index
    %c0_37 = arith.constant 0 : index
    %c0_38 = arith.constant 0 : index
    %25 = vector.load %arg14[%c0_36, %c0_37, %c0_38] : memref<1x128x32xbf16, #tpu.memory_space<vmem>>, vector<1x128x32xbf16>
    %26 = vector.shape_cast %25 : vector<1x128x32xbf16> to vector<128x32xbf16>
    %c0_39 = arith.constant 0 : index
    %c0_40 = arith.constant 0 : index
    %c0_41 = arith.constant 0 : index
    %27 = vector.load %arg15[%c0_39, %c0_40, %c0_41] : memref<1x1x32xf32, #tpu.memory_space<vmem>>, vector<1x1x32xf32>
    %28 = vector.shape_cast %27 : vector<1x1x32xf32> to vector<1x32xf32>
    %29 = vector.shape_cast %3 : vector<2x13x32xf32> to vector<26x32xf32>
    %cst = arith.constant dense<0.000000e+00> : vector<26xf32>
    %30 = vector.multi_reduction <add>, %29, %cst [1] : vector<26x32xf32> to vector<26xf32>
    %31 = vector.shape_cast %30 : vector<26xf32> to vector<26x1xf32>
    %cst_42 = arith.constant 3.200000e+01 : f32
    %32 = vector.broadcast %cst_42 : f32 to vector<26x1xf32>
    %33 = arith.divf %31, %32 : vector<26x1xf32>
    %34 = vector.broadcast %33 : vector<26x1xf32> to vector<26x32xf32>
    %35 = arith.subf %29, %34 : vector<26x32xf32>
    %36 = arith.mulf %35, %35 : vector<26x32xf32>
    %cst_43 = arith.constant dense<0.000000e+00> : vector<26xf32>
    %37 = vector.multi_reduction <add>, %36, %cst_43 [1] : vector<26x32xf32> to vector<26xf32>
    %38 = vector.shape_cast %37 : vector<26xf32> to vector<26x1xf32>
    %cst_44 = arith.constant 3.200000e+01 : f32
    %39 = vector.broadcast %cst_44 : f32 to vector<26x1xf32>
    %40 = arith.divf %38, %39 : vector<26x1xf32>
    %41 = vector.broadcast %33 : vector<26x1xf32> to vector<26x32xf32>
    %42 = arith.subf %29, %41 : vector<26x32xf32>
    %cst_45 = arith.constant 9.99999974E-6 : f32
    %43 = vector.broadcast %cst_45 : f32 to vector<26x1xf32>
    %44 = arith.addf %40, %43 : vector<26x1xf32>
    %45 = math.rsqrt %44 : vector<26x1xf32>
    %46 = vector.broadcast %45 : vector<26x1xf32> to vector<26x32xf32>
    %47 = arith.mulf %42, %46 : vector<26x32xf32>
    %48 = vector.broadcast %6 : vector<1x32xf32> to vector<26x32xf32>
    %49 = arith.mulf %47, %48 : vector<26x32xf32>
    %50 = vector.broadcast %8 : vector<1x32xf32> to vector<26x32xf32>
    %51 = arith.addf %49, %50 : vector<26x32xf32>
    %52 = arith.truncf %51 : vector<26x32xf32> to vector<26x32xbf16>
    %cst_46 = arith.constant dense<0.000000e+00> : vector<26x96xf32>
    %53 = tpu.matmul %52, %10, %cst_46 {dimension_numbers = #tpu.dot_dimension_numbers<[1], [0], [0], [1], [0, 0, 1, 1], [], []>} : vector<26x32xbf16>, vector<32x96xbf16>, vector<26x96xf32> -> vector<26x96xf32>
    %54 = vector.broadcast %12 : vector<1x96xf32> to vector<26x96xf32>
    %55 = arith.addf %53, %54 : vector<26x96xf32>
    %56 = vector.extract_strided_slice %55 {offsets = [0, 0], sizes = [26, 32], strides = [1, 1]} : vector<26x96xf32> to vector<26x32xf32>
    %57 = vector.shape_cast %56 : vector<26x32xf32> to vector<2x13x32xf32>
    %58 = vector.extract_strided_slice %55 {offsets = [0, 32], sizes = [26, 32], strides = [1, 1]} : vector<26x96xf32> to vector<26x32xf32>
    %59 = vector.shape_cast %58 : vector<26x32xf32> to vector<2x13x32xf32>
    %60 = vector.extract_strided_slice %55 {offsets = [0, 64], sizes = [26, 32], strides = [1, 1]} : vector<26x96xf32> to vector<26x32xf32>
    %61 = vector.shape_cast %60 : vector<26x32xf32> to vector<2x13x32xf32>
    %62 = vector.extract_strided_slice %57 {offsets = [0, 0, 0], sizes = [1, 13, 32], strides = [1, 1, 1]} : vector<2x13x32xf32> to vector<1x13x32xf32>
    %63 = vector.shape_cast %62 : vector<1x13x32xf32> to vector<13x32xf32>
    %64 = vector.extract_strided_slice %59 {offsets = [0, 0, 0], sizes = [1, 13, 32], strides = [1, 1, 1]} : vector<2x13x32xf32> to vector<1x13x32xf32>
    %65 = vector.shape_cast %64 : vector<1x13x32xf32> to vector<13x32xf32>
    %66 = vector.extract_strided_slice %61 {offsets = [0, 0, 0], sizes = [1, 13, 32], strides = [1, 1, 1]} : vector<2x13x32xf32> to vector<1x13x32xf32>
    %67 = vector.shape_cast %66 : vector<1x13x32xf32> to vector<13x32xf32>
    %68 = vector.extract_strided_slice %4 {offsets = [0, 0, 0], sizes = [1, 13, 13], strides = [1, 1, 1]} : vector<2x13x13xf32> to vector<1x13x13xf32>
    %69 = vector.shape_cast %68 : vector<1x13x13xf32> to vector<13x13xf32>
    %70 = vector.extract_strided_slice %63 {offsets = [0, 0], sizes = [13, 8], strides = [1, 1]} : vector<13x32xf32> to vector<13x8xf32>
    %71 = arith.truncf %70 : vector<13x8xf32> to vector<13x8xbf16>
    %72 = vector.extract_strided_slice %65 {offsets = [0, 0], sizes = [13, 8], strides = [1, 1]} : vector<13x32xf32> to vector<13x8xf32>
    %73 = arith.truncf %72 : vector<13x8xf32> to vector<13x8xbf16>
    %cst_47 = arith.constant dense<0.000000e+00> : vector<13x13xf32>
    %74 = tpu.matmul %71, %73, %cst_47 {dimension_numbers = #tpu.dot_dimension_numbers<[1], [1], [0], [0], [0, 0, 1, 0], [], []>} : vector<13x8xbf16>, vector<13x8xbf16>, vector<13x13xf32> -> vector<13x13xf32>
    %75 = arith.addf %74, %69 : vector<13x13xf32>
    %cst_48 = arith.constant dense<0xFF800000> : vector<13xf32>
    %76 = vector.multi_reduction <maximumf>, %75, %cst_48 [1] : vector<13x13xf32> to vector<13xf32>
    %77 = vector.shape_cast %76 : vector<13xf32> to vector<13x1xf32>
    %78 = vector.broadcast %77 : vector<13x1xf32> to vector<13x13xf32>
    %79 = arith.subf %75, %78 : vector<13x13xf32>
    %80 = math.exp %79 : vector<13x13xf32>
    %cst_49 = arith.constant dense<0.000000e+00> : vector<13xf32>
    %81 = vector.multi_reduction <add>, %80, %cst_49 [1] : vector<13x13xf32> to vector<13xf32>
    %82 = vector.shape_cast %81 : vector<13xf32> to vector<13x1xf32>
    %83 = tpu.reciprocal %82 {approx = true} : vector<13x1xf32> -> vector<13x1xf32>
    %84 = vector.broadcast %83 : vector<13x1xf32> to vector<13x13xf32>
    %85 = arith.mulf %80, %84 : vector<13x13xf32>
    %86 = arith.truncf %85 : vector<13x13xf32> to vector<13x13xbf16>
    %87 = vector.extract_strided_slice %67 {offsets = [0, 0], sizes = [13, 8], strides = [1, 1]} : vector<13x32xf32> to vector<13x8xf32>
    %88 = arith.truncf %87 : vector<13x8xf32> to vector<13x8xbf16>
    %cst_50 = arith.constant dense<0.000000e+00> : vector<13x8xf32>
    %89 = tpu.matmul %86, %88, %cst_50 {dimension_numbers = #tpu.dot_dimension_numbers<[1], [0], [0], [1], [0, 0, 1, 1], [], []>} : vector<13x13xbf16>, vector<13x8xbf16>, vector<13x8xf32> -> vector<13x8xf32>
    %90 = vector.extract_strided_slice %63 {offsets = [0, 8], sizes = [13, 8], strides = [1, 1]} : vector<13x32xf32> to vector<13x8xf32>
    %91 = arith.truncf %90 : vector<13x8xf32> to vector<13x8xbf16>
    %92 = vector.extract_strided_slice %65 {offsets = [0, 8], sizes = [13, 8], strides = [1, 1]} : vector<13x32xf32> to vector<13x8xf32>
    %93 = arith.truncf %92 : vector<13x8xf32> to vector<13x8xbf16>
    %cst_51 = arith.constant dense<0.000000e+00> : vector<13x13xf32>
    %94 = tpu.matmul %91, %93, %cst_51 {dimension_numbers = #tpu.dot_dimension_numbers<[1], [1], [0], [0], [0, 0, 1, 0], [], []>} : vector<13x8xbf16>, vector<13x8xbf16>, vector<13x13xf32> -> vector<13x13xf32>
    %95 = arith.addf %94, %69 : vector<13x13xf32>
    %cst_52 = arith.constant dense<0xFF800000> : vector<13xf32>
    %96 = vector.multi_reduction <maximumf>, %95, %cst_52 [1] : vector<13x13xf32> to vector<13xf32>
    %97 = vector.shape_cast %96 : vector<13xf32> to vector<13x1xf32>
    %98 = vector.broadcast %97 : vector<13x1xf32> to vector<13x13xf32>
    %99 = arith.subf %95, %98 : vector<13x13xf32>
    %100 = math.exp %99 : vector<13x13xf32>
    %cst_53 = arith.constant dense<0.000000e+00> : vector<13xf32>
    %101 = vector.multi_reduction <add>, %100, %cst_53 [1] : vector<13x13xf32> to vector<13xf32>
    %102 = vector.shape_cast %101 : vector<13xf32> to vector<13x1xf32>
    %103 = tpu.reciprocal %102 {approx = true} : vector<13x1xf32> -> vector<13x1xf32>
    %104 = vector.broadcast %103 : vector<13x1xf32> to vector<13x13xf32>
    %105 = arith.mulf %100, %104 : vector<13x13xf32>
    %106 = arith.truncf %105 : vector<13x13xf32> to vector<13x13xbf16>
    %107 = vector.extract_strided_slice %67 {offsets = [0, 8], sizes = [13, 8], strides = [1, 1]} : vector<13x32xf32> to vector<13x8xf32>
    %108 = arith.truncf %107 : vector<13x8xf32> to vector<13x8xbf16>
    %cst_54 = arith.constant dense<0.000000e+00> : vector<13x8xf32>
    %109 = tpu.matmul %106, %108, %cst_54 {dimension_numbers = #tpu.dot_dimension_numbers<[1], [0], [0], [1], [0, 0, 1, 1], [], []>} : vector<13x13xbf16>, vector<13x8xbf16>, vector<13x8xf32> -> vector<13x8xf32>
    %110 = vector.extract_strided_slice %63 {offsets = [0, 16], sizes = [13, 8], strides = [1, 1]} : vector<13x32xf32> to vector<13x8xf32>
    %111 = arith.truncf %110 : vector<13x8xf32> to vector<13x8xbf16>
    %112 = vector.extract_strided_slice %65 {offsets = [0, 16], sizes = [13, 8], strides = [1, 1]} : vector<13x32xf32> to vector<13x8xf32>
    %113 = arith.truncf %112 : vector<13x8xf32> to vector<13x8xbf16>
    %cst_55 = arith.constant dense<0.000000e+00> : vector<13x13xf32>
    %114 = tpu.matmul %111, %113, %cst_55 {dimension_numbers = #tpu.dot_dimension_numbers<[1], [1], [0], [0], [0, 0, 1, 0], [], []>} : vector<13x8xbf16>, vector<13x8xbf16>, vector<13x13xf32> -> vector<13x13xf32>
    %115 = arith.addf %114, %69 : vector<13x13xf32>
    %cst_56 = arith.constant dense<0xFF800000> : vector<13xf32>
    %116 = vector.multi_reduction <maximumf>, %115, %cst_56 [1] : vector<13x13xf32> to vector<13xf32>
    %117 = vector.shape_cast %116 : vector<13xf32> to vector<13x1xf32>
    %118 = vector.broadcast %117 : vector<13x1xf32> to vector<13x13xf32>
    %119 = arith.subf %115, %118 : vector<13x13xf32>
    %120 = math.exp %119 : vector<13x13xf32>
    %cst_57 = arith.constant dense<0.000000e+00> : vector<13xf32>
    %121 = vector.multi_reduction <add>, %120, %cst_57 [1] : vector<13x13xf32> to vector<13xf32>
    %122 = vector.shape_cast %121 : vector<13xf32> to vector<13x1xf32>
    %123 = tpu.reciprocal %122 {approx = true} : vector<13x1xf32> -> vector<13x1xf32>
    %124 = vector.broadcast %123 : vector<13x1xf32> to vector<13x13xf32>
    %125 = arith.mulf %120, %124 : vector<13x13xf32>
    %126 = arith.truncf %125 : vector<13x13xf32> to vector<13x13xbf16>
    %127 = vector.extract_strided_slice %67 {offsets = [0, 16], sizes = [13, 8], strides = [1, 1]} : vector<13x32xf32> to vector<13x8xf32>
    %128 = arith.truncf %127 : vector<13x8xf32> to vector<13x8xbf16>
    %cst_58 = arith.constant dense<0.000000e+00> : vector<13x8xf32>
    %129 = tpu.matmul %126, %128, %cst_58 {dimension_numbers = #tpu.dot_dimension_numbers<[1], [0], [0], [1], [0, 0, 1, 1], [], []>} : vector<13x13xbf16>, vector<13x8xbf16>, vector<13x8xf32> -> vector<13x8xf32>
    %130 = vector.extract_strided_slice %63 {offsets = [0, 24], sizes = [13, 8], strides = [1, 1]} : vector<13x32xf32> to vector<13x8xf32>
    %131 = arith.truncf %130 : vector<13x8xf32> to vector<13x8xbf16>
    %132 = vector.extract_strided_slice %65 {offsets = [0, 24], sizes = [13, 8], strides = [1, 1]} : vector<13x32xf32> to vector<13x8xf32>
    %133 = arith.truncf %132 : vector<13x8xf32> to vector<13x8xbf16>
    %cst_59 = arith.constant dense<0.000000e+00> : vector<13x13xf32>
    %134 = tpu.matmul %131, %133, %cst_59 {dimension_numbers = #tpu.dot_dimension_numbers<[1], [1], [0], [0], [0, 0, 1, 0], [], []>} : vector<13x8xbf16>, vector<13x8xbf16>, vector<13x13xf32> -> vector<13x13xf32>
    %135 = arith.addf %134, %69 : vector<13x13xf32>
    %cst_60 = arith.constant dense<0xFF800000> : vector<13xf32>
    %136 = vector.multi_reduction <maximumf>, %135, %cst_60 [1] : vector<13x13xf32> to vector<13xf32>
    %137 = vector.shape_cast %136 : vector<13xf32> to vector<13x1xf32>
    %138 = vector.broadcast %137 : vector<13x1xf32> to vector<13x13xf32>
    %139 = arith.subf %135, %138 : vector<13x13xf32>
    %140 = math.exp %139 : vector<13x13xf32>
    %cst_61 = arith.constant dense<0.000000e+00> : vector<13xf32>
    %141 = vector.multi_reduction <add>, %140, %cst_61 [1] : vector<13x13xf32> to vector<13xf32>
    %142 = vector.shape_cast %141 : vector<13xf32> to vector<13x1xf32>
    %143 = tpu.reciprocal %142 {approx = true} : vector<13x1xf32> -> vector<13x1xf32>
    %144 = vector.broadcast %143 : vector<13x1xf32> to vector<13x13xf32>
    %145 = arith.mulf %140, %144 : vector<13x13xf32>
    %146 = arith.truncf %145 : vector<13x13xf32> to vector<13x13xbf16>
    %147 = vector.extract_strided_slice %67 {offsets = [0, 24], sizes = [13, 8], strides = [1, 1]} : vector<13x32xf32> to vector<13x8xf32>
    %148 = arith.truncf %147 : vector<13x8xf32> to vector<13x8xbf16>
    %cst_62 = arith.constant dense<0.000000e+00> : vector<13x8xf32>
    %149 = tpu.matmul %146, %148, %cst_62 {dimension_numbers = #tpu.dot_dimension_numbers<[1], [0], [0], [1], [0, 0, 1, 1], [], []>} : vector<13x13xbf16>, vector<13x8xbf16>, vector<13x8xf32> -> vector<13x8xf32>
    %150 = tpu.concatenate %89, %109, %129, %149 in 1 : vector<13x8xf32>, vector<13x8xf32>, vector<13x8xf32>, vector<13x8xf32> -> vector<13x32xf32>
    %151 = vector.extract_strided_slice %57 {offsets = [1, 0, 0], sizes = [1, 13, 32], strides = [1, 1, 1]} : vector<2x13x32xf32> to vector<1x13x32xf32>
    %152 = vector.shape_cast %151 : vector<1x13x32xf32> to vector<13x32xf32>
    %153 = vector.extract_strided_slice %59 {offsets = [1, 0, 0], sizes = [1, 13, 32], strides = [1, 1, 1]} : vector<2x13x32xf32> to vector<1x13x32xf32>
    %154 = vector.shape_cast %153 : vector<1x13x32xf32> to vector<13x32xf32>
    %155 = vector.extract_strided_slice %61 {offsets = [1, 0, 0], sizes = [1, 13, 32], strides = [1, 1, 1]} : vector<2x13x32xf32> to vector<1x13x32xf32>
    %156 = vector.shape_cast %155 : vector<1x13x32xf32> to vector<13x32xf32>
    %157 = vector.extract_strided_slice %4 {offsets = [1, 0, 0], sizes = [1, 13, 13], strides = [1, 1, 1]} : vector<2x13x13xf32> to vector<1x13x13xf32>
    %158 = vector.shape_cast %157 : vector<1x13x13xf32> to vector<13x13xf32>
    %159 = vector.extract_strided_slice %152 {offsets = [0, 0], sizes = [13, 8], strides = [1, 1]} : vector<13x32xf32> to vector<13x8xf32>
    %160 = arith.truncf %159 : vector<13x8xf32> to vector<13x8xbf16>
    %161 = vector.extract_strided_slice %154 {offsets = [0, 0], sizes = [13, 8], strides = [1, 1]} : vector<13x32xf32> to vector<13x8xf32>
    %162 = arith.truncf %161 : vector<13x8xf32> to vector<13x8xbf16>
    %cst_63 = arith.constant dense<0.000000e+00> : vector<13x13xf32>
    %163 = tpu.matmul %160, %162, %cst_63 {dimension_numbers = #tpu.dot_dimension_numbers<[1], [1], [0], [0], [0, 0, 1, 0], [], []>} : vector<13x8xbf16>, vector<13x8xbf16>, vector<13x13xf32> -> vector<13x13xf32>
    %164 = arith.addf %163, %158 : vector<13x13xf32>
    %cst_64 = arith.constant dense<0xFF800000> : vector<13xf32>
    %165 = vector.multi_reduction <maximumf>, %164, %cst_64 [1] : vector<13x13xf32> to vector<13xf32>
    %166 = vector.shape_cast %165 : vector<13xf32> to vector<13x1xf32>
    %167 = vector.broadcast %166 : vector<13x1xf32> to vector<13x13xf32>
    %168 = arith.subf %164, %167 : vector<13x13xf32>
    %169 = math.exp %168 : vector<13x13xf32>
    %cst_65 = arith.constant dense<0.000000e+00> : vector<13xf32>
    %170 = vector.multi_reduction <add>, %169, %cst_65 [1] : vector<13x13xf32> to vector<13xf32>
    %171 = vector.shape_cast %170 : vector<13xf32> to vector<13x1xf32>
    %172 = tpu.reciprocal %171 {approx = true} : vector<13x1xf32> -> vector<13x1xf32>
    %173 = vector.broadcast %172 : vector<13x1xf32> to vector<13x13xf32>
    %174 = arith.mulf %169, %173 : vector<13x13xf32>
    %175 = arith.truncf %174 : vector<13x13xf32> to vector<13x13xbf16>
    %176 = vector.extract_strided_slice %156 {offsets = [0, 0], sizes = [13, 8], strides = [1, 1]} : vector<13x32xf32> to vector<13x8xf32>
    %177 = arith.truncf %176 : vector<13x8xf32> to vector<13x8xbf16>
    %cst_66 = arith.constant dense<0.000000e+00> : vector<13x8xf32>
    %178 = tpu.matmul %175, %177, %cst_66 {dimension_numbers = #tpu.dot_dimension_numbers<[1], [0], [0], [1], [0, 0, 1, 1], [], []>} : vector<13x13xbf16>, vector<13x8xbf16>, vector<13x8xf32> -> vector<13x8xf32>
    %179 = vector.extract_strided_slice %152 {offsets = [0, 8], sizes = [13, 8], strides = [1, 1]} : vector<13x32xf32> to vector<13x8xf32>
    %180 = arith.truncf %179 : vector<13x8xf32> to vector<13x8xbf16>
    %181 = vector.extract_strided_slice %154 {offsets = [0, 8], sizes = [13, 8], strides = [1, 1]} : vector<13x32xf32> to vector<13x8xf32>
    %182 = arith.truncf %181 : vector<13x8xf32> to vector<13x8xbf16>
    %cst_67 = arith.constant dense<0.000000e+00> : vector<13x13xf32>
    %183 = tpu.matmul %180, %182, %cst_67 {dimension_numbers = #tpu.dot_dimension_numbers<[1], [1], [0], [0], [0, 0, 1, 0], [], []>} : vector<13x8xbf16>, vector<13x8xbf16>, vector<13x13xf32> -> vector<13x13xf32>
    %184 = arith.addf %183, %158 : vector<13x13xf32>
    %cst_68 = arith.constant dense<0xFF800000> : vector<13xf32>
    %185 = vector.multi_reduction <maximumf>, %184, %cst_68 [1] : vector<13x13xf32> to vector<13xf32>
    %186 = vector.shape_cast %185 : vector<13xf32> to vector<13x1xf32>
    %187 = vector.broadcast %186 : vector<13x1xf32> to vector<13x13xf32>
    %188 = arith.subf %184, %187 : vector<13x13xf32>
    %189 = math.exp %188 : vector<13x13xf32>
    %cst_69 = arith.constant dense<0.000000e+00> : vector<13xf32>
    %190 = vector.multi_reduction <add>, %189, %cst_69 [1] : vector<13x13xf32> to vector<13xf32>
    %191 = vector.shape_cast %190 : vector<13xf32> to vector<13x1xf32>
    %192 = tpu.reciprocal %191 {approx = true} : vector<13x1xf32> -> vector<13x1xf32>
    %193 = vector.broadcast %192 : vector<13x1xf32> to vector<13x13xf32>
    %194 = arith.mulf %189, %193 : vector<13x13xf32>
    %195 = arith.truncf %194 : vector<13x13xf32> to vector<13x13xbf16>
    %196 = vector.extract_strided_slice %156 {offsets = [0, 8], sizes = [13, 8], strides = [1, 1]} : vector<13x32xf32> to vector<13x8xf32>
    %197 = arith.truncf %196 : vector<13x8xf32> to vector<13x8xbf16>
    %cst_70 = arith.constant dense<0.000000e+00> : vector<13x8xf32>
    %198 = tpu.matmul %195, %197, %cst_70 {dimension_numbers = #tpu.dot_dimension_numbers<[1], [0], [0], [1], [0, 0, 1, 1], [], []>} : vector<13x13xbf16>, vector<13x8xbf16>, vector<13x8xf32> -> vector<13x8xf32>
    %199 = vector.extract_strided_slice %152 {offsets = [0, 16], sizes = [13, 8], strides = [1, 1]} : vector<13x32xf32> to vector<13x8xf32>
    %200 = arith.truncf %199 : vector<13x8xf32> to vector<13x8xbf16>
    %201 = vector.extract_strided_slice %154 {offsets = [0, 16], sizes = [13, 8], strides = [1, 1]} : vector<13x32xf32> to vector<13x8xf32>
    %202 = arith.truncf %201 : vector<13x8xf32> to vector<13x8xbf16>
    %cst_71 = arith.constant dense<0.000000e+00> : vector<13x13xf32>
    %203 = tpu.matmul %200, %202, %cst_71 {dimension_numbers = #tpu.dot_dimension_numbers<[1], [1], [0], [0], [0, 0, 1, 0], [], []>} : vector<13x8xbf16>, vector<13x8xbf16>, vector<13x13xf32> -> vector<13x13xf32>
    %204 = arith.addf %203, %158 : vector<13x13xf32>
    %cst_72 = arith.constant dense<0xFF800000> : vector<13xf32>
    %205 = vector.multi_reduction <maximumf>, %204, %cst_72 [1] : vector<13x13xf32> to vector<13xf32>
    %206 = vector.shape_cast %205 : vector<13xf32> to vector<13x1xf32>
    %207 = vector.broadcast %206 : vector<13x1xf32> to vector<13x13xf32>
    %208 = arith.subf %204, %207 : vector<13x13xf32>
    %209 = math.exp %208 : vector<13x13xf32>
    %cst_73 = arith.constant dense<0.000000e+00> : vector<13xf32>
    %210 = vector.multi_reduction <add>, %209, %cst_73 [1] : vector<13x13xf32> to vector<13xf32>
    %211 = vector.shape_cast %210 : vector<13xf32> to vector<13x1xf32>
    %212 = tpu.reciprocal %211 {approx = true} : vector<13x1xf32> -> vector<13x1xf32>
    %213 = vector.broadcast %212 : vector<13x1xf32> to vector<13x13xf32>
    %214 = arith.mulf %209, %213 : vector<13x13xf32>
    %215 = arith.truncf %214 : vector<13x13xf32> to vector<13x13xbf16>
    %216 = vector.extract_strided_slice %156 {offsets = [0, 16], sizes = [13, 8], strides = [1, 1]} : vector<13x32xf32> to vector<13x8xf32>
    %217 = arith.truncf %216 : vector<13x8xf32> to vector<13x8xbf16>
    %cst_74 = arith.constant dense<0.000000e+00> : vector<13x8xf32>
    %218 = tpu.matmul %215, %217, %cst_74 {dimension_numbers = #tpu.dot_dimension_numbers<[1], [0], [0], [1], [0, 0, 1, 1], [], []>} : vector<13x13xbf16>, vector<13x8xbf16>, vector<13x8xf32> -> vector<13x8xf32>
    %219 = vector.extract_strided_slice %152 {offsets = [0, 24], sizes = [13, 8], strides = [1, 1]} : vector<13x32xf32> to vector<13x8xf32>
    %220 = arith.truncf %219 : vector<13x8xf32> to vector<13x8xbf16>
    %221 = vector.extract_strided_slice %154 {offsets = [0, 24], sizes = [13, 8], strides = [1, 1]} : vector<13x32xf32> to vector<13x8xf32>
    %222 = arith.truncf %221 : vector<13x8xf32> to vector<13x8xbf16>
    %cst_75 = arith.constant dense<0.000000e+00> : vector<13x13xf32>
    %223 = tpu.matmul %220, %222, %cst_75 {dimension_numbers = #tpu.dot_dimension_numbers<[1], [1], [0], [0], [0, 0, 1, 0], [], []>} : vector<13x8xbf16>, vector<13x8xbf16>, vector<13x13xf32> -> vector<13x13xf32>
    %224 = arith.addf %223, %158 : vector<13x13xf32>
    %cst_76 = arith.constant dense<0xFF800000> : vector<13xf32>
    %225 = vector.multi_reduction <maximumf>, %224, %cst_76 [1] : vector<13x13xf32> to vector<13xf32>
    %226 = vector.shape_cast %225 : vector<13xf32> to vector<13x1xf32>
    %227 = vector.broadcast %226 : vector<13x1xf32> to vector<13x13xf32>
    %228 = arith.subf %224, %227 : vector<13x13xf32>
    %229 = math.exp %228 : vector<13x13xf32>
    %cst_77 = arith.constant dense<0.000000e+00> : vector<13xf32>
    %230 = vector.multi_reduction <add>, %229, %cst_77 [1] : vector<13x13xf32> to vector<13xf32>
    %231 = vector.shape_cast %230 : vector<13xf32> to vector<13x1xf32>
    %232 = tpu.reciprocal %231 {approx = true} : vector<13x1xf32> -> vector<13x1xf32>
    %233 = vector.broadcast %232 : vector<13x1xf32> to vector<13x13xf32>
    %234 = arith.mulf %229, %233 : vector<13x13xf32>
    %235 = arith.truncf %234 : vector<13x13xf32> to vector<13x13xbf16>
    %236 = vector.extract_strided_slice %156 {offsets = [0, 24], sizes = [13, 8], strides = [1, 1]} : vector<13x32xf32> to vector<13x8xf32>
    %237 = arith.truncf %236 : vector<13x8xf32> to vector<13x8xbf16>
    %cst_78 = arith.constant dense<0.000000e+00> : vector<13x8xf32>
    %238 = tpu.matmul %235, %237, %cst_78 {dimension_numbers = #tpu.dot_dimension_numbers<[1], [0], [0], [1], [0, 0, 1, 1], [], []>} : vector<13x13xbf16>, vector<13x8xbf16>, vector<13x8xf32> -> vector<13x8xf32>
    %239 = tpu.concatenate %178, %198, %218, %238 in 1 : vector<13x8xf32>, vector<13x8xf32>, vector<13x8xf32>, vector<13x8xf32> -> vector<13x32xf32>
    %240 = tpu.concatenate %150, %239 in 0 : vector<13x32xf32>, vector<13x32xf32> -> vector<26x32xf32>
    %241 = arith.truncf %240 : vector<26x32xf32> to vector<26x32xbf16>
    %cst_79 = arith.constant dense<0.000000e+00> : vector<26x32xf32>
    %242 = tpu.matmul %241, %14, %cst_79 {dimension_numbers = #tpu.dot_dimension_numbers<[1], [0], [0], [1], [0, 0, 1, 1], [], []>} : vector<26x32xbf16>, vector<32x32xbf16>, vector<26x32xf32> -> vector<26x32xf32>
    %243 = vector.broadcast %16 : vector<1x32xf32> to vector<26x32xf32>
    %244 = arith.addf %242, %243 : vector<26x32xf32>
    %245 = arith.addf %29, %244 : vector<26x32xf32>
    %cst_80 = arith.constant dense<0.000000e+00> : vector<26xf32>
    %246 = vector.multi_reduction <add>, %245, %cst_80 [1] : vector<26x32xf32> to vector<26xf32>
    %247 = vector.shape_cast %246 : vector<26xf32> to vector<26x1xf32>
    %cst_81 = arith.constant 3.200000e+01 : f32
    %248 = vector.broadcast %cst_81 : f32 to vector<26x1xf32>
    %249 = arith.divf %247, %248 : vector<26x1xf32>
    %250 = vector.broadcast %249 : vector<26x1xf32> to vector<26x32xf32>
    %251 = arith.subf %245, %250 : vector<26x32xf32>
    %252 = arith.mulf %251, %251 : vector<26x32xf32>
    %cst_82 = arith.constant dense<0.000000e+00> : vector<26xf32>
    %253 = vector.multi_reduction <add>, %252, %cst_82 [1] : vector<26x32xf32> to vector<26xf32>
    %254 = vector.shape_cast %253 : vector<26xf32> to vector<26x1xf32>
    %cst_83 = arith.constant 3.200000e+01 : f32
    %255 = vector.broadcast %cst_83 : f32 to vector<26x1xf32>
    %256 = arith.divf %254, %255 : vector<26x1xf32>
    %257 = vector.broadcast %249 : vector<26x1xf32> to vector<26x32xf32>
    %258 = arith.subf %245, %257 : vector<26x32xf32>
    %cst_84 = arith.constant 9.99999974E-6 : f32
    %259 = vector.broadcast %cst_84 : f32 to vector<26x1xf32>
    %260 = arith.addf %256, %259 : vector<26x1xf32>
    %261 = math.rsqrt %260 : vector<26x1xf32>
    %262 = vector.broadcast %261 : vector<26x1xf32> to vector<26x32xf32>
    %263 = arith.mulf %258, %262 : vector<26x32xf32>
    %264 = vector.broadcast %18 : vector<1x32xf32> to vector<26x32xf32>
    %265 = arith.mulf %263, %264 : vector<26x32xf32>
    %266 = vector.broadcast %20 : vector<1x32xf32> to vector<26x32xf32>
    %267 = arith.addf %265, %266 : vector<26x32xf32>
    %268 = arith.truncf %267 : vector<26x32xf32> to vector<26x32xbf16>
    %cst_85 = arith.constant dense<0.000000e+00> : vector<26x128xf32>
    %269 = tpu.matmul %268, %22, %cst_85 {dimension_numbers = #tpu.dot_dimension_numbers<[1], [0], [0], [1], [0, 0, 1, 1], [], []>} : vector<26x32xbf16>, vector<32x128xbf16>, vector<26x128xf32> -> vector<26x128xf32>
    %270 = vector.broadcast %24 : vector<1x128xf32> to vector<26x128xf32>
    %271 = arith.addf %269, %270 : vector<26x128xf32>
    %cst_86 = arith.constant 5.000000e-01 : f32
    %272 = vector.broadcast %cst_86 : f32 to vector<26x128xf32>
    %273 = arith.mulf %272, %271 : vector<26x128xf32>
    %cst_87 = arith.constant 4.471500e-02 : f32
    %274 = vector.broadcast %cst_87 : f32 to vector<26x128xf32>
    %275 = arith.mulf %274, %271 : vector<26x128xf32>
    %276 = arith.mulf %275, %271 : vector<26x128xf32>
    %277 = arith.mulf %276, %271 : vector<26x128xf32>
    %278 = arith.addf %271, %277 : vector<26x128xf32>
    %cst_88 = arith.constant 0.797884583 : f32
    %279 = vector.broadcast %cst_88 : f32 to vector<26x128xf32>
    %280 = arith.mulf %279, %278 : vector<26x128xf32>
    %281 = math.tanh %280 : vector<26x128xf32>
    %cst_89 = arith.constant 1.000000e+00 : f32
    %282 = vector.broadcast %cst_89 : f32 to vector<26x128xf32>
    %283 = arith.addf %282, %281 : vector<26x128xf32>
    %284 = arith.mulf %273, %283 : vector<26x128xf32>
    %285 = arith.truncf %284 : vector<26x128xf32> to vector<26x128xbf16>
    %cst_90 = arith.constant dense<0.000000e+00> : vector<26x32xf32>
    %286 = tpu.matmul %285, %26, %cst_90 {dimension_numbers = #tpu.dot_dimension_numbers<[1], [0], [0], [1], [0, 0, 1, 1], [], []>} : vector<26x128xbf16>, vector<128x32xbf16>, vector<26x32xf32> -> vector<26x32xf32>
    %287 = vector.broadcast %28 : vector<1x32xf32> to vector<26x32xf32>
    %288 = arith.addf %286, %287 : vector<26x32xf32>
    %289 = arith.addf %245, %288 : vector<26x32xf32>
    %290 = vector.shape_cast %289 : vector<26x32xf32> to vector<2x13x32xf32>
    %c1_i32 = arith.constant 1 : i32
    %291 = arith.cmpi slt, %arg1, %c1_i32 : i32
    %292 = arith.extui %291 : i1 to i32
    %c0_i32_91 = arith.constant 0 : i32
    %293 = arith.cmpi ne, %292, %c0_i32_91 : i32
    scf.if %293 {
      %c0_94 = arith.constant 0 : index
      %c0_95 = arith.constant 0 : index
      %c0_96 = arith.constant 0 : index
      %297 = vector.load %arg27[%c0_94, %c0_95, %c0_96] : memref<2x13x32xf32, #tpu.memory_space<vmem>>, vector<2x13x32xf32>
      tpu.vector_store %arg27[%c0_94, %c0_95, %c0_96], %290 {strides = array<i32>} : memref<2x13x32xf32, #tpu.memory_space<vmem>>, vector<2x13x32xf32>,
    } else {
    }
    %c1_i32_92 = arith.constant 1 : i32
    %294 = arith.cmpi eq, %arg1, %c1_i32_92 : i32
    %295 = arith.extui %294 : i1 to i32
    %c0_i32_93 = arith.constant 0 : i32
    %296 = arith.cmpi ne, %295, %c0_i32_93 : i32
    scf.if %296 {
      %297 = vector.shape_cast %290 : vector<2x13x32xf32> to vector<26x32xf32>
      %c0_94 = arith.constant 0 : index
      %c0_95 = arith.constant 0 : index
      %298 = vector.load %arg16[%c0_94, %c0_95] : memref<1x32xf32, #tpu.memory_space<vmem>>, vector<1x32xf32>
      %c0_96 = arith.constant 0 : index
      %c0_97 = arith.constant 0 : index
      %299 = vector.load %arg17[%c0_96, %c0_97] : memref<1x32xf32, #tpu.memory_space<vmem>>, vector<1x32xf32>
      %cst_98 = arith.constant dense<0.000000e+00> : vector<26xf32>
      %300 = vector.multi_reduction <add>, %297, %cst_98 [1] : vector<26x32xf32> to vector<26xf32>
      %301 = vector.shape_cast %300 : vector<26xf32> to vector<26x1xf32>
      %cst_99 = arith.constant 3.200000e+01 : f32
      %302 = vector.broadcast %cst_99 : f32 to vector<26x1xf32>
      %303 = arith.divf %301, %302 : vector<26x1xf32>
      %304 = vector.broadcast %303 : vector<26x1xf32> to vector<26x32xf32>
      %305 = arith.subf %297, %304 : vector<26x32xf32>
      %306 = arith.mulf %305, %305 : vector<26x32xf32>
      %cst_100 = arith.constant dense<0.000000e+00> : vector<26xf32>
      %307 = vector.multi_reduction <add>, %306, %cst_100 [1] : vector<26x32xf32> to vector<26xf32>
      %308 = vector.shape_cast %307 : vector<26xf32> to vector<26x1xf32>
      %cst_101 = arith.constant 3.200000e+01 : f32
      %309 = vector.broadcast %cst_101 : f32 to vector<26x1xf32>
      %310 = arith.divf %308, %309 : vector<26x1xf32>
      %311 = vector.broadcast %303 : vector<26x1xf32> to vector<26x32xf32>
      %312 = arith.subf %297, %311 : vector<26x32xf32>
      %cst_102 = arith.constant 9.99999974E-6 : f32
      %313 = vector.broadcast %cst_102 : f32 to vector<26x1xf32>
      %314 = arith.addf %310, %313 : vector<26x1xf32>
      %315 = math.rsqrt %314 : vector<26x1xf32>
      %316 = vector.broadcast %315 : vector<26x1xf32> to vector<26x32xf32>
      %317 = arith.mulf %312, %316 : vector<26x32xf32>
      %318 = vector.broadcast %298 : vector<1x32xf32> to vector<26x32xf32>
      %319 = arith.mulf %317, %318 : vector<26x32xf32>
      %320 = vector.broadcast %299 : vector<1x32xf32> to vector<26x32xf32>
      %321 = arith.addf %319, %320 : vector<26x32xf32>
      %322 = vector.shape_cast %321 : vector<26x32xf32> to vector<2x13x32xf32>
      %cst_103 = arith.constant dense<0.000000e+00> : vector<2x32xf32>
      %323 = vector.multi_reduction <add>, %322, %cst_103 [1] : vector<2x13x32xf32> to vector<2x32xf32>
      %cst_104 = arith.constant 1.300000e+01 : f32
      %324 = vector.broadcast %cst_104 : f32 to vector<2x32xf32>
      %325 = arith.divf %323, %324 : vector<2x32xf32>
      %326 = arith.truncf %325 : vector<2x32xf32> to vector<2x32xbf16>
      %c0_105 = arith.constant 0 : index
      %c0_106 = arith.constant 0 : index
      %327 = vector.load %arg18[%c0_105, %c0_106] : memref<32x64xbf16, #tpu.memory_space<vmem>>, vector<32x64xbf16>
      %cst_107 = arith.constant dense<0.000000e+00> : vector<2x64xf32>
      %328 = tpu.matmul %326, %327, %cst_107 {dimension_numbers = #tpu.dot_dimension_numbers<[1], [0], [0], [1], [0, 0, 1, 1], [], []>} : vector<2x32xbf16>, vector<32x64xbf16>, vector<2x64xf32> -> vector<2x64xf32>
      %c0_108 = arith.constant 0 : index
      %c0_109 = arith.constant 0 : index
      %329 = vector.load %arg19[%c0_108, %c0_109] : memref<1x64xf32, #tpu.memory_space<vmem>>, vector<1x64xf32>
      %330 = vector.broadcast %329 : vector<1x64xf32> to vector<2x64xf32>
      %331 = arith.addf %328, %330 : vector<2x64xf32>
      %c0_110 = arith.constant 0 : index
      %c0_111 = arith.constant 0 : index
      %332 = vector.load %arg22[%c0_110, %c0_111] : memref<1x64xf32, #tpu.memory_space<vmem>>, vector<1x64xf32>
      %333 = vector.broadcast %332 : vector<1x64xf32> to vector<2x64xf32>
      %334 = arith.subf %331, %333 : vector<2x64xf32>
      %c0_112 = arith.constant 0 : index
      %c0_113 = arith.constant 0 : index
      %335 = vector.load %arg23[%c0_112, %c0_113] : memref<1x64xf32, #tpu.memory_space<vmem>>, vector<1x64xf32>
      %cst_114 = arith.constant 9.99999974E-6 : f32
      %336 = vector.broadcast %cst_114 : f32 to vector<1x64xf32>
      %337 = arith.addf %335, %336 : vector<1x64xf32>
      %338 = math.rsqrt %337 : vector<1x64xf32>
      %339 = vector.broadcast %338 : vector<1x64xf32> to vector<2x64xf32>
      %340 = arith.mulf %334, %339 : vector<2x64xf32>
      %c0_115 = arith.constant 0 : index
      %c0_116 = arith.constant 0 : index
      %341 = vector.load %arg20[%c0_115, %c0_116] : memref<1x64xf32, #tpu.memory_space<vmem>>, vector<1x64xf32>
      %342 = vector.broadcast %341 : vector<1x64xf32> to vector<2x64xf32>
      %343 = arith.mulf %340, %342 : vector<2x64xf32>
      %c0_117 = arith.constant 0 : index
      %c0_118 = arith.constant 0 : index
      %344 = vector.load %arg21[%c0_117, %c0_118] : memref<1x64xf32, #tpu.memory_space<vmem>>, vector<1x64xf32>
      %345 = vector.broadcast %344 : vector<1x64xf32> to vector<2x64xf32>
      %346 = arith.addf %343, %345 : vector<2x64xf32>
      %347 = arith.truncf %346 : vector<2x64xf32> to vector<2x64xbf16>
      %c0_119 = arith.constant 0 : index
      %c0_120 = arith.constant 0 : index
      %348 = vector.load %arg24[%c0_119, %c0_120] : memref<64x128xbf16, #tpu.memory_space<vmem>>, vector<64x128xbf16>
      %cst_121 = arith.constant dense<0.000000e+00> : vector<2x128xf32>
      %349 = tpu.matmul %347, %348, %cst_121 {dimension_numbers = #tpu.dot_dimension_numbers<[1], [0], [0], [1], [0, 0, 1, 1], [], []>} : vector<2x64xbf16>, vector<64x128xbf16>, vector<2x128xf32> -> vector<2x128xf32>
      %c0_122 = arith.constant 0 : index
      %c0_123 = arith.constant 0 : index
      %350 = vector.load %arg25[%c0_122, %c0_123] : memref<1x128xf32, #tpu.memory_space<vmem>>, vector<1x128xf32>
      %351 = vector.broadcast %350 : vector<1x128xf32> to vector<2x128xf32>
      %352 = arith.addf %349, %351 : vector<2x128xf32>
      %353 = vector.shape_cast %352 : vector<2x128xf32> to vector<2x1x128xf32>
      %c0_124 = arith.constant 0 : index
      %c0_125 = arith.constant 0 : index
      %c0_126 = arith.constant 0 : index
      %354 = vector.load %arg26[%c0_124, %c0_125, %c0_126] : memref<2x1x128xf32, #tpu.memory_space<vmem>>, vector<2x1x128xf32>
      tpu.vector_store %arg26[%c0_124, %c0_125, %c0_126], %353 {strides = array<i32>} : memref<2x1x128xf32, #tpu.memory_space<vmem>>, vector<2x1x128xf32>,
    } else {
    }
    return
  }
  func.func @transform_0(%arg0: i32, %arg1: i32) -> (i32, i32, i32) {
    %c0_i32 = arith.constant 0 : i32
    %c0_i32_0 = arith.constant 0 : i32
    %c0_i32_1 = arith.constant 0 : i32
    return %arg0, %c0_i32, %c0_i32_0 : i32, i32, i32
  }
  func.func @transform_1(%arg0: i32, %arg1: i32) -> (i32, i32, i32) {
    %c0_i32 = arith.constant 0 : i32
    %c0_i32_0 = arith.constant 0 : i32
    %c0_i32_1 = arith.constant 0 : i32
    return %arg0, %c0_i32, %c0_i32_0 : i32, i32, i32
  }
  func.func @transform_2(%arg0: i32, %arg1: i32) -> (i32, i32, i32) {
    %c0_i32 = arith.constant 0 : i32
    %c0_i32_0 = arith.constant 0 : i32
    %c0_i32_1 = arith.constant 0 : i32
    return %arg1, %c0_i32, %c0_i32_0 : i32, i32, i32
  }
  func.func @transform_3(%arg0: i32, %arg1: i32) -> (i32, i32, i32) {
    %c0_i32 = arith.constant 0 : i32
    %c0_i32_0 = arith.constant 0 : i32
    %c0_i32_1 = arith.constant 0 : i32
    return %arg1, %c0_i32, %c0_i32_0 : i32, i32, i32
  }
  func.func @transform_4(%arg0: i32, %arg1: i32) -> (i32, i32, i32) {
    %c0_i32 = arith.constant 0 : i32
    %c0_i32_0 = arith.constant 0 : i32
    %c0_i32_1 = arith.constant 0 : i32
    return %arg1, %c0_i32, %c0_i32_0 : i32, i32, i32
  }
  func.func @transform_5(%arg0: i32, %arg1: i32) -> (i32, i32, i32) {
    %c0_i32 = arith.constant 0 : i32
    %c0_i32_0 = arith.constant 0 : i32
    %c0_i32_1 = arith.constant 0 : i32
    return %arg1, %c0_i32, %c0_i32_0 : i32, i32, i32
  }
  func.func @transform_6(%arg0: i32, %arg1: i32) -> (i32, i32, i32) {
    %c0_i32 = arith.constant 0 : i32
    %c0_i32_0 = arith.constant 0 : i32
    %c0_i32_1 = arith.constant 0 : i32
    return %arg1, %c0_i32, %c0_i32_0 : i32, i32, i32
  }
  func.func @transform_7(%arg0: i32, %arg1: i32) -> (i32, i32, i32) {
    %c0_i32 = arith.constant 0 : i32
    %c0_i32_0 = arith.constant 0 : i32
    %c0_i32_1 = arith.constant 0 : i32
    return %arg1, %c0_i32, %c0_i32_0 : i32, i32, i32
  }
  func.func @transform_8(%arg0: i32, %arg1: i32) -> (i32, i32, i32) {
    %c0_i32 = arith.constant 0 : i32
    %c0_i32_0 = arith.constant 0 : i32
    %c0_i32_1 = arith.constant 0 : i32
    return %arg1, %c0_i32, %c0_i32_0 : i32, i32, i32
  }
  func.func @transform_9(%arg0: i32, %arg1: i32) -> (i32, i32, i32) {
    %c0_i32 = arith.constant 0 : i32
    %c0_i32_0 = arith.constant 0 : i32
    %c0_i32_1 = arith.constant 0 : i32
    return %arg1, %c0_i32, %c0_i32_0 : i32, i32, i32
  }
  func.func @transform_10(%arg0: i32, %arg1: i32) -> (i32, i32, i32) {
    %c0_i32 = arith.constant 0 : i32
    %c0_i32_0 = arith.constant 0 : i32
    %c0_i32_1 = arith.constant 0 : i32
    return %arg1, %c0_i32, %c0_i32_0 : i32, i32, i32
  }
  func.func @transform_11(%arg0: i32, %arg1: i32) -> (i32, i32, i32) {
    %c0_i32 = arith.constant 0 : i32
    %c0_i32_0 = arith.constant 0 : i32
    %c0_i32_1 = arith.constant 0 : i32
    return %arg1, %c0_i32, %c0_i32_0 : i32, i32, i32
  }
  func.func @transform_12(%arg0: i32, %arg1: i32) -> (i32, i32, i32) {
    %c0_i32 = arith.constant 0 : i32
    %c0_i32_0 = arith.constant 0 : i32
    %c0_i32_1 = arith.constant 0 : i32
    return %arg1, %c0_i32, %c0_i32_0 : i32, i32, i32
  }
  func.func @transform_13(%arg0: i32, %arg1: i32) -> (i32, i32, i32) {
    %c0_i32 = arith.constant 0 : i32
    %c0_i32_0 = arith.constant 0 : i32
    %c0_i32_1 = arith.constant 0 : i32
    return %arg1, %c0_i32, %c0_i32_0 : i32, i32, i32
  }
  func.func @transform_14(%arg0: i32, %arg1: i32) -> (i32, i32) {
    %c0_i32 = arith.constant 0 : i32
    %c0_i32_0 = arith.constant 0 : i32
    %c0_i32_1 = arith.constant 0 : i32
    return %c0_i32, %c0_i32_0 : i32, i32
  }
  func.func @transform_15(%arg0: i32, %arg1: i32) -> (i32, i32) {
    %c0_i32 = arith.constant 0 : i32
    %c0_i32_0 = arith.constant 0 : i32
    %c0_i32_1 = arith.constant 0 : i32
    return %c0_i32, %c0_i32_0 : i32, i32
  }
  func.func @transform_16(%arg0: i32, %arg1: i32) -> (i32, i32) {
    %c0_i32 = arith.constant 0 : i32
    %c0_i32_0 = arith.constant 0 : i32
    %c0_i32_1 = arith.constant 0 : i32
    return %c0_i32, %c0_i32_0 : i32, i32
  }
  func.func @transform_17(%arg0: i32, %arg1: i32) -> (i32, i32) {
    %c0_i32 = arith.constant 0 : i32
    %c0_i32_0 = arith.constant 0 : i32
    %c0_i32_1 = arith.constant 0 : i32
    return %c0_i32, %c0_i32_0 : i32, i32
  }
  func.func @transform_18(%arg0: i32, %arg1: i32) -> (i32, i32) {
    %c0_i32 = arith.constant 0 : i32
    %c0_i32_0 = arith.constant 0 : i32
    %c0_i32_1 = arith.constant 0 : i32
    return %c0_i32, %c0_i32_0 : i32, i32
  }
  func.func @transform_19(%arg0: i32, %arg1: i32) -> (i32, i32) {
    %c0_i32 = arith.constant 0 : i32
    %c0_i32_0 = arith.constant 0 : i32
    %c0_i32_1 = arith.constant 0 : i32
    return %c0_i32, %c0_i32_0 : i32, i32
  }
  func.func @transform_20(%arg0: i32, %arg1: i32) -> (i32, i32) {
    %c0_i32 = arith.constant 0 : i32
    %c0_i32_0 = arith.constant 0 : i32
    %c0_i32_1 = arith.constant 0 : i32
    return %c0_i32, %c0_i32_0 : i32, i32
  }
  func.func @transform_21(%arg0: i32, %arg1: i32) -> (i32, i32) {
    %c0_i32 = arith.constant 0 : i32
    %c0_i32_0 = arith.constant 0 : i32
    %c0_i32_1 = arith.constant 0 : i32
    return %c0_i32, %c0_i32_0 : i32, i32
  }
  func.func @transform_22(%arg0: i32, %arg1: i32) -> (i32, i32) {
    %c0_i32 = arith.constant 0 : i32
    %c0_i32_0 = arith.constant 0 : i32
    %c0_i32_1 = arith.constant 0 : i32
    return %c0_i32, %c0_i32_0 : i32, i32
  }
  func.func @transform_23(%arg0: i32, %arg1: i32) -> (i32, i32) {
    %c0_i32 = arith.constant 0 : i32
    %c0_i32_0 = arith.constant 0 : i32
    %c0_i32_1 = arith.constant 0 : i32
    return %c0_i32, %c0_i32_0 : i32, i32
  }
  func.func @transform_24(%arg0: i32, %arg1: i32) -> (i32, i32, i32) {
    %c0_i32 = arith.constant 0 : i32
    %c0_i32_0 = arith.constant 0 : i32
    %c0_i32_1 = arith.constant 0 : i32
    return %arg0, %c0_i32, %c0_i32_0 : i32, i32, i32
  }
}

</mosaic_0001>

<llo_original>
// kernel: forward.3
$region0: #{forward.3}
  #allocation0 [shape = 'u32[]', space=smem, size = 0x4, offset = 0x4, fixed_abs, tag = 'smem constant byte address 0x4 - core index']
  #allocation1 [shape = 'u32[72,128]{1,0:T(1,128)}', space=vmem, size = 0x9000, scoped, tag = 'internal scratch']
  %s0 = inlined_call_operand.vmem [shape: f32[16,192], index: 0, kind: input, shape index: {}]
  %s1 = inlined_call_operand.vmem [shape: bf16[192,32], index: 1, kind: input, shape index: {}]
  %s2 = inlined_call_operand.vmem [shape: f32[1,32], index: 2, kind: input, shape index: {}]
  %s3 = inlined_call_operand.vmem [shape: f32[16,32], index: 3, kind: output, shape index: {}]
  %s4 = sld [smem:[#allocation0]]
  $region22: #{forward.3} parent=0
    _
  %s6 = ssub.s32 1, %s4
  %s7 = scalar_select 0, %s6, %s4
  // Predicated region
  $region2: #{forward.3} parent=0 // pred_check
    _
  $region3: #{forward.3} parent=0 // pred_check_branch
    %9 = sbr.rel (0) target = $region5
  $region4: #{forward.3} parent=0 // pred_region
    _
  $region5: #{forward.3} parent=0 // pred_fallthru
    _
  // Predicated region
  $region6: #{forward.3} parent=0 // pred_check
    _
  $region7: #{forward.3} parent=0 // pred_check_branch
    %11 = sbr.rel (0) target = $region9
  $region8: #{forward.3} parent=0 // pred_region
    _
  $region9: #{forward.3} parent=0 // pred_fallthru
    _
  // Predicated region
  $region10: #{forward.3} parent=0 // pred_check
    _
  $region11: #{forward.3} parent=0 // pred_check_branch
    %13 = sbr.rel (0) target = $region13
  $region12: #{forward.3} parent=0 // pred_region
    _
  $region13: #{forward.3} parent=0 // pred_fallthru
    _
  %v15 = vld [vmem:[%s0] sm:$0xff]
  %v16 = vld [vmem:[%s0 + $0x8] sm:$0xff]
  %v17 = vld [vmem:[%s0 + $0x10] sm:$0xff]
  %v18 = vld [vmem:[%s0 + $0x18] sm:$0xff]
  %v19 = vpack.c.bf16 %v17, %v15
  %v20 = vpack.c.bf16 %v18, %v16
  %v21 = vld [vmem:[%s1] sm:$0xf]
  %v22 = vld [vmem:[%s1 + $0x4] sm:$0xf]
  %v23 = vld [vmem:[%s1 + $0x8] sm:$0xf]
  %v24 = vld [vmem:[%s1 + $0xc] sm:$0xf]
  %v25 = vld [vmem:[%s1 + $0x10] sm:$0xf]
  %v26 = vld [vmem:[%s1 + $0x14] sm:$0xf]
  %v27 = vld [vmem:[%s1 + $0x18] sm:$0xf]
  %v28 = vld [vmem:[%s1 + $0x1c] sm:$0xf]
  %v29 = vld [vmem:[%s1 + $0x20] sm:$0xf]
  %v30 = vld [vmem:[%s1 + $0x24] sm:$0xf]
  %v31 = vld [vmem:[%s1 + $0x28] sm:$0xf]
  %v32 = vld [vmem:[%s1 + $0x2c] sm:$0xf]
  %v33 = vld [vmem:[%s1 + $0x30] sm:$0xf]
  %v34 = vld [vmem:[%s1 + $0x34] sm:$0xf]
  %v35 = vld [vmem:[%s1 + $0x38] sm:$0xf]
  %v36 = vld [vmem:[%s1 + $0x3c] sm:$0xf]
  %v37 = vld [vmem:[%s1 + $0x40] sm:$0xf]
  %v38 = vld [vmem:[%s1 + $0x44] sm:$0xf]
  %v39 = vld [vmem:[%s1 + $0x48] sm:$0xf]
  %v40 = vld [vmem:[%s1 + $0x4c] sm:$0xf]
  %v41 = vld [vmem:[%s1 + $0x50] sm:$0xf]
  %v42 = vld [vmem:[%s1 + $0x54] sm:$0xf]
  %v43 = vld [vmem:[%s1 + $0x58] sm:$0xf]
  %v44 = vld [vmem:[%s1 + $0x5c] sm:$0xf]
  %v45 = vld [vmem:[%s2] sm:$0x1]
  %v47 = vperm.slane %v45, 0
  %v73 = vunpack.c.l.b16 %v21
  %v74 = vunpack.c.l.b16 %v22
  %v75 = vunpack.c.l.b16 %v23
  %v76 = vunpack.c.l.b16 %v24
  %v77 = vunpack.c.l.b16 %v25
  %v78 = vunpack.c.l.b16 %v26
  %v79 = vunpack.c.l.b16 %v27
  %v80 = vunpack.c.l.b16 %v28
  %v81 = vunpack.c.l.b16 %v29
  %v82 = vunpack.c.l.b16 %v30
  %v83 = vunpack.c.l.b16 %v31
  %v84 = vunpack.c.l.b16 %v32
  %v85 = vunpack.c.l.b16 %v33
  %v86 = vunpack.c.l.b16 %v34
  %v87 = vunpack.c.l.b16 %v35
  %v88 = vunpack.c.l.b16 %v36
  %v89 = vunpack.c.l.b16 %v37
  %v90 = vunpack.c.l.b16 %v38
  %v91 = vunpack.c.l.b16 %v39
  %v92 = vunpack.c.l.b16 %v40
  %v93 = vunpack.c.l.b16 %v41
  %v94 = vunpack.c.l.b16 %v42
  %v95 = vunpack.c.l.b16 %v43
  %v96 = vunpack.c.l.b16 %v44
  %v97 = vpack.c.b16 %v74, %v73
  %v98 = vpack.c.b16 %v76, %v75
  %v99 = vpack.c.b16 %v78, %v77
  %v100 = vpack.c.b16 %v80, %v79
  %v101 = vpack.c.b16 %v82, %v81
  %v102 = vpack.c.b16 %v84, %v83
  %v103 = vpack.c.b16 %v86, %v85
  %v104 = vpack.c.b16 %v88, %v87
  %v105 = vpack.c.b16 %v90, %v89
  %v106 = vpack.c.b16 %v92, %v91
  %v107 = vpack.c.b16 %v94, %v93
  %v108 = vpack.c.b16 %v96, %v95
  %vm121 = vcmask 523264
  %v123 = vsel %vm121, %v20, 0
  %125 = vmatpush.bf16.msra.mxu0 %v104
  %126 = vmatpush.bf16.msra.mxu0 %v103
  %127 = vmatpush.bf16.msra.mxu0 %v102
  %128 = vmatpush.bf16.msra.mxu0 %v101
  %129 = vmatpush.bf16.msra.mxu0 %v100
  %130 = vmatpush.bf16.msra.mxu0 %v99
  %131 = vmatpush.bf16.msra.mxu0 %v98
  %132 = vmatpush.bf16.msra.mxu0 %v97
  %133 = vmatmul.bf16.gmra.mxu0 %v19
  %v134 = vpop.f32.mrf.mxu0
  %v135 = vadd.f32 %v47, %v134
  %v136 = vpop.f32.mrf.mxu0
  %v137 = vadd.f32 %v47, %v136
  %138 = vdwg.mxu0
  %139 = vmatpush.bf16.msra.mxu0 0
  %140 = vmatpush.bf16.msra.mxu0 0
  %141 = vmatpush.bf16.msra.mxu0 0
  %142 = vmatpush.bf16.msra.mxu0 0
  %143 = vmatpush.bf16.msra.mxu0 %v108
  %144 = vmatpush.bf16.msra.mxu0 %v107
  %145 = vmatpush.bf16.msra.mxu0 %v106
  %146 = vmatpush.bf16.msra.mxu0 %v105
  %147 = vmatmul.bf16.gmra.mxu0 %v123
  %v148 = vpop.f32.mrf.mxu0
  %v149 = vadd.f32 %v135, %v148
  %v150 = vpop.f32.mrf.mxu0
  %v151 = vadd.f32 %v137, %v150
  %152 = vdwg.mxu0
  %vm153 = vcmask 261120
  %154 = vst.msk [vmem:[%s3] sm:$0xff] %vm153, %v149
  %155 = vst.msk [vmem:[%s3 + $0x8] sm:$0xff] %vm153, %v151
  // Predicated region
  $region14: #{forward.3} parent=0 // pred_check
    _
  $region15: #{forward.3} parent=0 // pred_check_branch
    %157 = sbr.rel (0) target = $region17
  $region16: #{forward.3} parent=0 // pred_region
    _
  $region17: #{forward.3} parent=0 // pred_fallthru
    _
  // Predicated region
  $region18: #{forward.3} parent=0 // pred_check
    _
  $region19: #{forward.3} parent=0 // pred_check_branch
    %159 = sbr.rel (0) target = $region21
  $region20: #{forward.3} parent=0 // pred_region
    _
  $region21: #{forward.3} parent=0 // pred_fallthru
    _

// kernel: forward.4
$region0: #{forward.4}
  #allocation0 [shape = 'u32[]', space=smem, size = 0x4, offset = 0x4, fixed_abs, tag = 'smem constant byte address 0x4 - core index']
  #allocation1 [shape = 'u32[72,128]{1,0:T(1,128)}', space=vmem, size = 0x9000, scoped, tag = 'internal scratch']
  %s0 = inlined_call_operand.vmem [shape: f32[4,5,32], index: 0, kind: input, shape index: {}]
  %s1 = inlined_call_operand.vmem [shape: f32[2,1,32], index: 1, kind: input, shape index: {}]
  %s2 = inlined_call_operand.vmem [shape: f32[2,1,32], index: 2, kind: input, shape index: {}]
  %s3 = inlined_call_operand.vmem [shape: bf16[2,32,96], index: 3, kind: input, shape index: {}]
  %s4 = inlined_call_operand.vmem [shape: f32[2,1,96], index: 4, kind: input, shape index: {}]
  %s5 = inlined_call_operand.vmem [shape: bf16[2,32,32], index: 5, kind: input, shape index: {}]
  %s6 = inlined_call_operand.vmem [shape: f32[2,1,32], index: 6, kind: input, shape index: {}]
  %s7 = inlined_call_operand.vmem [shape: f32[2,1,32], index: 7, kind: input, shape index: {}]
  %s8 = inlined_call_operand.vmem [shape: f32[2,1,32], index: 8, kind: input, shape index: {}]
  %s9 = inlined_call_operand.vmem [shape: bf16[2,32,128], index: 9, kind: input, shape index: {}]
  %s10 = inlined_call_operand.vmem [shape: f32[2,1,128], index: 10, kind: input, shape index: {}]
  %s11 = inlined_call_operand.vmem [shape: bf16[2,128,32], index: 11, kind: input, shape index: {}]
  %s12 = inlined_call_operand.vmem [shape: f32[2,1,32], index: 12, kind: input, shape index: {}]
  %s13 = inlined_call_operand.vmem [shape: f32[1,32], index: 13, kind: input, shape index: {}]
  %s14 = inlined_call_operand.vmem [shape: f32[1,32], index: 14, kind: input, shape index: {}]
  %s15 = inlined_call_operand.vmem [shape: bf16[32,32], index: 15, kind: input, shape index: {}]
  %s16 = inlined_call_operand.vmem [shape: f32[1,32], index: 16, kind: input, shape index: {}]
  %s17 = inlined_call_operand.vmem [shape: f32[4,5,32], index: 17, kind: output, shape index: {}]
  %s18 = sld [smem:[#allocation0]]
  $region113: #{forward.4} parent=0
    _
  %s20 = ssub.s32 1, %s18
  %s21 = scalar_select 0, %s20, %s18
  loop: start=0, step=1, limit=6
  $region2: #{forward.4} parent=0 // loop_pre_header
    _
  $region3: #{forward.4} parent=0 // loop_header
    %s23 = sphi 0, %s27
    %p24 = scmp.ge.s32.totalorder %s23, 6
    %s30 = sphi 0, %s42
    %s31 = sphi 0, %s38
    %s32 = sphi 0, %s30
    %s33 = sphi 0, %s31
    %s34 = sphi 0, %s32
    %s35 = sphi 0, %s33
    %s45 = sphi 0, %s47
    %s48 = sphi 0, %s45
    %s49 = sphi 0, %s48
    %s65 = sphi 0, %s49
    %s71 = sphi 0, %s73
    %s74 = sphi 0, %s71
    %s75 = sphi 0, %s74
    %s91 = sphi 0, %s75
    %s97 = sphi 0, %s99
    %s100 = sphi 0, %s97
    %s101 = sphi 0, %s100
    %s117 = sphi 0, %s101
    %s123 = sphi 0, %s125
    %s126 = sphi 0, %s123
    %s127 = sphi 0, %s126
    %s143 = sphi 0, %s127
    %s149 = sphi 0, %s151
    %s152 = sphi 0, %s149
    %s153 = sphi 0, %s152
    %s169 = sphi 0, %s153
    %s175 = sphi 0, %s177
    %s178 = sphi 0, %s175
    %s179 = sphi 0, %s178
    %s195 = sphi 0, %s179
    %s201 = sphi 0, %s203
    %s204 = sphi 0, %s201
    %s205 = sphi 0, %s204
    %s221 = sphi 0, %s205
    %s227 = sphi 0, %s229
    %s230 = sphi 0, %s227
    %s231 = sphi 0, %s230
    %s247 = sphi 0, %s231
    %s253 = sphi 0, %s255
    %s256 = sphi 0, %s253
    %s257 = sphi 0, %s256
    %s273 = sphi 0, %s257
    %s279 = sphi 0, %s281
    %s282 = sphi 0, %s279
    %s283 = sphi 0, %s282
    %s299 = sphi 0, %s283
    %s305 = sphi 0, %s307
    %s308 = sphi 0, %s305
    %s309 = sphi 0, %s308
    %s325 = sphi 0, %s309
    %s331 = sphi 0, %s333
    %s334 = sphi 0, %s331
    %s335 = sphi 0, %s334
    %s351 = sphi 0, %s335
    %s357 = sphi 0, %s359
    %s360 = sphi 0, %s357
    %s361 = sphi 0, %s360
    %s377 = sphi 0, %s361
    %s381 = sphi 0, %s381
    %s383 = sphi 0, %s381
    %s384 = sphi 0, %s383
    %s398 = sphi 0, %s384
    %s402 = sphi 0, %s402
    %s404 = sphi 0, %s402
    %s405 = sphi 0, %s404
    %s419 = sphi 0, %s405
    %s423 = sphi 0, %s423
    %s425 = sphi 0, %s423
    %s426 = sphi 0, %s425
    %s440 = sphi 0, %s426
    %s444 = sphi 0, %s444
    %s446 = sphi 0, %s444
    %s447 = sphi 0, %s446
    %s461 = sphi 0, %s447
    %s467 = sphi 0, %s469
    %s470 = sphi 0, %s467
    %s471 = sphi 0, %s470
    %s487 = sphi 0, %s471
  $region4: #{forward.4} parent=0 // loop_header_branch
    %26 = sbr.rel (%p24) target = $region8
  $region5: #{forward.4} parent=0 // loop_body
    %s28 = ssub.s32 %s23, 1
    %s29 = ssub.s32 %s23, 2
    %s36 = sadd.s32 1, %s31
    %p37 = scmp.ge.s32.totalorder %s36, 2
    %s38 = scalar_select %p37, 0, %s36
    %s39 = sadd.s32 1, %s30
    %s40 = scalar_select %p37, %s39, %s30
    %p41 = scmp.ge.s32.totalorder %s40, 2
    %s42 = scalar_select %p41, 0, %s40
    %s43 = ssub.s32 %s30, %s42
    %p44 = scmp.eq.s32.totalorder %s43, 0
    %s46 = sadd.s32 %s45, 1
    %s47 = scalar_select %p44, %s45, %s46
    %p50 = pneg %p44
    %p51 = scmp.eq.s32.totalorder %s23, 3
    %p52 = por %p50, %p51
    %p53 = scmp.ne.s32.totalorder %s45, %s48
    %p54 = scmp.eq.s32.totalorder %s23, 0
    %p55 = por %p53, %p54
    %p56 = scmp.ne.s32.totalorder %s45, %s48
    %p57 = scmp.eq.s32.totalorder %s28, 3
    %p58 = por %p56, %p57
    %p59 = scmp.ne.s32.totalorder %s48, %s49
    %p60 = scmp.eq.s32.totalorder %s28, 0
    %p61 = por %p59, %p60
    %p62 = scmp.ne.s32.totalorder %s48, %s49
    %p63 = scmp.eq.s32.totalorder %s29, 3
    %p64 = por %p62, %p63
    %p66 = scmp.ne.s32.totalorder %s49, %s65
    %p67 = scmp.eq.s32.totalorder %s29, 0
    %p68 = por %p66, %p67
    %s69 = ssub.s32 %s31, %s38
    %p70 = scmp.eq.s32.totalorder %s69, 0
    %s72 = sadd.s32 %s71, 1
    %s73 = scalar_select %p70, %s71, %s72
    %p76 = pneg %p70
    %p77 = scmp.eq.s32.totalorder %s23, 3
    %p78 = por %p76, %p77
    %p79 = scmp.ne.s32.totalorder %s71, %s74
    %p80 = scmp.eq.s32.totalorder %s23, 0
    %p81 = por %p79, %p80
    %p82 = scmp.ne.s32.totalorder %s71, %s74
    %p83 = scmp.eq.s32.totalorder %s28, 3
    %p84 = por %p82, %p83
    %p85 = scmp.ne.s32.totalorder %s74, %s75
    %p86 = scmp.eq.s32.totalorder %s28, 0
    %p87 = por %p85, %p86
    %p88 = scmp.ne.s32.totalorder %s74, %s75
    %p89 = scmp.eq.s32.totalorder %s29, 3
    %p90 = por %p88, %p89
    %p92 = scmp.ne.s32.totalorder %s75, %s91
    %p93 = scmp.eq.s32.totalorder %s29, 0
    %p94 = por %p92, %p93
    %s95 = ssub.s32 %s31, %s38
    %p96 = scmp.eq.s32.totalorder %s95, 0
    %s98 = sadd.s32 %s97, 1
    %s99 = scalar_select %p96, %s97, %s98
    %p102 = pneg %p96
    %p103 = scmp.eq.s32.totalorder %s23, 3
    %p104 = por %p102, %p103
    %p105 = scmp.ne.s32.totalorder %s97, %s100
    %p106 = scmp.eq.s32.totalorder %s23, 0
    %p107 = por %p105, %p106
    %p108 = scmp.ne.s32.totalorder %s97, %s100
    %p109 = scmp.eq.s32.totalorder %s28, 3
    %p110 = por %p108, %p109
    %p111 = scmp.ne.s32.totalorder %s100, %s101
    %p112 = scmp.eq.s32.totalorder %s28, 0
    %p113 = por %p111, %p112
    %p114 = scmp.ne.s32.totalorder %s100, %s101
    %p115 = scmp.eq.s32.totalorder %s29, 3
    %p116 = por %p114, %p115
    %p118 = scmp.ne.s32.totalorder %s101, %s117
    %p119 = scmp.eq.s32.totalorder %s29, 0
    %p120 = por %p118, %p119
    %s121 = ssub.s32 %s31, %s38
    %p122 = scmp.eq.s32.totalorder %s121, 0
    %s124 = sadd.s32 %s123, 1
    %s125 = scalar_select %p122, %s123, %s124
    %p128 = pneg %p122
    %p129 = scmp.eq.s32.totalorder %s23, 3
    %p130 = por %p128, %p129
    %p131 = scmp.ne.s32.totalorder %s123, %s126
    %p132 = scmp.eq.s32.totalorder %s23, 0
    %p133 = por %p131, %p132
    %p134 = scmp.ne.s32.totalorder %s123, %s126
    %p135 = scmp.eq.s32.totalorder %s28, 3
    %p136 = por %p134, %p135
    %p137 = scmp.ne.s32.totalorder %s126, %s127
    %p138 = scmp.eq.s32.totalorder %s28, 0
    %p139 = por %p137, %p138
    %p140 = scmp.ne.s32.totalorder %s126, %s127
    %p141 = scmp.eq.s32.totalorder %s29, 3
    %p142 = por %p140, %p141
    %p144 = scmp.ne.s32.totalorder %s127, %s143
    %p145 = scmp.eq.s32.totalorder %s29, 0
    %p146 = por %p144, %p145
    %s147 = ssub.s32 %s31, %s38
    %p148 = scmp.eq.s32.totalorder %s147, 0
    %s150 = sadd.s32 %s149, 1
    %s151 = scalar_select %p148, %s149, %s150
    %p154 = pneg %p148
    %p155 = scmp.eq.s32.totalorder %s23, 3
    %p156 = por %p154, %p155
    %p157 = scmp.ne.s32.totalorder %s149, %s152
    %p158 = scmp.eq.s32.totalorder %s23, 0
    %p159 = por %p157, %p158
    %p160 = scmp.ne.s32.totalorder %s149, %s152
    %p161 = scmp.eq.s32.totalorder %s28, 3
    %p162 = por %p160, %p161
    %p163 = scmp.ne.s32.totalorder %s152, %s153
    %p164 = scmp.eq.s32.totalorder %s28, 0
    %p165 = por %p163, %p164
    %p166 = scmp.ne.s32.totalorder %s152, %s153
    %p167 = scmp.eq.s32.totalorder %s29, 3
    %p168 = por %p166, %p167
    %p170 = scmp.ne.s32.totalorder %s153, %s169
    %p171 = scmp.eq.s32.totalorder %s29, 0
    %p172 = por %p170, %p171
    %s173 = ssub.s32 %s31, %s38
    %p174 = scmp.eq.s32.totalorder %s173, 0
    %s176 = sadd.s32 %s175, 1
    %s177 = scalar_select %p174, %s175, %s176
    %p180 = pneg %p174
    %p181 = scmp.eq.s32.totalorder %s23, 3
    %p182 = por %p180, %p181
    %p183 = scmp.ne.s32.totalorder %s175, %s178
    %p184 = scmp.eq.s32.totalorder %s23, 0
    %p185 = por %p183, %p184
    %p186 = scmp.ne.s32.totalorder %s175, %s178
    %p187 = scmp.eq.s32.totalorder %s28, 3
    %p188 = por %p186, %p187
    %p189 = scmp.ne.s32.totalorder %s178, %s179
    %p190 = scmp.eq.s32.totalorder %s28, 0
    %p191 = por %p189, %p190
    %p192 = scmp.ne.s32.totalorder %s178, %s179
    %p193 = scmp.eq.s32.totalorder %s29, 3
    %p194 = por %p192, %p193
    %p196 = scmp.ne.s32.totalorder %s179, %s195
    %p197 = scmp.eq.s32.totalorder %s29, 0
    %p198 = por %p196, %p197
    %s199 = ssub.s32 %s31, %s38
    %p200 = scmp.eq.s32.totalorder %s199, 0
    %s202 = sadd.s32 %s201, 1
    %s203 = scalar_select %p200, %s201, %s202
    %p206 = pneg %p200
    %p207 = scmp.eq.s32.totalorder %s23, 3
    %p208 = por %p206, %p207
    %p209 = scmp.ne.s32.totalorder %s201, %s204
    %p210 = scmp.eq.s32.totalorder %s23, 0
    %p211 = por %p209, %p210
    %p212 = scmp.ne.s32.totalorder %s201, %s204
    %p213 = scmp.eq.s32.totalorder %s28, 3
    %p214 = por %p212, %p213
    %p215 = scmp.ne.s32.totalorder %s204, %s205
    %p216 = scmp.eq.s32.totalorder %s28, 0
    %p217 = por %p215, %p216
    %p218 = scmp.ne.s32.totalorder %s204, %s205
    %p219 = scmp.eq.s32.totalorder %s29, 3
    %p220 = por %p218, %p219
    %p222 = scmp.ne.s32.totalorder %s205, %s221
    %p223 = scmp.eq.s32.totalorder %s29, 0
    %p224 = por %p222, %p223
    %s225 = ssub.s32 %s31, %s38
    %p226 = scmp.eq.s32.totalorder %s225, 0
    %s228 = sadd.s32 %s227, 1
    %s229 = scalar_select %p226, %s227, %s228
    %p232 = pneg %p226
    %p233 = scmp.eq.s32.totalorder %s23, 3
    %p234 = por %p232, %p233
    %p235 = scmp.ne.s32.totalorder %s227, %s230
    %p236 = scmp.eq.s32.totalorder %s23, 0
    %p237 = por %p235, %p236
    %p238 = scmp.ne.s32.totalorder %s227, %s230
    %p239 = scmp.eq.s32.totalorder %s28, 3
    %p240 = por %p238, %p239
    %p241 = scmp.ne.s32.totalorder %s230, %s231
    %p242 = scmp.eq.s32.totalorder %s28, 0
    %p243 = por %p241, %p242
    %p244 = scmp.ne.s32.totalorder %s230, %s231
    %p245 = scmp.eq.s32.totalorder %s29, 3
    %p246 = por %p244, %p245
    %p248 = scmp.ne.s32.totalorder %s231, %s247
    %p249 = scmp.eq.s32.totalorder %s29, 0
    %p250 = por %p248, %p249
    %s251 = ssub.s32 %s31, %s38
    %p252 = scmp.eq.s32.totalorder %s251, 0
    %s254 = sadd.s32 %s253, 1
    %s255 = scalar_select %p252, %s253, %s254
    %p258 = pneg %p252
    %p259 = scmp.eq.s32.totalorder %s23, 3
    %p260 = por %p258, %p259
    %p261 = scmp.ne.s32.totalorder %s253, %s256
    %p262 = scmp.eq.s32.totalorder %s23, 0
    %p263 = por %p261, %p262
    %p264 = scmp.ne.s32.totalorder %s253, %s256
    %p265 = scmp.eq.s32.totalorder %s28, 3
    %p266 = por %p264, %p265
    %p267 = scmp.ne.s32.totalorder %s256, %s257
    %p268 = scmp.eq.s32.totalorder %s28, 0
    %p269 = por %p267, %p268
    %p270 = scmp.ne.s32.totalorder %s256, %s257
    %p271 = scmp.eq.s32.totalorder %s29, 3
    %p272 = por %p270, %p271
    %p274 = scmp.ne.s32.totalorder %s257, %s273
    %p275 = scmp.eq.s32.totalorder %s29, 0
    %p276 = por %p274, %p275
    %s277 = ssub.s32 %s31, %s38
    %p278 = scmp.eq.s32.totalorder %s277, 0
    %s280 = sadd.s32 %s279, 1
    %s281 = scalar_select %p278, %s279, %s280
    %p284 = pneg %p278
    %p285 = scmp.eq.s32.totalorder %s23, 3
    %p286 = por %p284, %p285
    %p287 = scmp.ne.s32.totalorder %s279, %s282
    %p288 = scmp.eq.s32.totalorder %s23, 0
    %p289 = por %p287, %p288
    %p290 = scmp.ne.s32.totalorder %s279, %s282
    %p291 = scmp.eq.s32.totalorder %s28, 3
    %p292 = por %p290, %p291
    %p293 = scmp.ne.s32.totalorder %s282, %s283
    %p294 = scmp.eq.s32.totalorder %s28, 0
    %p295 = por %p293, %p294
    %p296 = scmp.ne.s32.totalorder %s282, %s283
    %p297 = scmp.eq.s32.totalorder %s29, 3
    %p298 = por %p296, %p297
    %p300 = scmp.ne.s32.totalorder %s283, %s299
    %p301 = scmp.eq.s32.totalorder %s29, 0
    %p302 = por %p300, %p301
    %s303 = ssub.s32 %s31, %s38
    %p304 = scmp.eq.s32.totalorder %s303, 0
    %s306 = sadd.s32 %s305, 1
    %s307 = scalar_select %p304, %s305, %s306
    %p310 = pneg %p304
    %p311 = scmp.eq.s32.totalorder %s23, 3
    %p312 = por %p310, %p311
    %p313 = scmp.ne.s32.totalorder %s305, %s308
    %p314 = scmp.eq.s32.totalorder %s23, 0
    %p315 = por %p313, %p314
    %p316 = scmp.ne.s32.totalorder %s305, %s308
    %p317 = scmp.eq.s32.totalorder %s28, 3
    %p318 = por %p316, %p317
    %p319 = scmp.ne.s32.totalorder %s308, %s309
    %p320 = scmp.eq.s32.totalorder %s28, 0
    %p321 = por %p319, %p320
    %p322 = scmp.ne.s32.totalorder %s308, %s309
    %p323 = scmp.eq.s32.totalorder %s29, 3
    %p324 = por %p322, %p323
    %p326 = scmp.ne.s32.totalorder %s309, %s325
    %p327 = scmp.eq.s32.totalorder %s29, 0
    %p328 = por %p326, %p327
    %s329 = ssub.s32 %s31, %s38
    %p330 = scmp.eq.s32.totalorder %s329, 0
    %s332 = sadd.s32 %s331, 1
    %s333 = scalar_select %p330, %s331, %s332
    %p336 = pneg %p330
    %p337 = scmp.eq.s32.totalorder %s23, 3
    %p338 = por %p336, %p337
    %p339 = scmp.ne.s32.totalorder %s331, %s334
    %p340 = scmp.eq.s32.totalorder %s23, 0
    %p341 = por %p339, %p340
    %p342 = scmp.ne.s32.totalorder %s331, %s334
    %p343 = scmp.eq.s32.totalorder %s28, 3
    %p344 = por %p342, %p343
    %p345 = scmp.ne.s32.totalorder %s334, %s335
    %p346 = scmp.eq.s32.totalorder %s28, 0
    %p347 = por %p345, %p346
    %p348 = scmp.ne.s32.totalorder %s334, %s335
    %p349 = scmp.eq.s32.totalorder %s29, 3
    %p350 = por %p348, %p349
    %p352 = scmp.ne.s32.totalorder %s335, %s351
    %p353 = scmp.eq.s32.totalorder %s29, 0
    %p354 = por %p352, %p353
    %s355 = ssub.s32 %s31, %s38
    %p356 = scmp.eq.s32.totalorder %s355, 0
    %s358 = sadd.s32 %s357, 1
    %s359 = scalar_select %p356, %s357, %s358
    %p362 = pneg %p356
    %p363 = scmp.eq.s32.totalorder %s23, 3
    %p364 = por %p362, %p363
    %p365 = scmp.ne.s32.totalorder %s357, %s360
    %p366 = scmp.eq.s32.totalorder %s23, 0
    %p367 = por %p365, %p366
    %p368 = scmp.ne.s32.totalorder %s357, %s360
    %p369 = scmp.eq.s32.totalorder %s28, 3
    %p370 = por %p368, %p369
    %p371 = scmp.ne.s32.totalorder %s360, %s361
    %p372 = scmp.eq.s32.totalorder %s28, 0
    %p373 = por %p371, %p372
    %p374 = scmp.ne.s32.totalorder %s360, %s361
    %p375 = scmp.eq.s32.totalorder %s29, 3
    %p376 = por %p374, %p375
    %p378 = scmp.ne.s32.totalorder %s361, %s377
    %p379 = scmp.eq.s32.totalorder %s29, 0
    %p380 = por %p378, %p379
    %s382 = sadd.s32 %s381, 1
    %p385 = scmp.eq.s32.totalorder %s23, 3
    %p386 = scmp.ne.s32.totalorder %s381, %s383
    %p387 = scmp.eq.s32.totalorder %s23, 0
    %p388 = por %p386, %p387
    %p389 = scmp.ne.s32.totalorder %s381, %s383
    %p390 = scmp.eq.s32.totalorder %s28, 3
    %p391 = por %p389, %p390
    %p392 = scmp.ne.s32.totalorder %s383, %s384
    %p393 = scmp.eq.s32.totalorder %s28, 0
    %p394 = por %p392, %p393
    %p395 = scmp.ne.s32.totalorder %s383, %s384
    %p396 = scmp.eq.s32.totalorder %s29, 3
    %p397 = por %p395, %p396
    %p399 = scmp.ne.s32.totalorder %s384, %s398
    %p400 = scmp.eq.s32.totalorder %s29, 0
    %p401 = por %p399, %p400
    %s403 = sadd.s32 %s402, 1
    %p406 = scmp.eq.s32.totalorder %s23, 3
    %p407 = scmp.ne.s32.totalorder %s402, %s404
    %p408 = scmp.eq.s32.totalorder %s23, 0
    %p409 = por %p407, %p408
    %p410 = scmp.ne.s32.totalorder %s402, %s404
    %p411 = scmp.eq.s32.totalorder %s28, 3
    %p412 = por %p410, %p411
    %p413 = scmp.ne.s32.totalorder %s404, %s405
    %p414 = scmp.eq.s32.totalorder %s28, 0
    %p415 = por %p413, %p414
    %p416 = scmp.ne.s32.totalorder %s404, %s405
    %p417 = scmp.eq.s32.totalorder %s29, 3
    %p418 = por %p416, %p417
    %p420 = scmp.ne.s32.totalorder %s405, %s419
    %p421 = scmp.eq.s32.totalorder %s29, 0
    %p422 = por %p420, %p421
    %s424 = sadd.s32 %s423, 1
    %p427 = scmp.eq.s32.totalorder %s23, 3
    %p428 = scmp.ne.s32.totalorder %s423, %s425
    %p429 = scmp.eq.s32.totalorder %s23, 0
    %p430 = por %p428, %p429
    %p431 = scmp.ne.s32.totalorder %s423, %s425
    %p432 = scmp.eq.s32.totalorder %s28, 3
    %p433 = por %p431, %p432
    %p434 = scmp.ne.s32.totalorder %s425, %s426
    %p435 = scmp.eq.s32.totalorder %s28, 0
    %p436 = por %p434, %p435
    %p437 = scmp.ne.s32.totalorder %s425, %s426
    %p438 = scmp.eq.s32.totalorder %s29, 3
    %p439 = por %p437, %p438
    %p441 = scmp.ne.s32.totalorder %s426, %s440
    %p442 = scmp.eq.s32.totalorder %s29, 0
    %p443 = por %p441, %p442
    %s445 = sadd.s32 %s444, 1
    %p448 = scmp.eq.s32.totalorder %s23, 3
    %p449 = scmp.ne.s32.totalorder %s444, %s446
    %p450 = scmp.eq.s32.totalorder %s23, 0
    %p451 = por %p449, %p450
    %p452 = scmp.ne.s32.totalorder %s444, %s446
    %p453 = scmp.eq.s32.totalorder %s28, 3
    %p454 = por %p452, %p453
    %p455 = scmp.ne.s32.totalorder %s446, %s447
    %p456 = scmp.eq.s32.totalorder %s28, 0
    %p457 = por %p455, %p456
    %p458 = scmp.ne.s32.totalorder %s446, %s447
    %p459 = scmp.eq.s32.totalorder %s29, 3
    %p460 = por %p458, %p459
    %p462 = scmp.ne.s32.totalorder %s447, %s461
    %p463 = scmp.eq.s32.totalorder %s29, 0
    %p464 = por %p462, %p463
    %s465 = ssub.s32 %s30, %s42
    %p466 = scmp.eq.s32.totalorder %s465, 0
    %s468 = sadd.s32 %s467, 1
    %s469 = scalar_select %p466, %s467, %s468
    %p472 = pneg %p466
    %p473 = scmp.eq.s32.totalorder %s23, 3
    %p474 = por %p472, %p473
    %p475 = scmp.ne.s32.totalorder %s467, %s470
    %p476 = scmp.eq.s32.totalorder %s23, 0
    %p477 = por %p475, %p476
    %p478 = scmp.ne.s32.totalorder %s467, %s470
    %p479 = scmp.eq.s32.totalorder %s28, 3
    %p480 = por %p478, %p479
    %p481 = scmp.ne.s32.totalorder %s470, %s471
    %p482 = scmp.eq.s32.totalorder %s28, 0
    %p483 = por %p481, %p482
    %p484 = scmp.ne.s32.totalorder %s470, %s471
    %p485 = scmp.eq.s32.totalorder %s29, 3
    %p486 = por %p484, %p485
    %p488 = scmp.ne.s32.totalorder %s471, %s487
    %p489 = scmp.eq.s32.totalorder %s29, 0
    %p490 = por %p488, %p489
    %p491 = scmp.le.s32.totalorder 1, %s23
    %p492 = scmp.lt.s32.totalorder %s23, 5
    %p493 = pnand %p491, %p492
    %p494 = pneg %p493
    // Predicated region
    $region9: #{forward.4} parent=5 // pred_check
      _
    $region10: #{forward.4} parent=5 // pred_check_branch
      %496 = sbr.rel (%p493) target = $region12
    $region11: #{forward.4} parent=5 // pred_region
      %s497 = ssub.s32 %s23, 1
      // Predicated region
      $region13: #{forward.4} parent=11 // pred_check
        %p498 = pneg %p394
      $region14: #{forward.4} parent=11 // pred_check_branch
        %500 = sbr.rel (%p498) target = $region16
      $region15: #{forward.4} parent=11 // pred_region
        _
      $region16: #{forward.4} parent=11 // pred_fallthru
        _
      // Predicated region
      $region17: #{forward.4} parent=11 // pred_check
        %p501 = pneg %p415
      $region18: #{forward.4} parent=11 // pred_check_branch
        %503 = sbr.rel (%p501) target = $region20
      $region19: #{forward.4} parent=11 // pred_region
        _
      $region20: #{forward.4} parent=11 // pred_fallthru
        _
      // Predicated region
      $region21: #{forward.4} parent=11 // pred_check
        %p504 = pneg %p436
      $region22: #{forward.4} parent=11 // pred_check_branch
        %506 = sbr.rel (%p504) target = $region24
      $region23: #{forward.4} parent=11 // pred_region
        _
      $region24: #{forward.4} parent=11 // pred_fallthru
        _
      // Predicated region
      $region25: #{forward.4} parent=11 // pred_check
        %p507 = pneg %p457
      $region26: #{forward.4} parent=11 // pred_check_branch
        %509 = sbr.rel (%p507) target = $region28
      $region27: #{forward.4} parent=11 // pred_region
        _
      $region28: #{forward.4} parent=11 // pred_fallthru
        _
    $region12: #{forward.4} parent=5 // pred_fallthru
      _
    %p510 = scmp.lt.s32.totalorder %s23, 4
    // Predicated region
    $region29: #{forward.4} parent=5 // pred_check
      %p511 = pneg %p510
    $region30: #{forward.4} parent=5 // pred_check_branch
      %513 = sbr.rel (%p511) target = $region32
    $region31: #{forward.4} parent=5 // pred_region
      // Predicated region
      $region33: #{forward.4} parent=31 // pred_check
        %p514 = pneg %p55
      $region34: #{forward.4} parent=31 // pred_check_branch
        %516 = sbr.rel (%p514) target = $region36
      $region35: #{forward.4} parent=31 // pred_region
        %s517 = smul.u32 2, %s30
        %p518 = scmp.lt.s32.totalorder %s517, 3
        %s519 = scalar_select %p518, %s517, 3
        %s520 = smul.addr %s519, 8
        %s521 = scalar_lea.vmem %s0, %s520
        %s522 = smul.u32 2, %s30
      $region36: #{forward.4} parent=31 // pred_fallthru
        _
      // Predicated region
      $region37: #{forward.4} parent=31 // pred_check
        %p523 = pneg %p81
      $region38: #{forward.4} parent=31 // pred_check_branch
        %525 = sbr.rel (%p523) target = $region40
      $region39: #{forward.4} parent=31 // pred_region
        %p526 = scmp.lt.s32.totalorder %s31, 1
        %s527 = scalar_select %p526, %s31, 1
        %s528 = scalar_lea.vmem %s1, %s527
      $region40: #{forward.4} parent=31 // pred_fallthru
        _
      // Predicated region
      $region41: #{forward.4} parent=31 // pred_check
        %p529 = pneg %p107
      $region42: #{forward.4} parent=31 // pred_check_branch
        %531 = sbr.rel (%p529) target = $region44
      $region43: #{forward.4} parent=31 // pred_region
        %p532 = scmp.lt.s32.totalorder %s31, 1
        %s533 = scalar_select %p532, %s31, 1
        %s534 = scalar_lea.vmem %s2, %s533
      $region44: #{forward.4} parent=31 // pred_fallthru
        _
      // Predicated region
      $region45: #{forward.4} parent=31 // pred_check
        %p535 = pneg %p133
      $region46: #{forward.4} parent=31 // pred_check_branch
        %537 = sbr.rel (%p535) target = $region48
      $region47: #{forward.4} parent=31 // pred_region
        %p538 = scmp.lt.s32.totalorder %s31, 1
        %s539 = scalar_select %p538, %s31, 1
        %s540 = smul.addr %s539, 4
        %s541 = smul.addr %s540, 4
        %s542 = scalar_lea.vmem %s3, %s541
      $region48: #{forward.4} parent=31 // pred_fallthru
        _
      // Predicated region
      $region49: #{forward.4} parent=31 // pred_check
        %p543 = pneg %p159
      $region50: #{forward.4} parent=31 // pred_check_branch
        %545 = sbr.rel (%p543) target = $region52
      $region51: #{forward.4} parent=31 // pred_region
        %p546 = scmp.lt.s32.totalorder %s31, 1
        %s547 = scalar_select %p546, %s31, 1
        %s548 = scalar_lea.vmem %s4, %s547
      $region52: #{forward.4} parent=31 // pred_fallthru
        _
      // Predicated region
      $region53: #{forward.4} parent=31 // pred_check
        %p549 = pneg %p185
      $region54: #{forward.4} parent=31 // pred_check_branch
        %551 = sbr.rel (%p549) target = $region56
      $region55: #{forward.4} parent=31 // pred_region
        %p552 = scmp.lt.s32.totalorder %s31, 1
        %s553 = scalar_select %p552, %s31, 1
        %s554 = smul.addr %s553, 4
        %s555 = smul.addr %s554, 4
        %s556 = scalar_lea.vmem %s5, %s555
      $region56: #{forward.4} parent=31 // pred_fallthru
        _
      // Predicated region
      $region57: #{forward.4} parent=31 // pred_check
        %p557 = pneg %p211
      $region58: #{forward.4} parent=31 // pred_check_branch
        %559 = sbr.rel (%p557) target = $region60
      $region59: #{forward.4} parent=31 // pred_region
        %p560 = scmp.lt.s32.totalorder %s31, 1
        %s561 = scalar_select %p560, %s31, 1
        %s562 = scalar_lea.vmem %s6, %s561
      $region60: #{forward.4} parent=31 // pred_fallthru
        _
      // Predicated region
      $region61: #{forward.4} parent=31 // pred_check
        %p563 = pneg %p237
      $region62: #{forward.4} parent=31 // pred_check_branch
        %565 = sbr.rel (%p563) target = $region64
      $region63: #{forward.4} parent=31 // pred_region
        %p566 = scmp.lt.s32.totalorder %s31, 1
        %s567 = scalar_select %p566, %s31, 1
        %s568 = scalar_lea.vmem %s7, %s567
      $region64: #{forward.4} parent=31 // pred_fallthru
        _
      // Predicated region
      $region65: #{forward.4} parent=31 // pred_check
        %p569 = pneg %p263
      $region66: #{forward.4} parent=31 // pred_check_branch
        %571 = sbr.rel (%p569) target = $region68
      $region67: #{forward.4} parent=31 // pred_region
        %p572 = scmp.lt.s32.totalorder %s31, 1
        %s573 = scalar_select %p572, %s31, 1
        %s574 = scalar_lea.vmem %s8, %s573
      $region68: #{forward.4} parent=31 // pred_fallthru
        _
      // Predicated region
      $region69: #{forward.4} parent=31 // pred_check
        %p575 = pneg %p289
      $region70: #{forward.4} parent=31 // pred_check_branch
        %577 = sbr.rel (%p575) target = $region72
      $region71: #{forward.4} parent=31 // pred_region
        %p578 = scmp.lt.s32.totalorder %s31, 1
        %s579 = scalar_select %p578, %s31, 1
        %s580 = smul.addr %s579, 4
        %s581 = smul.addr %s580, 4
        %s582 = scalar_lea.vmem %s9, %s581
      $region72: #{forward.4} parent=31 // pred_fallthru
        _
      // Predicated region
      $region73: #{forward.4} parent=31 // pred_check
        %p583 = pneg %p315
      $region74: #{forward.4} parent=31 // pred_check_branch
        %585 = sbr.rel (%p583) target = $region76
      $region75: #{forward.4} parent=31 // pred_region
        %p586 = scmp.lt.s32.totalorder %s31, 1
        %s587 = scalar_select %p586, %s31, 1
        %s588 = scalar_lea.vmem %s10, %s587
      $region76: #{forward.4} parent=31 // pred_fallthru
        _
      // Predicated region
      $region77: #{forward.4} parent=31 // pred_check
        %p589 = pneg %p341
      $region78: #{forward.4} parent=31 // pred_check_branch
        %591 = sbr.rel (%p589) target = $region80
      $region79: #{forward.4} parent=31 // pred_region
        %p592 = scmp.lt.s32.totalorder %s31, 1
        %s593 = scalar_select %p592, %s31, 1
        %s594 = smul.addr %s593, 16
        %s595 = smul.addr %s594, 4
        %s596 = scalar_lea.vmem %s11, %s595
      $region80: #{forward.4} parent=31 // pred_fallthru
        _
      // Predicated region
      $region81: #{forward.4} parent=31 // pred_check
        %p597 = pneg %p367
      $region82: #{forward.4} parent=31 // pred_check_branch
        %599 = sbr.rel (%p597) target = $region84
      $region83: #{forward.4} parent=31 // pred_region
        %p600 = scmp.lt.s32.totalorder %s31, 1
        %s601 = scalar_select %p600, %s31, 1
        %s602 = scalar_lea.vmem %s12, %s601
      $region84: #{forward.4} parent=31 // pred_fallthru
        _
    $region32: #{forward.4} parent=5 // pred_fallthru
      _
    %p603 = scmp.le.s32.totalorder 1, %s23
    %p604 = scmp.lt.s32.totalorder %s23, 5
    %p605 = pnand %p603, %p604
    %p606 = pneg %p605
    // Predicated region
    $region85: #{forward.4} parent=5 // pred_check
      _
    $region86: #{forward.4} parent=5 // pred_check_branch
      %608 = sbr.rel (%p605) target = $region88
    $region87: #{forward.4} parent=5 // pred_region
      %s609 = ssub.s32 %s23, 1
      %s610 = smul.u32 2, %s32
      %p611 = scmp.lt.s32.totalorder %s610, 3
      %s612 = scalar_select %p611, %s610, 3
      %s613 = smul.addr %s612, 8
      %s614 = scalar_lea.vmem %s0, %s613
      %p615 = pneg %p61
      %p616 = pneg %p58
      %p617 = scmp.lt.s32.totalorder %s33, 1
      %s618 = scalar_select %p617, %s33, 1
      %s619 = scalar_lea.vmem %s1, %s618
      %p620 = pneg %p87
      %p621 = pneg %p84
      %p622 = scmp.lt.s32.totalorder %s33, 1
      %s623 = scalar_select %p622, %s33, 1
      %s624 = scalar_lea.vmem %s2, %s623
      %p625 = pneg %p113
      %p626 = pneg %p110
      %p627 = scmp.lt.s32.totalorder %s33, 1
      %s628 = scalar_select %p627, %s33, 1
      %s629 = smul.addr %s628, 4
      %s630 = smul.addr %s629, 4
      %s631 = scalar_lea.vmem %s3, %s630
      %p632 = pneg %p139
      %p633 = pneg %p136
      %p634 = scmp.lt.s32.totalorder %s33, 1
      %s635 = scalar_select %p634, %s33, 1
      %s636 = scalar_lea.vmem %s4, %s635
      %p637 = pneg %p165
      %p638 = pneg %p162
      %p639 = scmp.lt.s32.totalorder %s33, 1
      %s640 = scalar_select %p639, %s33, 1
      %s641 = smul.addr %s640, 4
      %s642 = smul.addr %s641, 4
      %s643 = scalar_lea.vmem %s5, %s642
      %p644 = pneg %p191
      %p645 = pneg %p188
      %p646 = scmp.lt.s32.totalorder %s33, 1
      %s647 = scalar_select %p646, %s33, 1
      %s648 = scalar_lea.vmem %s6, %s647
      %p649 = pneg %p217
      %p650 = pneg %p214
      %p651 = scmp.lt.s32.totalorder %s33, 1
      %s652 = scalar_select %p651, %s33, 1
      %s653 = scalar_lea.vmem %s7, %s652
      %p654 = pneg %p243
      %p655 = pneg %p240
      %p656 = scmp.lt.s32.totalorder %s33, 1
      %s657 = scalar_select %p656, %s33, 1
      %s658 = scalar_lea.vmem %s8, %s657
      %p659 = pneg %p269
      %p660 = pneg %p266
      %p661 = scmp.lt.s32.totalorder %s33, 1
      %s662 = scalar_select %p661, %s33, 1
      %s663 = smul.addr %s662, 4
      %s664 = smul.addr %s663, 4
      %s665 = scalar_lea.vmem %s9, %s664
      %p666 = pneg %p295
      %p667 = pneg %p292
      %p668 = scmp.lt.s32.totalorder %s33, 1
      %s669 = scalar_select %p668, %s33, 1
      %s670 = scalar_lea.vmem %s10, %s669
      %p671 = pneg %p321
      %p672 = pneg %p318
      %p673 = scmp.lt.s32.totalorder %s33, 1
      %s674 = scalar_select %p673, %s33, 1
      %s675 = smul.addr %s674, 16
      %s676 = smul.addr %s675, 4
      %s677 = scalar_lea.vmem %s11, %s676
      %p678 = pneg %p347
      %p679 = pneg %p344
      %p680 = scmp.lt.s32.totalorder %s33, 1
      %s681 = scalar_select %p680, %s33, 1
      %s682 = scalar_lea.vmem %s12, %s681
      %p683 = pneg %p373
      %p684 = pneg %p370
      %p685 = pneg %p394
      %p686 = pneg %p391
      %p687 = pneg %p415
      %p688 = pneg %p412
      %p689 = pneg %p436
      %p690 = pneg %p433
      %p691 = pneg %p457
      %p692 = pneg %p454
      %p693 = pneg %p483
      %p694 = pneg %p480
      %s695 = smul.u32 2, %s32
      %p696 = scmp.lt.s32.totalorder %s695, 3
      %s697 = scalar_select %p696, %s695, 3
      %s698 = smul.addr %s697, 8
      %s699 = scalar_lea.vmem %s17, %s698
      %s700 = smul.u32 2, %s32
      %p701 = scmp.lt.s32.totalorder %s700, 3
      %s702 = scalar_select %p701, %s700, 3
      %s703 = smul.addr %s702, 8
      %s704 = scalar_lea.vmem %s0, %s703
      %s705 = smul.u32 2, %s32
      %p706 = scmp.lt.s32.totalorder %s33, 1
      %s707 = scalar_select %p706, %s33, 1
      %s708 = scalar_lea.vmem %s1, %s707
      %p709 = scmp.lt.s32.totalorder %s33, 1
      %s710 = scalar_select %p709, %s33, 1
      %s711 = scalar_lea.vmem %s2, %s710
      %p712 = scmp.lt.s32.totalorder %s33, 1
      %s713 = scalar_select %p712, %s33, 1
      %s714 = smul.addr %s713, 4
      %s715 = smul.addr %s714, 4
      %s716 = scalar_lea.vmem %s3, %s715
      %p717 = scmp.lt.s32.totalorder %s33, 1
      %s718 = scalar_select %p717, %s33, 1
      %s719 = scalar_lea.vmem %s4, %s718
      %p720 = scmp.lt.s32.totalorder %s33, 1
      %s721 = scalar_select %p720, %s33, 1
      %s722 = smul.addr %s721, 4
      %s723 = smul.addr %s722, 4
      %s724 = scalar_lea.vmem %s5, %s723
      %p725 = scmp.lt.s32.totalorder %s33, 1
      %s726 = scalar_select %p725, %s33, 1
      %s727 = scalar_lea.vmem %s6, %s726
      %p728 = scmp.lt.s32.totalorder %s33, 1
      %s729 = scalar_select %p728, %s33, 1
      %s730 = scalar_lea.vmem %s7, %s729
      %p731 = scmp.lt.s32.totalorder %s33, 1
      %s732 = scalar_select %p731, %s33, 1
      %s733 = scalar_lea.vmem %s8, %s732
      %p734 = scmp.lt.s32.totalorder %s33, 1
      %s735 = scalar_select %p734, %s33, 1
      %s736 = smul.addr %s735, 4
      %s737 = smul.addr %s736, 4
      %s738 = scalar_lea.vmem %s9, %s737
      %p739 = scmp.lt.s32.totalorder %s33, 1
      %s740 = scalar_select %p739, %s33, 1
      %s741 = scalar_lea.vmem %s10, %s740
      %p742 = scmp.lt.s32.totalorder %s33, 1
      %s743 = scalar_select %p742, %s33, 1
      %s744 = smul.addr %s743, 16
      %s745 = smul.addr %s744, 4
      %s746 = scalar_lea.vmem %s11, %s745
      %p747 = scmp.lt.s32.totalorder %s33, 1
      %s748 = scalar_select %p747, %s33, 1
      %s749 = scalar_lea.vmem %s12, %s748
      %s750 = smul.u32 2, %s32
      %p751 = scmp.lt.s32.totalorder %s750, 3
      %s752 = scalar_select %p751, %s750, 3
      %s753 = smul.addr %s752, 8
      %s754 = scalar_lea.vmem %s17, %s753
      %s755 = smul.u32 2, %s32
      %p757 = scmp.eq.s32.totalorder %s33, 0
      // Predicated region
      $region89: #{forward.4} parent=87 // pred_check
        %p758 = pneg %p757
      $region90: #{forward.4} parent=87 // pred_check_branch
        %760 = sbr.rel (%p758) target = $region92
      $region91: #{forward.4} parent=87 // pred_region
        %v761 = vld [vmem:[%s704] sm:$0x1f]
        %v762 = vld [vmem:[%s704 + $0x8] sm:$0x1f]
        %vm763 = vcmask 258048
        %764 = vst.msk [vmem:[%s754] sm:$0x1f] %vm763, %v761
        %765 = vst.msk [vmem:[%s754 + $0x8] sm:$0x1f] %vm763, %v762
      $region92: #{forward.4} parent=87 // pred_fallthru
        _
      %v766 = vld [vmem:[%s754] sm:$0x1f]
      %v767 = vld [vmem:[%s754 + $0x8] sm:$0x1f]
      %v768 = vld [vmem:[%s708] sm:$0x1]
      %v769 = vld [vmem:[%s711] sm:$0x1]
      %v770 = vld [vmem:[%s716] sm:$0xf]
      %v771 = vld [vmem:[%s716 + $0x4] sm:$0xf]
      %v772 = vld [vmem:[%s716 + $0x8] sm:$0xf]
      %v773 = vld [vmem:[%s716 + $0xc] sm:$0xf]
      %v774 = vld [vmem:[%s719] sm:$0x1]
      %v775 = vld [vmem:[%s724] sm:$0xf]
      %v776 = vld [vmem:[%s724 + $0x4] sm:$0xf]
      %v777 = vld [vmem:[%s724 + $0x8] sm:$0xf]
      %v778 = vld [vmem:[%s724 + $0xc] sm:$0xf]
      %v779 = vld [vmem:[%s727] sm:$0x1]
      %v780 = vld [vmem:[%s730] sm:$0x1]
      %v781 = vld [vmem:[%s733] sm:$0x1]
      %v782 = vld [vmem:[%s738] sm:$0xf]
      %v783 = vld [vmem:[%s738 + $0x4] sm:$0xf]
      %v784 = vld [vmem:[%s738 + $0x8] sm:$0xf]
      %v785 = vld [vmem:[%s738 + $0xc] sm:$0xf]
      %v786 = vld [vmem:[%s741] sm:$0x1]
      %v787 = vld [vmem:[%s746] sm:$0xf]
      %v788 = vld [vmem:[%s746 + $0x4] sm:$0xf]
      %v789 = vld [vmem:[%s746 + $0x8] sm:$0xf]
      %v790 = vld [vmem:[%s746 + $0xc] sm:$0xf]
      %v791 = vld [vmem:[%s746 + $0x10] sm:$0xf]
      %v792 = vld [vmem:[%s746 + $0x14] sm:$0xf]
      %v793 = vld [vmem:[%s746 + $0x18] sm:$0xf]
      %v794 = vld [vmem:[%s746 + $0x1c] sm:$0xf]
      %v795 = vld [vmem:[%s746 + $0x20] sm:$0xf]
      %v796 = vld [vmem:[%s746 + $0x24] sm:$0xf]
      %v797 = vld [vmem:[%s746 + $0x28] sm:$0xf]
      %v798 = vld [vmem:[%s746 + $0x2c] sm:$0xf]
      %v799 = vld [vmem:[%s746 + $0x30] sm:$0xf]
      %v800 = vld [vmem:[%s746 + $0x34] sm:$0xf]
      %v801 = vld [vmem:[%s746 + $0x38] sm:$0xf]
      %v802 = vld [vmem:[%s746 + $0x3c] sm:$0xf]
      %v803 = vld [vmem:[%s749] sm:$0x1]
      %v806 = vrot.slane %v766, 1
      %v807 = vrot.slane %v766, 2
      %v808 = vrot.slane %v766, 3
      %v809 = vrot.slane %v766, 4
      %v810 = vrot.slane %v767, 1
      %v811 = vrot.slane %v767, 2
      %v812 = vrot.slane %v767, 3
      %v813 = vrot.slane %v767, 4
      %822 = vst [vmem:[#allocation1] ss:$9 sm:$0xff] %v766
      %s823 = scalar_lea.vmem [#allocation1], 1
      %824 = vst [vmem:[%s823] ss:$9 sm:$0xff] %v806
      %s825 = scalar_lea.vmem [#allocation1], 2
      %826 = vst [vmem:[%s825] ss:$9 sm:$0xff] %v807
      %s827 = scalar_lea.vmem [#allocation1], 3
      %828 = vst [vmem:[%s827] ss:$9 sm:$0xff] %v808
      %s829 = scalar_lea.vmem [#allocation1], 4
      %830 = vst [vmem:[%s829] ss:$9 sm:$0xff] %v809
      %s831 = scalar_lea.vmem [#allocation1], 5
      %832 = vst [vmem:[%s831] ss:$9 sm:$0xff] %v767
      %s833 = scalar_lea.vmem [#allocation1], 6
      %834 = vst [vmem:[%s833] ss:$9 sm:$0xff] %v810
      %s835 = scalar_lea.vmem [#allocation1], 7
      %836 = vst [vmem:[%s835] ss:$9 sm:$0xff] %v811
      %v837 = vld [vmem:[#allocation1] sm:$0xff]
      %838 = vst [vmem:[#allocation1] ss:$9 sm:$0xff] %v812
      %839 = vst [vmem:[%s823] ss:$9 sm:$0xff] %v813
      %v840 = vld [vmem:[#allocation1] sm:$0xff]
      %vm843 = vcmask 261120
      %v844 = vsel %vm843, %v837, 0.0
      %845 = vadd.xlane.f32.xlu0 %v844
      %v846 = vpop.xlane.xlu0 %845
      %vm847 = vcmask 254976
      %v848 = vsel %vm847, %v840, 0.0
      %849 = vadd.xlane.f32.xlu0 %v848
      %v850 = vpop.xlane.xlu0 %849
      %v851 = vrcp.pop 32.0
      %v852 = vmul.f32 32.0, %v851
      %v853 = vsub.f32 1.0, %v852
      %v854 = vmul.f32 %v851, %v853
      %v855 = vadd.f32 %v851, %v854
      %vm856 = vweird.f32 %v851
      %v857 = vsel %vm856, %v851, %v855
      %v858 = vmul.f32 %v846, %v857
      %v859 = vmul.f32 %v850, %v857
      %v862 = vperm.slane %v858, 0
      %v863 = vperm.slane %v858, 1
      %v864 = vperm.slane %v858, 2
      %v865 = vperm.slane %v858, 3
      %v866 = vperm.slane %v858, 4
      %v867 = vperm.slane %v858, 5
      %v868 = vperm.slane %v858, 6
      %v869 = vperm.slane %v858, 7
      %v870 = vperm.slane %v859, 0
      %v871 = vperm.slane %v859, 1
      %v882 = vsub.f32 %v766, %v862
      %v883 = vsub.f32 %v806, %v863
      %v884 = vsub.f32 %v807, %v864
      %v885 = vsub.f32 %v808, %v865
      %v886 = vsub.f32 %v809, %v866
      %v887 = vsub.f32 %v767, %v867
      %v888 = vsub.f32 %v810, %v868
      %v889 = vsub.f32 %v811, %v869
      %v890 = vsub.f32 %v812, %v870
      %v891 = vsub.f32 %v813, %v871
      %v892 = vmul.f32 %v882, %v882
      %v893 = vmul.f32 %v883, %v883
      %v894 = vmul.f32 %v884, %v884
      %v895 = vmul.f32 %v885, %v885
      %v896 = vmul.f32 %v886, %v886
      %v897 = vmul.f32 %v887, %v887
      %v898 = vmul.f32 %v888, %v888
      %v899 = vmul.f32 %v889, %v889
      %v900 = vmul.f32 %v890, %v890
      %v901 = vmul.f32 %v891, %v891
      %912 = vst [vmem:[#allocation1] ss:$9 sm:$0xff] %v892
      %s913 = scalar_lea.vmem [#allocation1], 1
      %914 = vst [vmem:[%s913] ss:$9 sm:$0xff] %v893
      %s915 = scalar_lea.vmem [#allocation1], 2
      %916 = vst [vmem:[%s915] ss:$9 sm:$0xff] %v894
      %s917 = scalar_lea.vmem [#allocation1], 3
      %918 = vst [vmem:[%s917] ss:$9 sm:$0xff] %v895
      %s919 = scalar_lea.vmem [#allocation1], 4
      %920 = vst [vmem:[%s919] ss:$9 sm:$0xff] %v896
      %s921 = scalar_lea.vmem [#allocation1], 5
      %922 = vst [vmem:[%s921] ss:$9 sm:$0xff] %v897
      %s923 = scalar_lea.vmem [#allocation1], 6
      %924 = vst [vmem:[%s923] ss:$9 sm:$0xff] %v898
      %s925 = scalar_lea.vmem [#allocation1], 7
      %926 = vst [vmem:[%s925] ss:$9 sm:$0xff] %v899
      %v927 = vld [vmem:[#allocation1] sm:$0xff]
      %928 = vst [vmem:[#allocation1] ss:$9 sm:$0xff] %v900
      %929 = vst [vmem:[%s913] ss:$9 sm:$0xff] %v901
      %v930 = vld [vmem:[#allocation1] sm:$0xff]
      %v933 = vsel %vm843, %v927, 0.0
      %934 = vadd.xlane.f32.xlu0 %v933
      %v935 = vpop.xlane.xlu0 %934
      %v936 = vsel %vm847, %v930, 0.0
      %937 = vadd.xlane.f32.xlu0 %v936
      %v938 = vpop.xlane.xlu0 %937
      %v939 = vmul.f32 %v935, %v857
      %v940 = vmul.f32 %v938, %v857
      %v941 = vadd.f32 %v939, 1e-12
      %v942 = vadd.f32 %v940, 1e-12
      %v943 = vrsqrt.pop %v941
      %v944 = vmul.f32 %v943, %v941
      %v945 = vmul.f32 %v944, %v943
      %v946 = vmul.f32 0.5, %v945
      %v947 = vsub.f32 1.5, %v946
      %v948 = vmul.f32 %v943, %v947
      %vm949 = vweird.f32 %v941
      %vm950 = vweird.f32 %v943
      %vm951 = vmor %vm949, %vm950
      %v952 = vsel %vm951, %v943, %v948
      %v953 = vrsqrt.pop %v942
      %v954 = vmul.f32 %v953, %v942
      %v955 = vmul.f32 %v954, %v953
      %v956 = vmul.f32 0.5, %v955
      %v957 = vsub.f32 1.5, %v956
      %v958 = vmul.f32 %v953, %v957
      %vm959 = vweird.f32 %v942
      %vm960 = vweird.f32 %v953
      %vm961 = vmor %vm959, %vm960
      %v962 = vsel %vm961, %v953, %v958
      %v965 = vperm.slane %v952, 0
      %v966 = vperm.slane %v952, 1
      %v967 = vperm.slane %v952, 2
      %v968 = vperm.slane %v952, 3
      %v969 = vperm.slane %v952, 4
      %v970 = vperm.slane %v952, 5
      %v971 = vperm.slane %v952, 6
      %v972 = vperm.slane %v952, 7
      %v973 = vperm.slane %v962, 0
      %v974 = vperm.slane %v962, 1
      %v985 = vmul.f32 %v882, %v965
      %v986 = vmul.f32 %v883, %v966
      %v987 = vmul.f32 %v884, %v967
      %v988 = vmul.f32 %v885, %v968
      %v989 = vmul.f32 %v886, %v969
      %v990 = vmul.f32 %v887, %v970
      %v991 = vmul.f32 %v888, %v971
      %v992 = vmul.f32 %v889, %v972
      %v993 = vmul.f32 %v890, %v973
      %v994 = vmul.f32 %v891, %v974
      %v996 = vperm.slane %v768, 0
      %v998 = vrot.slane %v996, 1
      %v999 = vrot.slane %v996, 2
      %v1000 = vrot.slane %v996, 3
      %v1001 = vrot.slane %v996, 4
      %v1002 = vrot.slane %v996, 5
      %v1003 = vrot.slane %v996, 6
      %v1004 = vrot.slane %v996, 7
      %v1012 = vmul.f32 %v985, %v996
      %v1013 = vmul.f32 %v986, %v998
      %v1014 = vmul.f32 %v987, %v999
      %v1015 = vmul.f32 %v988, %v1000
      %v1016 = vmul.f32 %v989, %v1001
      %v1017 = vmul.f32 %v990, %v1002
      %v1018 = vmul.f32 %v991, %v1003
      %v1019 = vmul.f32 %v992, %v1004
      %v1020 = vmul.f32 %v993, %v996
      %v1021 = vmul.f32 %v994, %v998
      %v1023 = vperm.slane %v769, 0
      %v1025 = vrot.slane %v1023, 1
      %v1026 = vrot.slane %v1023, 2
      %v1027 = vrot.slane %v1023, 3
      %v1028 = vrot.slane %v1023, 4
      %v1029 = vrot.slane %v1023, 5
      %v1030 = vrot.slane %v1023, 6
      %v1031 = vrot.slane %v1023, 7
      %v1039 = vadd.f32 %v1012, %v1023
      %v1040 = vadd.f32 %v1013, %v1025
      %v1041 = vadd.f32 %v1014, %v1026
      %v1042 = vadd.f32 %v1015, %v1027
      %v1043 = vadd.f32 %v1016, %v1028
      %v1044 = vadd.f32 %v1017, %v1029
      %v1045 = vadd.f32 %v1018, %v1030
      %v1046 = vadd.f32 %v1019, %v1031
      %v1047 = vadd.f32 %v1020, %v1023
      %v1048 = vadd.f32 %v1021, %v1025
      %1059 = vst [vmem:[#allocation1] ss:$9 sm:$0xff] %v1039
      %s1060 = scalar_lea.vmem [#allocation1], 1
      %1061 = vst [vmem:[%s1060] ss:$9 sm:$0xff] %v1040
      %s1062 = scalar_lea.vmem [#allocation1], 2
      %1063 = vst [vmem:[%s1062] ss:$9 sm:$0xff] %v1041
      %s1064 = scalar_lea.vmem [#allocation1], 3
      %1065 = vst [vmem:[%s1064] ss:$9 sm:$0xff] %v1042
      %s1066 = scalar_lea.vmem [#allocation1], 4
      %1067 = vst [vmem:[%s1066] ss:$9 sm:$0xff] %v1043
      %s1068 = scalar_lea.vmem [#allocation1], 5
      %1069 = vst [vmem:[%s1068] ss:$9 sm:$0xff] %v1044
      %s1070 = scalar_lea.vmem [#allocation1], 6
      %1071 = vst [vmem:[%s1070] ss:$9 sm:$0xff] %v1045
      %s1072 = scalar_lea.vmem [#allocation1], 7
      %1073 = vst [vmem:[%s1072] ss:$9 sm:$0xff] %v1046
      %v1074 = vld [vmem:[#allocation1] sm:$0xff]
      %1075 = vst [vmem:[#allocation1] ss:$9 sm:$0xff] %v1047
      %1076 = vst [vmem:[%s1060] ss:$9 sm:$0xff] %v1048
      %v1077 = vld [vmem:[#allocation1] sm:$0xff]
      %v1080 = vpack.c.bf16 %v1077, %v1074
      %v1082 = vperm.slane %v774, 0
      %v1088 = vunpack.c.l.b16 %v770
      %v1089 = vunpack.c.l.b16 %v771
      %v1090 = vunpack.c.l.b16 %v772
      %v1091 = vunpack.c.l.b16 %v773
      %v1092 = vpack.c.b16 %v1089, %v1088
      %v1093 = vpack.c.b16 %v1091, %v1090
      %v1097 = vsel %vm843, %v1080, 0
      %1099 = vmatpush.bf16.msra.mxu0 0
      %1100 = vmatpush.bf16.msra.mxu0 0
      %1101 = vmatpush.bf16.msra.mxu0 0
      %1102 = vmatpush.bf16.msra.mxu0 0
      %1103 = vmatpush.bf16.msra.mxu0 0
      %1104 = vmatpush.bf16.msra.mxu0 0
      %1105 = vmatpush.bf16.msra.mxu0 %v1093
      %1106 = vmatpush.bf16.msra.mxu0 %v1092
      %1107 = vmatmul.bf16.gmra.mxu0 %v1097
      %v1108 = vpop.f32.mrf.mxu0
      %v1109 = vadd.f32 %v1082, %v1108
      %v1110 = vpop.f32.mrf.mxu0
      %v1111 = vadd.f32 %v1082, %v1110
      %1112 = vdwg.mxu0
      %v1115 = vrot.slane %v1109, 1
      %v1116 = vrot.slane %v1109, 2
      %v1117 = vrot.slane %v1109, 3
      %v1118 = vrot.slane %v1109, 4
      %v1119 = vrot.slane %v1109, 5
      %v1120 = vrot.slane %v1109, 6
      %v1121 = vrot.slane %v1109, 7
      %v1122 = vrot.slane %v1111, 1
      %1123 = vst [vmem:[#allocation1] ss:$9 sm:$0xff] %v1109
      %s1124 = scalar_lea.vmem [#allocation1], 1
      %1125 = vst [vmem:[%s1124] ss:$9 sm:$0xff] %v1115
      %s1126 = scalar_lea.vmem [#allocation1], 2
      %1127 = vst [vmem:[%s1126] ss:$9 sm:$0xff] %v1116
      %s1128 = scalar_lea.vmem [#allocation1], 3
      %1129 = vst [vmem:[%s1128] ss:$9 sm:$0xff] %v1117
      %s1130 = scalar_lea.vmem [#allocation1], 4
      %1131 = vst [vmem:[%s1130] ss:$9 sm:$0xff] %v1118
      %v1132 = vld [vmem:[#allocation1] sm:$0xff]
      %v1134 = vpack.c.bf16 %v1132, %v1132
      %1135 = vst [vmem:[#allocation1] ss:$9 sm:$0xff] %v1109
      %s1136 = scalar_lea.vmem [#allocation1], 1
      %1137 = vst [vmem:[%s1136] ss:$9 sm:$0xff] %v1115
      %s1138 = scalar_lea.vmem [#allocation1], 2
      %1139 = vst [vmem:[%s1138] ss:$9 sm:$0xff] %v1116
      %s1140 = scalar_lea.vmem [#allocation1], 3
      %1141 = vst [vmem:[%s1140] ss:$9 sm:$0xff] %v1117
      %s1142 = scalar_lea.vmem [#allocation1], 4
      %1143 = vst [vmem:[%s1142] ss:$9 sm:$0xff] %v1118
      %v1144 = vld [vmem:[#allocation1] sm:$0xff]
      %v1146 = vpack.c.bf16 %v1144, %v1144
      %1148 = vrot.lane.b32.xlu0 %v1146, 96
      %v1149 = vpop.permute.xlu0 %1148
      %vm1150 = vcmask 64512
      %v1152 = vsel %vm1150, %v1134, 0
      %v1155 = vsel %vm1150, %v1149, 0
      %1157 = vmatpush.bf16.xpose.msra.mxu0 0
      %1158 = vmatpush.bf16.xpose.msra.mxu0 0
      %1159 = vmatpush.bf16.xpose.msra.mxu0 0
      %1160 = vmatpush.bf16.xpose.msra.mxu0 0
      %1161 = vmatpush.bf16.xpose.msra.mxu0 0
      %1162 = vmatpush.bf16.xpose.msra.mxu0 0
      %1163 = vmatpush.bf16.xpose.msra.mxu0 0
      %1164 = vmatpush.bf16.xpose.msra.mxu0 %v1155
      %1165 = vmatmul.bf16.gmra.mxu0 %v1152
      %v1166 = vpop.f32.mrf.mxu0
      %v1167 = vadd.f32 0.0, %v1166
      %v1168 = vpop.f32.mrf.mxu0
      %1169 = vdwg.mxu0
      %vm1170 = vcmask 36864
      %v1171 = vsel %vm1170, %v1167, -inf
      %1172 = vmax.xlane.f32.xlu0 %v1171
      %v1173 = vpop.xlane.xlu0 %1172
      %v1174 = vsub.f32 %v1167, %v1173
      %v1175 = vmul.f32 %v1174, 1.442695
      %v1176 = vpow.pop %v1175
      %v1177 = vsel %vm1170, %v1176, 0.0
      %1178 = vadd.xlane.f32.xlu0 %v1177
      %v1179 = vpop.xlane.xlu0 %1178
      %v1180 = vrcp.pop %v1179
      %v1181 = vmul.f32 %v1176, %v1180
      %v1182 = vpack.c.bf16 %v1181, %v1181
      %1183 = vst [vmem:[#allocation1] ss:$9 sm:$0xff] %v1109
      %s1184 = scalar_lea.vmem [#allocation1], 1
      %1185 = vst [vmem:[%s1184] ss:$9 sm:$0xff] %v1115
      %s1186 = scalar_lea.vmem [#allocation1], 2
      %1187 = vst [vmem:[%s1186] ss:$9 sm:$0xff] %v1116
      %s1188 = scalar_lea.vmem [#allocation1], 3
      %1189 = vst [vmem:[%s1188] ss:$9 sm:$0xff] %v1117
      %s1190 = scalar_lea.vmem [#allocation1], 4
      %1191 = vst [vmem:[%s1190] ss:$9 sm:$0xff] %v1118
      %v1192 = vld [vmem:[#allocation1] sm:$0xff]
      %v1194 = vpack.c.bf16 %v1192, %v1192
      %1196 = vrot.lane.b32.xlu0 %v1194, 64
      %v1197 = vpop.permute.xlu0 %1196
      %vm1198 = vcmask 39936
      %v1200 = vsel %vm1198, %v1182, 0
      %vm1202 = vcmask 1041408
      %vm1203 = vcmask 1042432
      %v1204 = vsel %vm1202, 4294967295, 65535
      %v1205 = vsel %vm1203, %v1204, 0
      %v1207 = vand.u32 %v1197, %v1205
      %1209 = vmatpush.bf16.msra.mxu0 0
      %1210 = vmatpush.bf16.msra.mxu0 0
      %1211 = vmatpush.bf16.msra.mxu0 0
      %1212 = vmatpush.bf16.msra.mxu0 0
      %1213 = vmatpush.bf16.msra.mxu0 0
      %1214 = vmatpush.bf16.msra.mxu0 0
      %1215 = vmatpush.bf16.msra.mxu0 0
      %1216 = vmatpush.bf16.msra.mxu0 %v1207
      %1217 = vmatmul.bf16.gmra.mxu0 %v1200
      %v1218 = vpop.f32.mrf.mxu0
      %v1219 = vadd.f32 0.0, %v1218
      %v1220 = vpop.f32.mrf.mxu0
      %1221 = vdwg.mxu0
      %1222 = vst [vmem:[#allocation1] ss:$9 sm:$0xff] %v1109
      %s1223 = scalar_lea.vmem [#allocation1], 1
      %1224 = vst [vmem:[%s1223] ss:$9 sm:$0xff] %v1115
      %s1225 = scalar_lea.vmem [#allocation1], 2
      %1226 = vst [vmem:[%s1225] ss:$9 sm:$0xff] %v1116
      %s1227 = scalar_lea.vmem [#allocation1], 3
      %1228 = vst [vmem:[%s1227] ss:$9 sm:$0xff] %v1117
      %s1229 = scalar_lea.vmem [#allocation1], 4
      %1230 = vst [vmem:[%s1229] ss:$9 sm:$0xff] %v1118
      %v1231 = vld [vmem:[#allocation1] sm:$0xff]
      %v1233 = vpack.c.bf16 %v1231, %v1231
      %1234 = vst [vmem:[#allocation1] ss:$9 sm:$0xff] %v1109
      %s1235 = scalar_lea.vmem [#allocation1], 1
      %1236 = vst [vmem:[%s1235] ss:$9 sm:$0xff] %v1115
      %s1237 = scalar_lea.vmem [#allocation1], 2
      %1238 = vst [vmem:[%s1237] ss:$9 sm:$0xff] %v1116
      %s1239 = scalar_lea.vmem [#allocation1], 3
      %1240 = vst [vmem:[%s1239] ss:$9 sm:$0xff] %v1117
      %s1241 = scalar_lea.vmem [#allocation1], 4
      %1242 = vst [vmem:[%s1241] ss:$9 sm:$0xff] %v1118
      %v1243 = vld [vmem:[#allocation1] sm:$0xff]
      %v1245 = vpack.c.bf16 %v1243, %v1243
      %1247 = vrot.lane.b32.xlu0 %v1233, 120
      %v1248 = vpop.permute.xlu0 %1247
      %1250 = vrot.lane.b32.xlu0 %v1245, 88
      %v1251 = vpop.permute.xlu0 %1250
      %v1253 = vsel %vm1150, %v1248, 0
      %v1256 = vsel %vm1150, %v1251, 0
      %1258 = vmatpush.bf16.xpose.msra.mxu0 0
      %1259 = vmatpush.bf16.xpose.msra.mxu0 0
      %1260 = vmatpush.bf16.xpose.msra.mxu0 0
      %1261 = vmatpush.bf16.xpose.msra.mxu0 0
      %1262 = vmatpush.bf16.xpose.msra.mxu0 0
      %1263 = vmatpush.bf16.xpose.msra.mxu0 0
      %1264 = vmatpush.bf16.xpose.msra.mxu0 0
      %1265 = vmatpush.bf16.xpose.msra.mxu0 %v1256
      %1266 = vmatmul.bf16.gmra.mxu0 %v1253
      %v1267 = vpop.f32.mrf.mxu0
      %v1268 = vadd.f32 0.0, %v1267
      %v1269 = vpop.f32.mrf.mxu0
      %1270 = vdwg.mxu0
      %v1271 = vsel %vm1170, %v1268, -inf
      %1272 = vmax.xlane.f32.xlu0 %v1271
      %v1273 = vpop.xlane.xlu0 %1272
      %v1274 = vsub.f32 %v1268, %v1273
      %v1275 = vmul.f32 %v1274, 1.442695
      %v1276 = vpow.pop %v1275
      %v1277 = vsel %vm1170, %v1276, 0.0
      %1278 = vadd.xlane.f32.xlu0 %v1277
      %v1279 = vpop.xlane.xlu0 %1278
      %v1280 = vrcp.pop %v1279
      %v1281 = vmul.f32 %v1276, %v1280
      %v1282 = vpack.c.bf16 %v1281, %v1281
      %1283 = vst [vmem:[#allocation1] ss:$9 sm:$0xff] %v1109
      %s1284 = scalar_lea.vmem [#allocation1], 1
      %1285 = vst [vmem:[%s1284] ss:$9 sm:$0xff] %v1115
      %s1286 = scalar_lea.vmem [#allocation1], 2
      %1287 = vst [vmem:[%s1286] ss:$9 sm:$0xff] %v1116
      %s1288 = scalar_lea.vmem [#allocation1], 3
      %1289 = vst [vmem:[%s1288] ss:$9 sm:$0xff] %v1117
      %s1290 = scalar_lea.vmem [#allocation1], 4
      %1291 = vst [vmem:[%s1290] ss:$9 sm:$0xff] %v1118
      %v1292 = vld [vmem:[#allocation1] sm:$0xff]
      %v1294 = vpack.c.bf16 %v1292, %v1292
      %1296 = vrot.lane.b32.xlu0 %v1294, 56
      %v1297 = vpop.permute.xlu0 %1296
      %v1299 = vsel %vm1198, %v1282, 0
      %v1302 = vand.u32 %v1297, %v1205
      %1304 = vmatpush.bf16.msra.mxu0 0
      %1305 = vmatpush.bf16.msra.mxu0 0
      %1306 = vmatpush.bf16.msra.mxu0 0
      %1307 = vmatpush.bf16.msra.mxu0 0
      %1308 = vmatpush.bf16.msra.mxu0 0
      %1309 = vmatpush.bf16.msra.mxu0 0
      %1310 = vmatpush.bf16.msra.mxu0 0
      %1311 = vmatpush.bf16.msra.mxu0 %v1302
      %1312 = vmatmul.bf16.gmra.mxu0 %v1299
      %v1313 = vpop.f32.mrf.mxu0
      %v1314 = vadd.f32 0.0, %v1313
      %v1315 = vpop.f32.mrf.mxu0
      %1316 = vdwg.mxu0
      %1317 = vst [vmem:[#allocation1] ss:$9 sm:$0xff] %v1109
      %s1318 = scalar_lea.vmem [#allocation1], 1
      %1319 = vst [vmem:[%s1318] ss:$9 sm:$0xff] %v1115
      %s1320 = scalar_lea.vmem [#allocation1], 2
      %1321 = vst [vmem:[%s1320] ss:$9 sm:$0xff] %v1116
      %s1322 = scalar_lea.vmem [#allocation1], 3
      %1323 = vst [vmem:[%s1322] ss:$9 sm:$0xff] %v1117
      %s1324 = scalar_lea.vmem [#allocation1], 4
      %1325 = vst [vmem:[%s1324] ss:$9 sm:$0xff] %v1118
      %v1326 = vld [vmem:[#allocation1] sm:$0xff]
      %v1328 = vpack.c.bf16 %v1326, %v1326
      %1329 = vst [vmem:[#allocation1] ss:$9 sm:$0xff] %v1109
      %s1330 = scalar_lea.vmem [#allocation1], 1
      %1331 = vst [vmem:[%s1330] ss:$9 sm:$0xff] %v1115
      %s1332 = scalar_lea.vmem [#allocation1], 2
      %1333 = vst [vmem:[%s1332] ss:$9 sm:$0xff] %v1116
      %s1334 = scalar_lea.vmem [#allocation1], 3
      %1335 = vst [vmem:[%s1334] ss:$9 sm:$0xff] %v1117
      %s1336 = scalar_lea.vmem [#allocation1], 4
      %1337 = vst [vmem:[%s1336] ss:$9 sm:$0xff] %v1118
      %v1338 = vld [vmem:[#allocation1] sm:$0xff]
      %v1340 = vpack.c.bf16 %v1338, %v1338
      %1342 = vrot.lane.b32.xlu0 %v1328, 112
      %v1343 = vpop.permute.xlu0 %1342
      %1345 = vrot.lane.b32.xlu0 %v1340, 80
      %v1346 = vpop.permute.xlu0 %1345
      %v1348 = vsel %vm1150, %v1343, 0
      %v1351 = vsel %vm1150, %v1346, 0
      %1353 = vmatpush.bf16.xpose.msra.mxu0 0
      %1354 = vmatpush.bf16.xpose.msra.mxu0 0
      %1355 = vmatpush.bf16.xpose.msra.mxu0 0
      %1356 = vmatpush.bf16.xpose.msra.mxu0 0
      %1357 = vmatpush.bf16.xpose.msra.mxu0 0
      %1358 = vmatpush.bf16.xpose.msra.mxu0 0
      %1359 = vmatpush.bf16.xpose.msra.mxu0 0
      %1360 = vmatpush.bf16.xpose.msra.mxu0 %v1351
      %1361 = vmatmul.bf16.gmra.mxu0 %v1348
      %v1362 = vpop.f32.mrf.mxu0
      %v1363 = vadd.f32 0.0, %v1362
      %v1364 = vpop.f32.mrf.mxu0
      %1365 = vdwg.mxu0
      %v1366 = vsel %vm1170, %v1363, -inf
      %1367 = vmax.xlane.f32.xlu0 %v1366
      %v1368 = vpop.xlane.xlu0 %1367
      %v1369 = vsub.f32 %v1363, %v1368
      %v1370 = vmul.f32 %v1369, 1.442695
      %v1371 = vpow.pop %v1370
      %v1372 = vsel %vm1170, %v1371, 0.0
      %1373 = vadd.xlane.f32.xlu0 %v1372
      %v1374 = vpop.xlane.xlu0 %1373
      %v1375 = vrcp.pop %v1374
      %v1376 = vmul.f32 %v1371, %v1375
      %v1377 = vpack.c.bf16 %v1376, %v1376
      %1378 = vst [vmem:[#allocation1] ss:$9 sm:$0xff] %v1109
      %s1379 = scalar_lea.vmem [#allocation1], 1
      %1380 = vst [vmem:[%s1379] ss:$9 sm:$0xff] %v1115
      %s1381 = scalar_lea.vmem [#allocation1], 2
      %1382 = vst [vmem:[%s1381] ss:$9 sm:$0xff] %v1116
      %s1383 = scalar_lea.vmem [#allocation1], 3
      %1384 = vst [vmem:[%s1383] ss:$9 sm:$0xff] %v1117
      %s1385 = scalar_lea.vmem [#allocation1], 4
      %1386 = vst [vmem:[%s1385] ss:$9 sm:$0xff] %v1118
      %v1387 = vld [vmem:[#allocation1] sm:$0xff]
      %v1389 = vpack.c.bf16 %v1387, %v1387
      %1391 = vrot.lane.b32.xlu0 %v1389, 48
      %v1392 = vpop.permute.xlu0 %1391
      %v1394 = vsel %vm1198, %v1377, 0
      %v1397 = vand.u32 %v1392, %v1205
      %1399 = vmatpush.bf16.msra.mxu0 0
      %1400 = vmatpush.bf16.msra.mxu0 0
      %1401 = vmatpush.bf16.msra.mxu0 0
      %1402 = vmatpush.bf16.msra.mxu0 0
      %1403 = vmatpush.bf16.msra.mxu0 0
      %1404 = vmatpush.bf16.msra.mxu0 0
      %1405 = vmatpush.bf16.msra.mxu0 0
      %1406 = vmatpush.bf16.msra.mxu0 %v1397
      %1407 = vmatmul.bf16.gmra.mxu0 %v1394
      %v1408 = vpop.f32.mrf.mxu0
      %v1409 = vadd.f32 0.0, %v1408
      %v1410 = vpop.f32.mrf.mxu0
      %1411 = vdwg.mxu0
      %1412 = vst [vmem:[#allocation1] ss:$9 sm:$0xff] %v1109
      %s1413 = scalar_lea.vmem [#allocation1], 1
      %1414 = vst [vmem:[%s1413] ss:$9 sm:$0xff] %v1115
      %s1415 = scalar_lea.vmem [#allocation1], 2
      %1416 = vst [vmem:[%s1415] ss:$9 sm:$0xff] %v1116
      %s1417 = scalar_lea.vmem [#allocation1], 3
      %1418 = vst [vmem:[%s1417] ss:$9 sm:$0xff] %v1117
      %s1419 = scalar_lea.vmem [#allocation1], 4
      %1420 = vst [vmem:[%s1419] ss:$9 sm:$0xff] %v1118
      %v1421 = vld [vmem:[#allocation1] sm:$0xff]
      %v1423 = vpack.c.bf16 %v1421, %v1421
      %1424 = vst [vmem:[#allocation1] ss:$9 sm:$0xff] %v1109
      %s1425 = scalar_lea.vmem [#allocation1], 1
      %1426 = vst [vmem:[%s1425] ss:$9 sm:$0xff] %v1115
      %s1427 = scalar_lea.vmem [#allocation1], 2
      %1428 = vst [vmem:[%s1427] ss:$9 sm:$0xff] %v1116
      %s1429 = scalar_lea.vmem [#allocation1], 3
      %1430 = vst [vmem:[%s1429] ss:$9 sm:$0xff] %v1117
      %s1431 = scalar_lea.vmem [#allocation1], 4
      %1432 = vst [vmem:[%s1431] ss:$9 sm:$0xff] %v1118
      %v1433 = vld [vmem:[#allocation1] sm:$0xff]
      %v1435 = vpack.c.bf16 %v1433, %v1433
      %1437 = vrot.lane.b32.xlu0 %v1423, 104
      %v1438 = vpop.permute.xlu0 %1437
      %1440 = vrot.lane.b32.xlu0 %v1435, 72
      %v1441 = vpop.permute.xlu0 %1440
      %v1443 = vsel %vm1150, %v1438, 0
      %v1446 = vsel %vm1150, %v1441, 0
      %1448 = vmatpush.bf16.xpose.msra.mxu0 0
      %1449 = vmatpush.bf16.xpose.msra.mxu0 0
      %1450 = vmatpush.bf16.xpose.msra.mxu0 0
      %1451 = vmatpush.bf16.xpose.msra.mxu0 0
      %1452 = vmatpush.bf16.xpose.msra.mxu0 0
      %1453 = vmatpush.bf16.xpose.msra.mxu0 0
      %1454 = vmatpush.bf16.xpose.msra.mxu0 0
      %1455 = vmatpush.bf16.xpose.msra.mxu0 %v1446
      %1456 = vmatmul.bf16.gmra.mxu0 %v1443
      %v1457 = vpop.f32.mrf.mxu0
      %v1458 = vadd.f32 0.0, %v1457
      %v1459 = vpop.f32.mrf.mxu0
      %1460 = vdwg.mxu0
      %v1461 = vsel %vm1170, %v1458, -inf
      %1462 = vmax.xlane.f32.xlu0 %v1461
      %v1463 = vpop.xlane.xlu0 %1462
      %v1464 = vsub.f32 %v1458, %v1463
      %v1465 = vmul.f32 %v1464, 1.442695
      %v1466 = vpow.pop %v1465
      %v1467 = vsel %vm1170, %v1466, 0.0
      %1468 = vadd.xlane.f32.xlu0 %v1467
      %v1469 = vpop.xlane.xlu0 %1468
      %v1470 = vrcp.pop %v1469
      %v1471 = vmul.f32 %v1466, %v1470
      %v1472 = vpack.c.bf16 %v1471, %v1471
      %1473 = vst [vmem:[#allocation1] ss:$9 sm:$0xff] %v1109
      %s1474 = scalar_lea.vmem [#allocation1], 1
      %1475 = vst [vmem:[%s1474] ss:$9 sm:$0xff] %v1115
      %s1476 = scalar_lea.vmem [#allocation1], 2
      %1477 = vst [vmem:[%s1476] ss:$9 sm:$0xff] %v1116
      %s1478 = scalar_lea.vmem [#allocation1], 3
      %1479 = vst [vmem:[%s1478] ss:$9 sm:$0xff] %v1117
      %s1480 = scalar_lea.vmem [#allocation1], 4
      %1481 = vst [vmem:[%s1480] ss:$9 sm:$0xff] %v1118
      %v1482 = vld [vmem:[#allocation1] sm:$0xff]
      %v1484 = vpack.c.bf16 %v1482, %v1482
      %1486 = vrot.lane.b32.xlu0 %v1484, 40
      %v1487 = vpop.permute.xlu0 %1486
      %v1489 = vsel %vm1198, %v1472, 0
      %v1492 = vand.u32 %v1487, %v1205
      %1494 = vmatpush.bf16.msra.mxu0 0
      %1495 = vmatpush.bf16.msra.mxu0 0
      %1496 = vmatpush.bf16.msra.mxu0 0
      %1497 = vmatpush.bf16.msra.mxu0 0
      %1498 = vmatpush.bf16.msra.mxu0 0
      %1499 = vmatpush.bf16.msra.mxu0 0
      %1500 = vmatpush.bf16.msra.mxu0 0
      %1501 = vmatpush.bf16.msra.mxu0 %v1492
      %1502 = vmatmul.bf16.gmra.mxu0 %v1489
      %v1503 = vpop.f32.mrf.mxu0
      %v1504 = vadd.f32 0.0, %v1503
      %v1505 = vpop.f32.mrf.mxu0
      %1506 = vdwg.mxu0
      %1508 = vrot.lane.b32.xlu0 %v1314, 8
      %v1509 = vpop.permute.xlu0 %1508
      %1512 = vrot.lane.b32.xlu0 %v1409, 16
      %v1513 = vpop.permute.xlu0 %1512
      %1516 = vrot.lane.b32.xlu0 %v1504, 24
      %v1517 = vpop.permute.xlu0 %1516
      %v1519 = vsel %vm1150, %v1219, %v1509
      %vm1520 = vcmask 130048
      %v1521 = vsel %vm1520, %v1519, %v1513
      %vm1522 = vcmask 195584
      %v1523 = vsel %vm1522, %v1521, %v1517
      %1524 = vst [vmem:[#allocation1] ss:$9 sm:$0xff] %v1119
      %s1525 = scalar_lea.vmem [#allocation1], 1
      %1526 = vst [vmem:[%s1525] ss:$9 sm:$0xff] %v1120
      %s1527 = scalar_lea.vmem [#allocation1], 2
      %1528 = vst [vmem:[%s1527] ss:$9 sm:$0xff] %v1121
      %s1529 = scalar_lea.vmem [#allocation1], 3
      %1530 = vst [vmem:[%s1529] ss:$9 sm:$0xff] %v1111
      %s1531 = scalar_lea.vmem [#allocation1], 4
      %1532 = vst [vmem:[%s1531] ss:$9 sm:$0xff] %v1122
      %v1533 = vld [vmem:[#allocation1] sm:$0xff]
      %v1535 = vpack.c.bf16 %v1533, %v1533
      %1536 = vst [vmem:[#allocation1] ss:$9 sm:$0xff] %v1119
      %s1537 = scalar_lea.vmem [#allocation1], 1
      %1538 = vst [vmem:[%s1537] ss:$9 sm:$0xff] %v1120
      %s1539 = scalar_lea.vmem [#allocation1], 2
      %1540 = vst [vmem:[%s1539] ss:$9 sm:$0xff] %v1121
      %s1541 = scalar_lea.vmem [#allocation1], 3
      %1542 = vst [vmem:[%s1541] ss:$9 sm:$0xff] %v1111
      %s1543 = scalar_lea.vmem [#allocation1], 4
      %1544 = vst [vmem:[%s1543] ss:$9 sm:$0xff] %v1122
      %v1545 = vld [vmem:[#allocation1] sm:$0xff]
      %v1547 = vpack.c.bf16 %v1545, %v1545
      %1549 = vrot.lane.b32.xlu0 %v1547, 96
      %v1550 = vpop.permute.xlu0 %1549
      %v1552 = vsel %vm1150, %v1535, 0
      %v1555 = vsel %vm1150, %v1550, 0
      %1557 = vmatpush.bf16.xpose.msra.mxu0 0
      %1558 = vmatpush.bf16.xpose.msra.mxu0 0
      %1559 = vmatpush.bf16.xpose.msra.mxu0 0
      %1560 = vmatpush.bf16.xpose.msra.mxu0 0
      %1561 = vmatpush.bf16.xpose.msra.mxu0 0
      %1562 = vmatpush.bf16.xpose.msra.mxu0 0
      %1563 = vmatpush.bf16.xpose.msra.mxu0 0
      %1564 = vmatpush.bf16.xpose.msra.mxu0 %v1555
      %1565 = vmatmul.bf16.gmra.mxu0 %v1552
      %v1566 = vpop.f32.mrf.mxu0
      %v1567 = vadd.f32 0.0, %v1566
      %v1568 = vpop.f32.mrf.mxu0
      %1569 = vdwg.mxu0
      %v1570 = vsel %vm1170, %v1567, -inf
      %1571 = vmax.xlane.f32.xlu0 %v1570
      %v1572 = vpop.xlane.xlu0 %1571
      %v1573 = vsub.f32 %v1567, %v1572
      %v1574 = vmul.f32 %v1573, 1.442695
      %v1575 = vpow.pop %v1574
      %v1576 = vsel %vm1170, %v1575, 0.0
      %1577 = vadd.xlane.f32.xlu0 %v1576
      %v1578 = vpop.xlane.xlu0 %1577
      %v1579 = vrcp.pop %v1578
      %v1580 = vmul.f32 %v1575, %v1579
      %v1581 = vpack.c.bf16 %v1580, %v1580
      %1582 = vst [vmem:[#allocation1] ss:$9 sm:$0xff] %v1119
      %s1583 = scalar_lea.vmem [#allocation1], 1
      %1584 = vst [vmem:[%s1583] ss:$9 sm:$0xff] %v1120
      %s1585 = scalar_lea.vmem [#allocation1], 2
      %1586 = vst [vmem:[%s1585] ss:$9 sm:$0xff] %v1121
      %s1587 = scalar_lea.vmem [#allocation1], 3
      %1588 = vst [vmem:[%s1587] ss:$9 sm:$0xff] %v1111
      %s1589 = scalar_lea.vmem [#allocation1], 4
      %1590 = vst [vmem:[%s1589] ss:$9 sm:$0xff] %v1122
      %v1591 = vld [vmem:[#allocation1] sm:$0xff]
      %v1593 = vpack.c.bf16 %v1591, %v1591
      %1595 = vrot.lane.b32.xlu0 %v1593, 64
      %v1596 = vpop.permute.xlu0 %1595
      %v1598 = vsel %vm1198, %v1581, 0
      %v1601 = vand.u32 %v1596, %v1205
      %1603 = vmatpush.bf16.msra.mxu0 0
      %1604 = vmatpush.bf16.msra.mxu0 0
      %1605 = vmatpush.bf16.msra.mxu0 0
      %1606 = vmatpush.bf16.msra.mxu0 0
      %1607 = vmatpush.bf16.msra.mxu0 0
      %1608 = vmatpush.bf16.msra.mxu0 0
      %1609 = vmatpush.bf16.msra.mxu0 0
      %1610 = vmatpush.bf16.msra.mxu0 %v1601
      %1611 = vmatmul.bf16.gmra.mxu0 %v1598
      %v1612 = vpop.f32.mrf.mxu0
      %v1613 = vadd.f32 0.0, %v1612
      %v1614 = vpop.f32.mrf.mxu0
      %1615 = vdwg.mxu0
      %1616 = vst [vmem:[#allocation1] ss:$9 sm:$0xff] %v1119
      %s1617 = scalar_lea.vmem [#allocation1], 1
      %1618 = vst [vmem:[%s1617] ss:$9 sm:$0xff] %v1120
      %s1619 = scalar_lea.vmem [#allocation1], 2
      %1620 = vst [vmem:[%s1619] ss:$9 sm:$0xff] %v1121
      %s1621 = scalar_lea.vmem [#allocation1], 3
      %1622 = vst [vmem:[%s1621] ss:$9 sm:$0xff] %v1111
      %s1623 = scalar_lea.vmem [#allocation1], 4
      %1624 = vst [vmem:[%s1623] ss:$9 sm:$0xff] %v1122
      %v1625 = vld [vmem:[#allocation1] sm:$0xff]
      %v1627 = vpack.c.bf16 %v1625, %v1625
      %1628 = vst [vmem:[#allocation1] ss:$9 sm:$0xff] %v1119
      %s1629 = scalar_lea.vmem [#allocation1], 1
      %1630 = vst [vmem:[%s1629] ss:$9 sm:$0xff] %v1120
      %s1631 = scalar_lea.vmem [#allocation1], 2
      %1632 = vst [vmem:[%s1631] ss:$9 sm:$0xff] %v1121
      %s1633 = scalar_lea.vmem [#allocation1], 3
      %1634 = vst [vmem:[%s1633] ss:$9 sm:$0xff] %v1111
      %s1635 = scalar_lea.vmem [#allocation1], 4
      %1636 = vst [vmem:[%s1635] ss:$9 sm:$0xff] %v1122
      %v1637 = vld [vmem:[#allocation1] sm:$0xff]
      %v1639 = vpack.c.bf16 %v1637, %v1637
      %1641 = vrot.lane.b32.xlu0 %v1627, 120
      %v1642 = vpop.permute.xlu0 %1641
      %1644 = vrot.lane.b32.xlu0 %v1639, 88
      %v1645 = vpop.permute.xlu0 %1644
      %v1647 = vsel %vm1150, %v1642, 0
      %v1650 = vsel %vm1150, %v1645, 0
      %1652 = vmatpush.bf16.xpose.msra.mxu0 0
      %1653 = vmatpush.bf16.xpose.msra.mxu0 0
      %1654 = vmatpush.bf16.xpose.msra.mxu0 0
      %1655 = vmatpush.bf16.xpose.msra.mxu0 0
      %1656 = vmatpush.bf16.xpose.msra.mxu0 0
      %1657 = vmatpush.bf16.xpose.msra.mxu0 0
      %1658 = vmatpush.bf16.xpose.msra.mxu0 0
      %1659 = vmatpush.bf16.xpose.msra.mxu0 %v1650
      %1660 = vmatmul.bf16.gmra.mxu0 %v1647
      %v1661 = vpop.f32.mrf.mxu0
      %v1662 = vadd.f32 0.0, %v1661
      %v1663 = vpop.f32.mrf.mxu0
      %1664 = vdwg.mxu0
      %v1665 = vsel %vm1170, %v1662, -inf
      %1666 = vmax.xlane.f32.xlu0 %v1665
      %v1667 = vpop.xlane.xlu0 %1666
      %v1668 = vsub.f32 %v1662, %v1667
      %v1669 = vmul.f32 %v1668, 1.442695
      %v1670 = vpow.pop %v1669
      %v1671 = vsel %vm1170, %v1670, 0.0
      %1672 = vadd.xlane.f32.xlu0 %v1671
      %v1673 = vpop.xlane.xlu0 %1672
      %v1674 = vrcp.pop %v1673
      %v1675 = vmul.f32 %v1670, %v1674
      %v1676 = vpack.c.bf16 %v1675, %v1675
      %1677 = vst [vmem:[#allocation1] ss:$9 sm:$0xff] %v1119
      %s1678 = scalar_lea.vmem [#allocation1], 1
      %1679 = vst [vmem:[%s1678] ss:$9 sm:$0xff] %v1120
      %s1680 = scalar_lea.vmem [#allocation1], 2
      %1681 = vst [vmem:[%s1680] ss:$9 sm:$0xff] %v1121
      %s1682 = scalar_lea.vmem [#allocation1], 3
      %1683 = vst [vmem:[%s1682] ss:$9 sm:$0xff] %v1111
      %s1684 = scalar_lea.vmem [#allocation1], 4
      %1685 = vst [vmem:[%s1684] ss:$9 sm:$0xff] %v1122
      %v1686 = vld [vmem:[#allocation1] sm:$0xff]
      %v1688 = vpack.c.bf16 %v1686, %v1686
      %1690 = vrot.lane.b32.xlu0 %v1688, 56
      %v1691 = vpop.permute.xlu0 %1690
      %v1693 = vsel %vm1198, %v1676, 0
      %v1696 = vand.u32 %v1691, %v1205
      %1698 = vmatpush.bf16.msra.mxu0 0
      %1699 = vmatpush.bf16.msra.mxu0 0
      %1700 = vmatpush.bf16.msra.mxu0 0
      %1701 = vmatpush.bf16.msra.mxu0 0
      %1702 = vmatpush.bf16.msra.mxu0 0
      %1703 = vmatpush.bf16.msra.mxu0 0
      %1704 = vmatpush.bf16.msra.mxu0 0
      %1705 = vmatpush.bf16.msra.mxu0 %v1696
      %1706 = vmatmul.bf16.gmra.mxu0 %v1693
      %v1707 = vpop.f32.mrf.mxu0
      %v1708 = vadd.f32 0.0, %v1707
      %v1709 = vpop.f32.mrf.mxu0
      %1710 = vdwg.mxu0
      %1711 = vst [vmem:[#allocation1] ss:$9 sm:$0xff] %v1119
      %s1712 = scalar_lea.vmem [#allocation1], 1
      %1713 = vst [vmem:[%s1712] ss:$9 sm:$0xff] %v1120
      %s1714 = scalar_lea.vmem [#allocation1], 2
      %1715 = vst [vmem:[%s1714] ss:$9 sm:$0xff] %v1121
      %s1716 = scalar_lea.vmem [#allocation1], 3
      %1717 = vst [vmem:[%s1716] ss:$9 sm:$0xff] %v1111
      %s1718 = scalar_lea.vmem [#allocation1], 4
      %1719 = vst [vmem:[%s1718] ss:$9 sm:$0xff] %v1122
      %v1720 = vld [vmem:[#allocation1] sm:$0xff]
      %v1722 = vpack.c.bf16 %v1720, %v1720
      %1723 = vst [vmem:[#allocation1] ss:$9 sm:$0xff] %v1119
      %s1724 = scalar_lea.vmem [#allocation1], 1
      %1725 = vst [vmem:[%s1724] ss:$9 sm:$0xff] %v1120
      %s1726 = scalar_lea.vmem [#allocation1], 2
      %1727 = vst [vmem:[%s1726] ss:$9 sm:$0xff] %v1121
      %s1728 = scalar_lea.vmem [#allocation1], 3
      %1729 = vst [vmem:[%s1728] ss:$9 sm:$0xff] %v1111
      %s1730 = scalar_lea.vmem [#allocation1], 4
      %1731 = vst [vmem:[%s1730] ss:$9 sm:$0xff] %v1122
      %v1732 = vld [vmem:[#allocation1] sm:$0xff]
      %v1734 = vpack.c.bf16 %v1732, %v1732
      %1736 = vrot.lane.b32.xlu0 %v1722, 112
      %v1737 = vpop.permute.xlu0 %1736
      %1739 = vrot.lane.b32.xlu0 %v1734, 80
      %v1740 = vpop.permute.xlu0 %1739
      %v1742 = vsel %vm1150, %v1737, 0
      %v1745 = vsel %vm1150, %v1740, 0
      %1747 = vmatpush.bf16.xpose.msra.mxu0 0
      %1748 = vmatpush.bf16.xpose.msra.mxu0 0
      %1749 = vmatpush.bf16.xpose.msra.mxu0 0
      %1750 = vmatpush.bf16.xpose.msra.mxu0 0
      %1751 = vmatpush.bf16.xpose.msra.mxu0 0
      %1752 = vmatpush.bf16.xpose.msra.mxu0 0
      %1753 = vmatpush.bf16.xpose.msra.mxu0 0
      %1754 = vmatpush.bf16.xpose.msra.mxu0 %v1745
      %1755 = vmatmul.bf16.gmra.mxu0 %v1742
      %v1756 = vpop.f32.mrf.mxu0
      %v1757 = vadd.f32 0.0, %v1756
      %v1758 = vpop.f32.mrf.mxu0
      %1759 = vdwg.mxu0
      %v1760 = vsel %vm1170, %v1757, -inf
      %1761 = vmax.xlane.f32.xlu0 %v1760
      %v1762 = vpop.xlane.xlu0 %1761
      %v1763 = vsub.f32 %v1757, %v1762
      %v1764 = vmul.f32 %v1763, 1.442695
      %v1765 = vpow.pop %v1764
      %v1766 = vsel %vm1170, %v1765, 0.0
      %1767 = vadd.xlane.f32.xlu0 %v1766
      %v1768 = vpop.xlane.xlu0 %1767
      %v1769 = vrcp.pop %v1768
      %v1770 = vmul.f32 %v1765, %v1769
      %v1771 = vpack.c.bf16 %v1770, %v1770
      %1772 = vst [vmem:[#allocation1] ss:$9 sm:$0xff] %v1119
      %s1773 = scalar_lea.vmem [#allocation1], 1
      %1774 = vst [vmem:[%s1773] ss:$9 sm:$0xff] %v1120
      %s1775 = scalar_lea.vmem [#allocation1], 2
      %1776 = vst [vmem:[%s1775] ss:$9 sm:$0xff] %v1121
      %s1777 = scalar_lea.vmem [#allocation1], 3
      %1778 = vst [vmem:[%s1777] ss:$9 sm:$0xff] %v1111
      %s1779 = scalar_lea.vmem [#allocation1], 4
      %1780 = vst [vmem:[%s1779] ss:$9 sm:$0xff] %v1122
      %v1781 = vld [vmem:[#allocation1] sm:$0xff]
      %v1783 = vpack.c.bf16 %v1781, %v1781
      %1785 = vrot.lane.b32.xlu0 %v1783, 48
      %v1786 = vpop.permute.xlu0 %1785
      %v1788 = vsel %vm1198, %v1771, 0
      %v1791 = vand.u32 %v1786, %v1205
      %1793 = vmatpush.bf16.msra.mxu0 0
      %1794 = vmatpush.bf16.msra.mxu0 0
      %1795 = vmatpush.bf16.msra.mxu0 0
      %1796 = vmatpush.bf16.msra.mxu0 0
      %1797 = vmatpush.bf16.msra.mxu0 0
      %1798 = vmatpush.bf16.msra.mxu0 0
      %1799 = vmatpush.bf16.msra.mxu0 0
      %1800 = vmatpush.bf16.msra.mxu0 %v1791
      %1801 = vmatmul.bf16.gmra.mxu0 %v1788
      %v1802 = vpop.f32.mrf.mxu0
      %v1803 = vadd.f32 0.0, %v1802
      %v1804 = vpop.f32.mrf.mxu0
      %1805 = vdwg.mxu0
      %1806 = vst [vmem:[#allocation1] ss:$9 sm:$0xff] %v1119
      %s1807 = scalar_lea.vmem [#allocation1], 1
      %1808 = vst [vmem:[%s1807] ss:$9 sm:$0xff] %v1120
      %s1809 = scalar_lea.vmem [#allocation1], 2
      %1810 = vst [vmem:[%s1809] ss:$9 sm:$0xff] %v1121
      %s1811 = scalar_lea.vmem [#allocation1], 3
      %1812 = vst [vmem:[%s1811] ss:$9 sm:$0xff] %v1111
      %s1813 = scalar_lea.vmem [#allocation1], 4
      %1814 = vst [vmem:[%s1813] ss:$9 sm:$0xff] %v1122
      %v1815 = vld [vmem:[#allocation1] sm:$0xff]
      %v1817 = vpack.c.bf16 %v1815, %v1815
      %1818 = vst [vmem:[#allocation1] ss:$9 sm:$0xff] %v1119
      %s1819 = scalar_lea.vmem [#allocation1], 1
      %1820 = vst [vmem:[%s1819] ss:$9 sm:$0xff] %v1120
      %s1821 = scalar_lea.vmem [#allocation1], 2
      %1822 = vst [vmem:[%s1821] ss:$9 sm:$0xff] %v1121
      %s1823 = scalar_lea.vmem [#allocation1], 3
      %1824 = vst [vmem:[%s1823] ss:$9 sm:$0xff] %v1111
      %s1825 = scalar_lea.vmem [#allocation1], 4
      %1826 = vst [vmem:[%s1825] ss:$9 sm:$0xff] %v1122
      %v1827 = vld [vmem:[#allocation1] sm:$0xff]
      %v1829 = vpack.c.bf16 %v1827, %v1827
      %1831 = vrot.lane.b32.xlu0 %v1817, 104
      %v1832 = vpop.permute.xlu0 %1831
      %1834 = vrot.lane.b32.xlu0 %v1829, 72
      %v1835 = vpop.permute.xlu0 %1834
      %v1837 = vsel %vm1150, %v1832, 0
      %v1840 = vsel %vm1150, %v1835, 0
      %1842 = vmatpush.bf16.xpose.msra.mxu0 0
      %1843 = vmatpush.bf16.xpose.msra.mxu0 0
      %1844 = vmatpush.bf16.xpose.msra.mxu0 0
      %1845 = vmatpush.bf16.xpose.msra.mxu0 0
      %1846 = vmatpush.bf16.xpose.msra.mxu0 0
      %1847 = vmatpush.bf16.xpose.msra.mxu0 0
      %1848 = vmatpush.bf16.xpose.msra.mxu0 0
      %1849 = vmatpush.bf16.xpose.msra.mxu0 %v1840
      %1850 = vmatmul.bf16.gmra.mxu0 %v1837
      %v1851 = vpop.f32.mrf.mxu0
      %v1852 = vadd.f32 0.0, %v1851
      %v1853 = vpop.f32.mrf.mxu0
      %1854 = vdwg.mxu0
      %v1855 = vsel %vm1170, %v1852, -inf
      %1856 = vmax.xlane.f32.xlu0 %v1855
      %v1857 = vpop.xlane.xlu0 %1856
      %v1858 = vsub.f32 %v1852, %v1857
      %v1859 = vmul.f32 %v1858, 1.442695
      %v1860 = vpow.pop %v1859
      %v1861 = vsel %vm1170, %v1860, 0.0
      %1862 = vadd.xlane.f32.xlu0 %v1861
      %v1863 = vpop.xlane.xlu0 %1862
      %v1864 = vrcp.pop %v1863
      %v1865 = vmul.f32 %v1860, %v1864
      %v1866 = vpack.c.bf16 %v1865, %v1865
      %1867 = vst [vmem:[#allocation1] ss:$9 sm:$0xff] %v1119
      %s1868 = scalar_lea.vmem [#allocation1], 1
      %1869 = vst [vmem:[%s1868] ss:$9 sm:$0xff] %v1120
      %s1870 = scalar_lea.vmem [#allocation1], 2
      %1871 = vst [vmem:[%s1870] ss:$9 sm:$0xff] %v1121
      %s1872 = scalar_lea.vmem [#allocation1], 3
      %1873 = vst [vmem:[%s1872] ss:$9 sm:$0xff] %v1111
      %s1874 = scalar_lea.vmem [#allocation1], 4
      %1875 = vst [vmem:[%s1874] ss:$9 sm:$0xff] %v1122
      %v1876 = vld [vmem:[#allocation1] sm:$0xff]
      %v1878 = vpack.c.bf16 %v1876, %v1876
      %1880 = vrot.lane.b32.xlu0 %v1878, 40
      %v1881 = vpop.permute.xlu0 %1880
      %v1883 = vsel %vm1198, %v1866, 0
      %v1886 = vand.u32 %v1881, %v1205
      %1888 = vmatpush.bf16.msra.mxu0 0
      %1889 = vmatpush.bf16.msra.mxu0 0
      %1890 = vmatpush.bf16.msra.mxu0 0
      %1891 = vmatpush.bf16.msra.mxu0 0
      %1892 = vmatpush.bf16.msra.mxu0 0
      %1893 = vmatpush.bf16.msra.mxu0 0
      %1894 = vmatpush.bf16.msra.mxu0 0
      %1895 = vmatpush.bf16.msra.mxu0 %v1886
      %1896 = vmatmul.bf16.gmra.mxu0 %v1883
      %v1897 = vpop.f32.mrf.mxu0
      %v1898 = vadd.f32 0.0, %v1897
      %v1899 = vpop.f32.mrf.mxu0
      %1900 = vdwg.mxu0
      %1902 = vrot.lane.b32.xlu0 %v1708, 8
      %v1903 = vpop.permute.xlu0 %1902
      %1906 = vrot.lane.b32.xlu0 %v1803, 16
      %v1907 = vpop.permute.xlu0 %1906
      %1910 = vrot.lane.b32.xlu0 %v1898, 24
      %v1911 = vpop.permute.xlu0 %1910
      %v1913 = vsel %vm1150, %v1613, %v1903
      %v1914 = vsel %vm1520, %v1913, %v1907
      %v1915 = vsel %vm1522, %v1914, %v1911
      %v1917 = vrot.slane %v1915, 3
      %vm1919 = vcmask 1044480
      %v1920 = vsel %vm1919, %v1523, %v1917
      %v1921 = vpack.c.bf16 %v1917, %v1920
      %v1923 = vperm.slane %v779, 0
      %v1929 = vunpack.c.l.b16 %v775
      %v1930 = vunpack.c.l.b16 %v776
      %v1931 = vunpack.c.l.b16 %v777
      %v1932 = vunpack.c.l.b16 %v778
      %v1933 = vpack.c.b16 %v1930, %v1929
      %v1934 = vpack.c.b16 %v1932, %v1931
      %v1938 = vsel %vm843, %v1921, 0
      %1940 = vmatpush.bf16.msra.mxu0 0
      %1941 = vmatpush.bf16.msra.mxu0 0
      %1942 = vmatpush.bf16.msra.mxu0 0
      %1943 = vmatpush.bf16.msra.mxu0 0
      %1944 = vmatpush.bf16.msra.mxu0 0
      %1945 = vmatpush.bf16.msra.mxu0 0
      %1946 = vmatpush.bf16.msra.mxu0 %v1934
      %1947 = vmatpush.bf16.msra.mxu0 %v1933
      %1948 = vmatmul.bf16.gmra.mxu0 %v1938
      %v1949 = vpop.f32.mrf.mxu0
      %v1950 = vadd.f32 %v1923, %v1949
      %v1951 = vpop.f32.mrf.mxu0
      %v1952 = vadd.f32 %v1923, %v1951
      %1953 = vdwg.mxu0
      %v1956 = vrot.slane %v1950, 1
      %v1957 = vrot.slane %v1950, 2
      %v1958 = vrot.slane %v1950, 3
      %v1959 = vrot.slane %v1950, 4
      %v1960 = vrot.slane %v1950, 5
      %v1961 = vrot.slane %v1950, 6
      %v1962 = vrot.slane %v1950, 7
      %v1963 = vrot.slane %v1952, 1
      %v1972 = vadd.f32 %v766, %v1950
      %v1973 = vadd.f32 %v806, %v1956
      %v1974 = vadd.f32 %v807, %v1957
      %v1975 = vadd.f32 %v808, %v1958
      %v1976 = vadd.f32 %v809, %v1959
      %v1977 = vadd.f32 %v767, %v1960
      %v1978 = vadd.f32 %v810, %v1961
      %v1979 = vadd.f32 %v811, %v1962
      %v1980 = vadd.f32 %v812, %v1952
      %v1981 = vadd.f32 %v813, %v1963
      %1992 = vst [vmem:[#allocation1] ss:$9 sm:$0xff] %v1972
      %s1993 = scalar_lea.vmem [#allocation1], 1
      %1994 = vst [vmem:[%s1993] ss:$9 sm:$0xff] %v1973
      %s1995 = scalar_lea.vmem [#allocation1], 2
      %1996 = vst [vmem:[%s1995] ss:$9 sm:$0xff] %v1974
      %s1997 = scalar_lea.vmem [#allocation1], 3
      %1998 = vst [vmem:[%s1997] ss:$9 sm:$0xff] %v1975
      %s1999 = scalar_lea.vmem [#allocation1], 4
      %2000 = vst [vmem:[%s1999] ss:$9 sm:$0xff] %v1976
      %s2001 = scalar_lea.vmem [#allocation1], 5
      %2002 = vst [vmem:[%s2001] ss:$9 sm:$0xff] %v1977
      %s2003 = scalar_lea.vmem [#allocation1], 6
      %2004 = vst [vmem:[%s2003] ss:$9 sm:$0xff] %v1978
      %s2005 = scalar_lea.vmem [#allocation1], 7
      %2006 = vst [vmem:[%s2005] ss:$9 sm:$0xff] %v1979
      %v2007 = vld [vmem:[#allocation1] sm:$0xff]
      %2008 = vst [vmem:[#allocation1] ss:$9 sm:$0xff] %v1980
      %2009 = vst [vmem:[%s1993] ss:$9 sm:$0xff] %v1981
      %v2010 = vld [vmem:[#allocation1] sm:$0xff]
      %v2013 = vsel %vm843, %v2007, 0.0
      %2014 = vadd.xlane.f32.xlu0 %v2013
      %v2015 = vpop.xlane.xlu0 %2014
      %v2016 = vsel %vm847, %v2010, 0.0
      %2017 = vadd.xlane.f32.xlu0 %v2016
      %v2018 = vpop.xlane.xlu0 %2017
      %v2019 = vmul.f32 %v2015, %v857
      %v2020 = vmul.f32 %v2018, %v857
      %v2023 = vperm.slane %v2019, 0
      %v2024 = vperm.slane %v2019, 1
      %v2025 = vperm.slane %v2019, 2
      %v2026 = vperm.slane %v2019, 3
      %v2027 = vperm.slane %v2019, 4
      %v2028 = vperm.slane %v2019, 5
      %v2029 = vperm.slane %v2019, 6
      %v2030 = vperm.slane %v2019, 7
      %v2031 = vperm.slane %v2020, 0
      %v2032 = vperm.slane %v2020, 1
      %v2043 = vsub.f32 %v1972, %v2023
      %v2044 = vsub.f32 %v1973, %v2024
      %v2045 = vsub.f32 %v1974, %v2025
      %v2046 = vsub.f32 %v1975, %v2026
      %v2047 = vsub.f32 %v1976, %v2027
      %v2048 = vsub.f32 %v1977, %v2028
      %v2049 = vsub.f32 %v1978, %v2029
      %v2050 = vsub.f32 %v1979, %v2030
      %v2051 = vsub.f32 %v1980, %v2031
      %v2052 = vsub.f32 %v1981, %v2032
      %v2053 = vmul.f32 %v2043, %v2043
      %v2054 = vmul.f32 %v2044, %v2044
      %v2055 = vmul.f32 %v2045, %v2045
      %v2056 = vmul.f32 %v2046, %v2046
      %v2057 = vmul.f32 %v2047, %v2047
      %v2058 = vmul.f32 %v2048, %v2048
      %v2059 = vmul.f32 %v2049, %v2049
      %v2060 = vmul.f32 %v2050, %v2050
      %v2061 = vmul.f32 %v2051, %v2051
      %v2062 = vmul.f32 %v2052, %v2052
      %2073 = vst [vmem:[#allocation1] ss:$9 sm:$0xff] %v2053
      %s2074 = scalar_lea.vmem [#allocation1], 1
      %2075 = vst [vmem:[%s2074] ss:$9 sm:$0xff] %v2054
      %s2076 = scalar_lea.vmem [#allocation1], 2
      %2077 = vst [vmem:[%s2076] ss:$9 sm:$0xff] %v2055
      %s2078 = scalar_lea.vmem [#allocation1], 3
      %2079 = vst [vmem:[%s2078] ss:$9 sm:$0xff] %v2056
      %s2080 = scalar_lea.vmem [#allocation1], 4
      %2081 = vst [vmem:[%s2080] ss:$9 sm:$0xff] %v2057
      %s2082 = scalar_lea.vmem [#allocation1], 5
      %2083 = vst [vmem:[%s2082] ss:$9 sm:$0xff] %v2058
      %s2084 = scalar_lea.vmem [#allocation1], 6
      %2085 = vst [vmem:[%s2084] ss:$9 sm:$0xff] %v2059
      %s2086 = scalar_lea.vmem [#allocation1], 7
      %2087 = vst [vmem:[%s2086] ss:$9 sm:$0xff] %v2060
      %v2088 = vld [vmem:[#allocation1] sm:$0xff]
      %2089 = vst [vmem:[#allocation1] ss:$9 sm:$0xff] %v2061
      %2090 = vst [vmem:[%s2074] ss:$9 sm:$0xff] %v2062
      %v2091 = vld [vmem:[#allocation1] sm:$0xff]
      %v2094 = vsel %vm843, %v2088, 0.0
      %2095 = vadd.xlane.f32.xlu0 %v2094
      %v2096 = vpop.xlane.xlu0 %2095
      %v2097 = vsel %vm847, %v2091, 0.0
      %2098 = vadd.xlane.f32.xlu0 %v2097
      %v2099 = vpop.xlane.xlu0 %2098
      %v2100 = vmul.f32 %v2096, %v857
      %v2101 = vmul.f32 %v2099, %v857
      %v2102 = vadd.f32 %v2100, 1e-12
      %v2103 = vadd.f32 %v2101, 1e-12
      %v2104 = vrsqrt.pop %v2102
      %v2105 = vmul.f32 %v2104, %v2102
      %v2106 = vmul.f32 %v2105, %v2104
      %v2107 = vmul.f32 0.5, %v2106
      %v2108 = vsub.f32 1.5, %v2107
      %v2109 = vmul.f32 %v2104, %v2108
      %vm2110 = vweird.f32 %v2102
      %vm2111 = vweird.f32 %v2104
      %vm2112 = vmor %vm2110, %vm2111
      %v2113 = vsel %vm2112, %v2104, %v2109
      %v2114 = vrsqrt.pop %v2103
      %v2115 = vmul.f32 %v2114, %v2103
      %v2116 = vmul.f32 %v2115, %v2114
      %v2117 = vmul.f32 0.5, %v2116
      %v2118 = vsub.f32 1.5, %v2117
      %v2119 = vmul.f32 %v2114, %v2118
      %vm2120 = vweird.f32 %v2103
      %vm2121 = vweird.f32 %v2114
      %vm2122 = vmor %vm2120, %vm2121
      %v2123 = vsel %vm2122, %v2114, %v2119
      %v2126 = vperm.slane %v2113, 0
      %v2127 = vperm.slane %v2113, 1
      %v2128 = vperm.slane %v2113, 2
      %v2129 = vperm.slane %v2113, 3
      %v2130 = vperm.slane %v2113, 4
      %v2131 = vperm.slane %v2113, 5
      %v2132 = vperm.slane %v2113, 6
      %v2133 = vperm.slane %v2113, 7
      %v2134 = vperm.slane %v2123, 0
      %v2135 = vperm.slane %v2123, 1
      %v2146 = vmul.f32 %v2043, %v2126
      %v2147 = vmul.f32 %v2044, %v2127
      %v2148 = vmul.f32 %v2045, %v2128
      %v2149 = vmul.f32 %v2046, %v2129
      %v2150 = vmul.f32 %v2047, %v2130
      %v2151 = vmul.f32 %v2048, %v2131
      %v2152 = vmul.f32 %v2049, %v2132
      %v2153 = vmul.f32 %v2050, %v2133
      %v2154 = vmul.f32 %v2051, %v2134
      %v2155 = vmul.f32 %v2052, %v2135
      %v2157 = vperm.slane %v780, 0
      %v2159 = vrot.slane %v2157, 1
      %v2160 = vrot.slane %v2157, 2
      %v2161 = vrot.slane %v2157, 3
      %v2162 = vrot.slane %v2157, 4
      %v2163 = vrot.slane %v2157, 5
      %v2164 = vrot.slane %v2157, 6
      %v2165 = vrot.slane %v2157, 7
      %v2173 = vmul.f32 %v2146, %v2157
      %v2174 = vmul.f32 %v2147, %v2159
      %v2175 = vmul.f32 %v2148, %v2160
      %v2176 = vmul.f32 %v2149, %v2161
      %v2177 = vmul.f32 %v2150, %v2162
      %v2178 = vmul.f32 %v2151, %v2163
      %v2179 = vmul.f32 %v2152, %v2164
      %v2180 = vmul.f32 %v2153, %v2165
      %v2181 = vmul.f32 %v2154, %v2157
      %v2182 = vmul.f32 %v2155, %v2159
      %v2184 = vperm.slane %v781, 0
      %v2186 = vrot.slane %v2184, 1
      %v2187 = vrot.slane %v2184, 2
      %v2188 = vrot.slane %v2184, 3
      %v2189 = vrot.slane %v2184, 4
      %v2190 = vrot.slane %v2184, 5
      %v2191 = vrot.slane %v2184, 6
      %v2192 = vrot.slane %v2184, 7
      %v2200 = vadd.f32 %v2173, %v2184
      %v2201 = vadd.f32 %v2174, %v2186
      %v2202 = vadd.f32 %v2175, %v2187
      %v2203 = vadd.f32 %v2176, %v2188
      %v2204 = vadd.f32 %v2177, %v2189
      %v2205 = vadd.f32 %v2178, %v2190
      %v2206 = vadd.f32 %v2179, %v2191
      %v2207 = vadd.f32 %v2180, %v2192
      %v2208 = vadd.f32 %v2181, %v2184
      %v2209 = vadd.f32 %v2182, %v2186
      %2220 = vst [vmem:[#allocation1] ss:$9 sm:$0xff] %v2200
      %s2221 = scalar_lea.vmem [#allocation1], 1
      %2222 = vst [vmem:[%s2221] ss:$9 sm:$0xff] %v2201
      %s2223 = scalar_lea.vmem [#allocation1], 2
      %2224 = vst [vmem:[%s2223] ss:$9 sm:$0xff] %v2202
      %s2225 = scalar_lea.vmem [#allocation1], 3
      %2226 = vst [vmem:[%s2225] ss:$9 sm:$0xff] %v2203
      %s2227 = scalar_lea.vmem [#allocation1], 4
      %2228 = vst [vmem:[%s2227] ss:$9 sm:$0xff] %v2204
      %s2229 = scalar_lea.vmem [#allocation1], 5
      %2230 = vst [vmem:[%s2229] ss:$9 sm:$0xff] %v2205
      %s2231 = scalar_lea.vmem [#allocation1], 6
      %2232 = vst [vmem:[%s2231] ss:$9 sm:$0xff] %v2206
      %s2233 = scalar_lea.vmem [#allocation1], 7
      %2234 = vst [vmem:[%s2233] ss:$9 sm:$0xff] %v2207
      %v2235 = vld [vmem:[#allocation1] sm:$0xff]
      %2236 = vst [vmem:[#allocation1] ss:$9 sm:$0xff] %v2208
      %2237 = vst [vmem:[%s2221] ss:$9 sm:$0xff] %v2209
      %v2238 = vld [vmem:[#allocation1] sm:$0xff]
      %v2241 = vpack.c.bf16 %v2238, %v2235
      %v2243 = vperm.slane %v786, 0
      %v2249 = vunpack.c.l.b16 %v782
      %v2250 = vunpack.c.l.b16 %v783
      %v2251 = vunpack.c.l.b16 %v784
      %v2252 = vunpack.c.l.b16 %v785
      %v2253 = vpack.c.b16 %v2250, %v2249
      %v2254 = vpack.c.b16 %v2252, %v2251
      %v2258 = vsel %vm843, %v2241, 0
      %2260 = vmatpush.bf16.msra.mxu0 0
      %2261 = vmatpush.bf16.msra.mxu0 0
      %2262 = vmatpush.bf16.msra.mxu0 0
      %2263 = vmatpush.bf16.msra.mxu0 0
      %2264 = vmatpush.bf16.msra.mxu0 0
      %2265 = vmatpush.bf16.msra.mxu0 0
      %2266 = vmatpush.bf16.msra.mxu0 %v2254
      %2267 = vmatpush.bf16.msra.mxu0 %v2253
      %2268 = vmatmul.bf16.gmra.mxu0 %v2258
      %v2269 = vpop.f32.mrf.mxu0
      %v2270 = vadd.f32 %v2243, %v2269
      %v2271 = vpop.f32.mrf.mxu0
      %v2272 = vadd.f32 %v2243, %v2271
      %2273 = vdwg.mxu0
      %v2274 = vmul.f32 %v2270, 0.5
      %v2275 = vmul.f32 %v2272, 0.5
      %v2276 = vmul.f32 %v2270, 0.70710677
      %v2277 = vmul.f32 %v2272, 0.70710677
      %v2278 = vmul.f32 %v2276, %v2276
      %v2279 = vmin.f32 16.0, %v2278
      %v2280 = vmul.f32 %v2279, 2.1237322e-06
      %v2281 = vadd.f32 %v2280, 0.00028619796
      %v2282 = vmul.f32 %v2279, %v2281
      %v2283 = vadd.f32 %v2282, 0.0036580483
      %v2284 = vmul.f32 %v2279, %v2283
      %v2285 = vadd.f32 %v2284, 0.05243302
      %v2286 = vmul.f32 %v2279, %v2285
      %v2287 = vadd.f32 %v2286, 0.18741608
      %v2288 = vmul.f32 %v2279, %v2287
      %v2289 = vadd.f32 %v2288, 1.1283791
      %v2290 = vmul.f32 %v2276, %v2289
      %v2291 = vmul.f32 %v2279, 3.8918573e-05
      %v2292 = vadd.f32 %v2291, 0.001143296
      %v2293 = vmul.f32 %v2279, %v2292
      %v2294 = vadd.f32 %v2293, 0.014752088
      %v2295 = vmul.f32 %v2279, %v2294
      %v2296 = vadd.f32 %v2295, 0.112945676
      %v2297 = vmul.f32 %v2279, %v2296
      %v2298 = vadd.f32 %v2297, 0.4994258
      %v2299 = vmul.f32 %v2279, %v2298
      %v2300 = vadd.f32 %v2299, 1.0
      %v2301 = vrcp.pop %v2300
      %v2302 = vmul.f32 %v2300, %v2301
      %v2303 = vsub.f32 1.0, %v2302
      %v2304 = vmul.f32 %v2301, %v2303
      %v2305 = vadd.f32 %v2301, %v2304
      %vm2306 = vweird.f32 %v2300
      %vm2307 = vweird.f32 %v2301
      %vm2308 = vmor %vm2306, %vm2307
      %v2309 = vsel %vm2308, %v2301, %v2305
      %v2310 = vand.u32 2147483647, %v2300
      %vm2311 = vcmp.eq.f32.partialorder %v2310, 8.507059e+37
      %v2312 = vand.u32 %v2300, 2147483648
      %v2313 = vor.u32 1.1754944e-38, %v2312
      %v2314 = vsel %vm2311, %v2313, %v2309
      %v2315 = vmul.f32 %v2290, %v2314
      %v2316 = vmin.f32 %v2315, 1.0
      %v2317 = vmax.f32 %v2316, -1.0
      %v2318 = vmul.f32 %v2277, %v2277
      %v2319 = vmin.f32 16.0, %v2318
      %v2320 = vmul.f32 %v2319, 2.1237322e-06
      %v2321 = vadd.f32 %v2320, 0.00028619796
      %v2322 = vmul.f32 %v2319, %v2321
      %v2323 = vadd.f32 %v2322, 0.0036580483
      %v2324 = vmul.f32 %v2319, %v2323
      %v2325 = vadd.f32 %v2324, 0.05243302
      %v2326 = vmul.f32 %v2319, %v2325
      %v2327 = vadd.f32 %v2326, 0.18741608
      %v2328 = vmul.f32 %v2319, %v2327
      %v2329 = vadd.f32 %v2328, 1.1283791
      %v2330 = vmul.f32 %v2277, %v2329
      %v2331 = vmul.f32 %v2319, 3.8918573e-05
      %v2332 = vadd.f32 %v2331, 0.001143296
      %v2333 = vmul.f32 %v2319, %v2332
      %v2334 = vadd.f32 %v2333, 0.014752088
      %v2335 = vmul.f32 %v2319, %v2334
      %v2336 = vadd.f32 %v2335, 0.112945676
      %v2337 = vmul.f32 %v2319, %v2336
      %v2338 = vadd.f32 %v2337, 0.4994258
      %v2339 = vmul.f32 %v2319, %v2338
      %v2340 = vadd.f32 %v2339, 1.0
      %v2341 = vrcp.pop %v2340
      %v2342 = vmul.f32 %v2340, %v2341
      %v2343 = vsub.f32 1.0, %v2342
      %v2344 = vmul.f32 %v2341, %v2343
      %v2345 = vadd.f32 %v2341, %v2344
      %vm2346 = vweird.f32 %v2340
      %vm2347 = vweird.f32 %v2341
      %vm2348 = vmor %vm2346, %vm2347
      %v2349 = vsel %vm2348, %v2341, %v2345
      %v2350 = vand.u32 2147483647, %v2340
      %vm2351 = vcmp.eq.f32.partialorder %v2350, 8.507059e+37
      %v2352 = vand.u32 %v2340, 2147483648
      %v2353 = vor.u32 1.1754944e-38, %v2352
      %v2354 = vsel %vm2351, %v2353, %v2349
      %v2355 = vmul.f32 %v2330, %v2354
      %v2356 = vmin.f32 %v2355, 1.0
      %v2357 = vmax.f32 %v2356, -1.0
      %v2358 = vadd.f32 %v2317, 1.0
      %v2359 = vadd.f32 %v2357, 1.0
      %v2360 = vmul.f32 %v2274, %v2358
      %v2361 = vmul.f32 %v2275, %v2359
      %v2362 = vpack.c.bf16 %v2361, %v2360
      %v2364 = vperm.slane %v803, 0
      %v2382 = vunpack.c.l.b16 %v787
      %v2383 = vunpack.c.l.b16 %v788
      %v2384 = vunpack.c.l.b16 %v789
      %v2385 = vunpack.c.l.b16 %v790
      %v2386 = vunpack.c.l.b16 %v791
      %v2387 = vunpack.c.l.b16 %v792
      %v2388 = vunpack.c.l.b16 %v793
      %v2389 = vunpack.c.l.b16 %v794
      %v2390 = vunpack.c.l.b16 %v795
      %v2391 = vunpack.c.l.b16 %v796
      %v2392 = vunpack.c.l.b16 %v797
      %v2393 = vunpack.c.l.b16 %v798
      %v2394 = vunpack.c.l.b16 %v799
      %v2395 = vunpack.c.l.b16 %v800
      %v2396 = vunpack.c.l.b16 %v801
      %v2397 = vunpack.c.l.b16 %v802
      %v2398 = vpack.c.b16 %v2383, %v2382
      %v2399 = vpack.c.b16 %v2385, %v2384
      %v2400 = vpack.c.b16 %v2387, %v2386
      %v2401 = vpack.c.b16 %v2389, %v2388
      %v2402 = vpack.c.b16 %v2391, %v2390
      %v2403 = vpack.c.b16 %v2393, %v2392
      %v2404 = vpack.c.b16 %v2395, %v2394
      %v2405 = vpack.c.b16 %v2397, %v2396
      %2414 = vmatpush.bf16.msra.mxu0 %v2405
      %2415 = vmatpush.bf16.msra.mxu0 %v2404
      %2416 = vmatpush.bf16.msra.mxu0 %v2403
      %2417 = vmatpush.bf16.msra.mxu0 %v2402
      %2418 = vmatpush.bf16.msra.mxu0 %v2401
      %2419 = vmatpush.bf16.msra.mxu0 %v2400
      %2420 = vmatpush.bf16.msra.mxu0 %v2399
      %2421 = vmatpush.bf16.msra.mxu0 %v2398
      %2422 = vmatmul.bf16.gmra.mxu0 %v2362
      %v2423 = vpop.f32.mrf.mxu0
      %v2424 = vadd.f32 %v2364, %v2423
      %v2425 = vpop.f32.mrf.mxu0
      %v2426 = vadd.f32 %v2364, %v2425
      %2427 = vdwg.mxu0
      %v2430 = vrot.slane %v2424, 1
      %v2431 = vrot.slane %v2424, 2
      %v2432 = vrot.slane %v2424, 3
      %v2433 = vrot.slane %v2424, 4
      %v2434 = vrot.slane %v2424, 5
      %v2435 = vrot.slane %v2424, 6
      %v2436 = vrot.slane %v2424, 7
      %v2437 = vrot.slane %v2426, 1
      %v2446 = vadd.f32 %v1972, %v2424
      %v2447 = vadd.f32 %v1973, %v2430
      %v2448 = vadd.f32 %v1974, %v2431
      %v2449 = vadd.f32 %v1975, %v2432
      %v2450 = vadd.f32 %v1976, %v2433
      %v2451 = vadd.f32 %v1977, %v2434
      %v2452 = vadd.f32 %v1978, %v2435
      %v2453 = vadd.f32 %v1979, %v2436
      %v2454 = vadd.f32 %v1980, %v2426
      %v2455 = vadd.f32 %v1981, %v2437
      %p2456 = scmp.lt.s32.totalorder %s33, 1
      // Predicated region
      $region93: #{forward.4} parent=87 // pred_check
        %p2457 = pneg %p2456
      $region94: #{forward.4} parent=87 // pred_check_branch
        %2459 = sbr.rel (%p2457) target = $region96
      $region95: #{forward.4} parent=87 // pred_region
        %2470 = vst [vmem:[#allocation1] ss:$9 sm:$0xff] %v2446
        %s2471 = scalar_lea.vmem [#allocation1], 1
        %2472 = vst [vmem:[%s2471] ss:$9 sm:$0xff] %v2447
        %s2473 = scalar_lea.vmem [#allocation1], 2
        %2474 = vst [vmem:[%s2473] ss:$9 sm:$0xff] %v2448
        %s2475 = scalar_lea.vmem [#allocation1], 3
        %2476 = vst [vmem:[%s2475] ss:$9 sm:$0xff] %v2449
        %s2477 = scalar_lea.vmem [#allocation1], 4
        %2478 = vst [vmem:[%s2477] ss:$9 sm:$0xff] %v2450
        %v2479 = vld [vmem:[#allocation1] sm:$0xff]
        %2480 = vst [vmem:[#allocation1] ss:$9 sm:$0xff] %v2451
        %2481 = vst [vmem:[%s2471] ss:$9 sm:$0xff] %v2452
        %2482 = vst [vmem:[%s2473] ss:$9 sm:$0xff] %v2453
        %2483 = vst [vmem:[%s2475] ss:$9 sm:$0xff] %v2454
        %2484 = vst [vmem:[%s2477] ss:$9 sm:$0xff] %v2455
        %v2485 = vld [vmem:[#allocation1] sm:$0xff]
        %vm2488 = vcmask 258048
        %2489 = vst.msk [vmem:[%s754] sm:$0x1f] %vm2488, %v2479
        %2490 = vst.msk [vmem:[%s754 + $0x8] sm:$0x1f] %vm2488, %v2485
      $region96: #{forward.4} parent=87 // pred_fallthru
        _
      %p2491 = scmp.eq.s32.totalorder %s33, 1
      // Predicated region
      $region97: #{forward.4} parent=87 // pred_check
        %p2492 = pneg %p2491
      $region98: #{forward.4} parent=87 // pred_check_branch
        %2494 = sbr.rel (%p2492) target = $region100
      $region99: #{forward.4} parent=87 // pred_region
        %v2495 = vld [vmem:[%s13] sm:$0x1]
        %v2496 = vld [vmem:[%s14] sm:$0x1]
        %2507 = vst [vmem:[#allocation1] ss:$9 sm:$0xff] %v2446
        %s2508 = scalar_lea.vmem [#allocation1], 1
        %2509 = vst [vmem:[%s2508] ss:$9 sm:$0xff] %v2447
        %s2510 = scalar_lea.vmem [#allocation1], 2
        %2511 = vst [vmem:[%s2510] ss:$9 sm:$0xff] %v2448
        %s2512 = scalar_lea.vmem [#allocation1], 3
        %2513 = vst [vmem:[%s2512] ss:$9 sm:$0xff] %v2449
        %s2514 = scalar_lea.vmem [#allocation1], 4
        %2515 = vst [vmem:[%s2514] ss:$9 sm:$0xff] %v2450
        %s2516 = scalar_lea.vmem [#allocation1], 5
        %2517 = vst [vmem:[%s2516] ss:$9 sm:$0xff] %v2451
        %s2518 = scalar_lea.vmem [#allocation1], 6
        %2519 = vst [vmem:[%s2518] ss:$9 sm:$0xff] %v2452
        %s2520 = scalar_lea.vmem [#allocation1], 7
        %2521 = vst [vmem:[%s2520] ss:$9 sm:$0xff] %v2453
        %v2522 = vld [vmem:[#allocation1] sm:$0xff]
        %2523 = vst [vmem:[#allocation1] ss:$9 sm:$0xff] %v2454
        %2524 = vst [vmem:[%s2508] ss:$9 sm:$0xff] %v2455
        %v2525 = vld [vmem:[#allocation1] sm:$0xff]
        %v2528 = vsel %vm843, %v2522, 0.0
        %2529 = vadd.xlane.f32.xlu0 %v2528
        %v2530 = vpop.xlane.xlu0 %2529
        %v2531 = vsel %vm847, %v2525, 0.0
        %2532 = vadd.xlane.f32.xlu0 %v2531
        %v2533 = vpop.xlane.xlu0 %2532
        %v2534 = vmul.f32 %v2530, %v857
        %v2535 = vmul.f32 %v2533, %v857
        %v2538 = vperm.slane %v2534, 0
        %v2539 = vperm.slane %v2534, 1
        %v2540 = vperm.slane %v2534, 2
        %v2541 = vperm.slane %v2534, 3
        %v2542 = vperm.slane %v2534, 4
        %v2543 = vperm.slane %v2534, 5
        %v2544 = vperm.slane %v2534, 6
        %v2545 = vperm.slane %v2534, 7
        %v2546 = vperm.slane %v2535, 0
        %v2547 = vperm.slane %v2535, 1
        %v2558 = vsub.f32 %v2446, %v2538
        %v2559 = vsub.f32 %v2447, %v2539
        %v2560 = vsub.f32 %v2448, %v2540
        %v2561 = vsub.f32 %v2449, %v2541
        %v2562 = vsub.f32 %v2450, %v2542
        %v2563 = vsub.f32 %v2451, %v2543
        %v2564 = vsub.f32 %v2452, %v2544
        %v2565 = vsub.f32 %v2453, %v2545
        %v2566 = vsub.f32 %v2454, %v2546
        %v2567 = vsub.f32 %v2455, %v2547
        %v2568 = vmul.f32 %v2558, %v2558
        %v2569 = vmul.f32 %v2559, %v2559
        %v2570 = vmul.f32 %v2560, %v2560
        %v2571 = vmul.f32 %v2561, %v2561
        %v2572 = vmul.f32 %v2562, %v2562
        %v2573 = vmul.f32 %v2563, %v2563
        %v2574 = vmul.f32 %v2564, %v2564
        %v2575 = vmul.f32 %v2565, %v2565
        %v2576 = vmul.f32 %v2566, %v2566
        %v2577 = vmul.f32 %v2567, %v2567
        %2588 = vst [vmem:[#allocation1] ss:$9 sm:$0xff] %v2568
        %s2589 = scalar_lea.vmem [#allocation1], 1
        %2590 = vst [vmem:[%s2589] ss:$9 sm:$0xff] %v2569
        %s2591 = scalar_lea.vmem [#allocation1], 2
        %2592 = vst [vmem:[%s2591] ss:$9 sm:$0xff] %v2570
        %s2593 = scalar_lea.vmem [#allocation1], 3
        %2594 = vst [vmem:[%s2593] ss:$9 sm:$0xff] %v2571
        %s2595 = scalar_lea.vmem [#allocation1], 4
        %2596 = vst [vmem:[%s2595] ss:$9 sm:$0xff] %v2572
        %s2597 = scalar_lea.vmem [#allocation1], 5
        %2598 = vst [vmem:[%s2597] ss:$9 sm:$0xff] %v2573
        %s2599 = scalar_lea.vmem [#allocation1], 6
        %2600 = vst [vmem:[%s2599] ss:$9 sm:$0xff] %v2574
        %s2601 = scalar_lea.vmem [#allocation1], 7
        %2602 = vst [vmem:[%s2601] ss:$9 sm:$0xff] %v2575
        %v2603 = vld [vmem:[#allocation1] sm:$0xff]
        %2604 = vst [vmem:[#allocation1] ss:$9 sm:$0xff] %v2576
        %2605 = vst [vmem:[%s2589] ss:$9 sm:$0xff] %v2577
        %v2606 = vld [vmem:[#allocation1] sm:$0xff]
        %v2609 = vsel %vm843, %v2603, 0.0
        %2610 = vadd.xlane.f32.xlu0 %v2609
        %v2611 = vpop.xlane.xlu0 %2610
        %v2612 = vsel %vm847, %v2606, 0.0
        %2613 = vadd.xlane.f32.xlu0 %v2612
        %v2614 = vpop.xlane.xlu0 %2613
        %v2615 = vmul.f32 %v2611, %v857
        %v2616 = vmul.f32 %v2614, %v857
        %v2617 = vadd.f32 %v2615, 1e-12
        %v2618 = vadd.f32 %v2616, 1e-12
        %v2619 = vrsqrt.pop %v2617
        %v2620 = vmul.f32 %v2619, %v2617
        %v2621 = vmul.f32 %v2620, %v2619
        %v2622 = vmul.f32 0.5, %v2621
        %v2623 = vsub.f32 1.5, %v2622
        %v2624 = vmul.f32 %v2619, %v2623
        %vm2625 = vweird.f32 %v2617
        %vm2626 = vweird.f32 %v2619
        %vm2627 = vmor %vm2625, %vm2626
        %v2628 = vsel %vm2627, %v2619, %v2624
        %v2629 = vrsqrt.pop %v2618
        %v2630 = vmul.f32 %v2629, %v2618
        %v2631 = vmul.f32 %v2630, %v2629
        %v2632 = vmul.f32 0.5, %v2631
        %v2633 = vsub.f32 1.5, %v2632
        %v2634 = vmul.f32 %v2629, %v2633
        %vm2635 = vweird.f32 %v2618
        %vm2636 = vweird.f32 %v2629
        %vm2637 = vmor %vm2635, %vm2636
        %v2638 = vsel %vm2637, %v2629, %v2634
        %v2641 = vperm.slane %v2628, 0
        %v2642 = vperm.slane %v2628, 1
        %v2643 = vperm.slane %v2628, 2
        %v2644 = vperm.slane %v2628, 3
        %v2645 = vperm.slane %v2628, 4
        %v2646 = vperm.slane %v2628, 5
        %v2647 = vperm.slane %v2628, 6
        %v2648 = vperm.slane %v2628, 7
        %v2649 = vperm.slane %v2638, 0
        %v2650 = vperm.slane %v2638, 1
        %v2661 = vmul.f32 %v2558, %v2641
        %v2662 = vmul.f32 %v2559, %v2642
        %v2663 = vmul.f32 %v2560, %v2643
        %v2664 = vmul.f32 %v2561, %v2644
        %v2665 = vmul.f32 %v2562, %v2645
        %v2666 = vmul.f32 %v2563, %v2646
        %v2667 = vmul.f32 %v2564, %v2647
        %v2668 = vmul.f32 %v2565, %v2648
        %v2669 = vmul.f32 %v2566, %v2649
        %v2670 = vmul.f32 %v2567, %v2650
        %v2672 = vperm.slane %v2495, 0
        %v2674 = vrot.slane %v2672, 1
        %v2675 = vrot.slane %v2672, 2
        %v2676 = vrot.slane %v2672, 3
        %v2677 = vrot.slane %v2672, 4
        %v2678 = vrot.slane %v2672, 5
        %v2679 = vrot.slane %v2672, 6
        %v2680 = vrot.slane %v2672, 7
        %v2688 = vmul.f32 %v2661, %v2672
        %v2689 = vmul.f32 %v2662, %v2674
        %v2690 = vmul.f32 %v2663, %v2675
        %v2691 = vmul.f32 %v2664, %v2676
        %v2692 = vmul.f32 %v2665, %v2677
        %v2693 = vmul.f32 %v2666, %v2678
        %v2694 = vmul.f32 %v2667, %v2679
        %v2695 = vmul.f32 %v2668, %v2680
        %v2696 = vmul.f32 %v2669, %v2672
        %v2697 = vmul.f32 %v2670, %v2674
        %v2699 = vperm.slane %v2496, 0
        %v2701 = vrot.slane %v2699, 1
        %v2702 = vrot.slane %v2699, 2
        %v2703 = vrot.slane %v2699, 3
        %v2704 = vrot.slane %v2699, 4
        %v2705 = vrot.slane %v2699, 5
        %v2706 = vrot.slane %v2699, 6
        %v2707 = vrot.slane %v2699, 7
        %v2715 = vadd.f32 %v2688, %v2699
        %v2716 = vadd.f32 %v2689, %v2701
        %v2717 = vadd.f32 %v2690, %v2702
        %v2718 = vadd.f32 %v2691, %v2703
        %v2719 = vadd.f32 %v2692, %v2704
        %v2720 = vadd.f32 %v2693, %v2705
        %v2721 = vadd.f32 %v2694, %v2706
        %v2722 = vadd.f32 %v2695, %v2707
        %v2723 = vadd.f32 %v2696, %v2699
        %v2724 = vadd.f32 %v2697, %v2701
        %2735 = vst [vmem:[#allocation1] ss:$9 sm:$0xff] %v2715
        %s2736 = scalar_lea.vmem [#allocation1], 1
        %2737 = vst [vmem:[%s2736] ss:$9 sm:$0xff] %v2716
        %s2738 = scalar_lea.vmem [#allocation1], 2
        %2739 = vst [vmem:[%s2738] ss:$9 sm:$0xff] %v2717
        %s2740 = scalar_lea.vmem [#allocation1], 3
        %2741 = vst [vmem:[%s2740] ss:$9 sm:$0xff] %v2718
        %s2742 = scalar_lea.vmem [#allocation1], 4
        %2743 = vst [vmem:[%s2742] ss:$9 sm:$0xff] %v2719
        %s2744 = scalar_lea.vmem [#allocation1], 5
        %2745 = vst [vmem:[%s2744] ss:$9 sm:$0xff] %v2720
        %s2746 = scalar_lea.vmem [#allocation1], 6
        %2747 = vst [vmem:[%s2746] ss:$9 sm:$0xff] %v2721
        %s2748 = scalar_lea.vmem [#allocation1], 7
        %2749 = vst [vmem:[%s2748] ss:$9 sm:$0xff] %v2722
        %v2750 = vld [vmem:[#allocation1] sm:$0xff]
        %2751 = vst [vmem:[#allocation1] ss:$9 sm:$0xff] %v2723
        %2752 = vst [vmem:[%s2736] ss:$9 sm:$0xff] %v2724
        %v2753 = vld [vmem:[#allocation1] sm:$0xff]
        %v2756 = vpack.c.bf16 %v2753, %v2750
        %v2757 = vld [vmem:[%s15] sm:$0xf]
        %v2758 = vld [vmem:[%s15 + $0x4] sm:$0xf]
        %v2759 = vld [vmem:[%s15 + $0x8] sm:$0xf]
        %v2760 = vld [vmem:[%s15 + $0xc] sm:$0xf]
        %v2761 = vld [vmem:[%s16] sm:$0x1]
        %v2763 = vperm.slane %v2761, 0
        %v2769 = vunpack.c.l.b16 %v2757
        %v2770 = vunpack.c.l.b16 %v2758
        %v2771 = vunpack.c.l.b16 %v2759
        %v2772 = vunpack.c.l.b16 %v2760
        %v2773 = vpack.c.b16 %v2770, %v2769
        %v2774 = vpack.c.b16 %v2772, %v2771
        %v2778 = vsel %vm843, %v2756, 0
        %2780 = vmatpush.bf16.msra.mxu0 0
        %2781 = vmatpush.bf16.msra.mxu0 0
        %2782 = vmatpush.bf16.msra.mxu0 0
        %2783 = vmatpush.bf16.msra.mxu0 0
        %2784 = vmatpush.bf16.msra.mxu0 0
        %2785 = vmatpush.bf16.msra.mxu0 0
        %2786 = vmatpush.bf16.msra.mxu0 %v2774
        %2787 = vmatpush.bf16.msra.mxu0 %v2773
        %2788 = vmatmul.bf16.gmra.mxu0 %v2778
        %v2789 = vpop.f32.mrf.mxu0
        %v2790 = vadd.f32 %v2763, %v2789
        %v2791 = vpop.f32.mrf.mxu0
        %v2792 = vadd.f32 %v2763, %v2791
        %2793 = vdwg.mxu0
        %v2796 = vrot.slane %v2790, 1
        %v2797 = vrot.slane %v2790, 2
        %v2798 = vrot.slane %v2790, 3
        %v2799 = vrot.slane %v2790, 4
        %v2800 = vrot.slane %v2790, 5
        %v2801 = vrot.slane %v2790, 6
        %v2802 = vrot.slane %v2790, 7
        %v2803 = vrot.slane %v2792, 1
        %2804 = vst [vmem:[#allocation1] ss:$9 sm:$0xff] %v2790
        %s2805 = scalar_lea.vmem [#allocation1], 1
        %2806 = vst [vmem:[%s2805] ss:$9 sm:$0xff] %v2796
        %s2807 = scalar_lea.vmem [#allocation1], 2
        %2808 = vst [vmem:[%s2807] ss:$9 sm:$0xff] %v2797
        %s2809 = scalar_lea.vmem [#allocation1], 3
        %2810 = vst [vmem:[%s2809] ss:$9 sm:$0xff] %v2798
        %s2811 = scalar_lea.vmem [#allocation1], 4
        %2812 = vst [vmem:[%s2811] ss:$9 sm:$0xff] %v2799
        %v2813 = vld [vmem:[#allocation1] sm:$0xff]
        %2814 = vst [vmem:[#allocation1] ss:$9 sm:$0xff] %v2800
        %2815 = vst [vmem:[%s2805] ss:$9 sm:$0xff] %v2801
        %2816 = vst [vmem:[%s2807] ss:$9 sm:$0xff] %v2802
        %2817 = vst [vmem:[%s2809] ss:$9 sm:$0xff] %v2792
        %2818 = vst [vmem:[%s2811] ss:$9 sm:$0xff] %v2803
        %v2819 = vld [vmem:[#allocation1] sm:$0xff]
        %vm2822 = vcmask 258048
        %2823 = vst.msk [vmem:[%s754] sm:$0x1f] %vm2822, %v2813
        %2824 = vst.msk [vmem:[%s754 + $0x8] sm:$0x1f] %vm2822, %v2819
      $region100: #{forward.4} parent=87 // pred_fallthru
        _
      %s2825 = smul.u32 2, %s32
      %p2826 = scmp.lt.s32.totalorder %s2825, 3
      %s2827 = scalar_select %p2826, %s2825, 3
      %s2828 = smul.addr %s2827, 8
      %s2829 = scalar_lea.vmem %s17, %s2828
      // Predicated region
      $region101: #{forward.4} parent=87 // pred_check
        %p2830 = pneg %p480
      $region102: #{forward.4} parent=87 // pred_check_branch
        %2832 = sbr.rel (%p2830) target = $region104
      $region103: #{forward.4} parent=87 // pred_region
        %s2833 = smul.u32 2, %s32
      $region104: #{forward.4} parent=87 // pred_fallthru
        _
    $region88: #{forward.4} parent=5 // pred_fallthru
      _
    %p2834 = scmp.le.s32.totalorder 2, %s23
    // Predicated region
    $region105: #{forward.4} parent=5 // pred_check
      %p2835 = pneg %p2834
    $region106: #{forward.4} parent=5 // pred_check_branch
      %2837 = sbr.rel (%p2835) target = $region108
    $region107: #{forward.4} parent=5 // pred_region
      %s2838 = ssub.s32 %s23, 2
      // Predicated region
      $region109: #{forward.4} parent=107 // pred_check
        %p2839 = pneg %p486
      $region110: #{forward.4} parent=107 // pred_check_branch
        %2841 = sbr.rel (%p2839) target = $region112
      $region111: #{forward.4} parent=107 // pred_region
        %s2842 = smul.u32 2, %s34
        %p2843 = scmp.lt.s32.totalorder %s2842, 3
        %s2844 = scalar_select %p2843, %s2842, 3
        %s2845 = smul.addr %s2844, 8
        %s2846 = scalar_lea.vmem %s17, %s2845
      $region112: #{forward.4} parent=107 // pred_fallthru
        _
    $region108: #{forward.4} parent=5 // pred_fallthru
      _
  $region6: #{forward.4} parent=0 // loop_footer
    %s27 = sadd.s32 1, %s23
  $region7: #{forward.4} parent=0 // loop_footer_branch
    %22 = sbr.rel target = $region3
  $region8: #{forward.4} parent=0 // loop_exit
    _

// kernel: forward.5
$region0: #{forward.5}
  #allocation0 [shape = 'u32[]', space=smem, size = 0x4, offset = 0x4, fixed_abs, tag = 'smem constant byte address 0x4 - core index']
  #allocation1 [shape = 'u32[72,128]{1,0:T(1,128)}', space=vmem, size = 0x9000, scoped, tag = 'internal scratch']
  #allocation2 [shape = 'f32[2,13,32]{2,1,0:T(8,128)}', space=vmem, size = 0x4000, scoped, tag = 'scratch operand']
  #allocation3 [shape = 'f32[2,13,13]{2,1,0:T(8,128)}', space=vmem, size = 0x4000, scoped, tag = 'scratch operand']
  %s0 = inlined_call_operand.vmem [shape: f32[4,13,32], index: 0, kind: input, shape index: {}]
  %s1 = inlined_call_operand.vmem [shape: f32[4,1,13], index: 1, kind: input, shape index: {}]
  %s2 = inlined_call_operand.vmem [shape: f32[2,1,32], index: 2, kind: input, shape index: {}]
  %s3 = inlined_call_operand.vmem [shape: f32[2,1,32], index: 3, kind: input, shape index: {}]
  %s4 = inlined_call_operand.vmem [shape: bf16[2,32,96], index: 4, kind: input, shape index: {}]
  %s5 = inlined_call_operand.vmem [shape: f32[2,1,96], index: 5, kind: input, shape index: {}]
  %s6 = inlined_call_operand.vmem [shape: bf16[2,32,32], index: 6, kind: input, shape index: {}]
  %s7 = inlined_call_operand.vmem [shape: f32[2,1,32], index: 7, kind: input, shape index: {}]
  %s8 = inlined_call_operand.vmem [shape: f32[2,1,32], index: 8, kind: input, shape index: {}]
  %s9 = inlined_call_operand.vmem [shape: f32[2,1,32], index: 9, kind: input, shape index: {}]
  %s10 = inlined_call_operand.vmem [shape: bf16[2,32,128], index: 10, kind: input, shape index: {}]
  %s11 = inlined_call_operand.vmem [shape: f32[2,1,128], index: 11, kind: input, shape index: {}]
  %s12 = inlined_call_operand.vmem [shape: bf16[2,128,32], index: 12, kind: input, shape index: {}]
  %s13 = inlined_call_operand.vmem [shape: f32[2,1,32], index: 13, kind: input, shape index: {}]
  %s14 = inlined_call_operand.vmem [shape: f32[1,32], index: 14, kind: input, shape index: {}]
  %s15 = inlined_call_operand.vmem [shape: f32[1,32], index: 15, kind: input, shape index: {}]
  %s16 = inlined_call_operand.vmem [shape: bf16[32,64], index: 16, kind: input, shape index: {}]
  %s17 = inlined_call_operand.vmem [shape: f32[1,64], index: 17, kind: input, shape index: {}]
  %s18 = inlined_call_operand.vmem [shape: f32[1,64], index: 18, kind: input, shape index: {}]
  %s19 = inlined_call_operand.vmem [shape: f32[1,64], index: 19, kind: input, shape index: {}]
  %s20 = inlined_call_operand.vmem [shape: f32[1,64], index: 20, kind: input, shape index: {}]
  %s21 = inlined_call_operand.vmem [shape: f32[1,64], index: 21, kind: input, shape index: {}]
  %s22 = inlined_call_operand.vmem [shape: bf16[64,128], index: 22, kind: input, shape index: {}]
  %s23 = inlined_call_operand.vmem [shape: f32[1,128], index: 23, kind: input, shape index: {}]
  %s24 = inlined_call_operand.hbm [shape: f32[4,1,128], index: 24, kind: output, shape index: {}]
  %s25 = sld [smem:[#allocation0]]
  $region141: #{forward.5} parent=0
    _
  %s27 = ssub.s32 1, %s25
  %s28 = scalar_select 0, %s27, %s25
  $region1: #{forward.5} parent=0
    #allocation4 [shape = 'u8[2048]{0}', space=vmem, size = 0x800, scoped, tag = 'output window, operand 0']
    #allocation5 [shape = 's32[2]{0}', space=sflag, size = 0x8, scoped, tag = 'scoped memory for forward.5']
    %29 = vsyncpa [#allocation5], 0
    %s30 = scalar_lea.sflag [#allocation5], 1
    %31 = vsyncpa %s30, 0
    loop: start=0, step=1, limit=6
    $region2: #{forward.5} parent=1 // loop_pre_header
      _
    $region3: #{forward.5} parent=1 // loop_header
      %s33 = sphi 0, %s37
      %p34 = scmp.ge.s32.totalorder %s33, 6
      %s40 = sphi 0, %s52
      %s41 = sphi 0, %s48
      %s42 = sphi 0, %s40
      %s43 = sphi 0, %s41
      %s44 = sphi 0, %s42
      %s45 = sphi 0, %s43
      %s55 = sphi 0, %s57
      %s58 = sphi 0, %s55
      %s59 = sphi 0, %s58
      %s75 = sphi 0, %s59
      %s81 = sphi 0, %s83
      %s84 = sphi 0, %s81
      %s85 = sphi 0, %s84
      %s101 = sphi 0, %s85
      %s107 = sphi 0, %s109
      %s110 = sphi 0, %s107
      %s111 = sphi 0, %s110
      %s127 = sphi 0, %s111
      %s133 = sphi 0, %s135
      %s136 = sphi 0, %s133
      %s137 = sphi 0, %s136
      %s153 = sphi 0, %s137
      %s159 = sphi 0, %s161
      %s162 = sphi 0, %s159
      %s163 = sphi 0, %s162
      %s179 = sphi 0, %s163
      %s185 = sphi 0, %s187
      %s188 = sphi 0, %s185
      %s189 = sphi 0, %s188
      %s205 = sphi 0, %s189
      %s211 = sphi 0, %s213
      %s214 = sphi 0, %s211
      %s215 = sphi 0, %s214
      %s231 = sphi 0, %s215
      %s237 = sphi 0, %s239
      %s240 = sphi 0, %s237
      %s241 = sphi 0, %s240
      %s257 = sphi 0, %s241
      %s263 = sphi 0, %s265
      %s266 = sphi 0, %s263
      %s267 = sphi 0, %s266
      %s283 = sphi 0, %s267
      %s289 = sphi 0, %s291
      %s292 = sphi 0, %s289
      %s293 = sphi 0, %s292
      %s309 = sphi 0, %s293
      %s315 = sphi 0, %s317
      %s318 = sphi 0, %s315
      %s319 = sphi 0, %s318
      %s335 = sphi 0, %s319
      %s341 = sphi 0, %s343
      %s344 = sphi 0, %s341
      %s345 = sphi 0, %s344
      %s361 = sphi 0, %s345
      %s367 = sphi 0, %s369
      %s370 = sphi 0, %s367
      %s371 = sphi 0, %s370
      %s387 = sphi 0, %s371
      %s393 = sphi 0, %s395
      %s396 = sphi 0, %s393
      %s397 = sphi 0, %s396
      %s413 = sphi 0, %s397
      %s417 = sphi 0, %s417
      %s419 = sphi 0, %s417
      %s420 = sphi 0, %s419
      %s434 = sphi 0, %s420
      %s438 = sphi 0, %s438
      %s440 = sphi 0, %s438
      %s441 = sphi 0, %s440
      %s455 = sphi 0, %s441
      %s459 = sphi 0, %s459
      %s461 = sphi 0, %s459
      %s462 = sphi 0, %s461
      %s476 = sphi 0, %s462
      %s480 = sphi 0, %s480
      %s482 = sphi 0, %s480
      %s483 = sphi 0, %s482
      %s497 = sphi 0, %s483
      %s501 = sphi 0, %s501
      %s503 = sphi 0, %s501
      %s504 = sphi 0, %s503
      %s518 = sphi 0, %s504
      %s522 = sphi 0, %s522
      %s524 = sphi 0, %s522
      %s525 = sphi 0, %s524
      %s539 = sphi 0, %s525
      %s543 = sphi 0, %s543
      %s545 = sphi 0, %s543
      %s546 = sphi 0, %s545
      %s560 = sphi 0, %s546
      %s564 = sphi 0, %s564
      %s566 = sphi 0, %s564
      %s567 = sphi 0, %s566
      %s581 = sphi 0, %s567
      %s585 = sphi 0, %s585
      %s587 = sphi 0, %s585
      %s588 = sphi 0, %s587
      %s602 = sphi 0, %s588
      %s606 = sphi 0, %s606
      %s608 = sphi 0, %s606
      %s609 = sphi 0, %s608
      %s623 = sphi 0, %s609
      %s629 = sphi 0, %s631
      %s632 = sphi 0, %s629
      %s633 = sphi 0, %s632
      %s649 = sphi 0, %s633
    $region4: #{forward.5} parent=1 // loop_header_branch
      %36 = sbr.rel (%p34) target = $region8
    $region5: #{forward.5} parent=1 // loop_body
      %s38 = ssub.s32 %s33, 1
      %s39 = ssub.s32 %s33, 2
      %s46 = sadd.s32 1, %s41
      %p47 = scmp.ge.s32.totalorder %s46, 2
      %s48 = scalar_select %p47, 0, %s46
      %s49 = sadd.s32 1, %s40
      %s50 = scalar_select %p47, %s49, %s40
      %p51 = scmp.ge.s32.totalorder %s50, 2
      %s52 = scalar_select %p51, 0, %s50
      %s53 = ssub.s32 %s40, %s52
      %p54 = scmp.eq.s32.totalorder %s53, 0
      %s56 = sadd.s32 %s55, 1
      %s57 = scalar_select %p54, %s55, %s56
      %p60 = pneg %p54
      %p61 = scmp.eq.s32.totalorder %s33, 3
      %p62 = por %p60, %p61
      %p63 = scmp.ne.s32.totalorder %s55, %s58
      %p64 = scmp.eq.s32.totalorder %s33, 0
      %p65 = por %p63, %p64
      %p66 = scmp.ne.s32.totalorder %s55, %s58
      %p67 = scmp.eq.s32.totalorder %s38, 3
      %p68 = por %p66, %p67
      %p69 = scmp.ne.s32.totalorder %s58, %s59
      %p70 = scmp.eq.s32.totalorder %s38, 0
      %p71 = por %p69, %p70
      %p72 = scmp.ne.s32.totalorder %s58, %s59
      %p73 = scmp.eq.s32.totalorder %s39, 3
      %p74 = por %p72, %p73
      %p76 = scmp.ne.s32.totalorder %s59, %s75
      %p77 = scmp.eq.s32.totalorder %s39, 0
      %p78 = por %p76, %p77
      %s79 = ssub.s32 %s40, %s52
      %p80 = scmp.eq.s32.totalorder %s79, 0
      %s82 = sadd.s32 %s81, 1
      %s83 = scalar_select %p80, %s81, %s82
      %p86 = pneg %p80
      %p87 = scmp.eq.s32.totalorder %s33, 3
      %p88 = por %p86, %p87
      %p89 = scmp.ne.s32.totalorder %s81, %s84
      %p90 = scmp.eq.s32.totalorder %s33, 0
      %p91 = por %p89, %p90
      %p92 = scmp.ne.s32.totalorder %s81, %s84
      %p93 = scmp.eq.s32.totalorder %s38, 3
      %p94 = por %p92, %p93
      %p95 = scmp.ne.s32.totalorder %s84, %s85
      %p96 = scmp.eq.s32.totalorder %s38, 0
      %p97 = por %p95, %p96
      %p98 = scmp.ne.s32.totalorder %s84, %s85
      %p99 = scmp.eq.s32.totalorder %s39, 3
      %p100 = por %p98, %p99
      %p102 = scmp.ne.s32.totalorder %s85, %s101
      %p103 = scmp.eq.s32.totalorder %s39, 0
      %p104 = por %p102, %p103
      %s105 = ssub.s32 %s41, %s48
      %p106 = scmp.eq.s32.totalorder %s105, 0
      %s108 = sadd.s32 %s107, 1
      %s109 = scalar_select %p106, %s107, %s108
      %p112 = pneg %p106
      %p113 = scmp.eq.s32.totalorder %s33, 3
      %p114 = por %p112, %p113
      %p115 = scmp.ne.s32.totalorder %s107, %s110
      %p116 = scmp.eq.s32.totalorder %s33, 0
      %p117 = por %p115, %p116
      %p118 = scmp.ne.s32.totalorder %s107, %s110
      %p119 = scmp.eq.s32.totalorder %s38, 3
      %p120 = por %p118, %p119
      %p121 = scmp.ne.s32.totalorder %s110, %s111
      %p122 = scmp.eq.s32.totalorder %s38, 0
      %p123 = por %p121, %p122
      %p124 = scmp.ne.s32.totalorder %s110, %s111
      %p125 = scmp.eq.s32.totalorder %s39, 3
      %p126 = por %p124, %p125
      %p128 = scmp.ne.s32.totalorder %s111, %s127
      %p129 = scmp.eq.s32.totalorder %s39, 0
      %p130 = por %p128, %p129
      %s131 = ssub.s32 %s41, %s48
      %p132 = scmp.eq.s32.totalorder %s131, 0
      %s134 = sadd.s32 %s133, 1
      %s135 = scalar_select %p132, %s133, %s134
      %p138 = pneg %p132
      %p139 = scmp.eq.s32.totalorder %s33, 3
      %p140 = por %p138, %p139
      %p141 = scmp.ne.s32.totalorder %s133, %s136
      %p142 = scmp.eq.s32.totalorder %s33, 0
      %p143 = por %p141, %p142
      %p144 = scmp.ne.s32.totalorder %s133, %s136
      %p145 = scmp.eq.s32.totalorder %s38, 3
      %p146 = por %p144, %p145
      %p147 = scmp.ne.s32.totalorder %s136, %s137
      %p148 = scmp.eq.s32.totalorder %s38, 0
      %p149 = por %p147, %p148
      %p150 = scmp.ne.s32.totalorder %s136, %s137
      %p151 = scmp.eq.s32.totalorder %s39, 3
      %p152 = por %p150, %p151
      %p154 = scmp.ne.s32.totalorder %s137, %s153
      %p155 = scmp.eq.s32.totalorder %s39, 0
      %p156 = por %p154, %p155
      %s157 = ssub.s32 %s41, %s48
      %p158 = scmp.eq.s32.totalorder %s157, 0
      %s160 = sadd.s32 %s159, 1
      %s161 = scalar_select %p158, %s159, %s160
      %p164 = pneg %p158
      %p165 = scmp.eq.s32.totalorder %s33, 3
      %p166 = por %p164, %p165
      %p167 = scmp.ne.s32.totalorder %s159, %s162
      %p168 = scmp.eq.s32.totalorder %s33, 0
      %p169 = por %p167, %p168
      %p170 = scmp.ne.s32.totalorder %s159, %s162
      %p171 = scmp.eq.s32.totalorder %s38, 3
      %p172 = por %p170, %p171
      %p173 = scmp.ne.s32.totalorder %s162, %s163
      %p174 = scmp.eq.s32.totalorder %s38, 0
      %p175 = por %p173, %p174
      %p176 = scmp.ne.s32.totalorder %s162, %s163
      %p177 = scmp.eq.s32.totalorder %s39, 3
      %p178 = por %p176, %p177
      %p180 = scmp.ne.s32.totalorder %s163, %s179
      %p181 = scmp.eq.s32.totalorder %s39, 0
      %p182 = por %p180, %p181
      %s183 = ssub.s32 %s41, %s48
      %p184 = scmp.eq.s32.totalorder %s183, 0
      %s186 = sadd.s32 %s185, 1
      %s187 = scalar_select %p184, %s185, %s186
      %p190 = pneg %p184
      %p191 = scmp.eq.s32.totalorder %s33, 3
      %p192 = por %p190, %p191
      %p193 = scmp.ne.s32.totalorder %s185, %s188
      %p194 = scmp.eq.s32.totalorder %s33, 0
      %p195 = por %p193, %p194
      %p196 = scmp.ne.s32.totalorder %s185, %s188
      %p197 = scmp.eq.s32.totalorder %s38, 3
      %p198 = por %p196, %p197
      %p199 = scmp.ne.s32.totalorder %s188, %s189
      %p200 = scmp.eq.s32.totalorder %s38, 0
      %p201 = por %p199, %p200
      %p202 = scmp.ne.s32.totalorder %s188, %s189
      %p203 = scmp.eq.s32.totalorder %s39, 3
      %p204 = por %p202, %p203
      %p206 = scmp.ne.s32.totalorder %s189, %s205
      %p207 = scmp.eq.s32.totalorder %s39, 0
      %p208 = por %p206, %p207
      %s209 = ssub.s32 %s41, %s48
      %p210 = scmp.eq.s32.totalorder %s209, 0
      %s212 = sadd.s32 %s211, 1
      %s213 = scalar_select %p210, %s211, %s212
      %p216 = pneg %p210
      %p217 = scmp.eq.s32.totalorder %s33, 3
      %p218 = por %p216, %p217
      %p219 = scmp.ne.s32.totalorder %s211, %s214
      %p220 = scmp.eq.s32.totalorder %s33, 0
      %p221 = por %p219, %p220
      %p222 = scmp.ne.s32.totalorder %s211, %s214
      %p223 = scmp.eq.s32.totalorder %s38, 3
      %p224 = por %p222, %p223
      %p225 = scmp.ne.s32.totalorder %s214, %s215
      %p226 = scmp.eq.s32.totalorder %s38, 0
      %p227 = por %p225, %p226
      %p228 = scmp.ne.s32.totalorder %s214, %s215
      %p229 = scmp.eq.s32.totalorder %s39, 3
      %p230 = por %p228, %p229
      %p232 = scmp.ne.s32.totalorder %s215, %s231
      %p233 = scmp.eq.s32.totalorder %s39, 0
      %p234 = por %p232, %p233
      %s235 = ssub.s32 %s41, %s48
      %p236 = scmp.eq.s32.totalorder %s235, 0
      %s238 = sadd.s32 %s237, 1
      %s239 = scalar_select %p236, %s237, %s238
      %p242 = pneg %p236
      %p243 = scmp.eq.s32.totalorder %s33, 3
      %p244 = por %p242, %p243
      %p245 = scmp.ne.s32.totalorder %s237, %s240
      %p246 = scmp.eq.s32.totalorder %s33, 0
      %p247 = por %p245, %p246
      %p248 = scmp.ne.s32.totalorder %s237, %s240
      %p249 = scmp.eq.s32.totalorder %s38, 3
      %p250 = por %p248, %p249
      %p251 = scmp.ne.s32.totalorder %s240, %s241
      %p252 = scmp.eq.s32.totalorder %s38, 0
      %p253 = por %p251, %p252
      %p254 = scmp.ne.s32.totalorder %s240, %s241
      %p255 = scmp.eq.s32.totalorder %s39, 3
      %p256 = por %p254, %p255
      %p258 = scmp.ne.s32.totalorder %s241, %s257
      %p259 = scmp.eq.s32.totalorder %s39, 0
      %p260 = por %p258, %p259
      %s261 = ssub.s32 %s41, %s48
      %p262 = scmp.eq.s32.totalorder %s261, 0
      %s264 = sadd.s32 %s263, 1
      %s265 = scalar_select %p262, %s263, %s264
      %p268 = pneg %p262
      %p269 = scmp.eq.s32.totalorder %s33, 3
      %p270 = por %p268, %p269
      %p271 = scmp.ne.s32.totalorder %s263, %s266
      %p272 = scmp.eq.s32.totalorder %s33, 0
      %p273 = por %p271, %p272
      %p274 = scmp.ne.s32.totalorder %s263, %s266
      %p275 = scmp.eq.s32.totalorder %s38, 3
      %p276 = por %p274, %p275
      %p277 = scmp.ne.s32.totalorder %s266, %s267
      %p278 = scmp.eq.s32.totalorder %s38, 0
      %p279 = por %p277, %p278
      %p280 = scmp.ne.s32.totalorder %s266, %s267
      %p281 = scmp.eq.s32.totalorder %s39, 3
      %p282 = por %p280, %p281
      %p284 = scmp.ne.s32.totalorder %s267, %s283
      %p285 = scmp.eq.s32.totalorder %s39, 0
      %p286 = por %p284, %p285
      %s287 = ssub.s32 %s41, %s48
      %p288 = scmp.eq.s32.totalorder %s287, 0
      %s290 = sadd.s32 %s289, 1
      %s291 = scalar_select %p288, %s289, %s290
      %p294 = pneg %p288
      %p295 = scmp.eq.s32.totalorder %s33, 3
      %p296 = por %p294, %p295
      %p297 = scmp.ne.s32.totalorder %s289, %s292
      %p298 = scmp.eq.s32.totalorder %s33, 0
      %p299 = por %p297, %p298
      %p300 = scmp.ne.s32.totalorder %s289, %s292
      %p301 = scmp.eq.s32.totalorder %s38, 3
      %p302 = por %p300, %p301
      %p303 = scmp.ne.s32.totalorder %s292, %s293
      %p304 = scmp.eq.s32.totalorder %s38, 0
      %p305 = por %p303, %p304
      %p306 = scmp.ne.s32.totalorder %s292, %s293
      %p307 = scmp.eq.s32.totalorder %s39, 3
      %p308 = por %p306, %p307
      %p310 = scmp.ne.s32.totalorder %s293, %s309
      %p311 = scmp.eq.s32.totalorder %s39, 0
      %p312 = por %p310, %p311
      %s313 = ssub.s32 %s41, %s48
      %p314 = scmp.eq.s32.totalorder %s313, 0
      %s316 = sadd.s32 %s315, 1
      %s317 = scalar_select %p314, %s315, %s316
      %p320 = pneg %p314
      %p321 = scmp.eq.s32.totalorder %s33, 3
      %p322 = por %p320, %p321
      %p323 = scmp.ne.s32.totalorder %s315, %s318
      %p324 = scmp.eq.s32.totalorder %s33, 0
      %p325 = por %p323, %p324
      %p326 = scmp.ne.s32.totalorder %s315, %s318
      %p327 = scmp.eq.s32.totalorder %s38, 3
      %p328 = por %p326, %p327
      %p329 = scmp.ne.s32.totalorder %s318, %s319
      %p330 = scmp.eq.s32.totalorder %s38, 0
      %p331 = por %p329, %p330
      %p332 = scmp.ne.s32.totalorder %s318, %s319
      %p333 = scmp.eq.s32.totalorder %s39, 3
      %p334 = por %p332, %p333
      %p336 = scmp.ne.s32.totalorder %s319, %s335
      %p337 = scmp.eq.s32.totalorder %s39, 0
      %p338 = por %p336, %p337
      %s339 = ssub.s32 %s41, %s48
      %p340 = scmp.eq.s32.totalorder %s339, 0
      %s342 = sadd.s32 %s341, 1
      %s343 = scalar_select %p340, %s341, %s342
      %p346 = pneg %p340
      %p347 = scmp.eq.s32.totalorder %s33, 3
      %p348 = por %p346, %p347
      %p349 = scmp.ne.s32.totalorder %s341, %s344
      %p350 = scmp.eq.s32.totalorder %s33, 0
      %p351 = por %p349, %p350
      %p352 = scmp.ne.s32.totalorder %s341, %s344
      %p353 = scmp.eq.s32.totalorder %s38, 3
      %p354 = por %p352, %p353
      %p355 = scmp.ne.s32.totalorder %s344, %s345
      %p356 = scmp.eq.s32.totalorder %s38, 0
      %p357 = por %p355, %p356
      %p358 = scmp.ne.s32.totalorder %s344, %s345
      %p359 = scmp.eq.s32.totalorder %s39, 3
      %p360 = por %p358, %p359
      %p362 = scmp.ne.s32.totalorder %s345, %s361
      %p363 = scmp.eq.s32.totalorder %s39, 0
      %p364 = por %p362, %p363
      %s365 = ssub.s32 %s41, %s48
      %p366 = scmp.eq.s32.totalorder %s365, 0
      %s368 = sadd.s32 %s367, 1
      %s369 = scalar_select %p366, %s367, %s368
      %p372 = pneg %p366
      %p373 = scmp.eq.s32.totalorder %s33, 3
      %p374 = por %p372, %p373
      %p375 = scmp.ne.s32.totalorder %s367, %s370
      %p376 = scmp.eq.s32.totalorder %s33, 0
      %p377 = por %p375, %p376
      %p378 = scmp.ne.s32.totalorder %s367, %s370
      %p379 = scmp.eq.s32.totalorder %s38, 3
      %p380 = por %p378, %p379
      %p381 = scmp.ne.s32.totalorder %s370, %s371
      %p382 = scmp.eq.s32.totalorder %s38, 0
      %p383 = por %p381, %p382
      %p384 = scmp.ne.s32.totalorder %s370, %s371
      %p385 = scmp.eq.s32.totalorder %s39, 3
      %p386 = por %p384, %p385
      %p388 = scmp.ne.s32.totalorder %s371, %s387
      %p389 = scmp.eq.s32.totalorder %s39, 0
      %p390 = por %p388, %p389
      %s391 = ssub.s32 %s41, %s48
      %p392 = scmp.eq.s32.totalorder %s391, 0
      %s394 = sadd.s32 %s393, 1
      %s395 = scalar_select %p392, %s393, %s394
      %p398 = pneg %p392
      %p399 = scmp.eq.s32.totalorder %s33, 3
      %p400 = por %p398, %p399
      %p401 = scmp.ne.s32.totalorder %s393, %s396
      %p402 = scmp.eq.s32.totalorder %s33, 0
      %p403 = por %p401, %p402
      %p404 = scmp.ne.s32.totalorder %s393, %s396
      %p405 = scmp.eq.s32.totalorder %s38, 3
      %p406 = por %p404, %p405
      %p407 = scmp.ne.s32.totalorder %s396, %s397
      %p408 = scmp.eq.s32.totalorder %s38, 0
      %p409 = por %p407, %p408
      %p410 = scmp.ne.s32.totalorder %s396, %s397
      %p411 = scmp.eq.s32.totalorder %s39, 3
      %p412 = por %p410, %p411
      %p414 = scmp.ne.s32.totalorder %s397, %s413
      %p415 = scmp.eq.s32.totalorder %s39, 0
      %p416 = por %p414, %p415
      %s418 = sadd.s32 %s417, 1
      %p421 = scmp.eq.s32.totalorder %s33, 3
      %p422 = scmp.ne.s32.totalorder %s417, %s419
      %p423 = scmp.eq.s32.totalorder %s33, 0
      %p424 = por %p422, %p423
      %p425 = scmp.ne.s32.totalorder %s417, %s419
      %p426 = scmp.eq.s32.totalorder %s38, 3
      %p427 = por %p425, %p426
      %p428 = scmp.ne.s32.totalorder %s419, %s420
      %p429 = scmp.eq.s32.totalorder %s38, 0
      %p430 = por %p428, %p429
      %p431 = scmp.ne.s32.totalorder %s419, %s420
      %p432 = scmp.eq.s32.totalorder %s39, 3
      %p433 = por %p431, %p432
      %p435 = scmp.ne.s32.totalorder %s420, %s434
      %p436 = scmp.eq.s32.totalorder %s39, 0
      %p437 = por %p435, %p436
      %s439 = sadd.s32 %s438, 1
      %p442 = scmp.eq.s32.totalorder %s33, 3
      %p443 = scmp.ne.s32.totalorder %s438, %s440
      %p444 = scmp.eq.s32.totalorder %s33, 0
      %p445 = por %p443, %p444
      %p446 = scmp.ne.s32.totalorder %s438, %s440
      %p447 = scmp.eq.s32.totalorder %s38, 3
      %p448 = por %p446, %p447
      %p449 = scmp.ne.s32.totalorder %s440, %s441
      %p450 = scmp.eq.s32.totalorder %s38, 0
      %p451 = por %p449, %p450
      %p452 = scmp.ne.s32.totalorder %s440, %s441
      %p453 = scmp.eq.s32.totalorder %s39, 3
      %p454 = por %p452, %p453
      %p456 = scmp.ne.s32.totalorder %s441, %s455
      %p457 = scmp.eq.s32.totalorder %s39, 0
      %p458 = por %p456, %p457
      %s460 = sadd.s32 %s459, 1
      %p463 = scmp.eq.s32.totalorder %s33, 3
      %p464 = scmp.ne.s32.totalorder %s459, %s461
      %p465 = scmp.eq.s32.totalorder %s33, 0
      %p466 = por %p464, %p465
      %p467 = scmp.ne.s32.totalorder %s459, %s461
      %p468 = scmp.eq.s32.totalorder %s38, 3
      %p469 = por %p467, %p468
      %p470 = scmp.ne.s32.totalorder %s461, %s462
      %p471 = scmp.eq.s32.totalorder %s38, 0
      %p472 = por %p470, %p471
      %p473 = scmp.ne.s32.totalorder %s461, %s462
      %p474 = scmp.eq.s32.totalorder %s39, 3
      %p475 = por %p473, %p474
      %p477 = scmp.ne.s32.totalorder %s462, %s476
      %p478 = scmp.eq.s32.totalorder %s39, 0
      %p479 = por %p477, %p478
      %s481 = sadd.s32 %s480, 1
      %p484 = scmp.eq.s32.totalorder %s33, 3
      %p485 = scmp.ne.s32.totalorder %s480, %s482
      %p486 = scmp.eq.s32.totalorder %s33, 0
      %p487 = por %p485, %p486
      %p488 = scmp.ne.s32.totalorder %s480, %s482
      %p489 = scmp.eq.s32.totalorder %s38, 3
      %p490 = por %p488, %p489
      %p491 = scmp.ne.s32.totalorder %s482, %s483
      %p492 = scmp.eq.s32.totalorder %s38, 0
      %p493 = por %p491, %p492
      %p494 = scmp.ne.s32.totalorder %s482, %s483
      %p495 = scmp.eq.s32.totalorder %s39, 3
      %p496 = por %p494, %p495
      %p498 = scmp.ne.s32.totalorder %s483, %s497
      %p499 = scmp.eq.s32.totalorder %s39, 0
      %p500 = por %p498, %p499
      %s502 = sadd.s32 %s501, 1
      %p505 = scmp.eq.s32.totalorder %s33, 3
      %p506 = scmp.ne.s32.totalorder %s501, %s503
      %p507 = scmp.eq.s32.totalorder %s33, 0
      %p508 = por %p506, %p507
      %p509 = scmp.ne.s32.totalorder %s501, %s503
      %p510 = scmp.eq.s32.totalorder %s38, 3
      %p511 = por %p509, %p510
      %p512 = scmp.ne.s32.totalorder %s503, %s504
      %p513 = scmp.eq.s32.totalorder %s38, 0
      %p514 = por %p512, %p513
      %p515 = scmp.ne.s32.totalorder %s503, %s504
      %p516 = scmp.eq.s32.totalorder %s39, 3
      %p517 = por %p515, %p516
      %p519 = scmp.ne.s32.totalorder %s504, %s518
      %p520 = scmp.eq.s32.totalorder %s39, 0
      %p521 = por %p519, %p520
      %s523 = sadd.s32 %s522, 1
      %p526 = scmp.eq.s32.totalorder %s33, 3
      %p527 = scmp.ne.s32.totalorder %s522, %s524
      %p528 = scmp.eq.s32.totalorder %s33, 0
      %p529 = por %p527, %p528
      %p530 = scmp.ne.s32.totalorder %s522, %s524
      %p531 = scmp.eq.s32.totalorder %s38, 3
      %p532 = por %p530, %p531
      %p533 = scmp.ne.s32.totalorder %s524, %s525
      %p534 = scmp.eq.s32.totalorder %s38, 0
      %p535 = por %p533, %p534
      %p536 = scmp.ne.s32.totalorder %s524, %s525
      %p537 = scmp.eq.s32.totalorder %s39, 3
      %p538 = por %p536, %p537
      %p540 = scmp.ne.s32.totalorder %s525, %s539
      %p541 = scmp.eq.s32.totalorder %s39, 0
      %p542 = por %p540, %p541
      %s544 = sadd.s32 %s543, 1
      %p547 = scmp.eq.s32.totalorder %s33, 3
      %p548 = scmp.ne.s32.totalorder %s543, %s545
      %p549 = scmp.eq.s32.totalorder %s33, 0
      %p550 = por %p548, %p549
      %p551 = scmp.ne.s32.totalorder %s543, %s545
      %p552 = scmp.eq.s32.totalorder %s38, 3
      %p553 = por %p551, %p552
      %p554 = scmp.ne.s32.totalorder %s545, %s546
      %p555 = scmp.eq.s32.totalorder %s38, 0
      %p556 = por %p554, %p555
      %p557 = scmp.ne.s32.totalorder %s545, %s546
      %p558 = scmp.eq.s32.totalorder %s39, 3
      %p559 = por %p557, %p558
      %p561 = scmp.ne.s32.totalorder %s546, %s560
      %p562 = scmp.eq.s32.totalorder %s39, 0
      %p563 = por %p561, %p562
      %s565 = sadd.s32 %s564, 1
      %p568 = scmp.eq.s32.totalorder %s33, 3
      %p569 = scmp.ne.s32.totalorder %s564, %s566
      %p570 = scmp.eq.s32.totalorder %s33, 0
      %p571 = por %p569, %p570
      %p572 = scmp.ne.s32.totalorder %s564, %s566
      %p573 = scmp.eq.s32.totalorder %s38, 3
      %p574 = por %p572, %p573
      %p575 = scmp.ne.s32.totalorder %s566, %s567
      %p576 = scmp.eq.s32.totalorder %s38, 0
      %p577 = por %p575, %p576
      %p578 = scmp.ne.s32.totalorder %s566, %s567
      %p579 = scmp.eq.s32.totalorder %s39, 3
      %p580 = por %p578, %p579
      %p582 = scmp.ne.s32.totalorder %s567, %s581
      %p583 = scmp.eq.s32.totalorder %s39, 0
      %p584 = por %p582, %p583
      %s586 = sadd.s32 %s585, 1
      %p589 = scmp.eq.s32.totalorder %s33, 3
      %p590 = scmp.ne.s32.totalorder %s585, %s587
      %p591 = scmp.eq.s32.totalorder %s33, 0
      %p592 = por %p590, %p591
      %p593 = scmp.ne.s32.totalorder %s585, %s587
      %p594 = scmp.eq.s32.totalorder %s38, 3
      %p595 = por %p593, %p594
      %p596 = scmp.ne.s32.totalorder %s587, %s588
      %p597 = scmp.eq.s32.totalorder %s38, 0
      %p598 = por %p596, %p597
      %p599 = scmp.ne.s32.totalorder %s587, %s588
      %p600 = scmp.eq.s32.totalorder %s39, 3
      %p601 = por %p599, %p600
      %p603 = scmp.ne.s32.totalorder %s588, %s602
      %p604 = scmp.eq.s32.totalorder %s39, 0
      %p605 = por %p603, %p604
      %s607 = sadd.s32 %s606, 1
      %p610 = scmp.eq.s32.totalorder %s33, 3
      %p611 = scmp.ne.s32.totalorder %s606, %s608
      %p612 = scmp.eq.s32.totalorder %s33, 0
      %p613 = por %p611, %p612
      %p614 = scmp.ne.s32.totalorder %s606, %s608
      %p615 = scmp.eq.s32.totalorder %s38, 3
      %p616 = por %p614, %p615
      %p617 = scmp.ne.s32.totalorder %s608, %s609
      %p618 = scmp.eq.s32.totalorder %s38, 0
      %p619 = por %p617, %p618
      %p620 = scmp.ne.s32.totalorder %s608, %s609
      %p621 = scmp.eq.s32.totalorder %s39, 3
      %p622 = por %p620, %p621
      %p624 = scmp.ne.s32.totalorder %s609, %s623
      %p625 = scmp.eq.s32.totalorder %s39, 0
      %p626 = por %p624, %p625
      %s627 = ssub.s32 %s40, %s52
      %p628 = scmp.eq.s32.totalorder %s627, 0
      %s630 = sadd.s32 %s629, 1
      %s631 = scalar_select %p628, %s629, %s630
      %p634 = pneg %p628
      %p635 = scmp.eq.s32.totalorder %s33, 3
      %p636 = por %p634, %p635
      %p637 = scmp.ne.s32.totalorder %s629, %s632
      %p638 = scmp.eq.s32.totalorder %s33, 0
      %p639 = por %p637, %p638
      %p640 = scmp.ne.s32.totalorder %s629, %s632
      %p641 = scmp.eq.s32.totalorder %s38, 3
      %p642 = por %p640, %p641
      %p643 = scmp.ne.s32.totalorder %s632, %s633
      %p644 = scmp.eq.s32.totalorder %s38, 0
      %p645 = por %p643, %p644
      %p646 = scmp.ne.s32.totalorder %s632, %s633
      %p647 = scmp.eq.s32.totalorder %s39, 3
      %p648 = por %p646, %p647
      %p650 = scmp.ne.s32.totalorder %s633, %s649
      %p651 = scmp.eq.s32.totalorder %s39, 0
      %p652 = por %p650, %p651
      %p653 = scmp.le.s32.totalorder 1, %s33
      %p654 = scmp.lt.s32.totalorder %s33, 5
      %p655 = pnand %p653, %p654
      %p656 = pneg %p655
      // Predicated region
      $region9: #{forward.5} parent=5 // pred_check
        _
      $region10: #{forward.5} parent=5 // pred_check_branch
        %658 = sbr.rel (%p655) target = $region12
      $region11: #{forward.5} parent=5 // pred_region
        %s659 = ssub.s32 %s33, 1
        // Predicated region
        $region13: #{forward.5} parent=11 // pred_check
          %p660 = pneg %p430
        $region14: #{forward.5} parent=11 // pred_check_branch
          %662 = sbr.rel (%p660) target = $region16
        $region15: #{forward.5} parent=11 // pred_region
          _
        $region16: #{forward.5} parent=11 // pred_fallthru
          _
        // Predicated region
        $region17: #{forward.5} parent=11 // pred_check
          %p663 = pneg %p451
        $region18: #{forward.5} parent=11 // pred_check_branch
          %665 = sbr.rel (%p663) target = $region20
        $region19: #{forward.5} parent=11 // pred_region
          _
        $region20: #{forward.5} parent=11 // pred_fallthru
          _
        // Predicated region
        $region21: #{forward.5} parent=11 // pred_check
          %p666 = pneg %p472
        $region22: #{forward.5} parent=11 // pred_check_branch
          %668 = sbr.rel (%p666) target = $region24
        $region23: #{forward.5} parent=11 // pred_region
          _
        $region24: #{forward.5} parent=11 // pred_fallthru
          _
        // Predicated region
        $region25: #{forward.5} parent=11 // pred_check
          %p669 = pneg %p493
        $region26: #{forward.5} parent=11 // pred_check_branch
          %671 = sbr.rel (%p669) target = $region28
        $region27: #{forward.5} parent=11 // pred_region
          _
        $region28: #{forward.5} parent=11 // pred_fallthru
          _
        // Predicated region
        $region29: #{forward.5} parent=11 // pred_check
          %p672 = pneg %p514
        $region30: #{forward.5} parent=11 // pred_check_branch
          %674 = sbr.rel (%p672) target = $region32
        $region31: #{forward.5} parent=11 // pred_region
          _
        $region32: #{forward.5} parent=11 // pred_fallthru
          _
        // Predicated region
        $region33: #{forward.5} parent=11 // pred_check
          %p675 = pneg %p535
        $region34: #{forward.5} parent=11 // pred_check_branch
          %677 = sbr.rel (%p675) target = $region36
        $region35: #{forward.5} parent=11 // pred_region
          _
        $region36: #{forward.5} parent=11 // pred_fallthru
          _
        // Predicated region
        $region37: #{forward.5} parent=11 // pred_check
          %p678 = pneg %p556
        $region38: #{forward.5} parent=11 // pred_check_branch
          %680 = sbr.rel (%p678) target = $region40
        $region39: #{forward.5} parent=11 // pred_region
          _
        $region40: #{forward.5} parent=11 // pred_fallthru
          _
        // Predicated region
        $region41: #{forward.5} parent=11 // pred_check
          %p681 = pneg %p577
        $region42: #{forward.5} parent=11 // pred_check_branch
          %683 = sbr.rel (%p681) target = $region44
        $region43: #{forward.5} parent=11 // pred_region
          _
        $region44: #{forward.5} parent=11 // pred_fallthru
          _
        // Predicated region
        $region45: #{forward.5} parent=11 // pred_check
          %p684 = pneg %p598
        $region46: #{forward.5} parent=11 // pred_check_branch
          %686 = sbr.rel (%p684) target = $region48
        $region47: #{forward.5} parent=11 // pred_region
          _
        $region48: #{forward.5} parent=11 // pred_fallthru
          _
        // Predicated region
        $region49: #{forward.5} parent=11 // pred_check
          %p687 = pneg %p619
        $region50: #{forward.5} parent=11 // pred_check_branch
          %689 = sbr.rel (%p687) target = $region52
        $region51: #{forward.5} parent=11 // pred_region
          _
        $region52: #{forward.5} parent=11 // pred_fallthru
          _
      $region12: #{forward.5} parent=5 // pred_fallthru
        _
      %p690 = scmp.lt.s32.totalorder %s33, 4
      // Predicated region
      $region53: #{forward.5} parent=5 // pred_check
        %p691 = pneg %p690
      $region54: #{forward.5} parent=5 // pred_check_branch
        %693 = sbr.rel (%p691) target = $region56
      $region55: #{forward.5} parent=5 // pred_region
        // Predicated region
        $region57: #{forward.5} parent=55 // pred_check
          %p694 = pneg %p65
        $region58: #{forward.5} parent=55 // pred_check_branch
          %696 = sbr.rel (%p694) target = $region60
        $region59: #{forward.5} parent=55 // pred_region
          %s697 = smul.u32 2, %s40
          %p698 = scmp.lt.s32.totalorder %s697, 3
          %s699 = scalar_select %p698, %s697, 3
          %s700 = smul.addr %s699, 2
          %s701 = smul.addr %s700, 8
          %s702 = scalar_lea.vmem %s0, %s701
          %s703 = smul.u32 2, %s40
        $region60: #{forward.5} parent=55 // pred_fallthru
          _
        // Predicated region
        $region61: #{forward.5} parent=55 // pred_check
          %p704 = pneg %p91
        $region62: #{forward.5} parent=55 // pred_check_branch
          %706 = sbr.rel (%p704) target = $region64
        $region63: #{forward.5} parent=55 // pred_region
          %s707 = smul.u32 2, %s40
          %p708 = scmp.lt.s32.totalorder %s707, 3
          %s709 = scalar_select %p708, %s707, 3
          %s710 = scalar_lea.vmem %s1, %s709
          %s711 = smul.u32 2, %s40
        $region64: #{forward.5} parent=55 // pred_fallthru
          _
        // Predicated region
        $region65: #{forward.5} parent=55 // pred_check
          %p712 = pneg %p117
        $region66: #{forward.5} parent=55 // pred_check_branch
          %714 = sbr.rel (%p712) target = $region68
        $region67: #{forward.5} parent=55 // pred_region
          %p715 = scmp.lt.s32.totalorder %s41, 1
          %s716 = scalar_select %p715, %s41, 1
          %s717 = scalar_lea.vmem %s2, %s716
        $region68: #{forward.5} parent=55 // pred_fallthru
          _
        // Predicated region
        $region69: #{forward.5} parent=55 // pred_check
          %p718 = pneg %p143
        $region70: #{forward.5} parent=55 // pred_check_branch
          %720 = sbr.rel (%p718) target = $region72
        $region71: #{forward.5} parent=55 // pred_region
          %p721 = scmp.lt.s32.totalorder %s41, 1
          %s722 = scalar_select %p721, %s41, 1
          %s723 = scalar_lea.vmem %s3, %s722
        $region72: #{forward.5} parent=55 // pred_fallthru
          _
        // Predicated region
        $region73: #{forward.5} parent=55 // pred_check
          %p724 = pneg %p169
        $region74: #{forward.5} parent=55 // pred_check_branch
          %726 = sbr.rel (%p724) target = $region76
        $region75: #{forward.5} parent=55 // pred_region
          %p727 = scmp.lt.s32.totalorder %s41, 1
          %s728 = scalar_select %p727, %s41, 1
          %s729 = smul.addr %s728, 4
          %s730 = smul.addr %s729, 4
          %s731 = scalar_lea.vmem %s4, %s730
        $region76: #{forward.5} parent=55 // pred_fallthru
          _
        // Predicated region
        $region77: #{forward.5} parent=55 // pred_check
          %p732 = pneg %p195
        $region78: #{forward.5} parent=55 // pred_check_branch
          %734 = sbr.rel (%p732) target = $region80
        $region79: #{forward.5} parent=55 // pred_region
          %p735 = scmp.lt.s32.totalorder %s41, 1
          %s736 = scalar_select %p735, %s41, 1
          %s737 = scalar_lea.vmem %s5, %s736
        $region80: #{forward.5} parent=55 // pred_fallthru
          _
        // Predicated region
        $region81: #{forward.5} parent=55 // pred_check
          %p738 = pneg %p221
        $region82: #{forward.5} parent=55 // pred_check_branch
          %740 = sbr.rel (%p738) target = $region84
        $region83: #{forward.5} parent=55 // pred_region
          %p741 = scmp.lt.s32.totalorder %s41, 1
          %s742 = scalar_select %p741, %s41, 1
          %s743 = smul.addr %s742, 4
          %s744 = smul.addr %s743, 4
          %s745 = scalar_lea.vmem %s6, %s744
        $region84: #{forward.5} parent=55 // pred_fallthru
          _
        // Predicated region
        $region85: #{forward.5} parent=55 // pred_check
          %p746 = pneg %p247
        $region86: #{forward.5} parent=55 // pred_check_branch
          %748 = sbr.rel (%p746) target = $region88
        $region87: #{forward.5} parent=55 // pred_region
          %p749 = scmp.lt.s32.totalorder %s41, 1
          %s750 = scalar_select %p749, %s41, 1
          %s751 = scalar_lea.vmem %s7, %s750
        $region88: #{forward.5} parent=55 // pred_fallthru
          _
        // Predicated region
        $region89: #{forward.5} parent=55 // pred_check
          %p752 = pneg %p273
        $region90: #{forward.5} parent=55 // pred_check_branch
          %754 = sbr.rel (%p752) target = $region92
        $region91: #{forward.5} parent=55 // pred_region
          %p755 = scmp.lt.s32.totalorder %s41, 1
          %s756 = scalar_select %p755, %s41, 1
          %s757 = scalar_lea.vmem %s8, %s756
        $region92: #{forward.5} parent=55 // pred_fallthru
          _
        // Predicated region
        $region93: #{forward.5} parent=55 // pred_check
          %p758 = pneg %p299
        $region94: #{forward.5} parent=55 // pred_check_branch
          %760 = sbr.rel (%p758) target = $region96
        $region95: #{forward.5} parent=55 // pred_region
          %p761 = scmp.lt.s32.totalorder %s41, 1
          %s762 = scalar_select %p761, %s41, 1
          %s763 = scalar_lea.vmem %s9, %s762
        $region96: #{forward.5} parent=55 // pred_fallthru
          _
        // Predicated region
        $region97: #{forward.5} parent=55 // pred_check
          %p764 = pneg %p325
        $region98: #{forward.5} parent=55 // pred_check_branch
          %766 = sbr.rel (%p764) target = $region100
        $region99: #{forward.5} parent=55 // pred_region
          %p767 = scmp.lt.s32.totalorder %s41, 1
          %s768 = scalar_select %p767, %s41, 1
          %s769 = smul.addr %s768, 4
          %s770 = smul.addr %s769, 4
          %s771 = scalar_lea.vmem %s10, %s770
        $region100: #{forward.5} parent=55 // pred_fallthru
          _
        // Predicated region
        $region101: #{forward.5} parent=55 // pred_check
          %p772 = pneg %p351
        $region102: #{forward.5} parent=55 // pred_check_branch
          %774 = sbr.rel (%p772) target = $region104
        $region103: #{forward.5} parent=55 // pred_region
          %p775 = scmp.lt.s32.totalorder %s41, 1
          %s776 = scalar_select %p775, %s41, 1
          %s777 = scalar_lea.vmem %s11, %s776
        $region104: #{forward.5} parent=55 // pred_fallthru
          _
        // Predicated region
        $region105: #{forward.5} parent=55 // pred_check
          %p778 = pneg %p377
        $region106: #{forward.5} parent=55 // pred_check_branch
          %780 = sbr.rel (%p778) target = $region108
        $region107: #{forward.5} parent=55 // pred_region
          %p781 = scmp.lt.s32.totalorder %s41, 1
          %s782 = scalar_select %p781, %s41, 1
          %s783 = smul.addr %s782, 16
          %s784 = smul.addr %s783, 4
          %s785 = scalar_lea.vmem %s12, %s784
        $region108: #{forward.5} parent=55 // pred_fallthru
          _
        // Predicated region
        $region109: #{forward.5} parent=55 // pred_check
          %p786 = pneg %p403
        $region110: #{forward.5} parent=55 // pred_check_branch
          %788 = sbr.rel (%p786) target = $region112
        $region111: #{forward.5} parent=55 // pred_region
          %p789 = scmp.lt.s32.totalorder %s41, 1
          %s790 = scalar_select %p789, %s41, 1
          %s791 = scalar_lea.vmem %s13, %s790
        $region112: #{forward.5} parent=55 // pred_fallthru
          _
      $region56: #{forward.5} parent=5 // pred_fallthru
        _
      %p792 = scmp.le.s32.totalorder 1, %s33
      %p793 = scmp.lt.s32.totalorder %s33, 5
      %p794 = pnand %p792, %p793
      %p795 = pneg %p794
      // Predicated region
      $region113: #{forward.5} parent=5 // pred_check
        _
      $region114: #{forward.5} parent=5 // pred_check_branch
        %797 = sbr.rel (%p794) target = $region116
      $region115: #{forward.5} parent=5 // pred_region
        %s798 = ssub.s32 %s33, 1
        %s799 = smul.u32 2, %s42
        %p800 = scmp.lt.s32.totalorder %s799, 3
        %s801 = scalar_select %p800, %s799, 3
        %s802 = smul.addr %s801, 2
        %s803 = smul.addr %s802, 8
        %s804 = scalar_lea.vmem %s0, %s803
        %p805 = pneg %p71
        %p806 = pneg %p68
        %s807 = smul.u32 2, %s42
        %p808 = scmp.lt.s32.totalorder %s807, 3
        %s809 = scalar_select %p808, %s807, 3
        %s810 = scalar_lea.vmem %s1, %s809
        %p811 = pneg %p97
        %p812 = pneg %p94
        %p813 = scmp.lt.s32.totalorder %s43, 1
        %s814 = scalar_select %p813, %s43, 1
        %s815 = scalar_lea.vmem %s2, %s814
        %p816 = pneg %p123
        %p817 = pneg %p120
        %p818 = scmp.lt.s32.totalorder %s43, 1
        %s819 = scalar_select %p818, %s43, 1
        %s820 = scalar_lea.vmem %s3, %s819
        %p821 = pneg %p149
        %p822 = pneg %p146
        %p823 = scmp.lt.s32.totalorder %s43, 1
        %s824 = scalar_select %p823, %s43, 1
        %s825 = smul.addr %s824, 4
        %s826 = smul.addr %s825, 4
        %s827 = scalar_lea.vmem %s4, %s826
        %p828 = pneg %p175
        %p829 = pneg %p172
        %p830 = scmp.lt.s32.totalorder %s43, 1
        %s831 = scalar_select %p830, %s43, 1
        %s832 = scalar_lea.vmem %s5, %s831
        %p833 = pneg %p201
        %p834 = pneg %p198
        %p835 = scmp.lt.s32.totalorder %s43, 1
        %s836 = scalar_select %p835, %s43, 1
        %s837 = smul.addr %s836, 4
        %s838 = smul.addr %s837, 4
        %s839 = scalar_lea.vmem %s6, %s838
        %p840 = pneg %p227
        %p841 = pneg %p224
        %p842 = scmp.lt.s32.totalorder %s43, 1
        %s843 = scalar_select %p842, %s43, 1
        %s844 = scalar_lea.vmem %s7, %s843
        %p845 = pneg %p253
        %p846 = pneg %p250
        %p847 = scmp.lt.s32.totalorder %s43, 1
        %s848 = scalar_select %p847, %s43, 1
        %s849 = scalar_lea.vmem %s8, %s848
        %p850 = pneg %p279
        %p851 = pneg %p276
        %p852 = scmp.lt.s32.totalorder %s43, 1
        %s853 = scalar_select %p852, %s43, 1
        %s854 = scalar_lea.vmem %s9, %s853
        %p855 = pneg %p305
        %p856 = pneg %p302
        %p857 = scmp.lt.s32.totalorder %s43, 1
        %s858 = scalar_select %p857, %s43, 1
        %s859 = smul.addr %s858, 4
        %s860 = smul.addr %s859, 4
        %s861 = scalar_lea.vmem %s10, %s860
        %p862 = pneg %p331
        %p863 = pneg %p328
        %p864 = scmp.lt.s32.totalorder %s43, 1
        %s865 = scalar_select %p864, %s43, 1
        %s866 = scalar_lea.vmem %s11, %s865
        %p867 = pneg %p357
        %p868 = pneg %p354
        %p869 = scmp.lt.s32.totalorder %s43, 1
        %s870 = scalar_select %p869, %s43, 1
        %s871 = smul.addr %s870, 16
        %s872 = smul.addr %s871, 4
        %s873 = scalar_lea.vmem %s12, %s872
        %p874 = pneg %p383
        %p875 = pneg %p380
        %p876 = scmp.lt.s32.totalorder %s43, 1
        %s877 = scalar_select %p876, %s43, 1
        %s878 = scalar_lea.vmem %s13, %s877
        %p879 = pneg %p409
        %p880 = pneg %p406
        %p881 = pneg %p430
        %p882 = pneg %p427
        %p883 = pneg %p451
        %p884 = pneg %p448
        %p885 = pneg %p472
        %p886 = pneg %p469
        %p887 = pneg %p493
        %p888 = pneg %p490
        %p889 = pneg %p514
        %p890 = pneg %p511
        %p891 = pneg %p535
        %p892 = pneg %p532
        %p893 = pneg %p556
        %p894 = pneg %p553
        %p895 = pneg %p577
        %p896 = pneg %p574
        %p897 = pneg %p598
        %p898 = pneg %p595
        %p899 = pneg %p619
        %p900 = pneg %p616
        %p901 = pneg %p645
        %p902 = pneg %p642
        %s903 = sand.u32 %s632, 1
        %s904 = scalar_lea.sflag [#allocation5], %s903
        %s905 = sand.u32 %s632, 1
        %s906 = smul.addr %s905, 2
        %s907 = scalar_lea.vmem [#allocation4], %s906
        %s908 = smul.u32 2, %s42
        %p909 = scmp.lt.s32.totalorder %s908, 3
        %s910 = scalar_select %p909, %s908, 3
        %s911 = smul.addr %s910, 2
        %s912 = smul.addr %s911, 8
        %s913 = scalar_lea.vmem %s0, %s912
        %s914 = smul.u32 2, %s42
        %s915 = smul.u32 2, %s42
        %p916 = scmp.lt.s32.totalorder %s915, 3
        %s917 = scalar_select %p916, %s915, 3
        %s918 = scalar_lea.vmem %s1, %s917
        %s919 = smul.u32 2, %s42
        %p920 = scmp.lt.s32.totalorder %s43, 1
        %s921 = scalar_select %p920, %s43, 1
        %s922 = scalar_lea.vmem %s2, %s921
        %p923 = scmp.lt.s32.totalorder %s43, 1
        %s924 = scalar_select %p923, %s43, 1
        %s925 = scalar_lea.vmem %s3, %s924
        %p926 = scmp.lt.s32.totalorder %s43, 1
        %s927 = scalar_select %p926, %s43, 1
        %s928 = smul.addr %s927, 4
        %s929 = smul.addr %s928, 4
        %s930 = scalar_lea.vmem %s4, %s929
        %p931 = scmp.lt.s32.totalorder %s43, 1
        %s932 = scalar_select %p931, %s43, 1
        %s933 = scalar_lea.vmem %s5, %s932
        %p934 = scmp.lt.s32.totalorder %s43, 1
        %s935 = scalar_select %p934, %s43, 1
        %s936 = smul.addr %s935, 4
        %s937 = smul.addr %s936, 4
        %s938 = scalar_lea.vmem %s6, %s937
        %p939 = scmp.lt.s32.totalorder %s43, 1
        %s940 = scalar_select %p939, %s43, 1
        %s941 = scalar_lea.vmem %s7, %s940
        %p942 = scmp.lt.s32.totalorder %s43, 1
        %s943 = scalar_select %p942, %s43, 1
        %s944 = scalar_lea.vmem %s8, %s943
        %p945 = scmp.lt.s32.totalorder %s43, 1
        %s946 = scalar_select %p945, %s43, 1
        %s947 = scalar_lea.vmem %s9, %s946
        %p948 = scmp.lt.s32.totalorder %s43, 1
        %s949 = scalar_select %p948, %s43, 1
        %s950 = smul.addr %s949, 4
        %s951 = smul.addr %s950, 4
        %s952 = scalar_lea.vmem %s10, %s951
        %p953 = scmp.lt.s32.totalorder %s43, 1
        %s954 = scalar_select %p953, %s43, 1
        %s955 = scalar_lea.vmem %s11, %s954
        %p956 = scmp.lt.s32.totalorder %s43, 1
        %s957 = scalar_select %p956, %s43, 1
        %s958 = smul.addr %s957, 16
        %s959 = smul.addr %s958, 4
        %s960 = scalar_lea.vmem %s12, %s959
        %p961 = scmp.lt.s32.totalorder %s43, 1
        %s962 = scalar_select %p961, %s43, 1
        %s963 = scalar_lea.vmem %s13, %s962
        %s964 = smul.u32 2, %s42
        %p966 = scmp.eq.s32.totalorder %s43, 0
        // Predicated region
        $region117: #{forward.5} parent=115 // pred_check
          %p967 = pneg %p966
        $region118: #{forward.5} parent=115 // pred_check_branch
          %969 = sbr.rel (%p967) target = $region120
        $region119: #{forward.5} parent=115 // pred_region
          %v970 = vld [vmem:[%s913] sm:$0xff]
          %v971 = vld [vmem:[%s913 + $0x8] sm:$0x1f]
          %v972 = vld [vmem:[%s913 + $0x10] sm:$0xff]
          %v973 = vld [vmem:[%s913 + $0x18] sm:$0x1f]
          %vm974 = vcmask 261120
          %975 = vst.msk [vmem:[#allocation2] sm:$0xff] %vm974, %v970
          %vm976 = vcmask 258048
          %977 = vst.msk [vmem:[#allocation2 + $0x8] sm:$0x1f] %vm976, %v971
          %978 = vst.msk [vmem:[#allocation2 + $0x10] sm:$0xff] %vm974, %v972
          %979 = vst.msk [vmem:[#allocation2 + $0x18] sm:$0x1f] %vm976, %v973
          %v980 = vld [vmem:[%s918] sm:$0x1]
          %v981 = vld [vmem:[%s918 + $0x1] sm:$0x1]
          %vm982 = vcmp.gt.f32.partialorder %v980, 0.5
          %vm983 = vcmp.gt.f32.partialorder %v981, 0.5
          %v984 = vlaneseq
          %v985 = vshrl.u32 %v984, 7
          %v986 = vadd.s32 %v985, 8
          %v987 = vlaneseq
          %v988 = vand.u32 %v987, 127
          %vm989 = vcmp.le.s32.totalorder %v988, %v985
          %vm990 = vcmp.le.s32.totalorder %v988, %v986
          %v991 = vsel %vm989, 1, 0
          %v992 = vsel %vm990, 1, 0
          %vm993 = vcmp.eq.s32.totalorder %v991, 1
          %vm994 = vcmp.eq.s32.totalorder %v992, 1
          %v995 = vsel %vm982, 1, 0
          %v996 = vsel %vm983, 1, 0
          %v997 = vperm.slane %v995, 0
          %v998 = vperm.slane %v996, 0
          %vm999 = vcmp.eq.s32.totalorder %v997, 1
          %vm1000 = vcmp.eq.s32.totalorder %v998, 1
          %vm1001 = vmand %vm993, %vm999
          %vm1002 = vmand %vm994, %vm999
          %vm1003 = vmand %vm993, %vm1000
          %vm1004 = vmand %vm994, %vm1000
          %v1005 = vsel %vm1001, 0.0, -1e+09
          %v1006 = vsel %vm1002, 0.0, -1e+09
          %v1007 = vsel %vm1003, 0.0, -1e+09
          %v1008 = vsel %vm1004, 0.0, -1e+09
          %vm1009 = vcmask 105472
          %1010 = vst.msk [vmem:[#allocation3] sm:$0xff] %vm1009, %v1005
          %vm1011 = vcmask 102400
          %1012 = vst.msk [vmem:[#allocation3 + $0x8] sm:$0x1f] %vm1011, %v1006
          %1013 = vst.msk [vmem:[#allocation3 + $0x10] sm:$0xff] %vm1009, %v1007
          %1014 = vst.msk [vmem:[#allocation3 + $0x18] sm:$0x1f] %vm1011, %v1008
        $region120: #{forward.5} parent=115 // pred_fallthru
          _
        %v1015 = vld [vmem:[#allocation2] sm:$0xff]
        %v1016 = vld [vmem:[#allocation2 + $0x8] sm:$0x1f]
        %v1017 = vld [vmem:[#allocation2 + $0x10] sm:$0xff]
        %v1018 = vld [vmem:[#allocation2 + $0x18] sm:$0x1f]
        %v1019 = vld [vmem:[#allocation3] sm:$0xff]
        %v1020 = vld [vmem:[#allocation3 + $0x8] sm:$0x1f]
        %v1021 = vld [vmem:[#allocation3 + $0x10] sm:$0xff]
        %v1022 = vld [vmem:[#allocation3 + $0x18] sm:$0x1f]
        %v1023 = vld [vmem:[%s922] sm:$0x1]
        %v1024 = vld [vmem:[%s925] sm:$0x1]
        %v1025 = vld [vmem:[%s930] sm:$0xf]
        %v1026 = vld [vmem:[%s930 + $0x4] sm:$0xf]
        %v1027 = vld [vmem:[%s930 + $0x8] sm:$0xf]
        %v1028 = vld [vmem:[%s930 + $0xc] sm:$0xf]
        %v1029 = vld [vmem:[%s933] sm:$0x1]
        %v1030 = vld [vmem:[%s938] sm:$0xf]
        %v1031 = vld [vmem:[%s938 + $0x4] sm:$0xf]
        %v1032 = vld [vmem:[%s938 + $0x8] sm:$0xf]
        %v1033 = vld [vmem:[%s938 + $0xc] sm:$0xf]
        %v1034 = vld [vmem:[%s941] sm:$0x1]
        %v1035 = vld [vmem:[%s944] sm:$0x1]
        %v1036 = vld [vmem:[%s947] sm:$0x1]
        %v1037 = vld [vmem:[%s952] sm:$0xf]
        %v1038 = vld [vmem:[%s952 + $0x4] sm:$0xf]
        %v1039 = vld [vmem:[%s952 + $0x8] sm:$0xf]
        %v1040 = vld [vmem:[%s952 + $0xc] sm:$0xf]
        %v1041 = vld [vmem:[%s955] sm:$0x1]
        %v1042 = vld [vmem:[%s960] sm:$0xf]
        %v1043 = vld [vmem:[%s960 + $0x4] sm:$0xf]
        %v1044 = vld [vmem:[%s960 + $0x8] sm:$0xf]
        %v1045 = vld [vmem:[%s960 + $0xc] sm:$0xf]
        %v1046 = vld [vmem:[%s960 + $0x10] sm:$0xf]
        %v1047 = vld [vmem:[%s960 + $0x14] sm:$0xf]
        %v1048 = vld [vmem:[%s960 + $0x18] sm:$0xf]
        %v1049 = vld [vmem:[%s960 + $0x1c] sm:$0xf]
        %v1050 = vld [vmem:[%s960 + $0x20] sm:$0xf]
        %v1051 = vld [vmem:[%s960 + $0x24] sm:$0xf]
        %v1052 = vld [vmem:[%s960 + $0x28] sm:$0xf]
        %v1053 = vld [vmem:[%s960 + $0x2c] sm:$0xf]
        %v1054 = vld [vmem:[%s960 + $0x30] sm:$0xf]
        %v1055 = vld [vmem:[%s960 + $0x34] sm:$0xf]
        %v1056 = vld [vmem:[%s960 + $0x38] sm:$0xf]
        %v1057 = vld [vmem:[%s960 + $0x3c] sm:$0xf]
        %v1058 = vld [vmem:[%s963] sm:$0x1]
        %v1063 = vrot.slane %v1015, 1
        %v1064 = vrot.slane %v1015, 2
        %v1065 = vrot.slane %v1015, 3
        %v1066 = vrot.slane %v1015, 4
        %v1067 = vrot.slane %v1015, 5
        %v1068 = vrot.slane %v1015, 6
        %v1069 = vrot.slane %v1015, 7
        %v1070 = vrot.slane %v1016, 1
        %v1071 = vrot.slane %v1016, 2
        %v1072 = vrot.slane %v1016, 3
        %v1073 = vrot.slane %v1016, 4
        %v1074 = vrot.slane %v1017, 1
        %v1075 = vrot.slane %v1017, 2
        %v1076 = vrot.slane %v1017, 3
        %v1077 = vrot.slane %v1017, 4
        %v1078 = vrot.slane %v1017, 5
        %v1079 = vrot.slane %v1017, 6
        %v1080 = vrot.slane %v1017, 7
        %v1081 = vrot.slane %v1018, 1
        %v1082 = vrot.slane %v1018, 2
        %v1083 = vrot.slane %v1018, 3
        %v1084 = vrot.slane %v1018, 4
        %1107 = vst [vmem:[#allocation1] ss:$9 sm:$0xff] %v1015
        %s1108 = scalar_lea.vmem [#allocation1], 1
        %1109 = vst [vmem:[%s1108] ss:$9 sm:$0xff] %v1063
        %s1110 = scalar_lea.vmem [#allocation1], 2
        %1111 = vst [vmem:[%s1110] ss:$9 sm:$0xff] %v1064
        %s1112 = scalar_lea.vmem [#allocation1], 3
        %1113 = vst [vmem:[%s1112] ss:$9 sm:$0xff] %v1065
        %s1114 = scalar_lea.vmem [#allocation1], 4
        %1115 = vst [vmem:[%s1114] ss:$9 sm:$0xff] %v1066
        %s1116 = scalar_lea.vmem [#allocation1], 5
        %1117 = vst [vmem:[%s1116] ss:$9 sm:$0xff] %v1067
        %s1118 = scalar_lea.vmem [#allocation1], 6
        %1119 = vst [vmem:[%s1118] ss:$9 sm:$0xff] %v1068
        %s1120 = scalar_lea.vmem [#allocation1], 7
        %1121 = vst [vmem:[%s1120] ss:$9 sm:$0xff] %v1069
        %v1122 = vld [vmem:[#allocation1] sm:$0xff]
        %1123 = vst [vmem:[#allocation1] ss:$9 sm:$0xff] %v1016
        %1124 = vst [vmem:[%s1108] ss:$9 sm:$0xff] %v1070
        %1125 = vst [vmem:[%s1110] ss:$9 sm:$0xff] %v1071
        %1126 = vst [vmem:[%s1112] ss:$9 sm:$0xff] %v1072
        %1127 = vst [vmem:[%s1114] ss:$9 sm:$0xff] %v1073
        %1128 = vst [vmem:[%s1116] ss:$9 sm:$0xff] %v1017
        %1129 = vst [vmem:[%s1118] ss:$9 sm:$0xff] %v1074
        %1130 = vst [vmem:[%s1120] ss:$9 sm:$0xff] %v1075
        %v1131 = vld [vmem:[#allocation1] sm:$0xff]
        %1132 = vst [vmem:[#allocation1] ss:$9 sm:$0xff] %v1076
        %1133 = vst [vmem:[%s1108] ss:$9 sm:$0xff] %v1077
        %1134 = vst [vmem:[%s1110] ss:$9 sm:$0xff] %v1078
        %1135 = vst [vmem:[%s1112] ss:$9 sm:$0xff] %v1079
        %1136 = vst [vmem:[%s1114] ss:$9 sm:$0xff] %v1080
        %1137 = vst [vmem:[%s1116] ss:$9 sm:$0xff] %v1018
        %1138 = vst [vmem:[%s1118] ss:$9 sm:$0xff] %v1081
        %1139 = vst [vmem:[%s1120] ss:$9 sm:$0xff] %v1082
        %v1140 = vld [vmem:[#allocation1] sm:$0xff]
        %1141 = vst [vmem:[#allocation1] ss:$9 sm:$0xff] %v1083
        %1142 = vst [vmem:[%s1108] ss:$9 sm:$0xff] %v1084
        %v1143 = vld [vmem:[#allocation1] sm:$0xff]
        %vm1148 = vcmask 261120
        %v1149 = vsel %vm1148, %v1122, 0.0
        %1150 = vadd.xlane.f32.xlu0 %v1149
        %v1151 = vpop.xlane.xlu0 %1150
        %v1152 = vsel %vm1148, %v1131, 0.0
        %1153 = vadd.xlane.f32.xlu0 %v1152
        %v1154 = vpop.xlane.xlu0 %1153
        %v1155 = vsel %vm1148, %v1140, 0.0
        %1156 = vadd.xlane.f32.xlu0 %v1155
        %v1157 = vpop.xlane.xlu0 %1156
        %vm1158 = vcmask 254976
        %v1159 = vsel %vm1158, %v1143, 0.0
        %1160 = vadd.xlane.f32.xlu0 %v1159
        %v1161 = vpop.xlane.xlu0 %1160
        %v1162 = vrcp.pop 32.0
        %v1163 = vmul.f32 32.0, %v1162
        %v1164 = vsub.f32 1.0, %v1163
        %v1165 = vmul.f32 %v1162, %v1164
        %v1166 = vadd.f32 %v1162, %v1165
        %vm1167 = vweird.f32 %v1162
        %v1168 = vsel %vm1167, %v1162, %v1166
        %v1169 = vmul.f32 %v1151, %v1168
        %v1170 = vmul.f32 %v1154, %v1168
        %v1171 = vmul.f32 %v1157, %v1168
        %v1172 = vmul.f32 %v1161, %v1168
        %v1177 = vperm.slane %v1169, 0
        %v1178 = vperm.slane %v1169, 1
        %v1179 = vperm.slane %v1169, 2
        %v1180 = vperm.slane %v1169, 3
        %v1181 = vperm.slane %v1169, 4
        %v1182 = vperm.slane %v1169, 5
        %v1183 = vperm.slane %v1169, 6
        %v1184 = vperm.slane %v1169, 7
        %v1185 = vperm.slane %v1170, 0
        %v1186 = vperm.slane %v1170, 1
        %v1187 = vperm.slane %v1170, 2
        %v1188 = vperm.slane %v1170, 3
        %v1189 = vperm.slane %v1170, 4
        %v1190 = vperm.slane %v1170, 5
        %v1191 = vperm.slane %v1170, 6
        %v1192 = vperm.slane %v1170, 7
        %v1193 = vperm.slane %v1171, 0
        %v1194 = vperm.slane %v1171, 1
        %v1195 = vperm.slane %v1171, 2
        %v1196 = vperm.slane %v1171, 3
        %v1197 = vperm.slane %v1171, 4
        %v1198 = vperm.slane %v1171, 5
        %v1199 = vperm.slane %v1171, 6
        %v1200 = vperm.slane %v1171, 7
        %v1201 = vperm.slane %v1172, 0
        %v1202 = vperm.slane %v1172, 1
        %v1229 = vsub.f32 %v1015, %v1177
        %v1230 = vsub.f32 %v1063, %v1178
        %v1231 = vsub.f32 %v1064, %v1179
        %v1232 = vsub.f32 %v1065, %v1180
        %v1233 = vsub.f32 %v1066, %v1181
        %v1234 = vsub.f32 %v1067, %v1182
        %v1235 = vsub.f32 %v1068, %v1183
        %v1236 = vsub.f32 %v1069, %v1184
        %v1237 = vsub.f32 %v1016, %v1185
        %v1238 = vsub.f32 %v1070, %v1186
        %v1239 = vsub.f32 %v1071, %v1187
        %v1240 = vsub.f32 %v1072, %v1188
        %v1241 = vsub.f32 %v1073, %v1189
        %v1242 = vsub.f32 %v1017, %v1190
        %v1243 = vsub.f32 %v1074, %v1191
        %v1244 = vsub.f32 %v1075, %v1192
        %v1245 = vsub.f32 %v1076, %v1193
        %v1246 = vsub.f32 %v1077, %v1194
        %v1247 = vsub.f32 %v1078, %v1195
        %v1248 = vsub.f32 %v1079, %v1196
        %v1249 = vsub.f32 %v1080, %v1197
        %v1250 = vsub.f32 %v1018, %v1198
        %v1251 = vsub.f32 %v1081, %v1199
        %v1252 = vsub.f32 %v1082, %v1200
        %v1253 = vsub.f32 %v1083, %v1201
        %v1254 = vsub.f32 %v1084, %v1202
        %v1255 = vmul.f32 %v1229, %v1229
        %v1256 = vmul.f32 %v1230, %v1230
        %v1257 = vmul.f32 %v1231, %v1231
        %v1258 = vmul.f32 %v1232, %v1232
        %v1259 = vmul.f32 %v1233, %v1233
        %v1260 = vmul.f32 %v1234, %v1234
        %v1261 = vmul.f32 %v1235, %v1235
        %v1262 = vmul.f32 %v1236, %v1236
        %v1263 = vmul.f32 %v1237, %v1237
        %v1264 = vmul.f32 %v1238, %v1238
        %v1265 = vmul.f32 %v1239, %v1239
        %v1266 = vmul.f32 %v1240, %v1240
        %v1267 = vmul.f32 %v1241, %v1241
        %v1268 = vmul.f32 %v1242, %v1242
        %v1269 = vmul.f32 %v1243, %v1243
        %v1270 = vmul.f32 %v1244, %v1244
        %v1271 = vmul.f32 %v1245, %v1245
        %v1272 = vmul.f32 %v1246, %v1246
        %v1273 = vmul.f32 %v1247, %v1247
        %v1274 = vmul.f32 %v1248, %v1248
        %v1275 = vmul.f32 %v1249, %v1249
        %v1276 = vmul.f32 %v1250, %v1250
        %v1277 = vmul.f32 %v1251, %v1251
        %v1278 = vmul.f32 %v1252, %v1252
        %v1279 = vmul.f32 %v1253, %v1253
        %v1280 = vmul.f32 %v1254, %v1254
        %1307 = vst [vmem:[#allocation1] ss:$9 sm:$0xff] %v1255
        %s1308 = scalar_lea.vmem [#allocation1], 1
        %1309 = vst [vmem:[%s1308] ss:$9 sm:$0xff] %v1256
        %s1310 = scalar_lea.vmem [#allocation1], 2
        %1311 = vst [vmem:[%s1310] ss:$9 sm:$0xff] %v1257
        %s1312 = scalar_lea.vmem [#allocation1], 3
        %1313 = vst [vmem:[%s1312] ss:$9 sm:$0xff] %v1258
        %s1314 = scalar_lea.vmem [#allocation1], 4
        %1315 = vst [vmem:[%s1314] ss:$9 sm:$0xff] %v1259
        %s1316 = scalar_lea.vmem [#allocation1], 5
        %1317 = vst [vmem:[%s1316] ss:$9 sm:$0xff] %v1260
        %s1318 = scalar_lea.vmem [#allocation1], 6
        %1319 = vst [vmem:[%s1318] ss:$9 sm:$0xff] %v1261
        %s1320 = scalar_lea.vmem [#allocation1], 7
        %1321 = vst [vmem:[%s1320] ss:$9 sm:$0xff] %v1262
        %v1322 = vld [vmem:[#allocation1] sm:$0xff]
        %1323 = vst [vmem:[#allocation1] ss:$9 sm:$0xff] %v1263
        %1324 = vst [vmem:[%s1308] ss:$9 sm:$0xff] %v1264
        %1325 = vst [vmem:[%s1310] ss:$9 sm:$0xff] %v1265
        %1326 = vst [vmem:[%s1312] ss:$9 sm:$0xff] %v1266
        %1327 = vst [vmem:[%s1314] ss:$9 sm:$0xff] %v1267
        %1328 = vst [vmem:[%s1316] ss:$9 sm:$0xff] %v1268
        %1329 = vst [vmem:[%s1318] ss:$9 sm:$0xff] %v1269
        %1330 = vst [vmem:[%s1320] ss:$9 sm:$0xff] %v1270
        %v1331 = vld [vmem:[#allocation1] sm:$0xff]
        %1332 = vst [vmem:[#allocation1] ss:$9 sm:$0xff] %v1271
        %1333 = vst [vmem:[%s1308] ss:$9 sm:$0xff] %v1272
        %1334 = vst [vmem:[%s1310] ss:$9 sm:$0xff] %v1273
        %1335 = vst [vmem:[%s1312] ss:$9 sm:$0xff] %v1274
        %1336 = vst [vmem:[%s1314] ss:$9 sm:$0xff] %v1275
        %1337 = vst [vmem:[%s1316] ss:$9 sm:$0xff] %v1276
        %1338 = vst [vmem:[%s1318] ss:$9 sm:$0xff] %v1277
        %1339 = vst [vmem:[%s1320] ss:$9 sm:$0xff] %v1278
        %v1340 = vld [vmem:[#allocation1] sm:$0xff]
        %1341 = vst [vmem:[#allocation1] ss:$9 sm:$0xff] %v1279
        %1342 = vst [vmem:[%s1308] ss:$9 sm:$0xff] %v1280
        %v1343 = vld [vmem:[#allocation1] sm:$0xff]
        %v1348 = vsel %vm1148, %v1322, 0.0
        %1349 = vadd.xlane.f32.xlu0 %v1348
        %v1350 = vpop.xlane.xlu0 %1349
        %v1351 = vsel %vm1148, %v1331, 0.0
        %1352 = vadd.xlane.f32.xlu0 %v1351
        %v1353 = vpop.xlane.xlu0 %1352
        %v1354 = vsel %vm1148, %v1340, 0.0
        %1355 = vadd.xlane.f32.xlu0 %v1354
        %v1356 = vpop.xlane.xlu0 %1355
        %v1357 = vsel %vm1158, %v1343, 0.0
        %1358 = vadd.xlane.f32.xlu0 %v1357
        %v1359 = vpop.xlane.xlu0 %1358
        %v1360 = vmul.f32 %v1350, %v1168
        %v1361 = vmul.f32 %v1353, %v1168
        %v1362 = vmul.f32 %v1356, %v1168
        %v1363 = vmul.f32 %v1359, %v1168
        %v1364 = vadd.f32 %v1360, 1e-05
        %v1365 = vadd.f32 %v1361, 1e-05
        %v1366 = vadd.f32 %v1362, 1e-05
        %v1367 = vadd.f32 %v1363, 1e-05
        %v1368 = vrsqrt.pop %v1364
        %v1369 = vmul.f32 %v1368, %v1364
        %v1370 = vmul.f32 %v1369, %v1368
        %v1371 = vmul.f32 0.5, %v1370
        %v1372 = vsub.f32 1.5, %v1371
        %v1373 = vmul.f32 %v1368, %v1372
        %vm1374 = vweird.f32 %v1364
        %vm1375 = vweird.f32 %v1368
        %vm1376 = vmor %vm1374, %vm1375
        %v1377 = vsel %vm1376, %v1368, %v1373
        %v1378 = vrsqrt.pop %v1365
        %v1379 = vmul.f32 %v1378, %v1365
        %v1380 = vmul.f32 %v1379, %v1378
        %v1381 = vmul.f32 0.5, %v1380
        %v1382 = vsub.f32 1.5, %v1381
        %v1383 = vmul.f32 %v1378, %v1382
        %vm1384 = vweird.f32 %v1365
        %vm1385 = vweird.f32 %v1378
        %vm1386 = vmor %vm1384, %vm1385
        %v1387 = vsel %vm1386, %v1378, %v1383
        %v1388 = vrsqrt.pop %v1366
        %v1389 = vmul.f32 %v1388, %v1366
        %v1390 = vmul.f32 %v1389, %v1388
        %v1391 = vmul.f32 0.5, %v1390
        %v1392 = vsub.f32 1.5, %v1391
        %v1393 = vmul.f32 %v1388, %v1392
        %vm1394 = vweird.f32 %v1366
        %vm1395 = vweird.f32 %v1388
        %vm1396 = vmor %vm1394, %vm1395
        %v1397 = vsel %vm1396, %v1388, %v1393
        %v1398 = vrsqrt.pop %v1367
        %v1399 = vmul.f32 %v1398, %v1367
        %v1400 = vmul.f32 %v1399, %v1398
        %v1401 = vmul.f32 0.5, %v1400
        %v1402 = vsub.f32 1.5, %v1401
        %v1403 = vmul.f32 %v1398, %v1402
        %vm1404 = vweird.f32 %v1367
        %vm1405 = vweird.f32 %v1398
        %vm1406 = vmor %vm1404, %vm1405
        %v1407 = vsel %vm1406, %v1398, %v1403
        %v1412 = vperm.slane %v1377, 0
        %v1413 = vperm.slane %v1377, 1
        %v1414 = vperm.slane %v1377, 2
        %v1415 = vperm.slane %v1377, 3
        %v1416 = vperm.slane %v1377, 4
        %v1417 = vperm.slane %v1377, 5
        %v1418 = vperm.slane %v1377, 6
        %v1419 = vperm.slane %v1377, 7
        %v1420 = vperm.slane %v1387, 0
        %v1421 = vperm.slane %v1387, 1
        %v1422 = vperm.slane %v1387, 2
        %v1423 = vperm.slane %v1387, 3
        %v1424 = vperm.slane %v1387, 4
        %v1425 = vperm.slane %v1387, 5
        %v1426 = vperm.slane %v1387, 6
        %v1427 = vperm.slane %v1387, 7
        %v1428 = vperm.slane %v1397, 0
        %v1429 = vperm.slane %v1397, 1
        %v1430 = vperm.slane %v1397, 2
        %v1431 = vperm.slane %v1397, 3
        %v1432 = vperm.slane %v1397, 4
        %v1433 = vperm.slane %v1397, 5
        %v1434 = vperm.slane %v1397, 6
        %v1435 = vperm.slane %v1397, 7
        %v1436 = vperm.slane %v1407, 0
        %v1437 = vperm.slane %v1407, 1
        %v1464 = vmul.f32 %v1229, %v1412
        %v1465 = vmul.f32 %v1230, %v1413
        %v1466 = vmul.f32 %v1231, %v1414
        %v1467 = vmul.f32 %v1232, %v1415
        %v1468 = vmul.f32 %v1233, %v1416
        %v1469 = vmul.f32 %v1234, %v1417
        %v1470 = vmul.f32 %v1235, %v1418
        %v1471 = vmul.f32 %v1236, %v1419
        %v1472 = vmul.f32 %v1237, %v1420
        %v1473 = vmul.f32 %v1238, %v1421
        %v1474 = vmul.f32 %v1239, %v1422
        %v1475 = vmul.f32 %v1240, %v1423
        %v1476 = vmul.f32 %v1241, %v1424
        %v1477 = vmul.f32 %v1242, %v1425
        %v1478 = vmul.f32 %v1243, %v1426
        %v1479 = vmul.f32 %v1244, %v1427
        %v1480 = vmul.f32 %v1245, %v1428
        %v1481 = vmul.f32 %v1246, %v1429
        %v1482 = vmul.f32 %v1247, %v1430
        %v1483 = vmul.f32 %v1248, %v1431
        %v1484 = vmul.f32 %v1249, %v1432
        %v1485 = vmul.f32 %v1250, %v1433
        %v1486 = vmul.f32 %v1251, %v1434
        %v1487 = vmul.f32 %v1252, %v1435
        %v1488 = vmul.f32 %v1253, %v1436
        %v1489 = vmul.f32 %v1254, %v1437
        %v1491 = vperm.slane %v1023, 0
        %v1493 = vrot.slane %v1491, 1
        %v1494 = vrot.slane %v1491, 2
        %v1495 = vrot.slane %v1491, 3
        %v1496 = vrot.slane %v1491, 4
        %v1497 = vrot.slane %v1491, 5
        %v1498 = vrot.slane %v1491, 6
        %v1499 = vrot.slane %v1491, 7
        %v1507 = vmul.f32 %v1464, %v1491
        %v1508 = vmul.f32 %v1465, %v1493
        %v1509 = vmul.f32 %v1466, %v1494
        %v1510 = vmul.f32 %v1467, %v1495
        %v1511 = vmul.f32 %v1468, %v1496
        %v1512 = vmul.f32 %v1469, %v1497
        %v1513 = vmul.f32 %v1470, %v1498
        %v1514 = vmul.f32 %v1471, %v1499
        %v1515 = vmul.f32 %v1472, %v1491
        %v1516 = vmul.f32 %v1473, %v1493
        %v1517 = vmul.f32 %v1474, %v1494
        %v1518 = vmul.f32 %v1475, %v1495
        %v1519 = vmul.f32 %v1476, %v1496
        %v1520 = vmul.f32 %v1477, %v1497
        %v1521 = vmul.f32 %v1478, %v1498
        %v1522 = vmul.f32 %v1479, %v1499
        %v1523 = vmul.f32 %v1480, %v1491
        %v1524 = vmul.f32 %v1481, %v1493
        %v1525 = vmul.f32 %v1482, %v1494
        %v1526 = vmul.f32 %v1483, %v1495
        %v1527 = vmul.f32 %v1484, %v1496
        %v1528 = vmul.f32 %v1485, %v1497
        %v1529 = vmul.f32 %v1486, %v1498
        %v1530 = vmul.f32 %v1487, %v1499
        %v1531 = vmul.f32 %v1488, %v1491
        %v1532 = vmul.f32 %v1489, %v1493
        %v1534 = vperm.slane %v1024, 0
        %v1536 = vrot.slane %v1534, 1
        %v1537 = vrot.slane %v1534, 2
        %v1538 = vrot.slane %v1534, 3
        %v1539 = vrot.slane %v1534, 4
        %v1540 = vrot.slane %v1534, 5
        %v1541 = vrot.slane %v1534, 6
        %v1542 = vrot.slane %v1534, 7
        %v1550 = vadd.f32 %v1507, %v1534
        %v1551 = vadd.f32 %v1508, %v1536
        %v1552 = vadd.f32 %v1509, %v1537
        %v1553 = vadd.f32 %v1510, %v1538
        %v1554 = vadd.f32 %v1511, %v1539
        %v1555 = vadd.f32 %v1512, %v1540
        %v1556 = vadd.f32 %v1513, %v1541
        %v1557 = vadd.f32 %v1514, %v1542
        %v1558 = vadd.f32 %v1515, %v1534
        %v1559 = vadd.f32 %v1516, %v1536
        %v1560 = vadd.f32 %v1517, %v1537
        %v1561 = vadd.f32 %v1518, %v1538
        %v1562 = vadd.f32 %v1519, %v1539
        %v1563 = vadd.f32 %v1520, %v1540
        %v1564 = vadd.f32 %v1521, %v1541
        %v1565 = vadd.f32 %v1522, %v1542
        %v1566 = vadd.f32 %v1523, %v1534
        %v1567 = vadd.f32 %v1524, %v1536
        %v1568 = vadd.f32 %v1525, %v1537
        %v1569 = vadd.f32 %v1526, %v1538
        %v1570 = vadd.f32 %v1527, %v1539
        %v1571 = vadd.f32 %v1528, %v1540
        %v1572 = vadd.f32 %v1529, %v1541
        %v1573 = vadd.f32 %v1530, %v1542
        %v1574 = vadd.f32 %v1531, %v1534
        %v1575 = vadd.f32 %v1532, %v1536
        %1602 = vst [vmem:[#allocation1] ss:$9 sm:$0xff] %v1550
        %s1603 = scalar_lea.vmem [#allocation1], 1
        %1604 = vst [vmem:[%s1603] ss:$9 sm:$0xff] %v1551
        %s1605 = scalar_lea.vmem [#allocation1], 2
        %1606 = vst [vmem:[%s1605] ss:$9 sm:$0xff] %v1552
        %s1607 = scalar_lea.vmem [#allocation1], 3
        %1608 = vst [vmem:[%s1607] ss:$9 sm:$0xff] %v1553
        %s1609 = scalar_lea.vmem [#allocation1], 4
        %1610 = vst [vmem:[%s1609] ss:$9 sm:$0xff] %v1554
        %s1611 = scalar_lea.vmem [#allocation1], 5
        %1612 = vst [vmem:[%s1611] ss:$9 sm:$0xff] %v1555
        %s1613 = scalar_lea.vmem [#allocation1], 6
        %1614 = vst [vmem:[%s1613] ss:$9 sm:$0xff] %v1556
        %s1615 = scalar_lea.vmem [#allocation1], 7
        %1616 = vst [vmem:[%s1615] ss:$9 sm:$0xff] %v1557
        %v1617 = vld [vmem:[#allocation1] sm:$0xff]
        %1618 = vst [vmem:[#allocation1] ss:$9 sm:$0xff] %v1558
        %1619 = vst [vmem:[%s1603] ss:$9 sm:$0xff] %v1559
        %1620 = vst [vmem:[%s1605] ss:$9 sm:$0xff] %v1560
        %1621 = vst [vmem:[%s1607] ss:$9 sm:$0xff] %v1561
        %1622 = vst [vmem:[%s1609] ss:$9 sm:$0xff] %v1562
        %1623 = vst [vmem:[%s1611] ss:$9 sm:$0xff] %v1563
        %1624 = vst [vmem:[%s1613] ss:$9 sm:$0xff] %v1564
        %1625 = vst [vmem:[%s1615] ss:$9 sm:$0xff] %v1565
        %v1626 = vld [vmem:[#allocation1] sm:$0xff]
        %1627 = vst [vmem:[#allocation1] ss:$9 sm:$0xff] %v1566
        %1628 = vst [vmem:[%s1603] ss:$9 sm:$0xff] %v1567
        %1629 = vst [vmem:[%s1605] ss:$9 sm:$0xff] %v1568
        %1630 = vst [vmem:[%s1607] ss:$9 sm:$0xff] %v1569
        %1631 = vst [vmem:[%s1609] ss:$9 sm:$0xff] %v1570
        %1632 = vst [vmem:[%s1611] ss:$9 sm:$0xff] %v1571
        %1633 = vst [vmem:[%s1613] ss:$9 sm:$0xff] %v1572
        %1634 = vst [vmem:[%s1615] ss:$9 sm:$0xff] %v1573
        %v1635 = vld [vmem:[#allocation1] sm:$0xff]
        %1636 = vst [vmem:[#allocation1] ss:$9 sm:$0xff] %v1574
        %1637 = vst [vmem:[%s1603] ss:$9 sm:$0xff] %v1575
        %v1638 = vld [vmem:[#allocation1] sm:$0xff]
        %v1643 = vpack.c.bf16 %v1626, %v1617
        %v1644 = vpack.c.bf16 %v1638, %v1635
        %v1646 = vperm.slane %v1029, 0
        %v1652 = vunpack.c.l.b16 %v1025
        %v1653 = vunpack.c.l.b16 %v1026
        %v1654 = vunpack.c.l.b16 %v1027
        %v1655 = vunpack.c.l.b16 %v1028
        %v1656 = vpack.c.b16 %v1653, %v1652
        %v1657 = vpack.c.b16 %v1655, %v1654
        %v1661 = vsel %vm1148, %v1643, 0
        %v1664 = vsel %vm1148, %v1644, 0
        %1666 = vmatpush.bf16.msra.mxu0 0
        %1667 = vmatpush.bf16.msra.mxu0 0
        %1668 = vmatpush.bf16.msra.mxu0 0
        %1669 = vmatpush.bf16.msra.mxu0 0
        %1670 = vmatpush.bf16.msra.mxu0 0
        %1671 = vmatpush.bf16.msra.mxu0 0
        %1672 = vmatpush.bf16.msra.mxu0 %v1657
        %1673 = vmatpush.bf16.msra.mxu0 %v1656
        %1674 = vmatmul.bf16.gmra.mxu0 %v1661
        %v1675 = vpop.f32.mrf.mxu0
        %v1676 = vadd.f32 %v1646, %v1675
        %v1677 = vpop.f32.mrf.mxu0
        %v1678 = vadd.f32 %v1646, %v1677
        %1679 = vmatmul.bf16.gmra.mxu0 %v1664
        %v1680 = vpop.f32.mrf.mxu0
        %v1681 = vadd.f32 %v1646, %v1680
        %v1682 = vpop.f32.mrf.mxu0
        %v1683 = vadd.f32 %v1646, %v1682
        %1684 = vdwg.mxu0
        %v1689 = vrot.slane %v1676, 1
        %v1690 = vrot.slane %v1676, 2
        %v1691 = vrot.slane %v1676, 3
        %v1692 = vrot.slane %v1676, 4
        %v1693 = vrot.slane %v1676, 5
        %v1694 = vrot.slane %v1676, 6
        %v1695 = vrot.slane %v1676, 7
        %v1696 = vrot.slane %v1678, 1
        %v1697 = vrot.slane %v1678, 2
        %v1698 = vrot.slane %v1678, 3
        %v1699 = vrot.slane %v1678, 4
        %v1700 = vrot.slane %v1678, 5
        %v1701 = vrot.slane %v1678, 6
        %v1702 = vrot.slane %v1678, 7
        %v1703 = vrot.slane %v1681, 1
        %v1704 = vrot.slane %v1681, 2
        %v1705 = vrot.slane %v1681, 3
        %v1706 = vrot.slane %v1681, 4
        %v1707 = vrot.slane %v1681, 5
        %v1708 = vrot.slane %v1681, 6
        %v1709 = vrot.slane %v1681, 7
        %v1710 = vrot.slane %v1683, 1
        %1711 = vst [vmem:[#allocation1] ss:$9 sm:$0xff] %v1676
        %s1712 = scalar_lea.vmem [#allocation1], 1
        %1713 = vst [vmem:[%s1712] ss:$9 sm:$0xff] %v1689
        %s1714 = scalar_lea.vmem [#allocation1], 2
        %1715 = vst [vmem:[%s1714] ss:$9 sm:$0xff] %v1690
        %s1716 = scalar_lea.vmem [#allocation1], 3
        %1717 = vst [vmem:[%s1716] ss:$9 sm:$0xff] %v1691
        %s1718 = scalar_lea.vmem [#allocation1], 4
        %1719 = vst [vmem:[%s1718] ss:$9 sm:$0xff] %v1692
        %s1720 = scalar_lea.vmem [#allocation1], 5
        %1721 = vst [vmem:[%s1720] ss:$9 sm:$0xff] %v1693
        %s1722 = scalar_lea.vmem [#allocation1], 6
        %1723 = vst [vmem:[%s1722] ss:$9 sm:$0xff] %v1694
        %s1724 = scalar_lea.vmem [#allocation1], 7
        %1725 = vst [vmem:[%s1724] ss:$9 sm:$0xff] %v1695
        %v1726 = vld [vmem:[#allocation1] sm:$0xff]
        %1727 = vst [vmem:[#allocation1] ss:$9 sm:$0xff] %v1678
        %1728 = vst [vmem:[%s1712] ss:$9 sm:$0xff] %v1696
        %1729 = vst [vmem:[%s1714] ss:$9 sm:$0xff] %v1697
        %1730 = vst [vmem:[%s1716] ss:$9 sm:$0xff] %v1698
        %1731 = vst [vmem:[%s1718] ss:$9 sm:$0xff] %v1699
        %v1732 = vld [vmem:[#allocation1] sm:$0xff]
        %v1735 = vpack.c.bf16 %v1732, %v1726
        %1736 = vst [vmem:[#allocation1] ss:$9 sm:$0xff] %v1676
        %s1737 = scalar_lea.vmem [#allocation1], 1
        %1738 = vst [vmem:[%s1737] ss:$9 sm:$0xff] %v1689
        %s1739 = scalar_lea.vmem [#allocation1], 2
        %1740 = vst [vmem:[%s1739] ss:$9 sm:$0xff] %v1690
        %s1741 = scalar_lea.vmem [#allocation1], 3
        %1742 = vst [vmem:[%s1741] ss:$9 sm:$0xff] %v1691
        %s1743 = scalar_lea.vmem [#allocation1], 4
        %1744 = vst [vmem:[%s1743] ss:$9 sm:$0xff] %v1692
        %s1745 = scalar_lea.vmem [#allocation1], 5
        %1746 = vst [vmem:[%s1745] ss:$9 sm:$0xff] %v1693
        %s1747 = scalar_lea.vmem [#allocation1], 6
        %1748 = vst [vmem:[%s1747] ss:$9 sm:$0xff] %v1694
        %s1749 = scalar_lea.vmem [#allocation1], 7
        %1750 = vst [vmem:[%s1749] ss:$9 sm:$0xff] %v1695
        %v1751 = vld [vmem:[#allocation1] sm:$0xff]
        %1752 = vst [vmem:[#allocation1] ss:$9 sm:$0xff] %v1678
        %1753 = vst [vmem:[%s1737] ss:$9 sm:$0xff] %v1696
        %1754 = vst [vmem:[%s1739] ss:$9 sm:$0xff] %v1697
        %1755 = vst [vmem:[%s1741] ss:$9 sm:$0xff] %v1698
        %1756 = vst [vmem:[%s1743] ss:$9 sm:$0xff] %v1699
        %v1757 = vld [vmem:[#allocation1] sm:$0xff]
        %v1760 = vpack.c.bf16 %v1757, %v1751
        %1762 = vrot.lane.b32.xlu0 %v1760, 96
        %v1763 = vpop.permute.xlu0 %1762
        %vm1764 = vcmask 64512
        %v1766 = vsel %vm1764, %v1735, 0
        %v1769 = vsel %vm1764, %v1763, 0
        %1771 = vmatpush.bf16.xpose.msra.mxu0 0
        %1772 = vmatpush.bf16.xpose.msra.mxu0 0
        %1773 = vmatpush.bf16.xpose.msra.mxu0 0
        %1774 = vmatpush.bf16.xpose.msra.mxu0 0
        %1775 = vmatpush.bf16.xpose.msra.mxu0 0
        %1776 = vmatpush.bf16.xpose.msra.mxu0 0
        %1777 = vmatpush.bf16.xpose.msra.mxu0 0
        %1778 = vmatpush.bf16.xpose.msra.mxu0 %v1769
        %1779 = vmatmul.bf16.gmra.mxu0 %v1766
        %v1780 = vpop.f32.mrf.mxu0
        %v1781 = vadd.f32 %v1019, %v1780
        %v1782 = vpop.f32.mrf.mxu0
        %v1783 = vadd.f32 %v1020, %v1782
        %1784 = vdwg.mxu0
        %vm1785 = vcmask 105472
        %v1786 = vsel %vm1785, %v1781, -inf
        %1787 = vmax.xlane.f32.xlu0 %v1786
        %v1788 = vpop.xlane.xlu0 %1787
        %vm1789 = vcmask 102400
        %v1790 = vsel %vm1789, %v1783, -inf
        %1791 = vmax.xlane.f32.xlu0 %v1790
        %v1792 = vpop.xlane.xlu0 %1791
        %v1793 = vsub.f32 %v1781, %v1788
        %v1794 = vsub.f32 %v1783, %v1792
        %v1795 = vmul.f32 %v1793, 1.442695
        %v1796 = vpow.pop %v1795
        %v1797 = vmul.f32 %v1794, 1.442695
        %v1798 = vpow.pop %v1797
        %v1799 = vsel %vm1785, %v1796, 0.0
        %1800 = vadd.xlane.f32.xlu0 %v1799
        %v1801 = vpop.xlane.xlu0 %1800
        %v1802 = vsel %vm1789, %v1798, 0.0
        %1803 = vadd.xlane.f32.xlu0 %v1802
        %v1804 = vpop.xlane.xlu0 %1803
        %v1805 = vrcp.pop %v1801
        %v1806 = vrcp.pop %v1804
        %v1807 = vmul.f32 %v1796, %v1805
        %v1808 = vmul.f32 %v1798, %v1806
        %v1809 = vpack.c.bf16 %v1808, %v1807
        %1810 = vst [vmem:[#allocation1] ss:$9 sm:$0xff] %v1676
        %s1811 = scalar_lea.vmem [#allocation1], 1
        %1812 = vst [vmem:[%s1811] ss:$9 sm:$0xff] %v1689
        %s1813 = scalar_lea.vmem [#allocation1], 2
        %1814 = vst [vmem:[%s1813] ss:$9 sm:$0xff] %v1690
        %s1815 = scalar_lea.vmem [#allocation1], 3
        %1816 = vst [vmem:[%s1815] ss:$9 sm:$0xff] %v1691
        %s1817 = scalar_lea.vmem [#allocation1], 4
        %1818 = vst [vmem:[%s1817] ss:$9 sm:$0xff] %v1692
        %s1819 = scalar_lea.vmem [#allocation1], 5
        %1820 = vst [vmem:[%s1819] ss:$9 sm:$0xff] %v1693
        %s1821 = scalar_lea.vmem [#allocation1], 6
        %1822 = vst [vmem:[%s1821] ss:$9 sm:$0xff] %v1694
        %s1823 = scalar_lea.vmem [#allocation1], 7
        %1824 = vst [vmem:[%s1823] ss:$9 sm:$0xff] %v1695
        %v1825 = vld [vmem:[#allocation1] sm:$0xff]
        %1826 = vst [vmem:[#allocation1] ss:$9 sm:$0xff] %v1678
        %1827 = vst [vmem:[%s1811] ss:$9 sm:$0xff] %v1696
        %1828 = vst [vmem:[%s1813] ss:$9 sm:$0xff] %v1697
        %1829 = vst [vmem:[%s1815] ss:$9 sm:$0xff] %v1698
        %1830 = vst [vmem:[%s1817] ss:$9 sm:$0xff] %v1699
        %v1831 = vld [vmem:[#allocation1] sm:$0xff]
        %v1834 = vpack.c.bf16 %v1831, %v1825
        %1836 = vrot.lane.b32.xlu0 %v1834, 64
        %v1837 = vpop.permute.xlu0 %1836
        %v1839 = vsel %vm1785, %v1809, 0
        %vm1841 = vcmask 1045504
        %vm1842 = vcmask 1046528
        %v1843 = vsel %vm1841, 4294967295, 65535
        %v1844 = vsel %vm1842, %v1843, 0
        %v1846 = vand.u32 %v1837, %v1844
        %1848 = vmatpush.bf16.msra.mxu0 0
        %1849 = vmatpush.bf16.msra.mxu0 0
        %1850 = vmatpush.bf16.msra.mxu0 0
        %1851 = vmatpush.bf16.msra.mxu0 0
        %1852 = vmatpush.bf16.msra.mxu0 0
        %1853 = vmatpush.bf16.msra.mxu0 0
        %1854 = vmatpush.bf16.msra.mxu0 0
        %1855 = vmatpush.bf16.msra.mxu0 %v1846
        %1856 = vmatmul.bf16.gmra.mxu0 %v1839
        %v1857 = vpop.f32.mrf.mxu0
        %v1858 = vadd.f32 0.0, %v1857
        %v1859 = vpop.f32.mrf.mxu0
        %v1860 = vadd.f32 0.0, %v1859
        %1861 = vdwg.mxu0
        %1862 = vst [vmem:[#allocation1] ss:$9 sm:$0xff] %v1676
        %s1863 = scalar_lea.vmem [#allocation1], 1
        %1864 = vst [vmem:[%s1863] ss:$9 sm:$0xff] %v1689
        %s1865 = scalar_lea.vmem [#allocation1], 2
        %1866 = vst [vmem:[%s1865] ss:$9 sm:$0xff] %v1690
        %s1867 = scalar_lea.vmem [#allocation1], 3
        %1868 = vst [vmem:[%s1867] ss:$9 sm:$0xff] %v1691
        %s1869 = scalar_lea.vmem [#allocation1], 4
        %1870 = vst [vmem:[%s1869] ss:$9 sm:$0xff] %v1692
        %s1871 = scalar_lea.vmem [#allocation1], 5
        %1872 = vst [vmem:[%s1871] ss:$9 sm:$0xff] %v1693
        %s1873 = scalar_lea.vmem [#allocation1], 6
        %1874 = vst [vmem:[%s1873] ss:$9 sm:$0xff] %v1694
        %s1875 = scalar_lea.vmem [#allocation1], 7
        %1876 = vst [vmem:[%s1875] ss:$9 sm:$0xff] %v1695
        %v1877 = vld [vmem:[#allocation1] sm:$0xff]
        %1878 = vst [vmem:[#allocation1] ss:$9 sm:$0xff] %v1678
        %1879 = vst [vmem:[%s1863] ss:$9 sm:$0xff] %v1696
        %1880 = vst [vmem:[%s1865] ss:$9 sm:$0xff] %v1697
        %1881 = vst [vmem:[%s1867] ss:$9 sm:$0xff] %v1698
        %1882 = vst [vmem:[%s1869] ss:$9 sm:$0xff] %v1699
        %v1883 = vld [vmem:[#allocation1] sm:$0xff]
        %v1886 = vpack.c.bf16 %v1883, %v1877
        %1887 = vst [vmem:[#allocation1] ss:$9 sm:$0xff] %v1676
        %s1888 = scalar_lea.vmem [#allocation1], 1
        %1889 = vst [vmem:[%s1888] ss:$9 sm:$0xff] %v1689
        %s1890 = scalar_lea.vmem [#allocation1], 2
        %1891 = vst [vmem:[%s1890] ss:$9 sm:$0xff] %v1690
        %s1892 = scalar_lea.vmem [#allocation1], 3
        %1893 = vst [vmem:[%s1892] ss:$9 sm:$0xff] %v1691
        %s1894 = scalar_lea.vmem [#allocation1], 4
        %1895 = vst [vmem:[%s1894] ss:$9 sm:$0xff] %v1692
        %s1896 = scalar_lea.vmem [#allocation1], 5
        %1897 = vst [vmem:[%s1896] ss:$9 sm:$0xff] %v1693
        %s1898 = scalar_lea.vmem [#allocation1], 6
        %1899 = vst [vmem:[%s1898] ss:$9 sm:$0xff] %v1694
        %s1900 = scalar_lea.vmem [#allocation1], 7
        %1901 = vst [vmem:[%s1900] ss:$9 sm:$0xff] %v1695
        %v1902 = vld [vmem:[#allocation1] sm:$0xff]
        %1903 = vst [vmem:[#allocation1] ss:$9 sm:$0xff] %v1678
        %1904 = vst [vmem:[%s1888] ss:$9 sm:$0xff] %v1696
        %1905 = vst [vmem:[%s1890] ss:$9 sm:$0xff] %v1697
        %1906 = vst [vmem:[%s1892] ss:$9 sm:$0xff] %v1698
        %1907 = vst [vmem:[%s1894] ss:$9 sm:$0xff] %v1699
        %v1908 = vld [vmem:[#allocation1] sm:$0xff]
        %v1911 = vpack.c.bf16 %v1908, %v1902
        %1913 = vrot.lane.b32.xlu0 %v1886, 120
        %v1914 = vpop.permute.xlu0 %1913
        %1916 = vrot.lane.b32.xlu0 %v1911, 88
        %v1917 = vpop.permute.xlu0 %1916
        %v1919 = vsel %vm1764, %v1914, 0
        %v1922 = vsel %vm1764, %v1917, 0
        %1924 = vmatpush.bf16.xpose.msra.mxu0 0
        %1925 = vmatpush.bf16.xpose.msra.mxu0 0
        %1926 = vmatpush.bf16.xpose.msra.mxu0 0
        %1927 = vmatpush.bf16.xpose.msra.mxu0 0
        %1928 = vmatpush.bf16.xpose.msra.mxu0 0
        %1929 = vmatpush.bf16.xpose.msra.mxu0 0
        %1930 = vmatpush.bf16.xpose.msra.mxu0 0
        %1931 = vmatpush.bf16.xpose.msra.mxu0 %v1922
        %1932 = vmatmul.bf16.gmra.mxu0 %v1919
        %v1933 = vpop.f32.mrf.mxu0
        %v1934 = vadd.f32 %v1019, %v1933
        %v1935 = vpop.f32.mrf.mxu0
        %v1936 = vadd.f32 %v1020, %v1935
        %1937 = vdwg.mxu0
        %v1938 = vsel %vm1785, %v1934, -inf
        %1939 = vmax.xlane.f32.xlu0 %v1938
        %v1940 = vpop.xlane.xlu0 %1939
        %v1941 = vsel %vm1789, %v1936, -inf
        %1942 = vmax.xlane.f32.xlu0 %v1941
        %v1943 = vpop.xlane.xlu0 %1942
        %v1944 = vsub.f32 %v1934, %v1940
        %v1945 = vsub.f32 %v1936, %v1943
        %v1946 = vmul.f32 %v1944, 1.442695
        %v1947 = vpow.pop %v1946
        %v1948 = vmul.f32 %v1945, 1.442695
        %v1949 = vpow.pop %v1948
        %v1950 = vsel %vm1785, %v1947, 0.0
        %1951 = vadd.xlane.f32.xlu0 %v1950
        %v1952 = vpop.xlane.xlu0 %1951
        %v1953 = vsel %vm1789, %v1949, 0.0
        %1954 = vadd.xlane.f32.xlu0 %v1953
        %v1955 = vpop.xlane.xlu0 %1954
        %v1956 = vrcp.pop %v1952
        %v1957 = vrcp.pop %v1955
        %v1958 = vmul.f32 %v1947, %v1956
        %v1959 = vmul.f32 %v1949, %v1957
        %v1960 = vpack.c.bf16 %v1959, %v1958
        %1961 = vst [vmem:[#allocation1] ss:$9 sm:$0xff] %v1676
        %s1962 = scalar_lea.vmem [#allocation1], 1
        %1963 = vst [vmem:[%s1962] ss:$9 sm:$0xff] %v1689
        %s1964 = scalar_lea.vmem [#allocation1], 2
        %1965 = vst [vmem:[%s1964] ss:$9 sm:$0xff] %v1690
        %s1966 = scalar_lea.vmem [#allocation1], 3
        %1967 = vst [vmem:[%s1966] ss:$9 sm:$0xff] %v1691
        %s1968 = scalar_lea.vmem [#allocation1], 4
        %1969 = vst [vmem:[%s1968] ss:$9 sm:$0xff] %v1692
        %s1970 = scalar_lea.vmem [#allocation1], 5
        %1971 = vst [vmem:[%s1970] ss:$9 sm:$0xff] %v1693
        %s1972 = scalar_lea.vmem [#allocation1], 6
        %1973 = vst [vmem:[%s1972] ss:$9 sm:$0xff] %v1694
        %s1974 = scalar_lea.vmem [#allocation1], 7
        %1975 = vst [vmem:[%s1974] ss:$9 sm:$0xff] %v1695
        %v1976 = vld [vmem:[#allocation1] sm:$0xff]
        %1977 = vst [vmem:[#allocation1] ss:$9 sm:$0xff] %v1678
        %1978 = vst [vmem:[%s1962] ss:$9 sm:$0xff] %v1696
        %1979 = vst [vmem:[%s1964] ss:$9 sm:$0xff] %v1697
        %1980 = vst [vmem:[%s1966] ss:$9 sm:$0xff] %v1698
        %1981 = vst [vmem:[%s1968] ss:$9 sm:$0xff] %v1699
        %v1982 = vld [vmem:[#allocation1] sm:$0xff]
        %v1985 = vpack.c.bf16 %v1982, %v1976
        %1987 = vrot.lane.b32.xlu0 %v1985, 56
        %v1988 = vpop.permute.xlu0 %1987
        %v1990 = vsel %vm1785, %v1960, 0
        %v1993 = vand.u32 %v1988, %v1844
        %1995 = vmatpush.bf16.msra.mxu0 0
        %1996 = vmatpush.bf16.msra.mxu0 0
        %1997 = vmatpush.bf16.msra.mxu0 0
        %1998 = vmatpush.bf16.msra.mxu0 0
        %1999 = vmatpush.bf16.msra.mxu0 0
        %2000 = vmatpush.bf16.msra.mxu0 0
        %2001 = vmatpush.bf16.msra.mxu0 0
        %2002 = vmatpush.bf16.msra.mxu0 %v1993
        %2003 = vmatmul.bf16.gmra.mxu0 %v1990
        %v2004 = vpop.f32.mrf.mxu0
        %v2005 = vadd.f32 0.0, %v2004
        %v2006 = vpop.f32.mrf.mxu0
        %v2007 = vadd.f32 0.0, %v2006
        %2008 = vdwg.mxu0
        %2009 = vst [vmem:[#allocation1] ss:$9 sm:$0xff] %v1676
        %s2010 = scalar_lea.vmem [#allocation1], 1
        %2011 = vst [vmem:[%s2010] ss:$9 sm:$0xff] %v1689
        %s2012 = scalar_lea.vmem [#allocation1], 2
        %2013 = vst [vmem:[%s2012] ss:$9 sm:$0xff] %v1690
        %s2014 = scalar_lea.vmem [#allocation1], 3
        %2015 = vst [vmem:[%s2014] ss:$9 sm:$0xff] %v1691
        %s2016 = scalar_lea.vmem [#allocation1], 4
        %2017 = vst [vmem:[%s2016] ss:$9 sm:$0xff] %v1692
        %s2018 = scalar_lea.vmem [#allocation1], 5
        %2019 = vst [vmem:[%s2018] ss:$9 sm:$0xff] %v1693
        %s2020 = scalar_lea.vmem [#allocation1], 6
        %2021 = vst [vmem:[%s2020] ss:$9 sm:$0xff] %v1694
        %s2022 = scalar_lea.vmem [#allocation1], 7
        %2023 = vst [vmem:[%s2022] ss:$9 sm:$0xff] %v1695
        %v2024 = vld [vmem:[#allocation1] sm:$0xff]
        %2025 = vst [vmem:[#allocation1] ss:$9 sm:$0xff] %v1678
        %2026 = vst [vmem:[%s2010] ss:$9 sm:$0xff] %v1696
        %2027 = vst [vmem:[%s2012] ss:$9 sm:$0xff] %v1697
        %2028 = vst [vmem:[%s2014] ss:$9 sm:$0xff] %v1698
        %2029 = vst [vmem:[%s2016] ss:$9 sm:$0xff] %v1699
        %v2030 = vld [vmem:[#allocation1] sm:$0xff]
        %v2033 = vpack.c.bf16 %v2030, %v2024
        %2034 = vst [vmem:[#allocation1] ss:$9 sm:$0xff] %v1676
        %s2035 = scalar_lea.vmem [#allocation1], 1
        %2036 = vst [vmem:[%s2035] ss:$9 sm:$0xff] %v1689
        %s2037 = scalar_lea.vmem [#allocation1], 2
        %2038 = vst [vmem:[%s2037] ss:$9 sm:$0xff] %v1690
        %s2039 = scalar_lea.vmem [#allocation1], 3
        %2040 = vst [vmem:[%s2039] ss:$9 sm:$0xff] %v1691
        %s2041 = scalar_lea.vmem [#allocation1], 4
        %2042 = vst [vmem:[%s2041] ss:$9 sm:$0xff] %v1692
        %s2043 = scalar_lea.vmem [#allocation1], 5
        %2044 = vst [vmem:[%s2043] ss:$9 sm:$0xff] %v1693
        %s2045 = scalar_lea.vmem [#allocation1], 6
        %2046 = vst [vmem:[%s2045] ss:$9 sm:$0xff] %v1694
        %s2047 = scalar_lea.vmem [#allocation1], 7
        %2048 = vst [vmem:[%s2047] ss:$9 sm:$0xff] %v1695
        %v2049 = vld [vmem:[#allocation1] sm:$0xff]
        %2050 = vst [vmem:[#allocation1] ss:$9 sm:$0xff] %v1678
        %2051 = vst [vmem:[%s2035] ss:$9 sm:$0xff] %v1696
        %2052 = vst [vmem:[%s2037] ss:$9 sm:$0xff] %v1697
        %2053 = vst [vmem:[%s2039] ss:$9 sm:$0xff] %v1698
        %2054 = vst [vmem:[%s2041] ss:$9 sm:$0xff] %v1699
        %v2055 = vld [vmem:[#allocation1] sm:$0xff]
        %v2058 = vpack.c.bf16 %v2055, %v2049
        %2060 = vrot.lane.b32.xlu0 %v2033, 112
        %v2061 = vpop.permute.xlu0 %2060
        %2063 = vrot.lane.b32.xlu0 %v2058, 80
        %v2064 = vpop.permute.xlu0 %2063
        %v2066 = vsel %vm1764, %v2061, 0
        %v2069 = vsel %vm1764, %v2064, 0
        %2071 = vmatpush.bf16.xpose.msra.mxu0 0
        %2072 = vmatpush.bf16.xpose.msra.mxu0 0
        %2073 = vmatpush.bf16.xpose.msra.mxu0 0
        %2074 = vmatpush.bf16.xpose.msra.mxu0 0
        %2075 = vmatpush.bf16.xpose.msra.mxu0 0
        %2076 = vmatpush.bf16.xpose.msra.mxu0 0
        %2077 = vmatpush.bf16.xpose.msra.mxu0 0
        %2078 = vmatpush.bf16.xpose.msra.mxu0 %v2069
        %2079 = vmatmul.bf16.gmra.mxu0 %v2066
        %v2080 = vpop.f32.mrf.mxu0
        %v2081 = vadd.f32 %v1019, %v2080
        %v2082 = vpop.f32.mrf.mxu0
        %v2083 = vadd.f32 %v1020, %v2082
        %2084 = vdwg.mxu0
        %v2085 = vsel %vm1785, %v2081, -inf
        %2086 = vmax.xlane.f32.xlu0 %v2085
        %v2087 = vpop.xlane.xlu0 %2086
        %v2088 = vsel %vm1789, %v2083, -inf
        %2089 = vmax.xlane.f32.xlu0 %v2088
        %v2090 = vpop.xlane.xlu0 %2089
        %v2091 = vsub.f32 %v2081, %v2087
        %v2092 = vsub.f32 %v2083, %v2090
        %v2093 = vmul.f32 %v2091, 1.442695
        %v2094 = vpow.pop %v2093
        %v2095 = vmul.f32 %v2092, 1.442695
        %v2096 = vpow.pop %v2095
        %v2097 = vsel %vm1785, %v2094, 0.0
        %2098 = vadd.xlane.f32.xlu0 %v2097
        %v2099 = vpop.xlane.xlu0 %2098
        %v2100 = vsel %vm1789, %v2096, 0.0
        %2101 = vadd.xlane.f32.xlu0 %v2100
        %v2102 = vpop.xlane.xlu0 %2101
        %v2103 = vrcp.pop %v2099
        %v2104 = vrcp.pop %v2102
        %v2105 = vmul.f32 %v2094, %v2103
        %v2106 = vmul.f32 %v2096, %v2104
        %v2107 = vpack.c.bf16 %v2106, %v2105
        %2108 = vst [vmem:[#allocation1] ss:$9 sm:$0xff] %v1676
        %s2109 = scalar_lea.vmem [#allocation1], 1
        %2110 = vst [vmem:[%s2109] ss:$9 sm:$0xff] %v1689
        %s2111 = scalar_lea.vmem [#allocation1], 2
        %2112 = vst [vmem:[%s2111] ss:$9 sm:$0xff] %v1690
        %s2113 = scalar_lea.vmem [#allocation1], 3
        %2114 = vst [vmem:[%s2113] ss:$9 sm:$0xff] %v1691
        %s2115 = scalar_lea.vmem [#allocation1], 4
        %2116 = vst [vmem:[%s2115] ss:$9 sm:$0xff] %v1692
        %s2117 = scalar_lea.vmem [#allocation1], 5
        %2118 = vst [vmem:[%s2117] ss:$9 sm:$0xff] %v1693
        %s2119 = scalar_lea.vmem [#allocation1], 6
        %2120 = vst [vmem:[%s2119] ss:$9 sm:$0xff] %v1694
        %s2121 = scalar_lea.vmem [#allocation1], 7
        %2122 = vst [vmem:[%s2121] ss:$9 sm:$0xff] %v1695
        %v2123 = vld [vmem:[#allocation1] sm:$0xff]
        %2124 = vst [vmem:[#allocation1] ss:$9 sm:$0xff] %v1678
        %2125 = vst [vmem:[%s2109] ss:$9 sm:$0xff] %v1696
        %2126 = vst [vmem:[%s2111] ss:$9 sm:$0xff] %v1697
        %2127 = vst [vmem:[%s2113] ss:$9 sm:$0xff] %v1698
        %2128 = vst [vmem:[%s2115] ss:$9 sm:$0xff] %v1699
        %v2129 = vld [vmem:[#allocation1] sm:$0xff]
        %v2132 = vpack.c.bf16 %v2129, %v2123
        %2134 = vrot.lane.b32.xlu0 %v2132, 48
        %v2135 = vpop.permute.xlu0 %2134
        %v2137 = vsel %vm1785, %v2107, 0
        %v2140 = vand.u32 %v2135, %v1844
        %2142 = vmatpush.bf16.msra.mxu0 0
        %2143 = vmatpush.bf16.msra.mxu0 0
        %2144 = vmatpush.bf16.msra.mxu0 0
        %2145 = vmatpush.bf16.msra.mxu0 0
        %2146 = vmatpush.bf16.msra.mxu0 0
        %2147 = vmatpush.bf16.msra.mxu0 0
        %2148 = vmatpush.bf16.msra.mxu0 0
        %2149 = vmatpush.bf16.msra.mxu0 %v2140
        %2150 = vmatmul.bf16.gmra.mxu0 %v2137
        %v2151 = vpop.f32.mrf.mxu0
        %v2152 = vadd.f32 0.0, %v2151
        %v2153 = vpop.f32.mrf.mxu0
        %v2154 = vadd.f32 0.0, %v2153
        %2155 = vdwg.mxu0
        %2156 = vst [vmem:[#allocation1] ss:$9 sm:$0xff] %v1676
        %s2157 = scalar_lea.vmem [#allocation1], 1
        %2158 = vst [vmem:[%s2157] ss:$9 sm:$0xff] %v1689
        %s2159 = scalar_lea.vmem [#allocation1], 2
        %2160 = vst [vmem:[%s2159] ss:$9 sm:$0xff] %v1690
        %s2161 = scalar_lea.vmem [#allocation1], 3
        %2162 = vst [vmem:[%s2161] ss:$9 sm:$0xff] %v1691
        %s2163 = scalar_lea.vmem [#allocation1], 4
        %2164 = vst [vmem:[%s2163] ss:$9 sm:$0xff] %v1692
        %s2165 = scalar_lea.vmem [#allocation1], 5
        %2166 = vst [vmem:[%s2165] ss:$9 sm:$0xff] %v1693
        %s2167 = scalar_lea.vmem [#allocation1], 6
        %2168 = vst [vmem:[%s2167] ss:$9 sm:$0xff] %v1694
        %s2169 = scalar_lea.vmem [#allocation1], 7
        %2170 = vst [vmem:[%s2169] ss:$9 sm:$0xff] %v1695
        %v2171 = vld [vmem:[#allocation1] sm:$0xff]
        %2172 = vst [vmem:[#allocation1] ss:$9 sm:$0xff] %v1678
        %2173 = vst [vmem:[%s2157] ss:$9 sm:$0xff] %v1696
        %2174 = vst [vmem:[%s2159] ss:$9 sm:$0xff] %v1697
        %2175 = vst [vmem:[%s2161] ss:$9 sm:$0xff] %v1698
        %2176 = vst [vmem:[%s2163] ss:$9 sm:$0xff] %v1699
        %v2177 = vld [vmem:[#allocation1] sm:$0xff]
        %v2180 = vpack.c.bf16 %v2177, %v2171
        %2181 = vst [vmem:[#allocation1] ss:$9 sm:$0xff] %v1676
        %s2182 = scalar_lea.vmem [#allocation1], 1
        %2183 = vst [vmem:[%s2182] ss:$9 sm:$0xff] %v1689
        %s2184 = scalar_lea.vmem [#allocation1], 2
        %2185 = vst [vmem:[%s2184] ss:$9 sm:$0xff] %v1690
        %s2186 = scalar_lea.vmem [#allocation1], 3
        %2187 = vst [vmem:[%s2186] ss:$9 sm:$0xff] %v1691
        %s2188 = scalar_lea.vmem [#allocation1], 4
        %2189 = vst [vmem:[%s2188] ss:$9 sm:$0xff] %v1692
        %s2190 = scalar_lea.vmem [#allocation1], 5
        %2191 = vst [vmem:[%s2190] ss:$9 sm:$0xff] %v1693
        %s2192 = scalar_lea.vmem [#allocation1], 6
        %2193 = vst [vmem:[%s2192] ss:$9 sm:$0xff] %v1694
        %s2194 = scalar_lea.vmem [#allocation1], 7
        %2195 = vst [vmem:[%s2194] ss:$9 sm:$0xff] %v1695
        %v2196 = vld [vmem:[#allocation1] sm:$0xff]
        %2197 = vst [vmem:[#allocation1] ss:$9 sm:$0xff] %v1678
        %2198 = vst [vmem:[%s2182] ss:$9 sm:$0xff] %v1696
        %2199 = vst [vmem:[%s2184] ss:$9 sm:$0xff] %v1697
        %2200 = vst [vmem:[%s2186] ss:$9 sm:$0xff] %v1698
        %2201 = vst [vmem:[%s2188] ss:$9 sm:$0xff] %v1699
        %v2202 = vld [vmem:[#allocation1] sm:$0xff]
        %v2205 = vpack.c.bf16 %v2202, %v2196
        %2207 = vrot.lane.b32.xlu0 %v2180, 104
        %v2208 = vpop.permute.xlu0 %2207
        %2210 = vrot.lane.b32.xlu0 %v2205, 72
        %v2211 = vpop.permute.xlu0 %2210
        %v2213 = vsel %vm1764, %v2208, 0
        %v2216 = vsel %vm1764, %v2211, 0
        %2218 = vmatpush.bf16.xpose.msra.mxu0 0
        %2219 = vmatpush.bf16.xpose.msra.mxu0 0
        %2220 = vmatpush.bf16.xpose.msra.mxu0 0
        %2221 = vmatpush.bf16.xpose.msra.mxu0 0
        %2222 = vmatpush.bf16.xpose.msra.mxu0 0
        %2223 = vmatpush.bf16.xpose.msra.mxu0 0
        %2224 = vmatpush.bf16.xpose.msra.mxu0 0
        %2225 = vmatpush.bf16.xpose.msra.mxu0 %v2216
        %2226 = vmatmul.bf16.gmra.mxu0 %v2213
        %v2227 = vpop.f32.mrf.mxu0
        %v2228 = vadd.f32 %v1019, %v2227
        %v2229 = vpop.f32.mrf.mxu0
        %v2230 = vadd.f32 %v1020, %v2229
        %2231 = vdwg.mxu0
        %v2232 = vsel %vm1785, %v2228, -inf
        %2233 = vmax.xlane.f32.xlu0 %v2232
        %v2234 = vpop.xlane.xlu0 %2233
        %v2235 = vsel %vm1789, %v2230, -inf
        %2236 = vmax.xlane.f32.xlu0 %v2235
        %v2237 = vpop.xlane.xlu0 %2236
        %v2238 = vsub.f32 %v2228, %v2234
        %v2239 = vsub.f32 %v2230, %v2237
        %v2240 = vmul.f32 %v2238, 1.442695
        %v2241 = vpow.pop %v2240
        %v2242 = vmul.f32 %v2239, 1.442695
        %v2243 = vpow.pop %v2242
        %v2244 = vsel %vm1785, %v2241, 0.0
        %2245 = vadd.xlane.f32.xlu0 %v2244
        %v2246 = vpop.xlane.xlu0 %2245
        %v2247 = vsel %vm1789, %v2243, 0.0
        %2248 = vadd.xlane.f32.xlu0 %v2247
        %v2249 = vpop.xlane.xlu0 %2248
        %v2250 = vrcp.pop %v2246
        %v2251 = vrcp.pop %v2249
        %v2252 = vmul.f32 %v2241, %v2250
        %v2253 = vmul.f32 %v2243, %v2251
        %v2254 = vpack.c.bf16 %v2253, %v2252
        %2255 = vst [vmem:[#allocation1] ss:$9 sm:$0xff] %v1676
        %s2256 = scalar_lea.vmem [#allocation1], 1
        %2257 = vst [vmem:[%s2256] ss:$9 sm:$0xff] %v1689
        %s2258 = scalar_lea.vmem [#allocation1], 2
        %2259 = vst [vmem:[%s2258] ss:$9 sm:$0xff] %v1690
        %s2260 = scalar_lea.vmem [#allocation1], 3
        %2261 = vst [vmem:[%s2260] ss:$9 sm:$0xff] %v1691
        %s2262 = scalar_lea.vmem [#allocation1], 4
        %2263 = vst [vmem:[%s2262] ss:$9 sm:$0xff] %v1692
        %s2264 = scalar_lea.vmem [#allocation1], 5
        %2265 = vst [vmem:[%s2264] ss:$9 sm:$0xff] %v1693
        %s2266 = scalar_lea.vmem [#allocation1], 6
        %2267 = vst [vmem:[%s2266] ss:$9 sm:$0xff] %v1694
        %s2268 = scalar_lea.vmem [#allocation1], 7
        %2269 = vst [vmem:[%s2268] ss:$9 sm:$0xff] %v1695
        %v2270 = vld [vmem:[#allocation1] sm:$0xff]
        %2271 = vst [vmem:[#allocation1] ss:$9 sm:$0xff] %v1678
        %2272 = vst [vmem:[%s2256] ss:$9 sm:$0xff] %v1696
        %2273 = vst [vmem:[%s2258] ss:$9 sm:$0xff] %v1697
        %2274 = vst [vmem:[%s2260] ss:$9 sm:$0xff] %v1698
        %2275 = vst [vmem:[%s2262] ss:$9 sm:$0xff] %v1699
        %v2276 = vld [vmem:[#allocation1] sm:$0xff]
        %v2279 = vpack.c.bf16 %v2276, %v2270
        %2281 = vrot.lane.b32.xlu0 %v2279, 40
        %v2282 = vpop.permute.xlu0 %2281
        %v2284 = vsel %vm1785, %v2254, 0
        %v2287 = vand.u32 %v2282, %v1844
        %2289 = vmatpush.bf16.msra.mxu0 0
        %2290 = vmatpush.bf16.msra.mxu0 0
        %2291 = vmatpush.bf16.msra.mxu0 0
        %2292 = vmatpush.bf16.msra.mxu0 0
        %2293 = vmatpush.bf16.msra.mxu0 0
        %2294 = vmatpush.bf16.msra.mxu0 0
        %2295 = vmatpush.bf16.msra.mxu0 0
        %2296 = vmatpush.bf16.msra.mxu0 %v2287
        %2297 = vmatmul.bf16.gmra.mxu0 %v2284
        %v2298 = vpop.f32.mrf.mxu0
        %v2299 = vadd.f32 0.0, %v2298
        %v2300 = vpop.f32.mrf.mxu0
        %v2301 = vadd.f32 0.0, %v2300
        %2302 = vdwg.mxu0
        %2305 = vrot.lane.b32.xlu0 %v2005, 8
        %v2306 = vpop.permute.xlu0 %2305
        %2307 = vrot.lane.b32.xlu0 %v2007, 8
        %v2308 = vpop.permute.xlu0 %2307
        %2313 = vrot.lane.b32.xlu0 %v2152, 16
        %v2314 = vpop.permute.xlu0 %2313
        %2315 = vrot.lane.b32.xlu0 %v2154, 16
        %v2316 = vpop.permute.xlu0 %2315
        %2321 = vrot.lane.b32.xlu0 %v2299, 24
        %v2322 = vpop.permute.xlu0 %2321
        %2323 = vrot.lane.b32.xlu0 %v2301, 24
        %v2324 = vpop.permute.xlu0 %2323
        %v2327 = vsel %vm1764, %v1858, %v2306
        %v2328 = vsel %vm1764, %v1860, %v2308
        %vm2329 = vcmask 130048
        %v2330 = vsel %vm2329, %v2327, %v2314
        %v2331 = vsel %vm2329, %v2328, %v2316
        %vm2332 = vcmask 195584
        %v2333 = vsel %vm2332, %v2330, %v2322
        %v2334 = vsel %vm2332, %v2331, %v2324
        %2335 = vst [vmem:[#allocation1] ss:$9 sm:$0xff] %v1700
        %s2336 = scalar_lea.vmem [#allocation1], 1
        %2337 = vst [vmem:[%s2336] ss:$9 sm:$0xff] %v1701
        %s2338 = scalar_lea.vmem [#allocation1], 2
        %2339 = vst [vmem:[%s2338] ss:$9 sm:$0xff] %v1702
        %s2340 = scalar_lea.vmem [#allocation1], 3
        %2341 = vst [vmem:[%s2340] ss:$9 sm:$0xff] %v1681
        %s2342 = scalar_lea.vmem [#allocation1], 4
        %2343 = vst [vmem:[%s2342] ss:$9 sm:$0xff] %v1703
        %s2344 = scalar_lea.vmem [#allocation1], 5
        %2345 = vst [vmem:[%s2344] ss:$9 sm:$0xff] %v1704
        %s2346 = scalar_lea.vmem [#allocation1], 6
        %2347 = vst [vmem:[%s2346] ss:$9 sm:$0xff] %v1705
        %s2348 = scalar_lea.vmem [#allocation1], 7
        %2349 = vst [vmem:[%s2348] ss:$9 sm:$0xff] %v1706
        %v2350 = vld [vmem:[#allocation1] sm:$0xff]
        %2351 = vst [vmem:[#allocation1] ss:$9 sm:$0xff] %v1707
        %2352 = vst [vmem:[%s2336] ss:$9 sm:$0xff] %v1708
        %2353 = vst [vmem:[%s2338] ss:$9 sm:$0xff] %v1709
        %2354 = vst [vmem:[%s2340] ss:$9 sm:$0xff] %v1683
        %2355 = vst [vmem:[%s2342] ss:$9 sm:$0xff] %v1710
        %v2356 = vld [vmem:[#allocation1] sm:$0xff]
        %v2359 = vpack.c.bf16 %v2356, %v2350
        %2360 = vst [vmem:[#allocation1] ss:$9 sm:$0xff] %v1700
        %s2361 = scalar_lea.vmem [#allocation1], 1
        %2362 = vst [vmem:[%s2361] ss:$9 sm:$0xff] %v1701
        %s2363 = scalar_lea.vmem [#allocation1], 2
        %2364 = vst [vmem:[%s2363] ss:$9 sm:$0xff] %v1702
        %s2365 = scalar_lea.vmem [#allocation1], 3
        %2366 = vst [vmem:[%s2365] ss:$9 sm:$0xff] %v1681
        %s2367 = scalar_lea.vmem [#allocation1], 4
        %2368 = vst [vmem:[%s2367] ss:$9 sm:$0xff] %v1703
        %s2369 = scalar_lea.vmem [#allocation1], 5
        %2370 = vst [vmem:[%s2369] ss:$9 sm:$0xff] %v1704
        %s2371 = scalar_lea.vmem [#allocation1], 6
        %2372 = vst [vmem:[%s2371] ss:$9 sm:$0xff] %v1705
        %s2373 = scalar_lea.vmem [#allocation1], 7
        %2374 = vst [vmem:[%s2373] ss:$9 sm:$0xff] %v1706
        %v2375 = vld [vmem:[#allocation1] sm:$0xff]
        %2376 = vst [vmem:[#allocation1] ss:$9 sm:$0xff] %v1707
        %2377 = vst [vmem:[%s2361] ss:$9 sm:$0xff] %v1708
        %2378 = vst [vmem:[%s2363] ss:$9 sm:$0xff] %v1709
        %2379 = vst [vmem:[%s2365] ss:$9 sm:$0xff] %v1683
        %2380 = vst [vmem:[%s2367] ss:$9 sm:$0xff] %v1710
        %v2381 = vld [vmem:[#allocation1] sm:$0xff]
        %v2384 = vpack.c.bf16 %v2381, %v2375
        %2386 = vrot.lane.b32.xlu0 %v2384, 96
        %v2387 = vpop.permute.xlu0 %2386
        %v2389 = vsel %vm1764, %v2359, 0
        %v2392 = vsel %vm1764, %v2387, 0
        %2394 = vmatpush.bf16.xpose.msra.mxu0 0
        %2395 = vmatpush.bf16.xpose.msra.mxu0 0
        %2396 = vmatpush.bf16.xpose.msra.mxu0 0
        %2397 = vmatpush.bf16.xpose.msra.mxu0 0
        %2398 = vmatpush.bf16.xpose.msra.mxu0 0
        %2399 = vmatpush.bf16.xpose.msra.mxu0 0
        %2400 = vmatpush.bf16.xpose.msra.mxu0 0
        %2401 = vmatpush.bf16.xpose.msra.mxu0 %v2392
        %2402 = vmatmul.bf16.gmra.mxu0 %v2389
        %v2403 = vpop.f32.mrf.mxu0
        %v2404 = vadd.f32 %v1021, %v2403
        %v2405 = vpop.f32.mrf.mxu0
        %v2406 = vadd.f32 %v1022, %v2405
        %2407 = vdwg.mxu0
        %v2408 = vsel %vm1785, %v2404, -inf
        %2409 = vmax.xlane.f32.xlu0 %v2408
        %v2410 = vpop.xlane.xlu0 %2409
        %v2411 = vsel %vm1789, %v2406, -inf
        %2412 = vmax.xlane.f32.xlu0 %v2411
        %v2413 = vpop.xlane.xlu0 %2412
        %v2414 = vsub.f32 %v2404, %v2410
        %v2415 = vsub.f32 %v2406, %v2413
        %v2416 = vmul.f32 %v2414, 1.442695
        %v2417 = vpow.pop %v2416
        %v2418 = vmul.f32 %v2415, 1.442695
        %v2419 = vpow.pop %v2418
        %v2420 = vsel %vm1785, %v2417, 0.0
        %2421 = vadd.xlane.f32.xlu0 %v2420
        %v2422 = vpop.xlane.xlu0 %2421
        %v2423 = vsel %vm1789, %v2419, 0.0
        %2424 = vadd.xlane.f32.xlu0 %v2423
        %v2425 = vpop.xlane.xlu0 %2424
        %v2426 = vrcp.pop %v2422
        %v2427 = vrcp.pop %v2425
        %v2428 = vmul.f32 %v2417, %v2426
        %v2429 = vmul.f32 %v2419, %v2427
        %v2430 = vpack.c.bf16 %v2429, %v2428
        %2431 = vst [vmem:[#allocation1] ss:$9 sm:$0xff] %v1700
        %s2432 = scalar_lea.vmem [#allocation1], 1
        %2433 = vst [vmem:[%s2432] ss:$9 sm:$0xff] %v1701
        %s2434 = scalar_lea.vmem [#allocation1], 2
        %2435 = vst [vmem:[%s2434] ss:$9 sm:$0xff] %v1702
        %s2436 = scalar_lea.vmem [#allocation1], 3
        %2437 = vst [vmem:[%s2436] ss:$9 sm:$0xff] %v1681
        %s2438 = scalar_lea.vmem [#allocation1], 4
        %2439 = vst [vmem:[%s2438] ss:$9 sm:$0xff] %v1703
        %s2440 = scalar_lea.vmem [#allocation1], 5
        %2441 = vst [vmem:[%s2440] ss:$9 sm:$0xff] %v1704
        %s2442 = scalar_lea.vmem [#allocation1], 6
        %2443 = vst [vmem:[%s2442] ss:$9 sm:$0xff] %v1705
        %s2444 = scalar_lea.vmem [#allocation1], 7
        %2445 = vst [vmem:[%s2444] ss:$9 sm:$0xff] %v1706
        %v2446 = vld [vmem:[#allocation1] sm:$0xff]
        %2447 = vst [vmem:[#allocation1] ss:$9 sm:$0xff] %v1707
        %2448 = vst [vmem:[%s2432] ss:$9 sm:$0xff] %v1708
        %2449 = vst [vmem:[%s2434] ss:$9 sm:$0xff] %v1709
        %2450 = vst [vmem:[%s2436] ss:$9 sm:$0xff] %v1683
        %2451 = vst [vmem:[%s2438] ss:$9 sm:$0xff] %v1710
        %v2452 = vld [vmem:[#allocation1] sm:$0xff]
        %v2455 = vpack.c.bf16 %v2452, %v2446
        %2457 = vrot.lane.b32.xlu0 %v2455, 64
        %v2458 = vpop.permute.xlu0 %2457
        %v2460 = vsel %vm1785, %v2430, 0
        %v2463 = vand.u32 %v2458, %v1844
        %2465 = vmatpush.bf16.msra.mxu0 0
        %2466 = vmatpush.bf16.msra.mxu0 0
        %2467 = vmatpush.bf16.msra.mxu0 0
        %2468 = vmatpush.bf16.msra.mxu0 0
        %2469 = vmatpush.bf16.msra.mxu0 0
        %2470 = vmatpush.bf16.msra.mxu0 0
        %2471 = vmatpush.bf16.msra.mxu0 0
        %2472 = vmatpush.bf16.msra.mxu0 %v2463
        %2473 = vmatmul.bf16.gmra.mxu0 %v2460
        %v2474 = vpop.f32.mrf.mxu0
        %v2475 = vadd.f32 0.0, %v2474
        %v2476 = vpop.f32.mrf.mxu0
        %v2477 = vadd.f32 0.0, %v2476
        %2478 = vdwg.mxu0
        %2479 = vst [vmem:[#allocation1] ss:$9 sm:$0xff] %v1700
        %s2480 = scalar_lea.vmem [#allocation1], 1
        %2481 = vst [vmem:[%s2480] ss:$9 sm:$0xff] %v1701
        %s2482 = scalar_lea.vmem [#allocation1], 2
        %2483 = vst [vmem:[%s2482] ss:$9 sm:$0xff] %v1702
        %s2484 = scalar_lea.vmem [#allocation1], 3
        %2485 = vst [vmem:[%s2484] ss:$9 sm:$0xff] %v1681
        %s2486 = scalar_lea.vmem [#allocation1], 4
        %2487 = vst [vmem:[%s2486] ss:$9 sm:$0xff] %v1703
        %s2488 = scalar_lea.vmem [#allocation1], 5
        %2489 = vst [vmem:[%s2488] ss:$9 sm:$0xff] %v1704
        %s2490 = scalar_lea.vmem [#allocation1], 6
        %2491 = vst [vmem:[%s2490] ss:$9 sm:$0xff] %v1705
        %s2492 = scalar_lea.vmem [#allocation1], 7
        %2493 = vst [vmem:[%s2492] ss:$9 sm:$0xff] %v1706
        %v2494 = vld [vmem:[#allocation1] sm:$0xff]
        %2495 = vst [vmem:[#allocation1] ss:$9 sm:$0xff] %v1707
        %2496 = vst [vmem:[%s2480] ss:$9 sm:$0xff] %v1708
        %2497 = vst [vmem:[%s2482] ss:$9 sm:$0xff] %v1709
        %2498 = vst [vmem:[%s2484] ss:$9 sm:$0xff] %v1683
        %2499 = vst [vmem:[%s2486] ss:$9 sm:$0xff] %v1710
        %v2500 = vld [vmem:[#allocation1] sm:$0xff]
        %v2503 = vpack.c.bf16 %v2500, %v2494
        %2504 = vst [vmem:[#allocation1] ss:$9 sm:$0xff] %v1700
        %s2505 = scalar_lea.vmem [#allocation1], 1
        %2506 = vst [vmem:[%s2505] ss:$9 sm:$0xff] %v1701
        %s2507 = scalar_lea.vmem [#allocation1], 2
        %2508 = vst [vmem:[%s2507] ss:$9 sm:$0xff] %v1702
        %s2509 = scalar_lea.vmem [#allocation1], 3
        %2510 = vst [vmem:[%s2509] ss:$9 sm:$0xff] %v1681
        %s2511 = scalar_lea.vmem [#allocation1], 4
        %2512 = vst [vmem:[%s2511] ss:$9 sm:$0xff] %v1703
        %s2513 = scalar_lea.vmem [#allocation1], 5
        %2514 = vst [vmem:[%s2513] ss:$9 sm:$0xff] %v1704
        %s2515 = scalar_lea.vmem [#allocation1], 6
        %2516 = vst [vmem:[%s2515] ss:$9 sm:$0xff] %v1705
        %s2517 = scalar_lea.vmem [#allocation1], 7
        %2518 = vst [vmem:[%s2517] ss:$9 sm:$0xff] %v1706
        %v2519 = vld [vmem:[#allocation1] sm:$0xff]
        %2520 = vst [vmem:[#allocation1] ss:$9 sm:$0xff] %v1707
        %2521 = vst [vmem:[%s2505] ss:$9 sm:$0xff] %v1708
        %2522 = vst [vmem:[%s2507] ss:$9 sm:$0xff] %v1709
        %2523 = vst [vmem:[%s2509] ss:$9 sm:$0xff] %v1683
        %2524 = vst [vmem:[%s2511] ss:$9 sm:$0xff] %v1710
        %v2525 = vld [vmem:[#allocation1] sm:$0xff]
        %v2528 = vpack.c.bf16 %v2525, %v2519
        %2530 = vrot.lane.b32.xlu0 %v2503, 120
        %v2531 = vpop.permute.xlu0 %2530
        %2533 = vrot.lane.b32.xlu0 %v2528, 88
        %v2534 = vpop.permute.xlu0 %2533
        %v2536 = vsel %vm1764, %v2531, 0
        %v2539 = vsel %vm1764, %v2534, 0
        %2541 = vmatpush.bf16.xpose.msra.mxu0 0
        %2542 = vmatpush.bf16.xpose.msra.mxu0 0
        %2543 = vmatpush.bf16.xpose.msra.mxu0 0
        %2544 = vmatpush.bf16.xpose.msra.mxu0 0
        %2545 = vmatpush.bf16.xpose.msra.mxu0 0
        %2546 = vmatpush.bf16.xpose.msra.mxu0 0
        %2547 = vmatpush.bf16.xpose.msra.mxu0 0
        %2548 = vmatpush.bf16.xpose.msra.mxu0 %v2539
        %2549 = vmatmul.bf16.gmra.mxu0 %v2536
        %v2550 = vpop.f32.mrf.mxu0
        %v2551 = vadd.f32 %v1021, %v2550
        %v2552 = vpop.f32.mrf.mxu0
        %v2553 = vadd.f32 %v1022, %v2552
        %2554 = vdwg.mxu0
        %v2555 = vsel %vm1785, %v2551, -inf
        %2556 = vmax.xlane.f32.xlu0 %v2555
        %v2557 = vpop.xlane.xlu0 %2556
        %v2558 = vsel %vm1789, %v2553, -inf
        %2559 = vmax.xlane.f32.xlu0 %v2558
        %v2560 = vpop.xlane.xlu0 %2559
        %v2561 = vsub.f32 %v2551, %v2557
        %v2562 = vsub.f32 %v2553, %v2560
        %v2563 = vmul.f32 %v2561, 1.442695
        %v2564 = vpow.pop %v2563
        %v2565 = vmul.f32 %v2562, 1.442695
        %v2566 = vpow.pop %v2565
        %v2567 = vsel %vm1785, %v2564, 0.0
        %2568 = vadd.xlane.f32.xlu0 %v2567
        %v2569 = vpop.xlane.xlu0 %2568
        %v2570 = vsel %vm1789, %v2566, 0.0
        %2571 = vadd.xlane.f32.xlu0 %v2570
        %v2572 = vpop.xlane.xlu0 %2571
        %v2573 = vrcp.pop %v2569
        %v2574 = vrcp.pop %v2572
        %v2575 = vmul.f32 %v2564, %v2573
        %v2576 = vmul.f32 %v2566, %v2574
        %v2577 = vpack.c.bf16 %v2576, %v2575
        %2578 = vst [vmem:[#allocation1] ss:$9 sm:$0xff] %v1700
        %s2579 = scalar_lea.vmem [#allocation1], 1
        %2580 = vst [vmem:[%s2579] ss:$9 sm:$0xff] %v1701
        %s2581 = scalar_lea.vmem [#allocation1], 2
        %2582 = vst [vmem:[%s2581] ss:$9 sm:$0xff] %v1702
        %s2583 = scalar_lea.vmem [#allocation1], 3
        %2584 = vst [vmem:[%s2583] ss:$9 sm:$0xff] %v1681
        %s2585 = scalar_lea.vmem [#allocation1], 4
        %2586 = vst [vmem:[%s2585] ss:$9 sm:$0xff] %v1703
        %s2587 = scalar_lea.vmem [#allocation1], 5
        %2588 = vst [vmem:[%s2587] ss:$9 sm:$0xff] %v1704
        %s2589 = scalar_lea.vmem [#allocation1], 6
        %2590 = vst [vmem:[%s2589] ss:$9 sm:$0xff] %v1705
        %s2591 = scalar_lea.vmem [#allocation1], 7
        %2592 = vst [vmem:[%s2591] ss:$9 sm:$0xff] %v1706
        %v2593 = vld [vmem:[#allocation1] sm:$0xff]
        %2594 = vst [vmem:[#allocation1] ss:$9 sm:$0xff] %v1707
        %2595 = vst [vmem:[%s2579] ss:$9 sm:$0xff] %v1708
        %2596 = vst [vmem:[%s2581] ss:$9 sm:$0xff] %v1709
        %2597 = vst [vmem:[%s2583] ss:$9 sm:$0xff] %v1683
        %2598 = vst [vmem:[%s2585] ss:$9 sm:$0xff] %v1710
        %v2599 = vld [vmem:[#allocation1] sm:$0xff]
        %v2602 = vpack.c.bf16 %v2599, %v2593
        %2604 = vrot.lane.b32.xlu0 %v2602, 56
        %v2605 = vpop.permute.xlu0 %2604
        %v2607 = vsel %vm1785, %v2577, 0
        %v2610 = vand.u32 %v2605, %v1844
        %2612 = vmatpush.bf16.msra.mxu0 0
        %2613 = vmatpush.bf16.msra.mxu0 0
        %2614 = vmatpush.bf16.msra.mxu0 0
        %2615 = vmatpush.bf16.msra.mxu0 0
        %2616 = vmatpush.bf16.msra.mxu0 0
        %2617 = vmatpush.bf16.msra.mxu0 0
        %2618 = vmatpush.bf16.msra.mxu0 0
        %2619 = vmatpush.bf16.msra.mxu0 %v2610
        %2620 = vmatmul.bf16.gmra.mxu0 %v2607
        %v2621 = vpop.f32.mrf.mxu0
        %v2622 = vadd.f32 0.0, %v2621
        %v2623 = vpop.f32.mrf.mxu0
        %v2624 = vadd.f32 0.0, %v2623
        %2625 = vdwg.mxu0
        %2626 = vst [vmem:[#allocation1] ss:$9 sm:$0xff] %v1700
        %s2627 = scalar_lea.vmem [#allocation1], 1
        %2628 = vst [vmem:[%s2627] ss:$9 sm:$0xff] %v1701
        %s2629 = scalar_lea.vmem [#allocation1], 2
        %2630 = vst [vmem:[%s2629] ss:$9 sm:$0xff] %v1702
        %s2631 = scalar_lea.vmem [#allocation1], 3
        %2632 = vst [vmem:[%s2631] ss:$9 sm:$0xff] %v1681
        %s2633 = scalar_lea.vmem [#allocation1], 4
        %2634 = vst [vmem:[%s2633] ss:$9 sm:$0xff] %v1703
        %s2635 = scalar_lea.vmem [#allocation1], 5
        %2636 = vst [vmem:[%s2635] ss:$9 sm:$0xff] %v1704
        %s2637 = scalar_lea.vmem [#allocation1], 6
        %2638 = vst [vmem:[%s2637] ss:$9 sm:$0xff] %v1705
        %s2639 = scalar_lea.vmem [#allocation1], 7
        %2640 = vst [vmem:[%s2639] ss:$9 sm:$0xff] %v1706
        %v2641 = vld [vmem:[#allocation1] sm:$0xff]
        %2642 = vst [vmem:[#allocation1] ss:$9 sm:$0xff] %v1707
        %2643 = vst [vmem:[%s2627] ss:$9 sm:$0xff] %v1708
        %2644 = vst [vmem:[%s2629] ss:$9 sm:$0xff] %v1709
        %2645 = vst [vmem:[%s2631] ss:$9 sm:$0xff] %v1683
        %2646 = vst [vmem:[%s2633] ss:$9 sm:$0xff] %v1710
        %v2647 = vld [vmem:[#allocation1] sm:$0xff]
        %v2650 = vpack.c.bf16 %v2647, %v2641
        %2651 = vst [vmem:[#allocation1] ss:$9 sm:$0xff] %v1700
        %s2652 = scalar_lea.vmem [#allocation1], 1
        %2653 = vst [vmem:[%s2652] ss:$9 sm:$0xff] %v1701
        %s2654 = scalar_lea.vmem [#allocation1], 2
        %2655 = vst [vmem:[%s2654] ss:$9 sm:$0xff] %v1702
        %s2656 = scalar_lea.vmem [#allocation1], 3
        %2657 = vst [vmem:[%s2656] ss:$9 sm:$0xff] %v1681
        %s2658 = scalar_lea.vmem [#allocation1], 4
        %2659 = vst [vmem:[%s2658] ss:$9 sm:$0xff] %v1703
        %s2660 = scalar_lea.vmem [#allocation1], 5
        %2661 = vst [vmem:[%s2660] ss:$9 sm:$0xff] %v1704
        %s2662 = scalar_lea.vmem [#allocation1], 6
        %2663 = vst [vmem:[%s2662] ss:$9 sm:$0xff] %v1705
        %s2664 = scalar_lea.vmem [#allocation1], 7
        %2665 = vst [vmem:[%s2664] ss:$9 sm:$0xff] %v1706
        %v2666 = vld [vmem:[#allocation1] sm:$0xff]
        %2667 = vst [vmem:[#allocation1] ss:$9 sm:$0xff] %v1707
        %2668 = vst [vmem:[%s2652] ss:$9 sm:$0xff] %v1708
        %2669 = vst [vmem:[%s2654] ss:$9 sm:$0xff] %v1709
        %2670 = vst [vmem:[%s2656] ss:$9 sm:$0xff] %v1683
        %2671 = vst [vmem:[%s2658] ss:$9 sm:$0xff] %v1710
        %v2672 = vld [vmem:[#allocation1] sm:$0xff]
        %v2675 = vpack.c.bf16 %v2672, %v2666
        %2677 = vrot.lane.b32.xlu0 %v2650, 112
        %v2678 = vpop.permute.xlu0 %2677
        %2680 = vrot.lane.b32.xlu0 %v2675, 80
        %v2681 = vpop.permute.xlu0 %2680
        %v2683 = vsel %vm1764, %v2678, 0
        %v2686 = vsel %vm1764, %v2681, 0
        %2688 = vmatpush.bf16.xpose.msra.mxu0 0
        %2689 = vmatpush.bf16.xpose.msra.mxu0 0
        %2690 = vmatpush.bf16.xpose.msra.mxu0 0
        %2691 = vmatpush.bf16.xpose.msra.mxu0 0
        %2692 = vmatpush.bf16.xpose.msra.mxu0 0
        %2693 = vmatpush.bf16.xpose.msra.mxu0 0
        %2694 = vmatpush.bf16.xpose.msra.mxu0 0
        %2695 = vmatpush.bf16.xpose.msra.mxu0 %v2686
        %2696 = vmatmul.bf16.gmra.mxu0 %v2683
        %v2697 = vpop.f32.mrf.mxu0
        %v2698 = vadd.f32 %v1021, %v2697
        %v2699 = vpop.f32.mrf.mxu0
        %v2700 = vadd.f32 %v1022, %v2699
        %2701 = vdwg.mxu0
        %v2702 = vsel %vm1785, %v2698, -inf
        %2703 = vmax.xlane.f32.xlu0 %v2702
        %v2704 = vpop.xlane.xlu0 %2703
        %v2705 = vsel %vm1789, %v2700, -inf
        %2706 = vmax.xlane.f32.xlu0 %v2705
        %v2707 = vpop.xlane.xlu0 %2706
        %v2708 = vsub.f32 %v2698, %v2704
        %v2709 = vsub.f32 %v2700, %v2707
        %v2710 = vmul.f32 %v2708, 1.442695
        %v2711 = vpow.pop %v2710
        %v2712 = vmul.f32 %v2709, 1.442695
        %v2713 = vpow.pop %v2712
        %v2714 = vsel %vm1785, %v2711, 0.0
        %2715 = vadd.xlane.f32.xlu0 %v2714
        %v2716 = vpop.xlane.xlu0 %2715
        %v2717 = vsel %vm1789, %v2713, 0.0
        %2718 = vadd.xlane.f32.xlu0 %v2717
        %v2719 = vpop.xlane.xlu0 %2718
        %v2720 = vrcp.pop %v2716
        %v2721 = vrcp.pop %v2719
        %v2722 = vmul.f32 %v2711, %v2720
        %v2723 = vmul.f32 %v2713, %v2721
        %v2724 = vpack.c.bf16 %v2723, %v2722
        %2725 = vst [vmem:[#allocation1] ss:$9 sm:$0xff] %v1700
        %s2726 = scalar_lea.vmem [#allocation1], 1
        %2727 = vst [vmem:[%s2726] ss:$9 sm:$0xff] %v1701
        %s2728 = scalar_lea.vmem [#allocation1], 2
        %2729 = vst [vmem:[%s2728] ss:$9 sm:$0xff] %v1702
        %s2730 = scalar_lea.vmem [#allocation1], 3
        %2731 = vst [vmem:[%s2730] ss:$9 sm:$0xff] %v1681
        %s2732 = scalar_lea.vmem [#allocation1], 4
        %2733 = vst [vmem:[%s2732] ss:$9 sm:$0xff] %v1703
        %s2734 = scalar_lea.vmem [#allocation1], 5
        %2735 = vst [vmem:[%s2734] ss:$9 sm:$0xff] %v1704
        %s2736 = scalar_lea.vmem [#allocation1], 6
        %2737 = vst [vmem:[%s2736] ss:$9 sm:$0xff] %v1705
        %s2738 = scalar_lea.vmem [#allocation1], 7
        %2739 = vst [vmem:[%s2738] ss:$9 sm:$0xff] %v1706
        %v2740 = vld [vmem:[#allocation1] sm:$0xff]
        %2741 = vst [vmem:[#allocation1] ss:$9 sm:$0xff] %v1707
        %2742 = vst [vmem:[%s2726] ss:$9 sm:$0xff] %v1708
        %2743 = vst [vmem:[%s2728] ss:$9 sm:$0xff] %v1709
        %2744 = vst [vmem:[%s2730] ss:$9 sm:$0xff] %v1683
        %2745 = vst [vmem:[%s2732] ss:$9 sm:$0xff] %v1710
        %v2746 = vld [vmem:[#allocation1] sm:$0xff]
        %v2749 = vpack.c.bf16 %v2746, %v2740
        %2751 = vrot.lane.b32.xlu0 %v2749, 48
        %v2752 = vpop.permute.xlu0 %2751
        %v2754 = vsel %vm1785, %v2724, 0
        %v2757 = vand.u32 %v2752, %v1844
        %2759 = vmatpush.bf16.msra.mxu0 0
        %2760 = vmatpush.bf16.msra.mxu0 0
        %2761 = vmatpush.bf16.msra.mxu0 0
        %2762 = vmatpush.bf16.msra.mxu0 0
        %2763 = vmatpush.bf16.msra.mxu0 0
        %2764 = vmatpush.bf16.msra.mxu0 0
        %2765 = vmatpush.bf16.msra.mxu0 0
        %2766 = vmatpush.bf16.msra.mxu0 %v2757
        %2767 = vmatmul.bf16.gmra.mxu0 %v2754
        %v2768 = vpop.f32.mrf.mxu0
        %v2769 = vadd.f32 0.0, %v2768
        %v2770 = vpop.f32.mrf.mxu0
        %v2771 = vadd.f32 0.0, %v2770
        %2772 = vdwg.mxu0
        %2773 = vst [vmem:[#allocation1] ss:$9 sm:$0xff] %v1700
        %s2774 = scalar_lea.vmem [#allocation1], 1
        %2775 = vst [vmem:[%s2774] ss:$9 sm:$0xff] %v1701
        %s2776 = scalar_lea.vmem [#allocation1], 2
        %2777 = vst [vmem:[%s2776] ss:$9 sm:$0xff] %v1702
        %s2778 = scalar_lea.vmem [#allocation1], 3
        %2779 = vst [vmem:[%s2778] ss:$9 sm:$0xff] %v1681
        %s2780 = scalar_lea.vmem [#allocation1], 4
        %2781 = vst [vmem:[%s2780] ss:$9 sm:$0xff] %v1703
        %s2782 = scalar_lea.vmem [#allocation1], 5
        %2783 = vst [vmem:[%s2782] ss:$9 sm:$0xff] %v1704
        %s2784 = scalar_lea.vmem [#allocation1], 6
        %2785 = vst [vmem:[%s2784] ss:$9 sm:$0xff] %v1705
        %s2786 = scalar_lea.vmem [#allocation1], 7
        %2787 = vst [vmem:[%s2786] ss:$9 sm:$0xff] %v1706
        %v2788 = vld [vmem:[#allocation1] sm:$0xff]
        %2789 = vst [vmem:[#allocation1] ss:$9 sm:$0xff] %v1707
        %2790 = vst [vmem:[%s2774] ss:$9 sm:$0xff] %v1708
        %2791 = vst [vmem:[%s2776] ss:$9 sm:$0xff] %v1709
        %2792 = vst [vmem:[%s2778] ss:$9 sm:$0xff] %v1683
        %2793 = vst [vmem:[%s2780] ss:$9 sm:$0xff] %v1710
        %v2794 = vld [vmem:[#allocation1] sm:$0xff]
        %v2797 = vpack.c.bf16 %v2794, %v2788
        %2798 = vst [vmem:[#allocation1] ss:$9 sm:$0xff] %v1700
        %s2799 = scalar_lea.vmem [#allocation1], 1
        %2800 = vst [vmem:[%s2799] ss:$9 sm:$0xff] %v1701
        %s2801 = scalar_lea.vmem [#allocation1], 2
        %2802 = vst [vmem:[%s2801] ss:$9 sm:$0xff] %v1702
        %s2803 = scalar_lea.vmem [#allocation1], 3
        %2804 = vst [vmem:[%s2803] ss:$9 sm:$0xff] %v1681
        %s2805 = scalar_lea.vmem [#allocation1], 4
        %2806 = vst [vmem:[%s2805] ss:$9 sm:$0xff] %v1703
        %s2807 = scalar_lea.vmem [#allocation1], 5
        %2808 = vst [vmem:[%s2807] ss:$9 sm:$0xff] %v1704
        %s2809 = scalar_lea.vmem [#allocation1], 6
        %2810 = vst [vmem:[%s2809] ss:$9 sm:$0xff] %v1705
        %s2811 = scalar_lea.vmem [#allocation1], 7
        %2812 = vst [vmem:[%s2811] ss:$9 sm:$0xff] %v1706
        %v2813 = vld [vmem:[#allocation1] sm:$0xff]
        %2814 = vst [vmem:[#allocation1] ss:$9 sm:$0xff] %v1707
        %2815 = vst [vmem:[%s2799] ss:$9 sm:$0xff] %v1708
        %2816 = vst [vmem:[%s2801] ss:$9 sm:$0xff] %v1709
        %2817 = vst [vmem:[%s2803] ss:$9 sm:$0xff] %v1683
        %2818 = vst [vmem:[%s2805] ss:$9 sm:$0xff] %v1710
        %v2819 = vld [vmem:[#allocation1] sm:$0xff]
        %v2822 = vpack.c.bf16 %v2819, %v2813
        %2824 = vrot.lane.b32.xlu0 %v2797, 104
        %v2825 = vpop.permute.xlu0 %2824
        %2827 = vrot.lane.b32.xlu0 %v2822, 72
        %v2828 = vpop.permute.xlu0 %2827
        %v2830 = vsel %vm1764, %v2825, 0
        %v2833 = vsel %vm1764, %v2828, 0
        %2835 = vmatpush.bf16.xpose.msra.mxu0 0
        %2836 = vmatpush.bf16.xpose.msra.mxu0 0
        %2837 = vmatpush.bf16.xpose.msra.mxu0 0
        %2838 = vmatpush.bf16.xpose.msra.mxu0 0
        %2839 = vmatpush.bf16.xpose.msra.mxu0 0
        %2840 = vmatpush.bf16.xpose.msra.mxu0 0
        %2841 = vmatpush.bf16.xpose.msra.mxu0 0
        %2842 = vmatpush.bf16.xpose.msra.mxu0 %v2833
        %2843 = vmatmul.bf16.gmra.mxu0 %v2830
        %v2844 = vpop.f32.mrf.mxu0
        %v2845 = vadd.f32 %v1021, %v2844
        %v2846 = vpop.f32.mrf.mxu0
        %v2847 = vadd.f32 %v1022, %v2846
        %2848 = vdwg.mxu0
        %v2849 = vsel %vm1785, %v2845, -inf
        %2850 = vmax.xlane.f32.xlu0 %v2849
        %v2851 = vpop.xlane.xlu0 %2850
        %v2852 = vsel %vm1789, %v2847, -inf
        %2853 = vmax.xlane.f32.xlu0 %v2852
        %v2854 = vpop.xlane.xlu0 %2853
        %v2855 = vsub.f32 %v2845, %v2851
        %v2856 = vsub.f32 %v2847, %v2854
        %v2857 = vmul.f32 %v2855, 1.442695
        %v2858 = vpow.pop %v2857
        %v2859 = vmul.f32 %v2856, 1.442695
        %v2860 = vpow.pop %v2859
        %v2861 = vsel %vm1785, %v2858, 0.0
        %2862 = vadd.xlane.f32.xlu0 %v2861
        %v2863 = vpop.xlane.xlu0 %2862
        %v2864 = vsel %vm1789, %v2860, 0.0
        %2865 = vadd.xlane.f32.xlu0 %v2864
        %v2866 = vpop.xlane.xlu0 %2865
        %v2867 = vrcp.pop %v2863
        %v2868 = vrcp.pop %v2866
        %v2869 = vmul.f32 %v2858, %v2867
        %v2870 = vmul.f32 %v2860, %v2868
        %v2871 = vpack.c.bf16 %v2870, %v2869
        %2872 = vst [vmem:[#allocation1] ss:$9 sm:$0xff] %v1700
        %s2873 = scalar_lea.vmem [#allocation1], 1
        %2874 = vst [vmem:[%s2873] ss:$9 sm:$0xff] %v1701
        %s2875 = scalar_lea.vmem [#allocation1], 2
        %2876 = vst [vmem:[%s2875] ss:$9 sm:$0xff] %v1702
        %s2877 = scalar_lea.vmem [#allocation1], 3
        %2878 = vst [vmem:[%s2877] ss:$9 sm:$0xff] %v1681
        %s2879 = scalar_lea.vmem [#allocation1], 4
        %2880 = vst [vmem:[%s2879] ss:$9 sm:$0xff] %v1703
        %s2881 = scalar_lea.vmem [#allocation1], 5
        %2882 = vst [vmem:[%s2881] ss:$9 sm:$0xff] %v1704
        %s2883 = scalar_lea.vmem [#allocation1], 6
        %2884 = vst [vmem:[%s2883] ss:$9 sm:$0xff] %v1705
        %s2885 = scalar_lea.vmem [#allocation1], 7
        %2886 = vst [vmem:[%s2885] ss:$9 sm:$0xff] %v1706
        %v2887 = vld [vmem:[#allocation1] sm:$0xff]
        %2888 = vst [vmem:[#allocation1] ss:$9 sm:$0xff] %v1707
        %2889 = vst [vmem:[%s2873] ss:$9 sm:$0xff] %v1708
        %2890 = vst [vmem:[%s2875] ss:$9 sm:$0xff] %v1709
        %2891 = vst [vmem:[%s2877] ss:$9 sm:$0xff] %v1683
        %2892 = vst [vmem:[%s2879] ss:$9 sm:$0xff] %v1710
        %v2893 = vld [vmem:[#allocation1] sm:$0xff]
        %v2896 = vpack.c.bf16 %v2893, %v2887
        %2898 = vrot.lane.b32.xlu0 %v2896, 40
        %v2899 = vpop.permute.xlu0 %2898
        %v2901 = vsel %vm1785, %v2871, 0
        %v2904 = vand.u32 %v2899, %v1844
        %2906 = vmatpush.bf16.msra.mxu0 0
        %2907 = vmatpush.bf16.msra.mxu0 0
        %2908 = vmatpush.bf16.msra.mxu0 0
        %2909 = vmatpush.bf16.msra.mxu0 0
        %2910 = vmatpush.bf16.msra.mxu0 0
        %2911 = vmatpush.bf16.msra.mxu0 0
        %2912 = vmatpush.bf16.msra.mxu0 0
        %2913 = vmatpush.bf16.msra.mxu0 %v2904
        %2914 = vmatmul.bf16.gmra.mxu0 %v2901
        %v2915 = vpop.f32.mrf.mxu0
        %v2916 = vadd.f32 0.0, %v2915
        %v2917 = vpop.f32.mrf.mxu0
        %v2918 = vadd.f32 0.0, %v2917
        %2919 = vdwg.mxu0
        %2922 = vrot.lane.b32.xlu0 %v2622, 8
        %v2923 = vpop.permute.xlu0 %2922
        %2924 = vrot.lane.b32.xlu0 %v2624, 8
        %v2925 = vpop.permute.xlu0 %2924
        %2930 = vrot.lane.b32.xlu0 %v2769, 16
        %v2931 = vpop.permute.xlu0 %2930
        %2932 = vrot.lane.b32.xlu0 %v2771, 16
        %v2933 = vpop.permute.xlu0 %2932
        %2938 = vrot.lane.b32.xlu0 %v2916, 24
        %v2939 = vpop.permute.xlu0 %2938
        %2940 = vrot.lane.b32.xlu0 %v2918, 24
        %v2941 = vpop.permute.xlu0 %2940
        %v2944 = vsel %vm1764, %v2475, %v2923
        %v2945 = vsel %vm1764, %v2477, %v2925
        %v2946 = vsel %vm2329, %v2944, %v2931
        %v2947 = vsel %vm2329, %v2945, %v2933
        %v2948 = vsel %vm2332, %v2946, %v2939
        %v2949 = vsel %vm2332, %v2947, %v2941
        %vm2952 = vcmask 1044480
        %v2953 = vrot.slane %v2948, 3
        %v2954 = vrot.slane %v2949, 3
        %v2955 = vsel %vm2952, %v2953, %v2954
        %v2959 = vsel %vm2952, %v2334, %v2953
        %v2960 = vpack.c.bf16 %v2959, %v2333
        %v2961 = vpack.c.bf16 %v2954, %v2955
        %v2963 = vperm.slane %v1034, 0
        %v2969 = vunpack.c.l.b16 %v1030
        %v2970 = vunpack.c.l.b16 %v1031
        %v2971 = vunpack.c.l.b16 %v1032
        %v2972 = vunpack.c.l.b16 %v1033
        %v2973 = vpack.c.b16 %v2970, %v2969
        %v2974 = vpack.c.b16 %v2972, %v2971
        %v2978 = vsel %vm1148, %v2960, 0
        %v2981 = vsel %vm1148, %v2961, 0
        %2983 = vmatpush.bf16.msra.mxu0 0
        %2984 = vmatpush.bf16.msra.mxu0 0
        %2985 = vmatpush.bf16.msra.mxu0 0
        %2986 = vmatpush.bf16.msra.mxu0 0
        %2987 = vmatpush.bf16.msra.mxu0 0
        %2988 = vmatpush.bf16.msra.mxu0 0
        %2989 = vmatpush.bf16.msra.mxu0 %v2974
        %2990 = vmatpush.bf16.msra.mxu0 %v2973
        %2991 = vmatmul.bf16.gmra.mxu0 %v2978
        %v2992 = vpop.f32.mrf.mxu0
        %v2993 = vadd.f32 %v2963, %v2992
        %v2994 = vpop.f32.mrf.mxu0
        %v2995 = vadd.f32 %v2963, %v2994
        %2996 = vmatmul.bf16.gmra.mxu0 %v2981
        %v2997 = vpop.f32.mrf.mxu0
        %v2998 = vadd.f32 %v2963, %v2997
        %v2999 = vpop.f32.mrf.mxu0
        %v3000 = vadd.f32 %v2963, %v2999
        %3001 = vdwg.mxu0
        %v3006 = vrot.slane %v2993, 1
        %v3007 = vrot.slane %v2993, 2
        %v3008 = vrot.slane %v2993, 3
        %v3009 = vrot.slane %v2993, 4
        %v3010 = vrot.slane %v2993, 5
        %v3011 = vrot.slane %v2993, 6
        %v3012 = vrot.slane %v2993, 7
        %v3013 = vrot.slane %v2995, 1
        %v3014 = vrot.slane %v2995, 2
        %v3015 = vrot.slane %v2995, 3
        %v3016 = vrot.slane %v2995, 4
        %v3017 = vrot.slane %v2995, 5
        %v3018 = vrot.slane %v2995, 6
        %v3019 = vrot.slane %v2995, 7
        %v3020 = vrot.slane %v2998, 1
        %v3021 = vrot.slane %v2998, 2
        %v3022 = vrot.slane %v2998, 3
        %v3023 = vrot.slane %v2998, 4
        %v3024 = vrot.slane %v2998, 5
        %v3025 = vrot.slane %v2998, 6
        %v3026 = vrot.slane %v2998, 7
        %v3027 = vrot.slane %v3000, 1
        %v3050 = vadd.f32 %v1015, %v2993
        %v3051 = vadd.f32 %v1063, %v3006
        %v3052 = vadd.f32 %v1064, %v3007
        %v3053 = vadd.f32 %v1065, %v3008
        %v3054 = vadd.f32 %v1066, %v3009
        %v3055 = vadd.f32 %v1067, %v3010
        %v3056 = vadd.f32 %v1068, %v3011
        %v3057 = vadd.f32 %v1069, %v3012
        %v3058 = vadd.f32 %v1016, %v2995
        %v3059 = vadd.f32 %v1070, %v3013
        %v3060 = vadd.f32 %v1071, %v3014
        %v3061 = vadd.f32 %v1072, %v3015
        %v3062 = vadd.f32 %v1073, %v3016
        %v3063 = vadd.f32 %v1017, %v3017
        %v3064 = vadd.f32 %v1074, %v3018
        %v3065 = vadd.f32 %v1075, %v3019
        %v3066 = vadd.f32 %v1076, %v2998
        %v3067 = vadd.f32 %v1077, %v3020
        %v3068 = vadd.f32 %v1078, %v3021
        %v3069 = vadd.f32 %v1079, %v3022
        %v3070 = vadd.f32 %v1080, %v3023
        %v3071 = vadd.f32 %v1018, %v3024
        %v3072 = vadd.f32 %v1081, %v3025
        %v3073 = vadd.f32 %v1082, %v3026
        %v3074 = vadd.f32 %v1083, %v3000
        %v3075 = vadd.f32 %v1084, %v3027
        %3102 = vst [vmem:[#allocation1] ss:$9 sm:$0xff] %v3050
        %s3103 = scalar_lea.vmem [#allocation1], 1
        %3104 = vst [vmem:[%s3103] ss:$9 sm:$0xff] %v3051
        %s3105 = scalar_lea.vmem [#allocation1], 2
        %3106 = vst [vmem:[%s3105] ss:$9 sm:$0xff] %v3052
        %s3107 = scalar_lea.vmem [#allocation1], 3
        %3108 = vst [vmem:[%s3107] ss:$9 sm:$0xff] %v3053
        %s3109 = scalar_lea.vmem [#allocation1], 4
        %3110 = vst [vmem:[%s3109] ss:$9 sm:$0xff] %v3054
        %s3111 = scalar_lea.vmem [#allocation1], 5
        %3112 = vst [vmem:[%s3111] ss:$9 sm:$0xff] %v3055
        %s3113 = scalar_lea.vmem [#allocation1], 6
        %3114 = vst [vmem:[%s3113] ss:$9 sm:$0xff] %v3056
        %s3115 = scalar_lea.vmem [#allocation1], 7
        %3116 = vst [vmem:[%s3115] ss:$9 sm:$0xff] %v3057
        %v3117 = vld [vmem:[#allocation1] sm:$0xff]
        %3118 = vst [vmem:[#allocation1] ss:$9 sm:$0xff] %v3058
        %3119 = vst [vmem:[%s3103] ss:$9 sm:$0xff] %v3059
        %3120 = vst [vmem:[%s3105] ss:$9 sm:$0xff] %v3060
        %3121 = vst [vmem:[%s3107] ss:$9 sm:$0xff] %v3061
        %3122 = vst [vmem:[%s3109] ss:$9 sm:$0xff] %v3062
        %3123 = vst [vmem:[%s3111] ss:$9 sm:$0xff] %v3063
        %3124 = vst [vmem:[%s3113] ss:$9 sm:$0xff] %v3064
        %3125 = vst [vmem:[%s3115] ss:$9 sm:$0xff] %v3065
        %v3126 = vld [vmem:[#allocation1] sm:$0xff]
        %3127 = vst [vmem:[#allocation1] ss:$9 sm:$0xff] %v3066
        %3128 = vst [vmem:[%s3103] ss:$9 sm:$0xff] %v3067
        %3129 = vst [vmem:[%s3105] ss:$9 sm:$0xff] %v3068
        %3130 = vst [vmem:[%s3107] ss:$9 sm:$0xff] %v3069
        %3131 = vst [vmem:[%s3109] ss:$9 sm:$0xff] %v3070
        %3132 = vst [vmem:[%s3111] ss:$9 sm:$0xff] %v3071
        %3133 = vst [vmem:[%s3113] ss:$9 sm:$0xff] %v3072
        %3134 = vst [vmem:[%s3115] ss:$9 sm:$0xff] %v3073
        %v3135 = vld [vmem:[#allocation1] sm:$0xff]
        %3136 = vst [vmem:[#allocation1] ss:$9 sm:$0xff] %v3074
        %3137 = vst [vmem:[%s3103] ss:$9 sm:$0xff] %v3075
        %v3138 = vld [vmem:[#allocation1] sm:$0xff]
        %v3143 = vsel %vm1148, %v3117, 0.0
        %3144 = vadd.xlane.f32.xlu0 %v3143
        %v3145 = vpop.xlane.xlu0 %3144
        %v3146 = vsel %vm1148, %v3126, 0.0
        %3147 = vadd.xlane.f32.xlu0 %v3146
        %v3148 = vpop.xlane.xlu0 %3147
        %v3149 = vsel %vm1148, %v3135, 0.0
        %3150 = vadd.xlane.f32.xlu0 %v3149
        %v3151 = vpop.xlane.xlu0 %3150
        %v3152 = vsel %vm1158, %v3138, 0.0
        %3153 = vadd.xlane.f32.xlu0 %v3152
        %v3154 = vpop.xlane.xlu0 %3153
        %v3155 = vmul.f32 %v3145, %v1168
        %v3156 = vmul.f32 %v3148, %v1168
        %v3157 = vmul.f32 %v3151, %v1168
        %v3158 = vmul.f32 %v3154, %v1168
        %v3163 = vperm.slane %v3155, 0
        %v3164 = vperm.slane %v3155, 1
        %v3165 = vperm.slane %v3155, 2
        %v3166 = vperm.slane %v3155, 3
        %v3167 = vperm.slane %v3155, 4
        %v3168 = vperm.slane %v3155, 5
        %v3169 = vperm.slane %v3155, 6
        %v3170 = vperm.slane %v3155, 7
        %v3171 = vperm.slane %v3156, 0
        %v3172 = vperm.slane %v3156, 1
        %v3173 = vperm.slane %v3156, 2
        %v3174 = vperm.slane %v3156, 3
        %v3175 = vperm.slane %v3156, 4
        %v3176 = vperm.slane %v3156, 5
        %v3177 = vperm.slane %v3156, 6
        %v3178 = vperm.slane %v3156, 7
        %v3179 = vperm.slane %v3157, 0
        %v3180 = vperm.slane %v3157, 1
        %v3181 = vperm.slane %v3157, 2
        %v3182 = vperm.slane %v3157, 3
        %v3183 = vperm.slane %v3157, 4
        %v3184 = vperm.slane %v3157, 5
        %v3185 = vperm.slane %v3157, 6
        %v3186 = vperm.slane %v3157, 7
        %v3187 = vperm.slane %v3158, 0
        %v3188 = vperm.slane %v3158, 1
        %v3215 = vsub.f32 %v3050, %v3163
        %v3216 = vsub.f32 %v3051, %v3164
        %v3217 = vsub.f32 %v3052, %v3165
        %v3218 = vsub.f32 %v3053, %v3166
        %v3219 = vsub.f32 %v3054, %v3167
        %v3220 = vsub.f32 %v3055, %v3168
        %v3221 = vsub.f32 %v3056, %v3169
        %v3222 = vsub.f32 %v3057, %v3170
        %v3223 = vsub.f32 %v3058, %v3171
        %v3224 = vsub.f32 %v3059, %v3172
        %v3225 = vsub.f32 %v3060, %v3173
        %v3226 = vsub.f32 %v3061, %v3174
        %v3227 = vsub.f32 %v3062, %v3175
        %v3228 = vsub.f32 %v3063, %v3176
        %v3229 = vsub.f32 %v3064, %v3177
        %v3230 = vsub.f32 %v3065, %v3178
        %v3231 = vsub.f32 %v3066, %v3179
        %v3232 = vsub.f32 %v3067, %v3180
        %v3233 = vsub.f32 %v3068, %v3181
        %v3234 = vsub.f32 %v3069, %v3182
        %v3235 = vsub.f32 %v3070, %v3183
        %v3236 = vsub.f32 %v3071, %v3184
        %v3237 = vsub.f32 %v3072, %v3185
        %v3238 = vsub.f32 %v3073, %v3186
        %v3239 = vsub.f32 %v3074, %v3187
        %v3240 = vsub.f32 %v3075, %v3188
        %v3241 = vmul.f32 %v3215, %v3215
        %v3242 = vmul.f32 %v3216, %v3216
        %v3243 = vmul.f32 %v3217, %v3217
        %v3244 = vmul.f32 %v3218, %v3218
        %v3245 = vmul.f32 %v3219, %v3219
        %v3246 = vmul.f32 %v3220, %v3220
        %v3247 = vmul.f32 %v3221, %v3221
        %v3248 = vmul.f32 %v3222, %v3222
        %v3249 = vmul.f32 %v3223, %v3223
        %v3250 = vmul.f32 %v3224, %v3224
        %v3251 = vmul.f32 %v3225, %v3225
        %v3252 = vmul.f32 %v3226, %v3226
        %v3253 = vmul.f32 %v3227, %v3227
        %v3254 = vmul.f32 %v3228, %v3228
        %v3255 = vmul.f32 %v3229, %v3229
        %v3256 = vmul.f32 %v3230, %v3230
        %v3257 = vmul.f32 %v3231, %v3231
        %v3258 = vmul.f32 %v3232, %v3232
        %v3259 = vmul.f32 %v3233, %v3233
        %v3260 = vmul.f32 %v3234, %v3234
        %v3261 = vmul.f32 %v3235, %v3235
        %v3262 = vmul.f32 %v3236, %v3236
        %v3263 = vmul.f32 %v3237, %v3237
        %v3264 = vmul.f32 %v3238, %v3238
        %v3265 = vmul.f32 %v3239, %v3239
        %v3266 = vmul.f32 %v3240, %v3240
        %3293 = vst [vmem:[#allocation1] ss:$9 sm:$0xff] %v3241
        %s3294 = scalar_lea.vmem [#allocation1], 1
        %3295 = vst [vmem:[%s3294] ss:$9 sm:$0xff] %v3242
        %s3296 = scalar_lea.vmem [#allocation1], 2
        %3297 = vst [vmem:[%s3296] ss:$9 sm:$0xff] %v3243
        %s3298 = scalar_lea.vmem [#allocation1], 3
        %3299 = vst [vmem:[%s3298] ss:$9 sm:$0xff] %v3244
        %s3300 = scalar_lea.vmem [#allocation1], 4
        %3301 = vst [vmem:[%s3300] ss:$9 sm:$0xff] %v3245
        %s3302 = scalar_lea.vmem [#allocation1], 5
        %3303 = vst [vmem:[%s3302] ss:$9 sm:$0xff] %v3246
        %s3304 = scalar_lea.vmem [#allocation1], 6
        %3305 = vst [vmem:[%s3304] ss:$9 sm:$0xff] %v3247
        %s3306 = scalar_lea.vmem [#allocation1], 7
        %3307 = vst [vmem:[%s3306] ss:$9 sm:$0xff] %v3248
        %v3308 = vld [vmem:[#allocation1] sm:$0xff]
        %3309 = vst [vmem:[#allocation1] ss:$9 sm:$0xff] %v3249
        %3310 = vst [vmem:[%s3294] ss:$9 sm:$0xff] %v3250
        %3311 = vst [vmem:[%s3296] ss:$9 sm:$0xff] %v3251
        %3312 = vst [vmem:[%s3298] ss:$9 sm:$0xff] %v3252
        %3313 = vst [vmem:[%s3300] ss:$9 sm:$0xff] %v3253
        %3314 = vst [vmem:[%s3302] ss:$9 sm:$0xff] %v3254
        %3315 = vst [vmem:[%s3304] ss:$9 sm:$0xff] %v3255
        %3316 = vst [vmem:[%s3306] ss:$9 sm:$0xff] %v3256
        %v3317 = vld [vmem:[#allocation1] sm:$0xff]
        %3318 = vst [vmem:[#allocation1] ss:$9 sm:$0xff] %v3257
        %3319 = vst [vmem:[%s3294] ss:$9 sm:$0xff] %v3258
        %3320 = vst [vmem:[%s3296] ss:$9 sm:$0xff] %v3259
        %3321 = vst [vmem:[%s3298] ss:$9 sm:$0xff] %v3260
        %3322 = vst [vmem:[%s3300] ss:$9 sm:$0xff] %v3261
        %3323 = vst [vmem:[%s3302] ss:$9 sm:$0xff] %v3262
        %3324 = vst [vmem:[%s3304] ss:$9 sm:$0xff] %v3263
        %3325 = vst [vmem:[%s3306] ss:$9 sm:$0xff] %v3264
        %v3326 = vld [vmem:[#allocation1] sm:$0xff]
        %3327 = vst [vmem:[#allocation1] ss:$9 sm:$0xff] %v3265
        %3328 = vst [vmem:[%s3294] ss:$9 sm:$0xff] %v3266
        %v3329 = vld [vmem:[#allocation1] sm:$0xff]
        %v3334 = vsel %vm1148, %v3308, 0.0
        %3335 = vadd.xlane.f32.xlu0 %v3334
        %v3336 = vpop.xlane.xlu0 %3335
        %v3337 = vsel %vm1148, %v3317, 0.0
        %3338 = vadd.xlane.f32.xlu0 %v3337
        %v3339 = vpop.xlane.xlu0 %3338
        %v3340 = vsel %vm1148, %v3326, 0.0
        %3341 = vadd.xlane.f32.xlu0 %v3340
        %v3342 = vpop.xlane.xlu0 %3341
        %v3343 = vsel %vm1158, %v3329, 0.0
        %3344 = vadd.xlane.f32.xlu0 %v3343
        %v3345 = vpop.xlane.xlu0 %3344
        %v3346 = vmul.f32 %v3336, %v1168
        %v3347 = vmul.f32 %v3339, %v1168
        %v3348 = vmul.f32 %v3342, %v1168
        %v3349 = vmul.f32 %v3345, %v1168
        %v3350 = vadd.f32 %v3346, 1e-05
        %v3351 = vadd.f32 %v3347, 1e-05
        %v3352 = vadd.f32 %v3348, 1e-05
        %v3353 = vadd.f32 %v3349, 1e-05
        %v3354 = vrsqrt.pop %v3350
        %v3355 = vmul.f32 %v3354, %v3350
        %v3356 = vmul.f32 %v3355, %v3354
        %v3357 = vmul.f32 0.5, %v3356
        %v3358 = vsub.f32 1.5, %v3357
        %v3359 = vmul.f32 %v3354, %v3358
        %vm3360 = vweird.f32 %v3350
        %vm3361 = vweird.f32 %v3354
        %vm3362 = vmor %vm3360, %vm3361
        %v3363 = vsel %vm3362, %v3354, %v3359
        %v3364 = vrsqrt.pop %v3351
        %v3365 = vmul.f32 %v3364, %v3351
        %v3366 = vmul.f32 %v3365, %v3364
        %v3367 = vmul.f32 0.5, %v3366
        %v3368 = vsub.f32 1.5, %v3367
        %v3369 = vmul.f32 %v3364, %v3368
        %vm3370 = vweird.f32 %v3351
        %vm3371 = vweird.f32 %v3364
        %vm3372 = vmor %vm3370, %vm3371
        %v3373 = vsel %vm3372, %v3364, %v3369
        %v3374 = vrsqrt.pop %v3352
        %v3375 = vmul.f32 %v3374, %v3352
        %v3376 = vmul.f32 %v3375, %v3374
        %v3377 = vmul.f32 0.5, %v3376
        %v3378 = vsub.f32 1.5, %v3377
        %v3379 = vmul.f32 %v3374, %v3378
        %vm3380 = vweird.f32 %v3352
        %vm3381 = vweird.f32 %v3374
        %vm3382 = vmor %vm3380, %vm3381
        %v3383 = vsel %vm3382, %v3374, %v3379
        %v3384 = vrsqrt.pop %v3353
        %v3385 = vmul.f32 %v3384, %v3353
        %v3386 = vmul.f32 %v3385, %v3384
        %v3387 = vmul.f32 0.5, %v3386
        %v3388 = vsub.f32 1.5, %v3387
        %v3389 = vmul.f32 %v3384, %v3388
        %vm3390 = vweird.f32 %v3353
        %vm3391 = vweird.f32 %v3384
        %vm3392 = vmor %vm3390, %vm3391
        %v3393 = vsel %vm3392, %v3384, %v3389
        %v3398 = vperm.slane %v3363, 0
        %v3399 = vperm.slane %v3363, 1
        %v3400 = vperm.slane %v3363, 2
        %v3401 = vperm.slane %v3363, 3
        %v3402 = vperm.slane %v3363, 4
        %v3403 = vperm.slane %v3363, 5
        %v3404 = vperm.slane %v3363, 6
        %v3405 = vperm.slane %v3363, 7
        %v3406 = vperm.slane %v3373, 0
        %v3407 = vperm.slane %v3373, 1
        %v3408 = vperm.slane %v3373, 2
        %v3409 = vperm.slane %v3373, 3
        %v3410 = vperm.slane %v3373, 4
        %v3411 = vperm.slane %v3373, 5
        %v3412 = vperm.slane %v3373, 6
        %v3413 = vperm.slane %v3373, 7
        %v3414 = vperm.slane %v3383, 0
        %v3415 = vperm.slane %v3383, 1
        %v3416 = vperm.slane %v3383, 2
        %v3417 = vperm.slane %v3383, 3
        %v3418 = vperm.slane %v3383, 4
        %v3419 = vperm.slane %v3383, 5
        %v3420 = vperm.slane %v3383, 6
        %v3421 = vperm.slane %v3383, 7
        %v3422 = vperm.slane %v3393, 0
        %v3423 = vperm.slane %v3393, 1
        %v3450 = vmul.f32 %v3215, %v3398
        %v3451 = vmul.f32 %v3216, %v3399
        %v3452 = vmul.f32 %v3217, %v3400
        %v3453 = vmul.f32 %v3218, %v3401
        %v3454 = vmul.f32 %v3219, %v3402
        %v3455 = vmul.f32 %v3220, %v3403
        %v3456 = vmul.f32 %v3221, %v3404
        %v3457 = vmul.f32 %v3222, %v3405
        %v3458 = vmul.f32 %v3223, %v3406
        %v3459 = vmul.f32 %v3224, %v3407
        %v3460 = vmul.f32 %v3225, %v3408
        %v3461 = vmul.f32 %v3226, %v3409
        %v3462 = vmul.f32 %v3227, %v3410
        %v3463 = vmul.f32 %v3228, %v3411
        %v3464 = vmul.f32 %v3229, %v3412
        %v3465 = vmul.f32 %v3230, %v3413
        %v3466 = vmul.f32 %v3231, %v3414
        %v3467 = vmul.f32 %v3232, %v3415
        %v3468 = vmul.f32 %v3233, %v3416
        %v3469 = vmul.f32 %v3234, %v3417
        %v3470 = vmul.f32 %v3235, %v3418
        %v3471 = vmul.f32 %v3236, %v3419
        %v3472 = vmul.f32 %v3237, %v3420
        %v3473 = vmul.f32 %v3238, %v3421
        %v3474 = vmul.f32 %v3239, %v3422
        %v3475 = vmul.f32 %v3240, %v3423
        %v3477 = vperm.slane %v1035, 0
        %v3479 = vrot.slane %v3477, 1
        %v3480 = vrot.slane %v3477, 2
        %v3481 = vrot.slane %v3477, 3
        %v3482 = vrot.slane %v3477, 4
        %v3483 = vrot.slane %v3477, 5
        %v3484 = vrot.slane %v3477, 6
        %v3485 = vrot.slane %v3477, 7
        %v3493 = vmul.f32 %v3450, %v3477
        %v3494 = vmul.f32 %v3451, %v3479
        %v3495 = vmul.f32 %v3452, %v3480
        %v3496 = vmul.f32 %v3453, %v3481
        %v3497 = vmul.f32 %v3454, %v3482
        %v3498 = vmul.f32 %v3455, %v3483
        %v3499 = vmul.f32 %v3456, %v3484
        %v3500 = vmul.f32 %v3457, %v3485
        %v3501 = vmul.f32 %v3458, %v3477
        %v3502 = vmul.f32 %v3459, %v3479
        %v3503 = vmul.f32 %v3460, %v3480
        %v3504 = vmul.f32 %v3461, %v3481
        %v3505 = vmul.f32 %v3462, %v3482
        %v3506 = vmul.f32 %v3463, %v3483
        %v3507 = vmul.f32 %v3464, %v3484
        %v3508 = vmul.f32 %v3465, %v3485
        %v3509 = vmul.f32 %v3466, %v3477
        %v3510 = vmul.f32 %v3467, %v3479
        %v3511 = vmul.f32 %v3468, %v3480
        %v3512 = vmul.f32 %v3469, %v3481
        %v3513 = vmul.f32 %v3470, %v3482
        %v3514 = vmul.f32 %v3471, %v3483
        %v3515 = vmul.f32 %v3472, %v3484
        %v3516 = vmul.f32 %v3473, %v3485
        %v3517 = vmul.f32 %v3474, %v3477
        %v3518 = vmul.f32 %v3475, %v3479
        %v3520 = vperm.slane %v1036, 0
        %v3522 = vrot.slane %v3520, 1
        %v3523 = vrot.slane %v3520, 2
        %v3524 = vrot.slane %v3520, 3
        %v3525 = vrot.slane %v3520, 4
        %v3526 = vrot.slane %v3520, 5
        %v3527 = vrot.slane %v3520, 6
        %v3528 = vrot.slane %v3520, 7
        %v3536 = vadd.f32 %v3493, %v3520
        %v3537 = vadd.f32 %v3494, %v3522
        %v3538 = vadd.f32 %v3495, %v3523
        %v3539 = vadd.f32 %v3496, %v3524
        %v3540 = vadd.f32 %v3497, %v3525
        %v3541 = vadd.f32 %v3498, %v3526
        %v3542 = vadd.f32 %v3499, %v3527
        %v3543 = vadd.f32 %v3500, %v3528
        %v3544 = vadd.f32 %v3501, %v3520
        %v3545 = vadd.f32 %v3502, %v3522
        %v3546 = vadd.f32 %v3503, %v3523
        %v3547 = vadd.f32 %v3504, %v3524
        %v3548 = vadd.f32 %v3505, %v3525
        %v3549 = vadd.f32 %v3506, %v3526
        %v3550 = vadd.f32 %v3507, %v3527
        %v3551 = vadd.f32 %v3508, %v3528
        %v3552 = vadd.f32 %v3509, %v3520
        %v3553 = vadd.f32 %v3510, %v3522
        %v3554 = vadd.f32 %v3511, %v3523
        %v3555 = vadd.f32 %v3512, %v3524
        %v3556 = vadd.f32 %v3513, %v3525
        %v3557 = vadd.f32 %v3514, %v3526
        %v3558 = vadd.f32 %v3515, %v3527
        %v3559 = vadd.f32 %v3516, %v3528
        %v3560 = vadd.f32 %v3517, %v3520
        %v3561 = vadd.f32 %v3518, %v3522
        %3588 = vst [vmem:[#allocation1] ss:$9 sm:$0xff] %v3536
        %s3589 = scalar_lea.vmem [#allocation1], 1
        %3590 = vst [vmem:[%s3589] ss:$9 sm:$0xff] %v3537
        %s3591 = scalar_lea.vmem [#allocation1], 2
        %3592 = vst [vmem:[%s3591] ss:$9 sm:$0xff] %v3538
        %s3593 = scalar_lea.vmem [#allocation1], 3
        %3594 = vst [vmem:[%s3593] ss:$9 sm:$0xff] %v3539
        %s3595 = scalar_lea.vmem [#allocation1], 4
        %3596 = vst [vmem:[%s3595] ss:$9 sm:$0xff] %v3540
        %s3597 = scalar_lea.vmem [#allocation1], 5
        %3598 = vst [vmem:[%s3597] ss:$9 sm:$0xff] %v3541
        %s3599 = scalar_lea.vmem [#allocation1], 6
        %3600 = vst [vmem:[%s3599] ss:$9 sm:$0xff] %v3542
        %s3601 = scalar_lea.vmem [#allocation1], 7
        %3602 = vst [vmem:[%s3601] ss:$9 sm:$0xff] %v3543
        %v3603 = vld [vmem:[#allocation1] sm:$0xff]
        %3604 = vst [vmem:[#allocation1] ss:$9 sm:$0xff] %v3544
        %3605 = vst [vmem:[%s3589] ss:$9 sm:$0xff] %v3545
        %3606 = vst [vmem:[%s3591] ss:$9 sm:$0xff] %v3546
        %3607 = vst [vmem:[%s3593] ss:$9 sm:$0xff] %v3547
        %3608 = vst [vmem:[%s3595] ss:$9 sm:$0xff] %v3548
        %3609 = vst [vmem:[%s3597] ss:$9 sm:$0xff] %v3549
        %3610 = vst [vmem:[%s3599] ss:$9 sm:$0xff] %v3550
        %3611 = vst [vmem:[%s3601] ss:$9 sm:$0xff] %v3551
        %v3612 = vld [vmem:[#allocation1] sm:$0xff]
        %3613 = vst [vmem:[#allocation1] ss:$9 sm:$0xff] %v3552
        %3614 = vst [vmem:[%s3589] ss:$9 sm:$0xff] %v3553
        %3615 = vst [vmem:[%s3591] ss:$9 sm:$0xff] %v3554
        %3616 = vst [vmem:[%s3593] ss:$9 sm:$0xff] %v3555
        %3617 = vst [vmem:[%s3595] ss:$9 sm:$0xff] %v3556
        %3618 = vst [vmem:[%s3597] ss:$9 sm:$0xff] %v3557
        %3619 = vst [vmem:[%s3599] ss:$9 sm:$0xff] %v3558
        %3620 = vst [vmem:[%s3601] ss:$9 sm:$0xff] %v3559
        %v3621 = vld [vmem:[#allocation1] sm:$0xff]
        %3622 = vst [vmem:[#allocation1] ss:$9 sm:$0xff] %v3560
        %3623 = vst [vmem:[%s3589] ss:$9 sm:$0xff] %v3561
        %v3624 = vld [vmem:[#allocation1] sm:$0xff]
        %v3629 = vpack.c.bf16 %v3612, %v3603
        %v3630 = vpack.c.bf16 %v3624, %v3621
        %v3632 = vperm.slane %v1041, 0
        %v3638 = vunpack.c.l.b16 %v1037
        %v3639 = vunpack.c.l.b16 %v1038
        %v3640 = vunpack.c.l.b16 %v1039
        %v3641 = vunpack.c.l.b16 %v1040
        %v3642 = vpack.c.b16 %v3639, %v3638
        %v3643 = vpack.c.b16 %v3641, %v3640
        %v3647 = vsel %vm1148, %v3629, 0
        %v3650 = vsel %vm1148, %v3630, 0
        %3652 = vmatpush.bf16.msra.mxu0 0
        %3653 = vmatpush.bf16.msra.mxu0 0
        %3654 = vmatpush.bf16.msra.mxu0 0
        %3655 = vmatpush.bf16.msra.mxu0 0
        %3656 = vmatpush.bf16.msra.mxu0 0
        %3657 = vmatpush.bf16.msra.mxu0 0
        %3658 = vmatpush.bf16.msra.mxu0 %v3643
        %3659 = vmatpush.bf16.msra.mxu0 %v3642
        %3660 = vmatmul.bf16.gmra.mxu0 %v3647
        %v3661 = vpop.f32.mrf.mxu0
        %v3662 = vadd.f32 %v3632, %v3661
        %v3663 = vpop.f32.mrf.mxu0
        %v3664 = vadd.f32 %v3632, %v3663
        %3665 = vmatmul.bf16.gmra.mxu0 %v3650
        %v3666 = vpop.f32.mrf.mxu0
        %v3667 = vadd.f32 %v3632, %v3666
        %v3668 = vpop.f32.mrf.mxu0
        %v3669 = vadd.f32 %v3632, %v3668
        %3670 = vdwg.mxu0
        %v3671 = vmul.f32 %v3662, 0.5
        %v3672 = vmul.f32 %v3664, 0.5
        %v3673 = vmul.f32 %v3667, 0.5
        %v3674 = vmul.f32 %v3669, 0.5
        %v3675 = vmul.f32 %v3662, 0.044715
        %v3676 = vmul.f32 %v3664, 0.044715
        %v3677 = vmul.f32 %v3667, 0.044715
        %v3678 = vmul.f32 %v3669, 0.044715
        %v3679 = vmul.f32 %v3675, %v3662
        %v3680 = vmul.f32 %v3676, %v3664
        %v3681 = vmul.f32 %v3677, %v3667
        %v3682 = vmul.f32 %v3678, %v3669
        %v3683 = vmul.f32 %v3679, %v3662
        %v3684 = vmul.f32 %v3680, %v3664
        %v3685 = vmul.f32 %v3681, %v3667
        %v3686 = vmul.f32 %v3682, %v3669
        %v3687 = vadd.f32 %v3662, %v3683
        %v3688 = vadd.f32 %v3664, %v3684
        %v3689 = vadd.f32 %v3667, %v3685
        %v3690 = vadd.f32 %v3669, %v3686
        %v3691 = vmul.f32 %v3687, 0.7978846
        %v3692 = vmul.f32 %v3688, 0.7978846
        %v3693 = vmul.f32 %v3689, 0.7978846
        %v3694 = vmul.f32 %v3690, 0.7978846
        %v3695 = vtanh.pop %v3691
        %v3696 = vtanh.pop %v3692
        %v3697 = vtanh.pop %v3693
        %v3698 = vtanh.pop %v3694
        %v3699 = vadd.f32 %v3695, 1.0
        %v3700 = vadd.f32 %v3696, 1.0
        %v3701 = vadd.f32 %v3697, 1.0
        %v3702 = vadd.f32 %v3698, 1.0
        %v3703 = vmul.f32 %v3671, %v3699
        %v3704 = vmul.f32 %v3672, %v3700
        %v3705 = vmul.f32 %v3673, %v3701
        %v3706 = vmul.f32 %v3674, %v3702
        %v3707 = vpack.c.bf16 %v3704, %v3703
        %v3708 = vpack.c.bf16 %v3706, %v3705
        %v3710 = vperm.slane %v1058, 0
        %v3728 = vunpack.c.l.b16 %v1042
        %v3729 = vunpack.c.l.b16 %v1043
        %v3730 = vunpack.c.l.b16 %v1044
        %v3731 = vunpack.c.l.b16 %v1045
        %v3732 = vunpack.c.l.b16 %v1046
        %v3733 = vunpack.c.l.b16 %v1047
        %v3734 = vunpack.c.l.b16 %v1048
        %v3735 = vunpack.c.l.b16 %v1049
        %v3736 = vunpack.c.l.b16 %v1050
        %v3737 = vunpack.c.l.b16 %v1051
        %v3738 = vunpack.c.l.b16 %v1052
        %v3739 = vunpack.c.l.b16 %v1053
        %v3740 = vunpack.c.l.b16 %v1054
        %v3741 = vunpack.c.l.b16 %v1055
        %v3742 = vunpack.c.l.b16 %v1056
        %v3743 = vunpack.c.l.b16 %v1057
        %v3744 = vpack.c.b16 %v3729, %v3728
        %v3745 = vpack.c.b16 %v3731, %v3730
        %v3746 = vpack.c.b16 %v3733, %v3732
        %v3747 = vpack.c.b16 %v3735, %v3734
        %v3748 = vpack.c.b16 %v3737, %v3736
        %v3749 = vpack.c.b16 %v3739, %v3738
        %v3750 = vpack.c.b16 %v3741, %v3740
        %v3751 = vpack.c.b16 %v3743, %v3742
        %3760 = vmatpush.bf16.msra.mxu0 %v3751
        %3761 = vmatpush.bf16.msra.mxu0 %v3750
        %3762 = vmatpush.bf16.msra.mxu0 %v3749
        %3763 = vmatpush.bf16.msra.mxu0 %v3748
        %3764 = vmatpush.bf16.msra.mxu0 %v3747
        %3765 = vmatpush.bf16.msra.mxu0 %v3746
        %3766 = vmatpush.bf16.msra.mxu0 %v3745
        %3767 = vmatpush.bf16.msra.mxu0 %v3744
        %3768 = vmatmul.bf16.gmra.mxu0 %v3707
        %v3769 = vpop.f32.mrf.mxu0
        %v3770 = vadd.f32 %v3710, %v3769
        %v3771 = vpop.f32.mrf.mxu0
        %v3772 = vadd.f32 %v3710, %v3771
        %3773 = vmatmul.bf16.gmra.mxu0 %v3708
        %v3774 = vpop.f32.mrf.mxu0
        %v3775 = vadd.f32 %v3710, %v3774
        %v3776 = vpop.f32.mrf.mxu0
        %v3777 = vadd.f32 %v3710, %v3776
        %3778 = vdwg.mxu0
        %v3783 = vrot.slane %v3770, 1
        %v3784 = vrot.slane %v3770, 2
        %v3785 = vrot.slane %v3770, 3
        %v3786 = vrot.slane %v3770, 4
        %v3787 = vrot.slane %v3770, 5
        %v3788 = vrot.slane %v3770, 6
        %v3789 = vrot.slane %v3770, 7
        %v3790 = vrot.slane %v3772, 1
        %v3791 = vrot.slane %v3772, 2
        %v3792 = vrot.slane %v3772, 3
        %v3793 = vrot.slane %v3772, 4
        %v3794 = vrot.slane %v3772, 5
        %v3795 = vrot.slane %v3772, 6
        %v3796 = vrot.slane %v3772, 7
        %v3797 = vrot.slane %v3775, 1
        %v3798 = vrot.slane %v3775, 2
        %v3799 = vrot.slane %v3775, 3
        %v3800 = vrot.slane %v3775, 4
        %v3801 = vrot.slane %v3775, 5
        %v3802 = vrot.slane %v3775, 6
        %v3803 = vrot.slane %v3775, 7
        %v3804 = vrot.slane %v3777, 1
        %v3827 = vadd.f32 %v3050, %v3770
        %v3828 = vadd.f32 %v3051, %v3783
        %v3829 = vadd.f32 %v3052, %v3784
        %v3830 = vadd.f32 %v3053, %v3785
        %v3831 = vadd.f32 %v3054, %v3786
        %v3832 = vadd.f32 %v3055, %v3787
        %v3833 = vadd.f32 %v3056, %v3788
        %v3834 = vadd.f32 %v3057, %v3789
        %v3835 = vadd.f32 %v3058, %v3772
        %v3836 = vadd.f32 %v3059, %v3790
        %v3837 = vadd.f32 %v3060, %v3791
        %v3838 = vadd.f32 %v3061, %v3792
        %v3839 = vadd.f32 %v3062, %v3793
        %v3840 = vadd.f32 %v3063, %v3794
        %v3841 = vadd.f32 %v3064, %v3795
        %v3842 = vadd.f32 %v3065, %v3796
        %v3843 = vadd.f32 %v3066, %v3775
        %v3844 = vadd.f32 %v3067, %v3797
        %v3845 = vadd.f32 %v3068, %v3798
        %v3846 = vadd.f32 %v3069, %v3799
        %v3847 = vadd.f32 %v3070, %v3800
        %v3848 = vadd.f32 %v3071, %v3801
        %v3849 = vadd.f32 %v3072, %v3802
        %v3850 = vadd.f32 %v3073, %v3803
        %v3851 = vadd.f32 %v3074, %v3777
        %v3852 = vadd.f32 %v3075, %v3804
        %p3853 = scmp.lt.s32.totalorder %s43, 1
        // Predicated region
        $region121: #{forward.5} parent=115 // pred_check
          %p3854 = pneg %p3853
        $region122: #{forward.5} parent=115 // pred_check_branch
          %3856 = sbr.rel (%p3854) target = $region124
        $region123: #{forward.5} parent=115 // pred_region
          %3883 = vst [vmem:[#allocation1] ss:$9 sm:$0xff] %v3827
          %s3884 = scalar_lea.vmem [#allocation1], 1
          %3885 = vst [vmem:[%s3884] ss:$9 sm:$0xff] %v3828
          %s3886 = scalar_lea.vmem [#allocation1], 2
          %3887 = vst [vmem:[%s3886] ss:$9 sm:$0xff] %v3829
          %s3888 = scalar_lea.vmem [#allocation1], 3
          %3889 = vst [vmem:[%s3888] ss:$9 sm:$0xff] %v3830
          %s3890 = scalar_lea.vmem [#allocation1], 4
          %3891 = vst [vmem:[%s3890] ss:$9 sm:$0xff] %v3831
          %s3892 = scalar_lea.vmem [#allocation1], 5
          %3893 = vst [vmem:[%s3892] ss:$9 sm:$0xff] %v3832
          %s3894 = scalar_lea.vmem [#allocation1], 6
          %3895 = vst [vmem:[%s3894] ss:$9 sm:$0xff] %v3833
          %s3896 = scalar_lea.vmem [#allocation1], 7
          %3897 = vst [vmem:[%s3896] ss:$9 sm:$0xff] %v3834
          %v3898 = vld [vmem:[#allocation1] sm:$0xff]
          %3899 = vst [vmem:[#allocation1] ss:$9 sm:$0xff] %v3835
          %3900 = vst [vmem:[%s3884] ss:$9 sm:$0xff] %v3836
          %3901 = vst [vmem:[%s3886] ss:$9 sm:$0xff] %v3837
          %3902 = vst [vmem:[%s3888] ss:$9 sm:$0xff] %v3838
          %3903 = vst [vmem:[%s3890] ss:$9 sm:$0xff] %v3839
          %v3904 = vld [vmem:[#allocation1] sm:$0xff]
          %3905 = vst [vmem:[#allocation1] ss:$9 sm:$0xff] %v3840
          %3906 = vst [vmem:[%s3884] ss:$9 sm:$0xff] %v3841
          %3907 = vst [vmem:[%s3886] ss:$9 sm:$0xff] %v3842
          %3908 = vst [vmem:[%s3888] ss:$9 sm:$0xff] %v3843
          %3909 = vst [vmem:[%s3890] ss:$9 sm:$0xff] %v3844
          %3910 = vst [vmem:[%s3892] ss:$9 sm:$0xff] %v3845
          %3911 = vst [vmem:[%s3894] ss:$9 sm:$0xff] %v3846
          %3912 = vst [vmem:[%s3896] ss:$9 sm:$0xff] %v3847
          %v3913 = vld [vmem:[#allocation1] sm:$0xff]
          %3914 = vst [vmem:[#allocation1] ss:$9 sm:$0xff] %v3848
          %3915 = vst [vmem:[%s3884] ss:$9 sm:$0xff] %v3849
          %3916 = vst [vmem:[%s3886] ss:$9 sm:$0xff] %v3850
          %3917 = vst [vmem:[%s3888] ss:$9 sm:$0xff] %v3851
          %3918 = vst [vmem:[%s3890] ss:$9 sm:$0xff] %v3852
          %v3919 = vld [vmem:[#allocation1] sm:$0xff]
          %3924 = vst.msk [vmem:[#allocation2] sm:$0xff] %vm1148, %v3898
          %vm3925 = vcmask 258048
          %3926 = vst.msk [vmem:[#allocation2 + $0x8] sm:$0x1f] %vm3925, %v3904
          %3927 = vst.msk [vmem:[#allocation2 + $0x10] sm:$0xff] %vm1148, %v3913
          %3928 = vst.msk [vmem:[#allocation2 + $0x18] sm:$0x1f] %vm3925, %v3919
        $region124: #{forward.5} parent=115 // pred_fallthru
          _
        %p3929 = scmp.eq.s32.totalorder %s43, 1
        // Predicated region
        $region125: #{forward.5} parent=115 // pred_check
          %p3930 = pneg %p3929
        $region126: #{forward.5} parent=115 // pred_check_branch
          %3932 = sbr.rel (%p3930) target = $region128
        $region127: #{forward.5} parent=115 // pred_region
          %v3933 = vld [vmem:[%s14] sm:$0x1]
          %v3934 = vld [vmem:[%s15] sm:$0x1]
          %3961 = vst [vmem:[#allocation1] ss:$9 sm:$0xff] %v3827
          %s3962 = scalar_lea.vmem [#allocation1], 1
          %3963 = vst [vmem:[%s3962] ss:$9 sm:$0xff] %v3828
          %s3964 = scalar_lea.vmem [#allocation1], 2
          %3965 = vst [vmem:[%s3964] ss:$9 sm:$0xff] %v3829
          %s3966 = scalar_lea.vmem [#allocation1], 3
          %3967 = vst [vmem:[%s3966] ss:$9 sm:$0xff] %v3830
          %s3968 = scalar_lea.vmem [#allocation1], 4
          %3969 = vst [vmem:[%s3968] ss:$9 sm:$0xff] %v3831
          %s3970 = scalar_lea.vmem [#allocation1], 5
          %3971 = vst [vmem:[%s3970] ss:$9 sm:$0xff] %v3832
          %s3972 = scalar_lea.vmem [#allocation1], 6
          %3973 = vst [vmem:[%s3972] ss:$9 sm:$0xff] %v3833
          %s3974 = scalar_lea.vmem [#allocation1], 7
          %3975 = vst [vmem:[%s3974] ss:$9 sm:$0xff] %v3834
          %v3976 = vld [vmem:[#allocation1] sm:$0xff]
          %3977 = vst [vmem:[#allocation1] ss:$9 sm:$0xff] %v3835
          %3978 = vst [vmem:[%s3962] ss:$9 sm:$0xff] %v3836
          %3979 = vst [vmem:[%s3964] ss:$9 sm:$0xff] %v3837
          %3980 = vst [vmem:[%s3966] ss:$9 sm:$0xff] %v3838
          %3981 = vst [vmem:[%s3968] ss:$9 sm:$0xff] %v3839
          %3982 = vst [vmem:[%s3970] ss:$9 sm:$0xff] %v3840
          %3983 = vst [vmem:[%s3972] ss:$9 sm:$0xff] %v3841
          %3984 = vst [vmem:[%s3974] ss:$9 sm:$0xff] %v3842
          %v3985 = vld [vmem:[#allocation1] sm:$0xff]
          %3986 = vst [vmem:[#allocation1] ss:$9 sm:$0xff] %v3843
          %3987 = vst [vmem:[%s3962] ss:$9 sm:$0xff] %v3844
          %3988 = vst [vmem:[%s3964] ss:$9 sm:$0xff] %v3845
          %3989 = vst [vmem:[%s3966] ss:$9 sm:$0xff] %v3846
          %3990 = vst [vmem:[%s3968] ss:$9 sm:$0xff] %v3847
          %3991 = vst [vmem:[%s3970] ss:$9 sm:$0xff] %v3848
          %3992 = vst [vmem:[%s3972] ss:$9 sm:$0xff] %v3849
          %3993 = vst [vmem:[%s3974] ss:$9 sm:$0xff] %v3850
          %v3994 = vld [vmem:[#allocation1] sm:$0xff]
          %3995 = vst [vmem:[#allocation1] ss:$9 sm:$0xff] %v3851
          %3996 = vst [vmem:[%s3962] ss:$9 sm:$0xff] %v3852
          %v3997 = vld [vmem:[#allocation1] sm:$0xff]
          %v4002 = vsel %vm1148, %v3976, 0.0
          %4003 = vadd.xlane.f32.xlu0 %v4002
          %v4004 = vpop.xlane.xlu0 %4003
          %v4005 = vsel %vm1148, %v3985, 0.0
          %4006 = vadd.xlane.f32.xlu0 %v4005
          %v4007 = vpop.xlane.xlu0 %4006
          %v4008 = vsel %vm1148, %v3994, 0.0
          %4009 = vadd.xlane.f32.xlu0 %v4008
          %v4010 = vpop.xlane.xlu0 %4009
          %v4011 = vsel %vm1158, %v3997, 0.0
          %4012 = vadd.xlane.f32.xlu0 %v4011
          %v4013 = vpop.xlane.xlu0 %4012
          %v4014 = vmul.f32 %v4004, %v1168
          %v4015 = vmul.f32 %v4007, %v1168
          %v4016 = vmul.f32 %v4010, %v1168
          %v4017 = vmul.f32 %v4013, %v1168
          %v4022 = vperm.slane %v4014, 0
          %v4023 = vperm.slane %v4014, 1
          %v4024 = vperm.slane %v4014, 2
          %v4025 = vperm.slane %v4014, 3
          %v4026 = vperm.slane %v4014, 4
          %v4027 = vperm.slane %v4014, 5
          %v4028 = vperm.slane %v4014, 6
          %v4029 = vperm.slane %v4014, 7
          %v4030 = vperm.slane %v4015, 0
          %v4031 = vperm.slane %v4015, 1
          %v4032 = vperm.slane %v4015, 2
          %v4033 = vperm.slane %v4015, 3
          %v4034 = vperm.slane %v4015, 4
          %v4035 = vperm.slane %v4015, 5
          %v4036 = vperm.slane %v4015, 6
          %v4037 = vperm.slane %v4015, 7
          %v4038 = vperm.slane %v4016, 0
          %v4039 = vperm.slane %v4016, 1
          %v4040 = vperm.slane %v4016, 2
          %v4041 = vperm.slane %v4016, 3
          %v4042 = vperm.slane %v4016, 4
          %v4043 = vperm.slane %v4016, 5
          %v4044 = vperm.slane %v4016, 6
          %v4045 = vperm.slane %v4016, 7
          %v4046 = vperm.slane %v4017, 0
          %v4047 = vperm.slane %v4017, 1
          %v4074 = vsub.f32 %v3827, %v4022
          %v4075 = vsub.f32 %v3828, %v4023
          %v4076 = vsub.f32 %v3829, %v4024
          %v4077 = vsub.f32 %v3830, %v4025
          %v4078 = vsub.f32 %v3831, %v4026
          %v4079 = vsub.f32 %v3832, %v4027
          %v4080 = vsub.f32 %v3833, %v4028
          %v4081 = vsub.f32 %v3834, %v4029
          %v4082 = vsub.f32 %v3835, %v4030
          %v4083 = vsub.f32 %v3836, %v4031
          %v4084 = vsub.f32 %v3837, %v4032
          %v4085 = vsub.f32 %v3838, %v4033
          %v4086 = vsub.f32 %v3839, %v4034
          %v4087 = vsub.f32 %v3840, %v4035
          %v4088 = vsub.f32 %v3841, %v4036
          %v4089 = vsub.f32 %v3842, %v4037
          %v4090 = vsub.f32 %v3843, %v4038
          %v4091 = vsub.f32 %v3844, %v4039
          %v4092 = vsub.f32 %v3845, %v4040
          %v4093 = vsub.f32 %v3846, %v4041
          %v4094 = vsub.f32 %v3847, %v4042
          %v4095 = vsub.f32 %v3848, %v4043
          %v4096 = vsub.f32 %v3849, %v4044
          %v4097 = vsub.f32 %v3850, %v4045
          %v4098 = vsub.f32 %v3851, %v4046
          %v4099 = vsub.f32 %v3852, %v4047
          %v4100 = vmul.f32 %v4074, %v4074
          %v4101 = vmul.f32 %v4075, %v4075
          %v4102 = vmul.f32 %v4076, %v4076
          %v4103 = vmul.f32 %v4077, %v4077
          %v4104 = vmul.f32 %v4078, %v4078
          %v4105 = vmul.f32 %v4079, %v4079
          %v4106 = vmul.f32 %v4080, %v4080
          %v4107 = vmul.f32 %v4081, %v4081
          %v4108 = vmul.f32 %v4082, %v4082
          %v4109 = vmul.f32 %v4083, %v4083
          %v4110 = vmul.f32 %v4084, %v4084
          %v4111 = vmul.f32 %v4085, %v4085
          %v4112 = vmul.f32 %v4086, %v4086
          %v4113 = vmul.f32 %v4087, %v4087
          %v4114 = vmul.f32 %v4088, %v4088
          %v4115 = vmul.f32 %v4089, %v4089
          %v4116 = vmul.f32 %v4090, %v4090
          %v4117 = vmul.f32 %v4091, %v4091
          %v4118 = vmul.f32 %v4092, %v4092
          %v4119 = vmul.f32 %v4093, %v4093
          %v4120 = vmul.f32 %v4094, %v4094
          %v4121 = vmul.f32 %v4095, %v4095
          %v4122 = vmul.f32 %v4096, %v4096
          %v4123 = vmul.f32 %v4097, %v4097
          %v4124 = vmul.f32 %v4098, %v4098
          %v4125 = vmul.f32 %v4099, %v4099
          %4152 = vst [vmem:[#allocation1] ss:$9 sm:$0xff] %v4100
          %s4153 = scalar_lea.vmem [#allocation1], 1
          %4154 = vst [vmem:[%s4153] ss:$9 sm:$0xff] %v4101
          %s4155 = scalar_lea.vmem [#allocation1], 2
          %4156 = vst [vmem:[%s4155] ss:$9 sm:$0xff] %v4102
          %s4157 = scalar_lea.vmem [#allocation1], 3
          %4158 = vst [vmem:[%s4157] ss:$9 sm:$0xff] %v4103
          %s4159 = scalar_lea.vmem [#allocation1], 4
          %4160 = vst [vmem:[%s4159] ss:$9 sm:$0xff] %v4104
          %s4161 = scalar_lea.vmem [#allocation1], 5
          %4162 = vst [vmem:[%s4161] ss:$9 sm:$0xff] %v4105
          %s4163 = scalar_lea.vmem [#allocation1], 6
          %4164 = vst [vmem:[%s4163] ss:$9 sm:$0xff] %v4106
          %s4165 = scalar_lea.vmem [#allocation1], 7
          %4166 = vst [vmem:[%s4165] ss:$9 sm:$0xff] %v4107
          %v4167 = vld [vmem:[#allocation1] sm:$0xff]
          %4168 = vst [vmem:[#allocation1] ss:$9 sm:$0xff] %v4108
          %4169 = vst [vmem:[%s4153] ss:$9 sm:$0xff] %v4109
          %4170 = vst [vmem:[%s4155] ss:$9 sm:$0xff] %v4110
          %4171 = vst [vmem:[%s4157] ss:$9 sm:$0xff] %v4111
          %4172 = vst [vmem:[%s4159] ss:$9 sm:$0xff] %v4112
          %4173 = vst [vmem:[%s4161] ss:$9 sm:$0xff] %v4113
          %4174 = vst [vmem:[%s4163] ss:$9 sm:$0xff] %v4114
          %4175 = vst [vmem:[%s4165] ss:$9 sm:$0xff] %v4115
          %v4176 = vld [vmem:[#allocation1] sm:$0xff]
          %4177 = vst [vmem:[#allocation1] ss:$9 sm:$0xff] %v4116
          %4178 = vst [vmem:[%s4153] ss:$9 sm:$0xff] %v4117
          %4179 = vst [vmem:[%s4155] ss:$9 sm:$0xff] %v4118
          %4180 = vst [vmem:[%s4157] ss:$9 sm:$0xff] %v4119
          %4181 = vst [vmem:[%s4159] ss:$9 sm:$0xff] %v4120
          %4182 = vst [vmem:[%s4161] ss:$9 sm:$0xff] %v4121
          %4183 = vst [vmem:[%s4163] ss:$9 sm:$0xff] %v4122
          %4184 = vst [vmem:[%s4165] ss:$9 sm:$0xff] %v4123
          %v4185 = vld [vmem:[#allocation1] sm:$0xff]
          %4186 = vst [vmem:[#allocation1] ss:$9 sm:$0xff] %v4124
          %4187 = vst [vmem:[%s4153] ss:$9 sm:$0xff] %v4125
          %v4188 = vld [vmem:[#allocation1] sm:$0xff]
          %v4193 = vsel %vm1148, %v4167, 0.0
          %4194 = vadd.xlane.f32.xlu0 %v4193
          %v4195 = vpop.xlane.xlu0 %4194
          %v4196 = vsel %vm1148, %v4176, 0.0
          %4197 = vadd.xlane.f32.xlu0 %v4196
          %v4198 = vpop.xlane.xlu0 %4197
          %v4199 = vsel %vm1148, %v4185, 0.0
          %4200 = vadd.xlane.f32.xlu0 %v4199
          %v4201 = vpop.xlane.xlu0 %4200
          %v4202 = vsel %vm1158, %v4188, 0.0
          %4203 = vadd.xlane.f32.xlu0 %v4202
          %v4204 = vpop.xlane.xlu0 %4203
          %v4205 = vmul.f32 %v4195, %v1168
          %v4206 = vmul.f32 %v4198, %v1168
          %v4207 = vmul.f32 %v4201, %v1168
          %v4208 = vmul.f32 %v4204, %v1168
          %v4209 = vadd.f32 %v4205, 1e-05
          %v4210 = vadd.f32 %v4206, 1e-05
          %v4211 = vadd.f32 %v4207, 1e-05
          %v4212 = vadd.f32 %v4208, 1e-05
          %v4213 = vrsqrt.pop %v4209
          %v4214 = vmul.f32 %v4213, %v4209
          %v4215 = vmul.f32 %v4214, %v4213
          %v4216 = vmul.f32 0.5, %v4215
          %v4217 = vsub.f32 1.5, %v4216
          %v4218 = vmul.f32 %v4213, %v4217
          %vm4219 = vweird.f32 %v4209
          %vm4220 = vweird.f32 %v4213
          %vm4221 = vmor %vm4219, %vm4220
          %v4222 = vsel %vm4221, %v4213, %v4218
          %v4223 = vrsqrt.pop %v4210
          %v4224 = vmul.f32 %v4223, %v4210
          %v4225 = vmul.f32 %v4224, %v4223
          %v4226 = vmul.f32 0.5, %v4225
          %v4227 = vsub.f32 1.5, %v4226
          %v4228 = vmul.f32 %v4223, %v4227
          %vm4229 = vweird.f32 %v4210
          %vm4230 = vweird.f32 %v4223
          %vm4231 = vmor %vm4229, %vm4230
          %v4232 = vsel %vm4231, %v4223, %v4228
          %v4233 = vrsqrt.pop %v4211
          %v4234 = vmul.f32 %v4233, %v4211
          %v4235 = vmul.f32 %v4234, %v4233
          %v4236 = vmul.f32 0.5, %v4235
          %v4237 = vsub.f32 1.5, %v4236
          %v4238 = vmul.f32 %v4233, %v4237
          %vm4239 = vweird.f32 %v4211
          %vm4240 = vweird.f32 %v4233
          %vm4241 = vmor %vm4239, %vm4240
          %v4242 = vsel %vm4241, %v4233, %v4238
          %v4243 = vrsqrt.pop %v4212
          %v4244 = vmul.f32 %v4243, %v4212
          %v4245 = vmul.f32 %v4244, %v4243
          %v4246 = vmul.f32 0.5, %v4245
          %v4247 = vsub.f32 1.5, %v4246
          %v4248 = vmul.f32 %v4243, %v4247
          %vm4249 = vweird.f32 %v4212
          %vm4250 = vweird.f32 %v4243
          %vm4251 = vmor %vm4249, %vm4250
          %v4252 = vsel %vm4251, %v4243, %v4248
          %v4257 = vperm.slane %v4222, 0
          %v4258 = vperm.slane %v4222, 1
          %v4259 = vperm.slane %v4222, 2
          %v4260 = vperm.slane %v4222, 3
          %v4261 = vperm.slane %v4222, 4
          %v4262 = vperm.slane %v4222, 5
          %v4263 = vperm.slane %v4222, 6
          %v4264 = vperm.slane %v4222, 7
          %v4265 = vperm.slane %v4232, 0
          %v4266 = vperm.slane %v4232, 1
          %v4267 = vperm.slane %v4232, 2
          %v4268 = vperm.slane %v4232, 3
          %v4269 = vperm.slane %v4232, 4
          %v4270 = vperm.slane %v4232, 5
          %v4271 = vperm.slane %v4232, 6
          %v4272 = vperm.slane %v4232, 7
          %v4273 = vperm.slane %v4242, 0
          %v4274 = vperm.slane %v4242, 1
          %v4275 = vperm.slane %v4242, 2
          %v4276 = vperm.slane %v4242, 3
          %v4277 = vperm.slane %v4242, 4
          %v4278 = vperm.slane %v4242, 5
          %v4279 = vperm.slane %v4242, 6
          %v4280 = vperm.slane %v4242, 7
          %v4281 = vperm.slane %v4252, 0
          %v4282 = vperm.slane %v4252, 1
          %v4309 = vmul.f32 %v4074, %v4257
          %v4310 = vmul.f32 %v4075, %v4258
          %v4311 = vmul.f32 %v4076, %v4259
          %v4312 = vmul.f32 %v4077, %v4260
          %v4313 = vmul.f32 %v4078, %v4261
          %v4314 = vmul.f32 %v4079, %v4262
          %v4315 = vmul.f32 %v4080, %v4263
          %v4316 = vmul.f32 %v4081, %v4264
          %v4317 = vmul.f32 %v4082, %v4265
          %v4318 = vmul.f32 %v4083, %v4266
          %v4319 = vmul.f32 %v4084, %v4267
          %v4320 = vmul.f32 %v4085, %v4268
          %v4321 = vmul.f32 %v4086, %v4269
          %v4322 = vmul.f32 %v4087, %v4270
          %v4323 = vmul.f32 %v4088, %v4271
          %v4324 = vmul.f32 %v4089, %v4272
          %v4325 = vmul.f32 %v4090, %v4273
          %v4326 = vmul.f32 %v4091, %v4274
          %v4327 = vmul.f32 %v4092, %v4275
          %v4328 = vmul.f32 %v4093, %v4276
          %v4329 = vmul.f32 %v4094, %v4277
          %v4330 = vmul.f32 %v4095, %v4278
          %v4331 = vmul.f32 %v4096, %v4279
          %v4332 = vmul.f32 %v4097, %v4280
          %v4333 = vmul.f32 %v4098, %v4281
          %v4334 = vmul.f32 %v4099, %v4282
          %v4336 = vperm.slane %v3933, 0
          %v4338 = vrot.slane %v4336, 1
          %v4339 = vrot.slane %v4336, 2
          %v4340 = vrot.slane %v4336, 3
          %v4341 = vrot.slane %v4336, 4
          %v4342 = vrot.slane %v4336, 5
          %v4343 = vrot.slane %v4336, 6
          %v4344 = vrot.slane %v4336, 7
          %v4352 = vmul.f32 %v4309, %v4336
          %v4353 = vmul.f32 %v4310, %v4338
          %v4354 = vmul.f32 %v4311, %v4339
          %v4355 = vmul.f32 %v4312, %v4340
          %v4356 = vmul.f32 %v4313, %v4341
          %v4357 = vmul.f32 %v4314, %v4342
          %v4358 = vmul.f32 %v4315, %v4343
          %v4359 = vmul.f32 %v4316, %v4344
          %v4360 = vmul.f32 %v4317, %v4336
          %v4361 = vmul.f32 %v4318, %v4338
          %v4362 = vmul.f32 %v4319, %v4339
          %v4363 = vmul.f32 %v4320, %v4340
          %v4364 = vmul.f32 %v4321, %v4341
          %v4365 = vmul.f32 %v4322, %v4342
          %v4366 = vmul.f32 %v4323, %v4343
          %v4367 = vmul.f32 %v4324, %v4344
          %v4368 = vmul.f32 %v4325, %v4336
          %v4369 = vmul.f32 %v4326, %v4338
          %v4370 = vmul.f32 %v4327, %v4339
          %v4371 = vmul.f32 %v4328, %v4340
          %v4372 = vmul.f32 %v4329, %v4341
          %v4373 = vmul.f32 %v4330, %v4342
          %v4374 = vmul.f32 %v4331, %v4343
          %v4375 = vmul.f32 %v4332, %v4344
          %v4376 = vmul.f32 %v4333, %v4336
          %v4377 = vmul.f32 %v4334, %v4338
          %v4379 = vperm.slane %v3934, 0
          %v4381 = vrot.slane %v4379, 1
          %v4382 = vrot.slane %v4379, 2
          %v4383 = vrot.slane %v4379, 3
          %v4384 = vrot.slane %v4379, 4
          %v4385 = vrot.slane %v4379, 5
          %v4386 = vrot.slane %v4379, 6
          %v4387 = vrot.slane %v4379, 7
          %v4395 = vadd.f32 %v4352, %v4379
          %v4396 = vadd.f32 %v4353, %v4381
          %v4397 = vadd.f32 %v4354, %v4382
          %v4398 = vadd.f32 %v4355, %v4383
          %v4399 = vadd.f32 %v4356, %v4384
          %v4400 = vadd.f32 %v4357, %v4385
          %v4401 = vadd.f32 %v4358, %v4386
          %v4402 = vadd.f32 %v4359, %v4387
          %v4403 = vadd.f32 %v4360, %v4379
          %v4404 = vadd.f32 %v4361, %v4381
          %v4405 = vadd.f32 %v4362, %v4382
          %v4406 = vadd.f32 %v4363, %v4383
          %v4407 = vadd.f32 %v4364, %v4384
          %v4408 = vadd.f32 %v4365, %v4385
          %v4409 = vadd.f32 %v4366, %v4386
          %v4410 = vadd.f32 %v4367, %v4387
          %v4411 = vadd.f32 %v4368, %v4379
          %v4412 = vadd.f32 %v4369, %v4381
          %v4413 = vadd.f32 %v4370, %v4382
          %v4414 = vadd.f32 %v4371, %v4383
          %v4415 = vadd.f32 %v4372, %v4384
          %v4416 = vadd.f32 %v4373, %v4385
          %v4417 = vadd.f32 %v4374, %v4386
          %v4418 = vadd.f32 %v4375, %v4387
          %v4419 = vadd.f32 %v4376, %v4379
          %v4420 = vadd.f32 %v4377, %v4381
          %4447 = vst [vmem:[#allocation1] ss:$9 sm:$0xff] %v4395
          %s4448 = scalar_lea.vmem [#allocation1], 1
          %4449 = vst [vmem:[%s4448] ss:$9 sm:$0xff] %v4396
          %s4450 = scalar_lea.vmem [#allocation1], 2
          %4451 = vst [vmem:[%s4450] ss:$9 sm:$0xff] %v4397
          %s4452 = scalar_lea.vmem [#allocation1], 3
          %4453 = vst [vmem:[%s4452] ss:$9 sm:$0xff] %v4398
          %s4454 = scalar_lea.vmem [#allocation1], 4
          %4455 = vst [vmem:[%s4454] ss:$9 sm:$0xff] %v4399
          %s4456 = scalar_lea.vmem [#allocation1], 5
          %4457 = vst [vmem:[%s4456] ss:$9 sm:$0xff] %v4400
          %s4458 = scalar_lea.vmem [#allocation1], 6
          %4459 = vst [vmem:[%s4458] ss:$9 sm:$0xff] %v4401
          %s4460 = scalar_lea.vmem [#allocation1], 7
          %4461 = vst [vmem:[%s4460] ss:$9 sm:$0xff] %v4402
          %v4462 = vld [vmem:[#allocation1] sm:$0xff]
          %4463 = vst [vmem:[#allocation1] ss:$9 sm:$0xff] %v4403
          %4464 = vst [vmem:[%s4448] ss:$9 sm:$0xff] %v4404
          %4465 = vst [vmem:[%s4450] ss:$9 sm:$0xff] %v4405
          %4466 = vst [vmem:[%s4452] ss:$9 sm:$0xff] %v4406
          %4467 = vst [vmem:[%s4454] ss:$9 sm:$0xff] %v4407
          %v4468 = vld [vmem:[#allocation1] sm:$0xff]
          %4469 = vst [vmem:[#allocation1] ss:$9 sm:$0xff] %v4408
          %4470 = vst [vmem:[%s4448] ss:$9 sm:$0xff] %v4409
          %4471 = vst [vmem:[%s4450] ss:$9 sm:$0xff] %v4410
          %4472 = vst [vmem:[%s4452] ss:$9 sm:$0xff] %v4411
          %4473 = vst [vmem:[%s4454] ss:$9 sm:$0xff] %v4412
          %4474 = vst [vmem:[%s4456] ss:$9 sm:$0xff] %v4413
          %4475 = vst [vmem:[%s4458] ss:$9 sm:$0xff] %v4414
          %4476 = vst [vmem:[%s4460] ss:$9 sm:$0xff] %v4415
          %v4477 = vld [vmem:[#allocation1] sm:$0xff]
          %4478 = vst [vmem:[#allocation1] ss:$9 sm:$0xff] %v4416
          %4479 = vst [vmem:[%s4448] ss:$9 sm:$0xff] %v4417
          %4480 = vst [vmem:[%s4450] ss:$9 sm:$0xff] %v4418
          %4481 = vst [vmem:[%s4452] ss:$9 sm:$0xff] %v4419
          %4482 = vst [vmem:[%s4454] ss:$9 sm:$0xff] %v4420
          %v4483 = vld [vmem:[#allocation1] sm:$0xff]
          %v4488 = vsel %vm1148, %v4462, 0.0
          %vm4489 = vcmask 258048
          %v4490 = vsel %vm4489, %v4468, 0.0
          %v4491 = vadd.f32 %v4488, %v4490
          %v4492 = vrot.slane %v4491, 4
          %v4493 = vadd.f32 %v4491, %v4492
          %v4494 = vrot.slane %v4493, 2
          %v4495 = vadd.f32 %v4493, %v4494
          %v4496 = vrot.slane %v4495, 1
          %v4497 = vadd.f32 %v4495, %v4496
          %v4498 = vsel %vm1148, %v4477, 0.0
          %v4499 = vsel %vm4489, %v4483, 0.0
          %v4500 = vadd.f32 %v4498, %v4499
          %v4501 = vrot.slane %v4500, 4
          %v4502 = vadd.f32 %v4500, %v4501
          %v4503 = vrot.slane %v4502, 2
          %v4504 = vadd.f32 %v4502, %v4503
          %v4505 = vrot.slane %v4504, 1
          %v4506 = vadd.f32 %v4504, %v4505
          %v4507 = vrcp.pop 13.0
          %v4508 = vmul.f32 13.0, %v4507
          %v4509 = vsub.f32 1.0, %v4508
          %v4510 = vmul.f32 %v4507, %v4509
          %v4511 = vadd.f32 %v4507, %v4510
          %vm4512 = vweird.f32 %v4507
          %v4513 = vsel %vm4512, %v4507, %v4511
          %v4514 = vmul.f32 %v4497, %v4513
          %v4515 = vmul.f32 %v4506, %v4513
          %v4516 = vpack.c.bf16 %v4514, %v4514
          %v4517 = vpack.c.bf16 %v4515, %v4515
          %v4518 = vld [vmem:[%s16] sm:$0xf]
          %v4519 = vld [vmem:[%s16 + $0x4] sm:$0xf]
          %v4520 = vld [vmem:[%s16 + $0x8] sm:$0xf]
          %v4521 = vld [vmem:[%s16 + $0xc] sm:$0xf]
          %v4522 = vld [vmem:[%s17] sm:$0x1]
          %v4524 = vperm.slane %v4522, 0
          %v4528 = vunpack.c.l.b16 %v4516
          %v4529 = vunpack.c.l.b16 %v4517
          %vm4530 = vcmask 1041409
          %v4531 = vsel %vm4530, %v4529, %v4528
          %v4532 = vpack.c.b16 %v4531, %v4531
          %v4537 = vunpack.c.l.b16 %v4518
          %v4538 = vunpack.c.l.b16 %v4519
          %v4539 = vunpack.c.l.b16 %v4520
          %v4540 = vunpack.c.l.b16 %v4521
          %v4541 = vpack.c.b16 %v4538, %v4537
          %v4542 = vpack.c.b16 %v4540, %v4539
          %v4546 = vsel %vm1148, %v4532, 0
          %4548 = vmatpush.bf16.msra.mxu0 0
          %4549 = vmatpush.bf16.msra.mxu0 0
          %4550 = vmatpush.bf16.msra.mxu0 0
          %4551 = vmatpush.bf16.msra.mxu0 0
          %4552 = vmatpush.bf16.msra.mxu0 0
          %4553 = vmatpush.bf16.msra.mxu0 0
          %4554 = vmatpush.bf16.msra.mxu0 %v4542
          %4555 = vmatpush.bf16.msra.mxu0 %v4541
          %4556 = vmatmul.bf16.gmra.mxu0 %v4546
          %v4557 = vpop.f32.mrf.mxu0
          %v4558 = vadd.f32 %v4524, %v4557
          %v4559 = vpop.f32.mrf.mxu0
          %4560 = vdwg.mxu0
          %v4561 = vld [vmem:[%s20] sm:$0x1]
          %v4563 = vperm.slane %v4561, 0
          %v4565 = vsub.f32 %v4558, %v4563
          %v4566 = vld [vmem:[%s21] sm:$0x1]
          %v4567 = vadd.f32 %v4566, 1e-05
          %v4568 = vrsqrt.pop %v4567
          %v4569 = vmul.f32 %v4568, %v4567
          %v4570 = vmul.f32 %v4569, %v4568
          %v4571 = vmul.f32 0.5, %v4570
          %v4572 = vsub.f32 1.5, %v4571
          %v4573 = vmul.f32 %v4568, %v4572
          %vm4574 = vweird.f32 %v4567
          %vm4575 = vweird.f32 %v4568
          %vm4576 = vmor %vm4574, %vm4575
          %v4577 = vsel %vm4576, %v4568, %v4573
          %v4579 = vperm.slane %v4577, 0
          %v4581 = vmul.f32 %v4565, %v4579
          %v4582 = vld [vmem:[%s18] sm:$0x1]
          %v4584 = vperm.slane %v4582, 0
          %v4586 = vmul.f32 %v4581, %v4584
          %v4587 = vld [vmem:[%s19] sm:$0x1]
          %v4589 = vperm.slane %v4587, 0
          %v4591 = vadd.f32 %v4586, %v4589
          %v4592 = vpack.c.bf16 %v4591, %v4591
          %v4593 = vld [vmem:[%s22] sm:$0xf]
          %v4594 = vld [vmem:[%s22 + $0x4] sm:$0xf]
          %v4595 = vld [vmem:[%s22 + $0x8] sm:$0xf]
          %v4596 = vld [vmem:[%s22 + $0xc] sm:$0xf]
          %v4597 = vld [vmem:[%s22 + $0x10] sm:$0xf]
          %v4598 = vld [vmem:[%s22 + $0x14] sm:$0xf]
          %v4599 = vld [vmem:[%s22 + $0x18] sm:$0xf]
          %v4600 = vld [vmem:[%s22 + $0x1c] sm:$0xf]
          %v4601 = vld [vmem:[%s23] sm:$0x1]
          %v4603 = vperm.slane %v4601, 0
          %v4613 = vunpack.c.l.b16 %v4593
          %v4614 = vunpack.c.l.b16 %v4594
          %v4615 = vunpack.c.l.b16 %v4595
          %v4616 = vunpack.c.l.b16 %v4596
          %v4617 = vunpack.c.l.b16 %v4597
          %v4618 = vunpack.c.l.b16 %v4598
          %v4619 = vunpack.c.l.b16 %v4599
          %v4620 = vunpack.c.l.b16 %v4600
          %v4621 = vpack.c.b16 %v4614, %v4613
          %v4622 = vpack.c.b16 %v4616, %v4615
          %v4623 = vpack.c.b16 %v4618, %v4617
          %v4624 = vpack.c.b16 %v4620, %v4619
          %vm4629 = vcmask 523264
          %v4631 = vsel %vm4629, %v4592, 0
          %4633 = vmatpush.bf16.msra.mxu0 0
          %4634 = vmatpush.bf16.msra.mxu0 0
          %4635 = vmatpush.bf16.msra.mxu0 0
          %4636 = vmatpush.bf16.msra.mxu0 0
          %4637 = vmatpush.bf16.msra.mxu0 %v4624
          %4638 = vmatpush.bf16.msra.mxu0 %v4623
          %4639 = vmatpush.bf16.msra.mxu0 %v4622
          %4640 = vmatpush.bf16.msra.mxu0 %v4621
          %4641 = vmatmul.bf16.gmra.mxu0 %v4631
          %v4642 = vpop.f32.mrf.mxu0
          %v4643 = vadd.f32 %v4603, %v4642
          %v4644 = vpop.f32.mrf.mxu0
          %4645 = vdwg.mxu0
          %v4647 = vrot.slane %v4643, 1
          %4649 = vst [vmem:[%s907] sm:$0x1] %v4643
          %4650 = vst [vmem:[%s907 + $0x1] sm:$0x1] %v4647
        $region128: #{forward.5} parent=115 // pred_fallthru
          _
        %s4651 = sand.u32 %s632, 1
        %s4652 = scalar_lea.sflag [#allocation5], %s4651
        %s4653 = sand.u32 %s632, 1
        %s4654 = smul.addr %s4653, 2
        %s4655 = scalar_lea.vmem [#allocation4], %s4654
        // Predicated region
        $region129: #{forward.5} parent=115 // pred_check
          %p4656 = pneg %p642
        $region130: #{forward.5} parent=115 // pred_check_branch
          %4658 = sbr.rel (%p4656) target = $region132
        $region131: #{forward.5} parent=115 // pred_region
          %s4659 = smul.u32 2, %s42
          %4661 = vsyncadd %s4652, 0
          %s4662 = scalar_lea.hbm %s24, %s4659
          %s4663 = sshll.u32 %s4655, 4
          %s4664 = int_to_ptr.vmem [resolvable:$true] %s4663
          %s4665 = sshll.u32 %s4662, 4
          %s4666 = int_to_ptr.hbm [resolvable:$true] %s4665
          %4671 = dma.vmem_to_hbm [thread:$0]  %s4664, 32, %s4666, %s4652, 16, 16, 1
        $region132: #{forward.5} parent=115 // pred_fallthru
          _
      $region116: #{forward.5} parent=5 // pred_fallthru
        _
      %p4672 = scmp.le.s32.totalorder 2, %s33
      // Predicated region
      $region133: #{forward.5} parent=5 // pred_check
        %p4673 = pneg %p4672
      $region134: #{forward.5} parent=5 // pred_check_branch
        %4675 = sbr.rel (%p4673) target = $region136
      $region135: #{forward.5} parent=5 // pred_region
        %s4676 = ssub.s32 %s33, 2
        // Predicated region
        $region137: #{forward.5} parent=135 // pred_check
          %p4677 = pneg %p648
        $region138: #{forward.5} parent=135 // pred_check_branch
          %4679 = sbr.rel (%p4677) target = $region140
        $region139: #{forward.5} parent=135 // pred_region
          %s4680 = sand.u32 %s633, 1
          %s4681 = scalar_lea.sflag [#allocation5], %s4680
          %s4682 = sand.u32 %s633, 1
          %s4683 = smul.addr %s4682, 2
          %s4684 = scalar_lea.vmem [#allocation4], %s4683
          %4686 = dma.done %s4681, 32
        $region140: #{forward.5} parent=135 // pred_fallthru
          _
      $region136: #{forward.5} parent=5 // pred_fallthru
        _
    $region6: #{forward.5} parent=1 // loop_footer
      %s37 = sadd.s32 1, %s33
    $region7: #{forward.5} parent=1 // loop_footer_branch
      %32 = sbr.rel target = $region3
    $region8: #{forward.5} parent=1 // loop_exit
      _
    %4687 = vsyncpa [#allocation5], 1
    %s4688 = scalar_lea.sflag [#allocation5], 1
    %4689 = vsyncpa %s4688, 1

</llo_original>
